<compile_context>
chip_gen: v7x
topology: tpu7x:2x2x1
jax: 0.10.0
libtpu: 0.0.40
codegen_flags: <defaults>
</compile_context>

<pallas_src>
import functools
import math

import jax
import jax.numpy as jnp
from jax.experimental import pallas as pl
from jax.experimental.pallas import tpu as pltpu

_SQRT2 = math.sqrt(2.0)
_EPS = 1e-6


# ----------------------------------------------------------------------------
# in-kernel helpers
# ----------------------------------------------------------------------------
def _phi(x):
    # Standard normal CDF 0.5*(1+erf(x/sqrt(2))) using the Abramowitz & Stegun
    # 7.1.26 erf approximation (max abs err ~1.5e-7).  Only exp / mul / add /
    # where / reciprocal, all of which lower on the TPU VPU/EUP.
    z = x * (1.0 / _SQRT2)
    s = jnp.where(z < 0.0, -1.0, 1.0)
    az = jnp.abs(z)
    t = pl.reciprocal(1.0 + 0.3275911 * az, approx=True)   # EUP, off the VALU
    poly = t * (0.254829592 + t * (-0.284496736 + t * (1.421413741
                + t * (-1.453152027 + t * 1.061405429))))
    erf = s * (1.0 - poly * jnp.exp(-az * az))
    return 0.5 * (1.0 + erf)


def _layernorm(x, w, b, eps):
    # x: (N, C); channel LayerNorm (biased variance), matches the torch module.
    mu = jnp.mean(x, axis=-1, keepdims=True)
    d = x - mu
    var = jnp.mean(d * d, axis=-1, keepdims=True)
    return d * jax.lax.rsqrt(var + eps) * w + b


def _dwconv3x3_half(t, w9, b):
    # Depthwise 3x3, padding=1, stride=1, for one C-wide half.
    #   t  : (Bsub, H, W, C) f32
    #   w9 : (9, C) taps, row-major (dy, dx)
    #   b  : (1, C)
    Bsub, H, W, C = t.shape
    f32 = jnp.float32

    # W-axis +/-1 neighbours (zero outside).  These are the only sublane-axis
    # shifts in the kernel (single-element shift each; no wide padded buffer).
    zcol = jnp.zeros((Bsub, H, 1, C), f32)
    left = jnp.concatenate([zcol, t[:, :, :W - 1, :]], axis=2)   # value at w-1
    right = jnp.concatenate([t[:, :, 1:, :], zcol], axis=2)      # value at w+1

    # H-axis handled by cheap outer-axis zero-row pads + aligned windows.
    zrow = jnp.zeros((Bsub, 1, W, C), f32)
    padded = [jnp.concatenate([zrow, v, zrow], axis=1)           # (Bsub, H+2, W, C)
              for v in (left, t, right)]                         # j = 0, 1, 2

    acc = jnp.zeros((Bsub, H, W, C), f32)
    for a in range(3):            # dy = a - 1
        for j in range(3):        # dx = j - 1
            wk = w9[3 * a + j:3 * a + j + 1, :].reshape(1, 1, 1, C)
            acc = acc + padded[j][:, a:a + H, :, :] * wk
    return acc + b.reshape(1, 1, 1, C)


# ----------------------------------------------------------------------------
# kernel
# ----------------------------------------------------------------------------
def nafblock_kernel(x_ref, pool_ref,
                    ln1w_ref, ln1b_ref,
                    w1a_ref, w1b_ref, b1a_ref, b1b_ref,
                    w2a_ref, w2b_ref, b2a_ref, b2b_ref,
                    wsca_ref, bsca_ref, w3_ref, b3_ref,
                    ln2w_ref, ln2b_ref,
                    w4a_ref, w4b_ref, b4a_ref, b4b_ref,
                    w5_ref, b5_ref, beta_ref, gamma_ref,
                    out_ref, *, Bsub, H, W, C, eps):
    f32 = jnp.float32
    bf16 = jnp.bfloat16
    N = Bsub * H * W

    inp = x_ref[...].reshape(N, C).astype(f32)                       # (N, C)

    # ----- attention-like branch -----
    xn = _layernorm(inp, ln1w_ref[...], ln1b_ref[...], eps)
    xnb = xn.astype(bf16)                                            # MXU operands
    ta = jnp.dot(xnb, w1a_ref[...], preferred_element_type=f32) + b1a_ref[...]
    tb = jnp.dot(xnb, w1b_ref[...], preferred_element_type=f32) + b1b_ref[...]

    ta = _dwconv3x3_half(ta.reshape(Bsub, H, W, C), w2a_ref[...], b2a_ref[...])
    tb = _dwconv3x3_half(tb.reshape(Bsub, H, W, C), w2b_ref[...], b2b_ref[...])

    # SimpleGate: x1 * Phi(x2) -- halves were kept separate, no lane slicing.
    g = (ta * _phi(tb)).reshape(N, C)                                # (N, C)

    # SCA: per-image global average pool done on the MXU (pool matrix already
    # carries the 1/(H*W) factor and the per-image block structure).
    pooled = jnp.dot(pool_ref[...], g, preferred_element_type=f32)   # (Bsub, C)
    sca = jnp.dot(pooled.astype(bf16), wsca_ref[...],
                  preferred_element_type=f32) + bsca_ref[...]        # (Bsub, C)
    g = (g.reshape(Bsub, H * W, C) * sca.reshape(Bsub, 1, C)).reshape(N, C)

    t = jnp.dot(g.astype(bf16), w3_ref[...], preferred_element_type=f32) + b3_ref[...]
    # dropout1 is Identity (drop_out_rate = 0.0)
    # TODO(synk): optional scale_l / shift_l modulation (None in the reference
    # forward) is not implemented.
    y = inp + t * beta_ref[...]

    # ----- FFN branch -----
    yn = _layernorm(y, ln2w_ref[...], ln2b_ref[...], eps)
    ynb = yn.astype(bf16)
    fa = jnp.dot(ynb, w4a_ref[...], preferred_element_type=f32) + b4a_ref[...]
    fb = jnp.dot(ynb, w4b_ref[...], preferred_element_type=f32) + b4b_ref[...]
    f = fa * _phi(fb)
    t = jnp.dot(f.astype(bf16), w5_ref[...], preferred_element_type=f32) + b5_ref[...]
    # dropout2 is Identity (drop_out_rate = 0.0)
    out = y + t * gamma_ref[...]

    out_ref[...] = out.reshape(Bsub, H, W, C).astype(out_ref.dtype)


# ----------------------------------------------------------------------------
# wrapper
# ----------------------------------------------------------------------------
def nafblock_forward(x_nhwc, params, *, batch_tile=1):
    B, H, W, C = x_nhwc.shape
    if B % batch_tile != 0:
        raise ValueError("B must be divisible by batch_tile")
    if W % 8 != 0:
        # keeps the (Bsub,H,W,C) <-> (N,C) reshapes layout-preserving
        raise ValueError("W must be a multiple of 8 for this kernel")

    f32, bf16 = jnp.float32, jnp.bfloat16
    p = params
    w1, b1 = p["w1"], p["b1"]
    w2, b2 = p["w2"], p["b2"]
    w4, b4 = p["w4"], p["b4"]

    # split the 2C-wide params into halves; bf16 for MXU weight operands.
    plist = [
        p["ln1_w"].astype(f32), p["ln1_b"].astype(f32),
        w1[:, :C].astype(bf16), w1[:, C:].astype(bf16),
        b1[:, :C].astype(f32), b1[:, C:].astype(f32),
        w2[:, :C].astype(f32), w2[:, C:].astype(f32),
        b2[:, :C].astype(f32), b2[:, C:].astype(f32),
        p["w_sca"].astype(bf16), p["b_sca"].astype(f32),
        p["w3"].astype(bf16), p["b3"].astype(f32),
        p["ln2_w"].astype(f32), p["ln2_b"].astype(f32),
        w4[:, :C].astype(bf16), w4[:, C:].astype(bf16),
        b4[:, :C].astype(f32), b4[:, C:].astype(f32),
        p["w5"].astype(bf16), p["b5"].astype(f32),
        p["beta"].astype(f32), p["gamma"].astype(f32),
    ]

    HW = H * W
    # block-diagonal per-image averaging matrix: (Bsub, Bsub*HW), rows sum to 1.
    pool_mat = jnp.repeat(jnp.eye(batch_tile, dtype=f32), HW, axis=1) / float(HW)

    def full_spec(arr):
        nd = arr.ndim
        return pl.BlockSpec(arr.shape, lambda b, _nd=nd: (0,) * _nd)

    kernel = functools.partial(nafblock_kernel,
                               Bsub=batch_tile, H=H, W=W, C=C, eps=_EPS)

    # scoped-VMEM budget: ~40 live f32 block-sized intermediates (two dwconv
    # halves, LN temps, both branches) + params + double-buffered I/O, clamped
    # to a range that is safe on every generation (v7x physical VMEM = 64 MiB).
    block_bytes = batch_tile * H * W * C * 4
    param_bytes = sum(int(a.size) * a.dtype.itemsize for a in plist) + int(pool_mat.size) * 4
    vmem_bytes = int(min(max(40 * block_bytes + 8 * param_bytes, 16 << 20), 32 << 20))

    return pl.pallas_call(
        kernel,
        out_shape=jax.ShapeDtypeStruct((B, H, W, C), jnp.float32),
        grid_spec=pltpu.PrefetchScalarGridSpec(
            num_scalar_prefetch=0,
            grid=(B // batch_tile,),
            in_specs=[pl.BlockSpec((batch_tile, H, W, C), lambda b: (b, 0, 0, 0)),
                      full_spec(pool_mat)]
                     + [full_spec(a) for a in plist],
            out_specs=pl.BlockSpec((batch_tile, H, W, C), lambda b: (b, 0, 0, 0)),
        ),
        compiler_params=pltpu.CompilerParams(
            dimension_semantics=("parallel",),   # batches independent; v7x 2-TC
            vmem_limit_bytes=vmem_bytes,
        ),
    )(x_nhwc.astype(jnp.float32), pool_mat, *plist)


# ----------------------------------------------------------------------------
# pure-JAX reference (NHWC) for a correctness sanity check
# ----------------------------------------------------------------------------
def nafblock_reference(x_nhwc, params, eps=_EPS):
    def ln(x, w, b):
        mu = jnp.mean(x, -1, keepdims=True)
        var = jnp.mean((x - mu) ** 2, -1, keepdims=True)
        return (x - mu) / jnp.sqrt(var + eps) * w.reshape(-1) + b.reshape(-1)

    def conv1x1(x, w, b):
        return jnp.einsum("bhwi,io->bhwo", x, w) + b.reshape(-1)

    def dwconv3x3(x, w9, b):
        c2 = x.shape[-1]
        rhs = w9.reshape(3, 3, c2)[:, :, None, :]          # (3, 3, 1, C2)
        y = jax.lax.conv_general_dilated(
            x, rhs, window_strides=(1, 1), padding="SAME",
            dimension_numbers=("NHWC", "HWIO", "NHWC"),
            feature_group_count=c2)
        return y + b.reshape(-1)

    def sg(x):
        c2 = x.shape[-1]
        x1, x2 = x[..., :c2 // 2], x[..., c2 // 2:]
        return x1 * (0.5 * (1.0 + jax.lax.erf(x2 / _SQRT2)))

    inp = x_nhwc.astype(jnp.float32)
    x = ln(inp, params["ln1_w"], params["ln1_b"])
    x = conv1x1(x, params["w1"], params["b1"])
    x = dwconv3x3(x, params["w2"], params["b2"])
    x = sg(x)
    pooled = jnp.mean(x, axis=(1, 2), keepdims=True)
    x = x * conv1x1(pooled, params["w_sca"], params["b_sca"])
    x = conv1x1(x, params["w3"], params["b3"])
    y = inp + x * params["beta"].reshape(-1)
    x = conv1x1(ln(y, params["ln2_w"], params["ln2_b"]), params["w4"], params["b4"])
    x = sg(x)
    x = conv1x1(x, params["w5"], params["b5"])
    return y + x * params["gamma"].reshape(-1)


# ----------------------------------------------------------------------------
# params
# ----------------------------------------------------------------------------
def init_params(c, key):
    c2 = 2 * c
    ks = jax.random.split(key, 12)

    def rn(k, shape, scale=0.1):
        return scale * jax.random.normal(k, shape, jnp.float32)

    return {
        "ln1_w": jnp.ones((1, c), jnp.float32),
        "ln1_b": jnp.zeros((1, c), jnp.float32),
        "w1": rn(ks[0], (c, c2)),
        "b1": rn(ks[1], (1, c2), 0.01),
        "w2": rn(ks[2], (9, c2)),        # 3x3 depthwise taps, row-major (dy, dx)
        "b2": rn(ks[3], (1, c2), 0.01),
        "w_sca": rn(ks[4], (c, c)),
        "b_sca": rn(ks[5], (1, c), 0.01),
        "w3": rn(ks[6], (c, c)),
        "b3": rn(ks[7], (1, c), 0.01),
        "ln2_w": jnp.ones((1, c), jnp.float32),
        "ln2_b": jnp.zeros((1, c), jnp.float32),
        "w4": rn(ks[8], (c, c2)),
        "b4": rn(ks[9], (1, c2), 0.01),
        "w5": rn(ks[10], (c, c)),
        "b5": rn(ks[11], (1, c), 0.01),
        # beta/gamma are zero-initialized in torch; use nonzero values here so
        # the whole data path is exercised.
        "beta": jnp.full((1, c), 0.5, jnp.float32),
        "gamma": jnp.full((1, c), 0.25, jnp.float32),
    }


if __name__ == "__main__":
    key = jax.random.PRNGKey(0)
    k_x, k_p = jax.random.split(key)

    B, C, H, W = 2, 4, 16, 16                      # PyTorch NCHW input shape
    x_nchw = jax.random.normal(k_x, (B, C, H, W), jnp.float32)
    x_nhwc = jnp.transpose(x_nchw, (0, 2, 3, 1))   # kernel layout: NHWC

    params = init_params(C, k_p)

    # batch_tile=1 keeps grid=(B,) so v7x can shard the parallel batch axis
    # across its two TensorCores; use batch_tile>=2 for B>=4 small images.
    out_nhwc = nafblock_forward(x_nhwc, params, batch_tile=1)
    out_nchw = jnp.transpose(out_nhwc, (0, 3, 1, 2))
    jax.block_until_ready(out_nchw)

    ref_nhwc = nafblock_reference(x_nhwc, params)
    err = float(jnp.max(jnp.abs(out_nhwc - ref_nhwc)))

    assert out_nchw.shape == (B, C, H, W)
    assert bool(jnp.all(jnp.isfinite(out_nchw)))
    # bf16 MXU operands + approximate erf/reciprocal => loose tolerance vs the
    # full-f32 reference.
    assert err < 5e-2, f"kernel deviates from reference: max abs err = {err}"
    print("KERNEL_OK")
</pallas_src>

<mosaic_0001>
module attributes {stable_mosaic.version = 11 : i64} {
  func.func @nafblock_kernel(%arg0: i32, %arg1: memref<1x16x16x4xf32, #tpu.memory_space<vmem>>, %arg2: memref<1x256xf32, #tpu.memory_space<vmem>>, %arg3: memref<1x4xf32, #tpu.memory_space<vmem>>, %arg4: memref<1x4xf32, #tpu.memory_space<vmem>>, %arg5: memref<4x4xbf16, #tpu.memory_space<vmem>>, %arg6: memref<4x4xbf16, #tpu.memory_space<vmem>>, %arg7: memref<1x4xf32, #tpu.memory_space<vmem>>, %arg8: memref<1x4xf32, #tpu.memory_space<vmem>>, %arg9: memref<9x4xf32, #tpu.memory_space<vmem>>, %arg10: memref<9x4xf32, #tpu.memory_space<vmem>>, %arg11: memref<1x4xf32, #tpu.memory_space<vmem>>, %arg12: memref<1x4xf32, #tpu.memory_space<vmem>>, %arg13: memref<4x4xbf16, #tpu.memory_space<vmem>>, %arg14: memref<1x4xf32, #tpu.memory_space<vmem>>, %arg15: memref<4x4xbf16, #tpu.memory_space<vmem>>, %arg16: memref<1x4xf32, #tpu.memory_space<vmem>>, %arg17: memref<1x4xf32, #tpu.memory_space<vmem>>, %arg18: memref<1x4xf32, #tpu.memory_space<vmem>>, %arg19: memref<4x4xbf16, #tpu.memory_space<vmem>>, %arg20: memref<4x4xbf16, #tpu.memory_space<vmem>>, %arg21: memref<1x4xf32, #tpu.memory_space<vmem>>, %arg22: memref<1x4xf32, #tpu.memory_space<vmem>>, %arg23: memref<4x4xbf16, #tpu.memory_space<vmem>>, %arg24: memref<1x4xf32, #tpu.memory_space<vmem>>, %arg25: memref<1x4xf32, #tpu.memory_space<vmem>>, %arg26: memref<1x4xf32, #tpu.memory_space<vmem>>, %arg27: memref<1x16x16x4xf32, #tpu.memory_space<vmem>>) attributes {dimension_semantics = [#tpu.dimension_semantics<parallel>], iteration_bounds = array<i64: 2>, scalar_prefetch = 0 : i64, scratch_operands = 0 : i64, tpu.core_type = #tpu.core_type<tc>, window_params = [{transform_indices = @transform_0, window_bounds = array<i64: 1, 16, 16, 4>}, {pipeline_mode = #tpu.pipeline_mode<synchronous>, transform_indices = @transform_1, window_bounds = array<i64: 1, 256>}, {pipeline_mode = #tpu.pipeline_mode<synchronous>, transform_indices = @transform_2, window_bounds = array<i64: 1, 4>}, {pipeline_mode = #tpu.pipeline_mode<synchronous>, transform_indices = @transform_3, window_bounds = array<i64: 1, 4>}, {pipeline_mode = #tpu.pipeline_mode<synchronous>, transform_indices = @transform_4, window_bounds = array<i64: 4, 4>}, {pipeline_mode = #tpu.pipeline_mode<synchronous>, transform_indices = @transform_5, window_bounds = array<i64: 4, 4>}, {pipeline_mode = #tpu.pipeline_mode<synchronous>, transform_indices = @transform_6, window_bounds = array<i64: 1, 4>}, {pipeline_mode = #tpu.pipeline_mode<synchronous>, transform_indices = @transform_7, window_bounds = array<i64: 1, 4>}, {pipeline_mode = #tpu.pipeline_mode<synchronous>, transform_indices = @transform_8, window_bounds = array<i64: 9, 4>}, {pipeline_mode = #tpu.pipeline_mode<synchronous>, transform_indices = @transform_9, window_bounds = array<i64: 9, 4>}, {pipeline_mode = #tpu.pipeline_mode<synchronous>, transform_indices = @transform_10, window_bounds = array<i64: 1, 4>}, {pipeline_mode = #tpu.pipeline_mode<synchronous>, transform_indices = @transform_11, window_bounds = array<i64: 1, 4>}, {pipeline_mode = #tpu.pipeline_mode<synchronous>, transform_indices = @transform_12, window_bounds = array<i64: 4, 4>}, {pipeline_mode = #tpu.pipeline_mode<synchronous>, transform_indices = @transform_13, window_bounds = array<i64: 1, 4>}, {pipeline_mode = #tpu.pipeline_mode<synchronous>, transform_indices = @transform_14, window_bounds = array<i64: 4, 4>}, {pipeline_mode = #tpu.pipeline_mode<synchronous>, transform_indices = @transform_15, window_bounds = array<i64: 1, 4>}, {pipeline_mode = #tpu.pipeline_mode<synchronous>, transform_indices = @transform_16, window_bounds = array<i64: 1, 4>}, {pipeline_mode = #tpu.pipeline_mode<synchronous>, transform_indices = @transform_17, window_bounds = array<i64: 1, 4>}, {pipeline_mode = #tpu.pipeline_mode<synchronous>, transform_indices = @transform_18, window_bounds = array<i64: 4, 4>}, {pipeline_mode = #tpu.pipeline_mode<synchronous>, transform_indices = @transform_19, window_bounds = array<i64: 4, 4>}, {pipeline_mode = #tpu.pipeline_mode<synchronous>, transform_indices = @transform_20, window_bounds = array<i64: 1, 4>}, {pipeline_mode = #tpu.pipeline_mode<synchronous>, transform_indices = @transform_21, window_bounds = array<i64: 1, 4>}, {pipeline_mode = #tpu.pipeline_mode<synchronous>, transform_indices = @transform_22, window_bounds = array<i64: 4, 4>}, {pipeline_mode = #tpu.pipeline_mode<synchronous>, transform_indices = @transform_23, window_bounds = array<i64: 1, 4>}, {pipeline_mode = #tpu.pipeline_mode<synchronous>, transform_indices = @transform_24, window_bounds = array<i64: 1, 4>}, {pipeline_mode = #tpu.pipeline_mode<synchronous>, transform_indices = @transform_25, window_bounds = array<i64: 1, 4>}, {transform_indices = @transform_26, window_bounds = array<i64: 1, 16, 16, 4>}]} {
    %c0 = arith.constant 0 : index
    %c0_0 = arith.constant 0 : index
    %c0_1 = arith.constant 0 : index
    %c0_2 = arith.constant 0 : index
    %0 = vector.load %arg1[%c0, %c0_0, %c0_1, %c0_2] : memref<1x16x16x4xf32, #tpu.memory_space<vmem>>, vector<1x16x16x4xf32>
    %1 = vector.shape_cast %0 : vector<1x16x16x4xf32> to vector<256x4xf32>
    %c0_3 = arith.constant 0 : index
    %c0_4 = arith.constant 0 : index
    %2 = vector.load %arg3[%c0_3, %c0_4] : memref<1x4xf32, #tpu.memory_space<vmem>>, vector<1x4xf32>
    %c0_5 = arith.constant 0 : index
    %c0_6 = arith.constant 0 : index
    %3 = vector.load %arg4[%c0_5, %c0_6] : memref<1x4xf32, #tpu.memory_space<vmem>>, vector<1x4xf32>
    %cst = arith.constant dense<0.000000e+00> : vector<256xf32>
    %4 = vector.multi_reduction <add>, %1, %cst [1] : vector<256x4xf32> to vector<256xf32>
    %5 = vector.shape_cast %4 : vector<256xf32> to vector<256x1xf32>
    %cst_7 = arith.constant 4.000000e+00 : f32
    %6 = vector.broadcast %cst_7 : f32 to vector<256x1xf32>
    %7 = arith.divf %5, %6 : vector<256x1xf32>
    %8 = vector.broadcast %7 : vector<256x1xf32> to vector<256x4xf32>
    %9 = arith.subf %1, %8 : vector<256x4xf32>
    %10 = arith.mulf %9, %9 : vector<256x4xf32>
    %cst_8 = arith.constant dense<0.000000e+00> : vector<256xf32>
    %11 = vector.multi_reduction <add>, %10, %cst_8 [1] : vector<256x4xf32> to vector<256xf32>
    %12 = vector.shape_cast %11 : vector<256xf32> to vector<256x1xf32>
    %cst_9 = arith.constant 4.000000e+00 : f32
    %13 = vector.broadcast %cst_9 : f32 to vector<256x1xf32>
    %14 = arith.divf %12, %13 : vector<256x1xf32>
    %cst_10 = arith.constant 9.99999997E-7 : f32
    %15 = vector.broadcast %cst_10 : f32 to vector<256x1xf32>
    %16 = arith.addf %14, %15 : vector<256x1xf32>
    %17 = math.rsqrt %16 : vector<256x1xf32>
    %18 = vector.broadcast %17 : vector<256x1xf32> to vector<256x4xf32>
    %19 = arith.mulf %9, %18 : vector<256x4xf32>
    %20 = vector.broadcast %2 : vector<1x4xf32> to vector<256x4xf32>
    %21 = arith.mulf %19, %20 : vector<256x4xf32>
    %22 = vector.broadcast %3 : vector<1x4xf32> to vector<256x4xf32>
    %23 = arith.addf %21, %22 : vector<256x4xf32>
    %24 = arith.truncf %23 : vector<256x4xf32> to vector<256x4xbf16>
    %c0_11 = arith.constant 0 : index
    %c0_12 = arith.constant 0 : index
    %25 = vector.load %arg5[%c0_11, %c0_12] : memref<4x4xbf16, #tpu.memory_space<vmem>>, vector<4x4xbf16>
    %cst_13 = arith.constant dense<0.000000e+00> : vector<256x4xf32>
    %26 = tpu.matmul %24, %25, %cst_13 {dimension_numbers = #tpu.dot_dimension_numbers<[1], [0], [0], [1], [0, 0, 1, 1], [], []>} : vector<256x4xbf16>, vector<4x4xbf16>, vector<256x4xf32> -> vector<256x4xf32>
    %c0_14 = arith.constant 0 : index
    %c0_15 = arith.constant 0 : index
    %27 = vector.load %arg7[%c0_14, %c0_15] : memref<1x4xf32, #tpu.memory_space<vmem>>, vector<1x4xf32>
    %28 = vector.broadcast %27 : vector<1x4xf32> to vector<256x4xf32>
    %29 = arith.addf %26, %28 : vector<256x4xf32>
    %c0_16 = arith.constant 0 : index
    %c0_17 = arith.constant 0 : index
    %30 = vector.load %arg6[%c0_16, %c0_17] : memref<4x4xbf16, #tpu.memory_space<vmem>>, vector<4x4xbf16>
    %cst_18 = arith.constant dense<0.000000e+00> : vector<256x4xf32>
    %31 = tpu.matmul %24, %30, %cst_18 {dimension_numbers = #tpu.dot_dimension_numbers<[1], [0], [0], [1], [0, 0, 1, 1], [], []>} : vector<256x4xbf16>, vector<4x4xbf16>, vector<256x4xf32> -> vector<256x4xf32>
    %c0_19 = arith.constant 0 : index
    %c0_20 = arith.constant 0 : index
    %32 = vector.load %arg8[%c0_19, %c0_20] : memref<1x4xf32, #tpu.memory_space<vmem>>, vector<1x4xf32>
    %33 = vector.broadcast %32 : vector<1x4xf32> to vector<256x4xf32>
    %34 = arith.addf %31, %33 : vector<256x4xf32>
    %35 = vector.shape_cast %29 : vector<256x4xf32> to vector<1x16x16x4xf32>
    %c0_21 = arith.constant 0 : index
    %c0_22 = arith.constant 0 : index
    %36 = vector.load %arg9[%c0_21, %c0_22] : memref<9x4xf32, #tpu.memory_space<vmem>>, vector<9x4xf32>
    %c0_23 = arith.constant 0 : index
    %c0_24 = arith.constant 0 : index
    %37 = vector.load %arg11[%c0_23, %c0_24] : memref<1x4xf32, #tpu.memory_space<vmem>>, vector<1x4xf32>
    %cst_25 = arith.constant 0.000000e+00 : f32
    %38 = vector.broadcast %cst_25 : f32 to vector<1x16x1x4xf32>
    %39 = vector.extract_strided_slice %35 {offsets = [0, 0, 0, 0], sizes = [1, 16, 15, 4], strides = [1, 1, 1, 1]} : vector<1x16x16x4xf32> to vector<1x16x15x4xf32>
    %40 = tpu.concatenate %38, %39 in 2 : vector<1x16x1x4xf32>, vector<1x16x15x4xf32> -> vector<1x16x16x4xf32>
    %41 = vector.extract_strided_slice %35 {offsets = [0, 0, 1, 0], sizes = [1, 16, 15, 4], strides = [1, 1, 1, 1]} : vector<1x16x16x4xf32> to vector<1x16x15x4xf32>
    %42 = tpu.concatenate %41, %38 in 2 : vector<1x16x15x4xf32>, vector<1x16x1x4xf32> -> vector<1x16x16x4xf32>
    %cst_26 = arith.constant 0.000000e+00 : f32
    %43 = vector.broadcast %cst_26 : f32 to vector<1x1x16x4xf32>
    %44 = tpu.concatenate %43, %40, %43 in 1 : vector<1x1x16x4xf32>, vector<1x16x16x4xf32>, vector<1x1x16x4xf32> -> vector<1x18x16x4xf32>
    %45 = tpu.concatenate %43, %35, %43 in 1 : vector<1x1x16x4xf32>, vector<1x16x16x4xf32>, vector<1x1x16x4xf32> -> vector<1x18x16x4xf32>
    %46 = tpu.concatenate %43, %42, %43 in 1 : vector<1x1x16x4xf32>, vector<1x16x16x4xf32>, vector<1x1x16x4xf32> -> vector<1x18x16x4xf32>
    %cst_27 = arith.constant 0.000000e+00 : f32
    %47 = vector.broadcast %cst_27 : f32 to vector<1x16x16x4xf32>
    %48 = vector.extract_strided_slice %36 {offsets = [0, 0], sizes = [1, 4], strides = [1, 1]} : vector<9x4xf32> to vector<1x4xf32>
    %49 = vector.shape_cast %48 : vector<1x4xf32> to vector<1x1x1x4xf32>
    %50 = vector.extract_strided_slice %44 {offsets = [0, 0, 0, 0], sizes = [1, 16, 16, 4], strides = [1, 1, 1, 1]} : vector<1x18x16x4xf32> to vector<1x16x16x4xf32>
    %51 = vector.broadcast %49 : vector<1x1x1x4xf32> to vector<1x16x16x4xf32>
    %52 = arith.mulf %50, %51 : vector<1x16x16x4xf32>
    %53 = arith.addf %47, %52 : vector<1x16x16x4xf32>
    %54 = vector.extract_strided_slice %36 {offsets = [1, 0], sizes = [1, 4], strides = [1, 1]} : vector<9x4xf32> to vector<1x4xf32>
    %55 = vector.shape_cast %54 : vector<1x4xf32> to vector<1x1x1x4xf32>
    %56 = vector.extract_strided_slice %45 {offsets = [0, 0, 0, 0], sizes = [1, 16, 16, 4], strides = [1, 1, 1, 1]} : vector<1x18x16x4xf32> to vector<1x16x16x4xf32>
    %57 = vector.broadcast %55 : vector<1x1x1x4xf32> to vector<1x16x16x4xf32>
    %58 = arith.mulf %56, %57 : vector<1x16x16x4xf32>
    %59 = arith.addf %53, %58 : vector<1x16x16x4xf32>
    %60 = vector.extract_strided_slice %36 {offsets = [2, 0], sizes = [1, 4], strides = [1, 1]} : vector<9x4xf32> to vector<1x4xf32>
    %61 = vector.shape_cast %60 : vector<1x4xf32> to vector<1x1x1x4xf32>
    %62 = vector.extract_strided_slice %46 {offsets = [0, 0, 0, 0], sizes = [1, 16, 16, 4], strides = [1, 1, 1, 1]} : vector<1x18x16x4xf32> to vector<1x16x16x4xf32>
    %63 = vector.broadcast %61 : vector<1x1x1x4xf32> to vector<1x16x16x4xf32>
    %64 = arith.mulf %62, %63 : vector<1x16x16x4xf32>
    %65 = arith.addf %59, %64 : vector<1x16x16x4xf32>
    %66 = vector.extract_strided_slice %36 {offsets = [3, 0], sizes = [1, 4], strides = [1, 1]} : vector<9x4xf32> to vector<1x4xf32>
    %67 = vector.shape_cast %66 : vector<1x4xf32> to vector<1x1x1x4xf32>
    %68 = vector.extract_strided_slice %44 {offsets = [0, 1, 0, 0], sizes = [1, 16, 16, 4], strides = [1, 1, 1, 1]} : vector<1x18x16x4xf32> to vector<1x16x16x4xf32>
    %69 = vector.broadcast %67 : vector<1x1x1x4xf32> to vector<1x16x16x4xf32>
    %70 = arith.mulf %68, %69 : vector<1x16x16x4xf32>
    %71 = arith.addf %65, %70 : vector<1x16x16x4xf32>
    %72 = vector.extract_strided_slice %36 {offsets = [4, 0], sizes = [1, 4], strides = [1, 1]} : vector<9x4xf32> to vector<1x4xf32>
    %73 = vector.shape_cast %72 : vector<1x4xf32> to vector<1x1x1x4xf32>
    %74 = vector.extract_strided_slice %45 {offsets = [0, 1, 0, 0], sizes = [1, 16, 16, 4], strides = [1, 1, 1, 1]} : vector<1x18x16x4xf32> to vector<1x16x16x4xf32>
    %75 = vector.broadcast %73 : vector<1x1x1x4xf32> to vector<1x16x16x4xf32>
    %76 = arith.mulf %74, %75 : vector<1x16x16x4xf32>
    %77 = arith.addf %71, %76 : vector<1x16x16x4xf32>
    %78 = vector.extract_strided_slice %36 {offsets = [5, 0], sizes = [1, 4], strides = [1, 1]} : vector<9x4xf32> to vector<1x4xf32>
    %79 = vector.shape_cast %78 : vector<1x4xf32> to vector<1x1x1x4xf32>
    %80 = vector.extract_strided_slice %46 {offsets = [0, 1, 0, 0], sizes = [1, 16, 16, 4], strides = [1, 1, 1, 1]} : vector<1x18x16x4xf32> to vector<1x16x16x4xf32>
    %81 = vector.broadcast %79 : vector<1x1x1x4xf32> to vector<1x16x16x4xf32>
    %82 = arith.mulf %80, %81 : vector<1x16x16x4xf32>
    %83 = arith.addf %77, %82 : vector<1x16x16x4xf32>
    %84 = vector.extract_strided_slice %36 {offsets = [6, 0], sizes = [1, 4], strides = [1, 1]} : vector<9x4xf32> to vector<1x4xf32>
    %85 = vector.shape_cast %84 : vector<1x4xf32> to vector<1x1x1x4xf32>
    %86 = vector.extract_strided_slice %44 {offsets = [0, 2, 0, 0], sizes = [1, 16, 16, 4], strides = [1, 1, 1, 1]} : vector<1x18x16x4xf32> to vector<1x16x16x4xf32>
    %87 = vector.broadcast %85 : vector<1x1x1x4xf32> to vector<1x16x16x4xf32>
    %88 = arith.mulf %86, %87 : vector<1x16x16x4xf32>
    %89 = arith.addf %83, %88 : vector<1x16x16x4xf32>
    %90 = vector.extract_strided_slice %36 {offsets = [7, 0], sizes = [1, 4], strides = [1, 1]} : vector<9x4xf32> to vector<1x4xf32>
    %91 = vector.shape_cast %90 : vector<1x4xf32> to vector<1x1x1x4xf32>
    %92 = vector.extract_strided_slice %45 {offsets = [0, 2, 0, 0], sizes = [1, 16, 16, 4], strides = [1, 1, 1, 1]} : vector<1x18x16x4xf32> to vector<1x16x16x4xf32>
    %93 = vector.broadcast %91 : vector<1x1x1x4xf32> to vector<1x16x16x4xf32>
    %94 = arith.mulf %92, %93 : vector<1x16x16x4xf32>
    %95 = arith.addf %89, %94 : vector<1x16x16x4xf32>
    %96 = vector.extract_strided_slice %36 {offsets = [8, 0], sizes = [1, 4], strides = [1, 1]} : vector<9x4xf32> to vector<1x4xf32>
    %97 = vector.shape_cast %96 : vector<1x4xf32> to vector<1x1x1x4xf32>
    %98 = vector.extract_strided_slice %46 {offsets = [0, 2, 0, 0], sizes = [1, 16, 16, 4], strides = [1, 1, 1, 1]} : vector<1x18x16x4xf32> to vector<1x16x16x4xf32>
    %99 = vector.broadcast %97 : vector<1x1x1x4xf32> to vector<1x16x16x4xf32>
    %100 = arith.mulf %98, %99 : vector<1x16x16x4xf32>
    %101 = arith.addf %95, %100 : vector<1x16x16x4xf32>
    %102 = vector.shape_cast %37 : vector<1x4xf32> to vector<1x1x1x4xf32>
    %103 = vector.broadcast %102 : vector<1x1x1x4xf32> to vector<1x16x16x4xf32>
    %104 = arith.addf %101, %103 : vector<1x16x16x4xf32>
    %105 = vector.shape_cast %34 : vector<256x4xf32> to vector<1x16x16x4xf32>
    %c0_28 = arith.constant 0 : index
    %c0_29 = arith.constant 0 : index
    %106 = vector.load %arg10[%c0_28, %c0_29] : memref<9x4xf32, #tpu.memory_space<vmem>>, vector<9x4xf32>
    %c0_30 = arith.constant 0 : index
    %c0_31 = arith.constant 0 : index
    %107 = vector.load %arg12[%c0_30, %c0_31] : memref<1x4xf32, #tpu.memory_space<vmem>>, vector<1x4xf32>
    %cst_32 = arith.constant 0.000000e+00 : f32
    %108 = vector.broadcast %cst_32 : f32 to vector<1x16x1x4xf32>
    %109 = vector.extract_strided_slice %105 {offsets = [0, 0, 0, 0], sizes = [1, 16, 15, 4], strides = [1, 1, 1, 1]} : vector<1x16x16x4xf32> to vector<1x16x15x4xf32>
    %110 = tpu.concatenate %108, %109 in 2 : vector<1x16x1x4xf32>, vector<1x16x15x4xf32> -> vector<1x16x16x4xf32>
    %111 = vector.extract_strided_slice %105 {offsets = [0, 0, 1, 0], sizes = [1, 16, 15, 4], strides = [1, 1, 1, 1]} : vector<1x16x16x4xf32> to vector<1x16x15x4xf32>
    %112 = tpu.concatenate %111, %108 in 2 : vector<1x16x15x4xf32>, vector<1x16x1x4xf32> -> vector<1x16x16x4xf32>
    %cst_33 = arith.constant 0.000000e+00 : f32
    %113 = vector.broadcast %cst_33 : f32 to vector<1x1x16x4xf32>
    %114 = tpu.concatenate %113, %110, %113 in 1 : vector<1x1x16x4xf32>, vector<1x16x16x4xf32>, vector<1x1x16x4xf32> -> vector<1x18x16x4xf32>
    %115 = tpu.concatenate %113, %105, %113 in 1 : vector<1x1x16x4xf32>, vector<1x16x16x4xf32>, vector<1x1x16x4xf32> -> vector<1x18x16x4xf32>
    %116 = tpu.concatenate %113, %112, %113 in 1 : vector<1x1x16x4xf32>, vector<1x16x16x4xf32>, vector<1x1x16x4xf32> -> vector<1x18x16x4xf32>
    %cst_34 = arith.constant 0.000000e+00 : f32
    %117 = vector.broadcast %cst_34 : f32 to vector<1x16x16x4xf32>
    %118 = vector.extract_strided_slice %106 {offsets = [0, 0], sizes = [1, 4], strides = [1, 1]} : vector<9x4xf32> to vector<1x4xf32>
    %119 = vector.shape_cast %118 : vector<1x4xf32> to vector<1x1x1x4xf32>
    %120 = vector.extract_strided_slice %114 {offsets = [0, 0, 0, 0], sizes = [1, 16, 16, 4], strides = [1, 1, 1, 1]} : vector<1x18x16x4xf32> to vector<1x16x16x4xf32>
    %121 = vector.broadcast %119 : vector<1x1x1x4xf32> to vector<1x16x16x4xf32>
    %122 = arith.mulf %120, %121 : vector<1x16x16x4xf32>
    %123 = arith.addf %117, %122 : vector<1x16x16x4xf32>
    %124 = vector.extract_strided_slice %106 {offsets = [1, 0], sizes = [1, 4], strides = [1, 1]} : vector<9x4xf32> to vector<1x4xf32>
    %125 = vector.shape_cast %124 : vector<1x4xf32> to vector<1x1x1x4xf32>
    %126 = vector.extract_strided_slice %115 {offsets = [0, 0, 0, 0], sizes = [1, 16, 16, 4], strides = [1, 1, 1, 1]} : vector<1x18x16x4xf32> to vector<1x16x16x4xf32>
    %127 = vector.broadcast %125 : vector<1x1x1x4xf32> to vector<1x16x16x4xf32>
    %128 = arith.mulf %126, %127 : vector<1x16x16x4xf32>
    %129 = arith.addf %123, %128 : vector<1x16x16x4xf32>
    %130 = vector.extract_strided_slice %106 {offsets = [2, 0], sizes = [1, 4], strides = [1, 1]} : vector<9x4xf32> to vector<1x4xf32>
    %131 = vector.shape_cast %130 : vector<1x4xf32> to vector<1x1x1x4xf32>
    %132 = vector.extract_strided_slice %116 {offsets = [0, 0, 0, 0], sizes = [1, 16, 16, 4], strides = [1, 1, 1, 1]} : vector<1x18x16x4xf32> to vector<1x16x16x4xf32>
    %133 = vector.broadcast %131 : vector<1x1x1x4xf32> to vector<1x16x16x4xf32>
    %134 = arith.mulf %132, %133 : vector<1x16x16x4xf32>
    %135 = arith.addf %129, %134 : vector<1x16x16x4xf32>
    %136 = vector.extract_strided_slice %106 {offsets = [3, 0], sizes = [1, 4], strides = [1, 1]} : vector<9x4xf32> to vector<1x4xf32>
    %137 = vector.shape_cast %136 : vector<1x4xf32> to vector<1x1x1x4xf32>
    %138 = vector.extract_strided_slice %114 {offsets = [0, 1, 0, 0], sizes = [1, 16, 16, 4], strides = [1, 1, 1, 1]} : vector<1x18x16x4xf32> to vector<1x16x16x4xf32>
    %139 = vector.broadcast %137 : vector<1x1x1x4xf32> to vector<1x16x16x4xf32>
    %140 = arith.mulf %138, %139 : vector<1x16x16x4xf32>
    %141 = arith.addf %135, %140 : vector<1x16x16x4xf32>
    %142 = vector.extract_strided_slice %106 {offsets = [4, 0], sizes = [1, 4], strides = [1, 1]} : vector<9x4xf32> to vector<1x4xf32>
    %143 = vector.shape_cast %142 : vector<1x4xf32> to vector<1x1x1x4xf32>
    %144 = vector.extract_strided_slice %115 {offsets = [0, 1, 0, 0], sizes = [1, 16, 16, 4], strides = [1, 1, 1, 1]} : vector<1x18x16x4xf32> to vector<1x16x16x4xf32>
    %145 = vector.broadcast %143 : vector<1x1x1x4xf32> to vector<1x16x16x4xf32>
    %146 = arith.mulf %144, %145 : vector<1x16x16x4xf32>
    %147 = arith.addf %141, %146 : vector<1x16x16x4xf32>
    %148 = vector.extract_strided_slice %106 {offsets = [5, 0], sizes = [1, 4], strides = [1, 1]} : vector<9x4xf32> to vector<1x4xf32>
    %149 = vector.shape_cast %148 : vector<1x4xf32> to vector<1x1x1x4xf32>
    %150 = vector.extract_strided_slice %116 {offsets = [0, 1, 0, 0], sizes = [1, 16, 16, 4], strides = [1, 1, 1, 1]} : vector<1x18x16x4xf32> to vector<1x16x16x4xf32>
    %151 = vector.broadcast %149 : vector<1x1x1x4xf32> to vector<1x16x16x4xf32>
    %152 = arith.mulf %150, %151 : vector<1x16x16x4xf32>
    %153 = arith.addf %147, %152 : vector<1x16x16x4xf32>
    %154 = vector.extract_strided_slice %106 {offsets = [6, 0], sizes = [1, 4], strides = [1, 1]} : vector<9x4xf32> to vector<1x4xf32>
    %155 = vector.shape_cast %154 : vector<1x4xf32> to vector<1x1x1x4xf32>
    %156 = vector.extract_strided_slice %114 {offsets = [0, 2, 0, 0], sizes = [1, 16, 16, 4], strides = [1, 1, 1, 1]} : vector<1x18x16x4xf32> to vector<1x16x16x4xf32>
    %157 = vector.broadcast %155 : vector<1x1x1x4xf32> to vector<1x16x16x4xf32>
    %158 = arith.mulf %156, %157 : vector<1x16x16x4xf32>
    %159 = arith.addf %153, %158 : vector<1x16x16x4xf32>
    %160 = vector.extract_strided_slice %106 {offsets = [7, 0], sizes = [1, 4], strides = [1, 1]} : vector<9x4xf32> to vector<1x4xf32>
    %161 = vector.shape_cast %160 : vector<1x4xf32> to vector<1x1x1x4xf32>
    %162 = vector.extract_strided_slice %115 {offsets = [0, 2, 0, 0], sizes = [1, 16, 16, 4], strides = [1, 1, 1, 1]} : vector<1x18x16x4xf32> to vector<1x16x16x4xf32>
    %163 = vector.broadcast %161 : vector<1x1x1x4xf32> to vector<1x16x16x4xf32>
    %164 = arith.mulf %162, %163 : vector<1x16x16x4xf32>
    %165 = arith.addf %159, %164 : vector<1x16x16x4xf32>
    %166 = vector.extract_strided_slice %106 {offsets = [8, 0], sizes = [1, 4], strides = [1, 1]} : vector<9x4xf32> to vector<1x4xf32>
    %167 = vector.shape_cast %166 : vector<1x4xf32> to vector<1x1x1x4xf32>
    %168 = vector.extract_strided_slice %116 {offsets = [0, 2, 0, 0], sizes = [1, 16, 16, 4], strides = [1, 1, 1, 1]} : vector<1x18x16x4xf32> to vector<1x16x16x4xf32>
    %169 = vector.broadcast %167 : vector<1x1x1x4xf32> to vector<1x16x16x4xf32>
    %170 = arith.mulf %168, %169 : vector<1x16x16x4xf32>
    %171 = arith.addf %165, %170 : vector<1x16x16x4xf32>
    %172 = vector.shape_cast %107 : vector<1x4xf32> to vector<1x1x1x4xf32>
    %173 = vector.broadcast %172 : vector<1x1x1x4xf32> to vector<1x16x16x4xf32>
    %174 = arith.addf %171, %173 : vector<1x16x16x4xf32>
    %cst_35 = arith.constant 0.707106769 : f32
    %175 = vector.broadcast %cst_35 : f32 to vector<1x16x16x4xf32>
    %176 = arith.mulf %174, %175 : vector<1x16x16x4xf32>
    %cst_36 = arith.constant 0.000000e+00 : f32
    %177 = vector.broadcast %cst_36 : f32 to vector<1x16x16x4xf32>
    %178 = arith.cmpf olt, %176, %177 : vector<1x16x16x4xf32>
    %cst_37 = arith.constant -1.000000e+00 : f32
    %cst_38 = arith.constant 1.000000e+00 : f32
    %179 = vector.broadcast %cst_37 : f32 to vector<1x16x16x4xf32>
    %180 = vector.broadcast %cst_38 : f32 to vector<1x16x16x4xf32>
    %181 = arith.select %178, %179, %180 : vector<1x16x16x4xi1>, vector<1x16x16x4xf32>
    %182 = math.absf %176 : vector<1x16x16x4xf32>
    %cst_39 = arith.constant 0.327591091 : f32
    %183 = vector.broadcast %cst_39 : f32 to vector<1x16x16x4xf32>
    %184 = arith.mulf %183, %182 : vector<1x16x16x4xf32>
    %cst_40 = arith.constant 1.000000e+00 : f32
    %185 = vector.broadcast %cst_40 : f32 to vector<1x16x16x4xf32>
    %186 = arith.addf %185, %184 : vector<1x16x16x4xf32>
    %187 = tpu.reciprocal %186 {approx = true} : vector<1x16x16x4xf32> -> vector<1x16x16x4xf32>
    %cst_41 = arith.constant 1.06140542 : f32
    %188 = vector.broadcast %cst_41 : f32 to vector<1x16x16x4xf32>
    %189 = arith.mulf %187, %188 : vector<1x16x16x4xf32>
    %cst_42 = arith.constant -1.45315206 : f32
    %190 = vector.broadcast %cst_42 : f32 to vector<1x16x16x4xf32>
    %191 = arith.addf %190, %189 : vector<1x16x16x4xf32>
    %192 = arith.mulf %187, %191 : vector<1x16x16x4xf32>
    %cst_43 = arith.constant 1.42141378 : f32
    %193 = vector.broadcast %cst_43 : f32 to vector<1x16x16x4xf32>
    %194 = arith.addf %193, %192 : vector<1x16x16x4xf32>
    %195 = arith.mulf %187, %194 : vector<1x16x16x4xf32>
    %cst_44 = arith.constant -0.284496725 : f32
    %196 = vector.broadcast %cst_44 : f32 to vector<1x16x16x4xf32>
    %197 = arith.addf %196, %195 : vector<1x16x16x4xf32>
    %198 = arith.mulf %187, %197 : vector<1x16x16x4xf32>
    %cst_45 = arith.constant 0.254829586 : f32
    %199 = vector.broadcast %cst_45 : f32 to vector<1x16x16x4xf32>
    %200 = arith.addf %199, %198 : vector<1x16x16x4xf32>
    %201 = arith.mulf %187, %200 : vector<1x16x16x4xf32>
    %cst_46 = arith.constant 0.000000e+00 : f32
    %202 = vector.broadcast %cst_46 : f32 to vector<1x16x16x4xf32>
    %203 = arith.subf %202, %182 : vector<1x16x16x4xf32>
    %204 = arith.mulf %203, %182 : vector<1x16x16x4xf32>
    %205 = math.exp %204 : vector<1x16x16x4xf32>
    %206 = arith.mulf %201, %205 : vector<1x16x16x4xf32>
    %cst_47 = arith.constant 1.000000e+00 : f32
    %207 = vector.broadcast %cst_47 : f32 to vector<1x16x16x4xf32>
    %208 = arith.subf %207, %206 : vector<1x16x16x4xf32>
    %209 = arith.mulf %181, %208 : vector<1x16x16x4xf32>
    %cst_48 = arith.constant 1.000000e+00 : f32
    %210 = vector.broadcast %cst_48 : f32 to vector<1x16x16x4xf32>
    %211 = arith.addf %210, %209 : vector<1x16x16x4xf32>
    %cst_49 = arith.constant 5.000000e-01 : f32
    %212 = vector.broadcast %cst_49 : f32 to vector<1x16x16x4xf32>
    %213 = arith.mulf %212, %211 : vector<1x16x16x4xf32>
    %214 = arith.mulf %104, %213 : vector<1x16x16x4xf32>
    %215 = vector.shape_cast %214 : vector<1x16x16x4xf32> to vector<256x4xf32>
    %c0_50 = arith.constant 0 : index
    %c0_51 = arith.constant 0 : index
    %216 = vector.load %arg2[%c0_50, %c0_51] : memref<1x256xf32, #tpu.memory_space<vmem>>, vector<1x256xf32>
    %cst_52 = arith.constant dense<0.000000e+00> : vector<1x4xf32>
    %217 = tpu.matmul %216, %215, %cst_52 {dimension_numbers = #tpu.dot_dimension_numbers<[1], [0], [0], [1], [0, 0, 1, 1], [], []>} : vector<1x256xf32>, vector<256x4xf32>, vector<1x4xf32> -> vector<1x4xf32>
    %218 = arith.truncf %217 : vector<1x4xf32> to vector<1x4xbf16>
    %c0_53 = arith.constant 0 : index
    %c0_54 = arith.constant 0 : index
    %219 = vector.load %arg13[%c0_53, %c0_54] : memref<4x4xbf16, #tpu.memory_space<vmem>>, vector<4x4xbf16>
    %cst_55 = arith.constant dense<0.000000e+00> : vector<1x4xf32>
    %220 = tpu.matmul %218, %219, %cst_55 {dimension_numbers = #tpu.dot_dimension_numbers<[1], [0], [0], [1], [0, 0, 1, 1], [], []>} : vector<1x4xbf16>, vector<4x4xbf16>, vector<1x4xf32> -> vector<1x4xf32>
    %c0_56 = arith.constant 0 : index
    %c0_57 = arith.constant 0 : index
    %221 = vector.load %arg14[%c0_56, %c0_57] : memref<1x4xf32, #tpu.memory_space<vmem>>, vector<1x4xf32>
    %222 = arith.addf %220, %221 : vector<1x4xf32>
    %223 = vector.shape_cast %215 : vector<256x4xf32> to vector<1x256x4xf32>
    %224 = vector.shape_cast %222 : vector<1x4xf32> to vector<1x1x4xf32>
    %225 = vector.broadcast %224 : vector<1x1x4xf32> to vector<1x256x4xf32>
    %226 = arith.mulf %223, %225 : vector<1x256x4xf32>
    %227 = vector.shape_cast %226 : vector<1x256x4xf32> to vector<256x4xf32>
    %228 = arith.truncf %227 : vector<256x4xf32> to vector<256x4xbf16>
    %c0_58 = arith.constant 0 : index
    %c0_59 = arith.constant 0 : index
    %229 = vector.load %arg15[%c0_58, %c0_59] : memref<4x4xbf16, #tpu.memory_space<vmem>>, vector<4x4xbf16>
    %cst_60 = arith.constant dense<0.000000e+00> : vector<256x4xf32>
    %230 = tpu.matmul %228, %229, %cst_60 {dimension_numbers = #tpu.dot_dimension_numbers<[1], [0], [0], [1], [0, 0, 1, 1], [], []>} : vector<256x4xbf16>, vector<4x4xbf16>, vector<256x4xf32> -> vector<256x4xf32>
    %c0_61 = arith.constant 0 : index
    %c0_62 = arith.constant 0 : index
    %231 = vector.load %arg16[%c0_61, %c0_62] : memref<1x4xf32, #tpu.memory_space<vmem>>, vector<1x4xf32>
    %232 = vector.broadcast %231 : vector<1x4xf32> to vector<256x4xf32>
    %233 = arith.addf %230, %232 : vector<256x4xf32>
    %c0_63 = arith.constant 0 : index
    %c0_64 = arith.constant 0 : index
    %234 = vector.load %arg25[%c0_63, %c0_64] : memref<1x4xf32, #tpu.memory_space<vmem>>, vector<1x4xf32>
    %235 = vector.broadcast %234 : vector<1x4xf32> to vector<256x4xf32>
    %236 = arith.mulf %233, %235 : vector<256x4xf32>
    %237 = arith.addf %1, %236 : vector<256x4xf32>
    %c0_65 = arith.constant 0 : index
    %c0_66 = arith.constant 0 : index
    %238 = vector.load %arg17[%c0_65, %c0_66] : memref<1x4xf32, #tpu.memory_space<vmem>>, vector<1x4xf32>
    %c0_67 = arith.constant 0 : index
    %c0_68 = arith.constant 0 : index
    %239 = vector.load %arg18[%c0_67, %c0_68] : memref<1x4xf32, #tpu.memory_space<vmem>>, vector<1x4xf32>
    %cst_69 = arith.constant dense<0.000000e+00> : vector<256xf32>
    %240 = vector.multi_reduction <add>, %237, %cst_69 [1] : vector<256x4xf32> to vector<256xf32>
    %241 = vector.shape_cast %240 : vector<256xf32> to vector<256x1xf32>
    %cst_70 = arith.constant 4.000000e+00 : f32
    %242 = vector.broadcast %cst_70 : f32 to vector<256x1xf32>
    %243 = arith.divf %241, %242 : vector<256x1xf32>
    %244 = vector.broadcast %243 : vector<256x1xf32> to vector<256x4xf32>
    %245 = arith.subf %237, %244 : vector<256x4xf32>
    %246 = arith.mulf %245, %245 : vector<256x4xf32>
    %cst_71 = arith.constant dense<0.000000e+00> : vector<256xf32>
    %247 = vector.multi_reduction <add>, %246, %cst_71 [1] : vector<256x4xf32> to vector<256xf32>
    %248 = vector.shape_cast %247 : vector<256xf32> to vector<256x1xf32>
    %cst_72 = arith.constant 4.000000e+00 : f32
    %249 = vector.broadcast %cst_72 : f32 to vector<256x1xf32>
    %250 = arith.divf %248, %249 : vector<256x1xf32>
    %cst_73 = arith.constant 9.99999997E-7 : f32
    %251 = vector.broadcast %cst_73 : f32 to vector<256x1xf32>
    %252 = arith.addf %250, %251 : vector<256x1xf32>
    %253 = math.rsqrt %252 : vector<256x1xf32>
    %254 = vector.broadcast %253 : vector<256x1xf32> to vector<256x4xf32>
    %255 = arith.mulf %245, %254 : vector<256x4xf32>
    %256 = vector.broadcast %238 : vector<1x4xf32> to vector<256x4xf32>
    %257 = arith.mulf %255, %256 : vector<256x4xf32>
    %258 = vector.broadcast %239 : vector<1x4xf32> to vector<256x4xf32>
    %259 = arith.addf %257, %258 : vector<256x4xf32>
    %260 = arith.truncf %259 : vector<256x4xf32> to vector<256x4xbf16>
    %c0_74 = arith.constant 0 : index
    %c0_75 = arith.constant 0 : index
    %261 = vector.load %arg19[%c0_74, %c0_75] : memref<4x4xbf16, #tpu.memory_space<vmem>>, vector<4x4xbf16>
    %cst_76 = arith.constant dense<0.000000e+00> : vector<256x4xf32>
    %262 = tpu.matmul %260, %261, %cst_76 {dimension_numbers = #tpu.dot_dimension_numbers<[1], [0], [0], [1], [0, 0, 1, 1], [], []>} : vector<256x4xbf16>, vector<4x4xbf16>, vector<256x4xf32> -> vector<256x4xf32>
    %c0_77 = arith.constant 0 : index
    %c0_78 = arith.constant 0 : index
    %263 = vector.load %arg21[%c0_77, %c0_78] : memref<1x4xf32, #tpu.memory_space<vmem>>, vector<1x4xf32>
    %264 = vector.broadcast %263 : vector<1x4xf32> to vector<256x4xf32>
    %265 = arith.addf %262, %264 : vector<256x4xf32>
    %c0_79 = arith.constant 0 : index
    %c0_80 = arith.constant 0 : index
    %266 = vector.load %arg20[%c0_79, %c0_80] : memref<4x4xbf16, #tpu.memory_space<vmem>>, vector<4x4xbf16>
    %cst_81 = arith.constant dense<0.000000e+00> : vector<256x4xf32>
    %267 = tpu.matmul %260, %266, %cst_81 {dimension_numbers = #tpu.dot_dimension_numbers<[1], [0], [0], [1], [0, 0, 1, 1], [], []>} : vector<256x4xbf16>, vector<4x4xbf16>, vector<256x4xf32> -> vector<256x4xf32>
    %c0_82 = arith.constant 0 : index
    %c0_83 = arith.constant 0 : index
    %268 = vector.load %arg22[%c0_82, %c0_83] : memref<1x4xf32, #tpu.memory_space<vmem>>, vector<1x4xf32>
    %269 = vector.broadcast %268 : vector<1x4xf32> to vector<256x4xf32>
    %270 = arith.addf %267, %269 : vector<256x4xf32>
    %cst_84 = arith.constant 0.707106769 : f32
    %271 = vector.broadcast %cst_84 : f32 to vector<256x4xf32>
    %272 = arith.mulf %270, %271 : vector<256x4xf32>
    %cst_85 = arith.constant 0.000000e+00 : f32
    %273 = vector.broadcast %cst_85 : f32 to vector<256x4xf32>
    %274 = arith.cmpf olt, %272, %273 : vector<256x4xf32>
    %cst_86 = arith.constant -1.000000e+00 : f32
    %cst_87 = arith.constant 1.000000e+00 : f32
    %275 = vector.broadcast %cst_86 : f32 to vector<256x4xf32>
    %276 = vector.broadcast %cst_87 : f32 to vector<256x4xf32>
    %277 = arith.select %274, %275, %276 : vector<256x4xi1>, vector<256x4xf32>
    %278 = math.absf %272 : vector<256x4xf32>
    %cst_88 = arith.constant 0.327591091 : f32
    %279 = vector.broadcast %cst_88 : f32 to vector<256x4xf32>
    %280 = arith.mulf %279, %278 : vector<256x4xf32>
    %cst_89 = arith.constant 1.000000e+00 : f32
    %281 = vector.broadcast %cst_89 : f32 to vector<256x4xf32>
    %282 = arith.addf %281, %280 : vector<256x4xf32>
    %283 = tpu.reciprocal %282 {approx = true} : vector<256x4xf32> -> vector<256x4xf32>
    %cst_90 = arith.constant 1.06140542 : f32
    %284 = vector.broadcast %cst_90 : f32 to vector<256x4xf32>
    %285 = arith.mulf %283, %284 : vector<256x4xf32>
    %cst_91 = arith.constant -1.45315206 : f32
    %286 = vector.broadcast %cst_91 : f32 to vector<256x4xf32>
    %287 = arith.addf %286, %285 : vector<256x4xf32>
    %288 = arith.mulf %283, %287 : vector<256x4xf32>
    %cst_92 = arith.constant 1.42141378 : f32
    %289 = vector.broadcast %cst_92 : f32 to vector<256x4xf32>
    %290 = arith.addf %289, %288 : vector<256x4xf32>
    %291 = arith.mulf %283, %290 : vector<256x4xf32>
    %cst_93 = arith.constant -0.284496725 : f32
    %292 = vector.broadcast %cst_93 : f32 to vector<256x4xf32>
    %293 = arith.addf %292, %291 : vector<256x4xf32>
    %294 = arith.mulf %283, %293 : vector<256x4xf32>
    %cst_94 = arith.constant 0.254829586 : f32
    %295 = vector.broadcast %cst_94 : f32 to vector<256x4xf32>
    %296 = arith.addf %295, %294 : vector<256x4xf32>
    %297 = arith.mulf %283, %296 : vector<256x4xf32>
    %cst_95 = arith.constant 0.000000e+00 : f32
    %298 = vector.broadcast %cst_95 : f32 to vector<256x4xf32>
    %299 = arith.subf %298, %278 : vector<256x4xf32>
    %300 = arith.mulf %299, %278 : vector<256x4xf32>
    %301 = math.exp %300 : vector<256x4xf32>
    %302 = arith.mulf %297, %301 : vector<256x4xf32>
    %cst_96 = arith.constant 1.000000e+00 : f32
    %303 = vector.broadcast %cst_96 : f32 to vector<256x4xf32>
    %304 = arith.subf %303, %302 : vector<256x4xf32>
    %305 = arith.mulf %277, %304 : vector<256x4xf32>
    %cst_97 = arith.constant 1.000000e+00 : f32
    %306 = vector.broadcast %cst_97 : f32 to vector<256x4xf32>
    %307 = arith.addf %306, %305 : vector<256x4xf32>
    %cst_98 = arith.constant 5.000000e-01 : f32
    %308 = vector.broadcast %cst_98 : f32 to vector<256x4xf32>
    %309 = arith.mulf %308, %307 : vector<256x4xf32>
    %310 = arith.mulf %265, %309 : vector<256x4xf32>
    %311 = arith.truncf %310 : vector<256x4xf32> to vector<256x4xbf16>
    %c0_99 = arith.constant 0 : index
    %c0_100 = arith.constant 0 : index
    %312 = vector.load %arg23[%c0_99, %c0_100] : memref<4x4xbf16, #tpu.memory_space<vmem>>, vector<4x4xbf16>
    %cst_101 = arith.constant dense<0.000000e+00> : vector<256x4xf32>
    %313 = tpu.matmul %311, %312, %cst_101 {dimension_numbers = #tpu.dot_dimension_numbers<[1], [0], [0], [1], [0, 0, 1, 1], [], []>} : vector<256x4xbf16>, vector<4x4xbf16>, vector<256x4xf32> -> vector<256x4xf32>
    %c0_102 = arith.constant 0 : index
    %c0_103 = arith.constant 0 : index
    %314 = vector.load %arg24[%c0_102, %c0_103] : memref<1x4xf32, #tpu.memory_space<vmem>>, vector<1x4xf32>
    %315 = vector.broadcast %314 : vector<1x4xf32> to vector<256x4xf32>
    %316 = arith.addf %313, %315 : vector<256x4xf32>
    %c0_104 = arith.constant 0 : index
    %c0_105 = arith.constant 0 : index
    %317 = vector.load %arg26[%c0_104, %c0_105] : memref<1x4xf32, #tpu.memory_space<vmem>>, vector<1x4xf32>
    %318 = vector.broadcast %317 : vector<1x4xf32> to vector<256x4xf32>
    %319 = arith.mulf %316, %318 : vector<256x4xf32>
    %320 = arith.addf %237, %319 : vector<256x4xf32>
    %321 = vector.shape_cast %320 : vector<256x4xf32> to vector<1x16x16x4xf32>
    %c0_106 = arith.constant 0 : index
    %c0_107 = arith.constant 0 : index
    %c0_108 = arith.constant 0 : index
    %c0_109 = arith.constant 0 : index
    %322 = vector.load %arg27[%c0_106, %c0_107, %c0_108, %c0_109] : memref<1x16x16x4xf32, #tpu.memory_space<vmem>>, vector<1x16x16x4xf32>
    tpu.vector_store %arg27[%c0_106, %c0_107, %c0_108, %c0_109], %321 {strides = array<i32>} : memref<1x16x16x4xf32, #tpu.memory_space<vmem>>, vector<1x16x16x4xf32>,
    return
  }
  func.func @transform_0(%arg0: i32) -> (i32, i32, i32, i32) {
    %c0_i32 = arith.constant 0 : i32
    %c0_i32_0 = arith.constant 0 : i32
    %c0_i32_1 = arith.constant 0 : i32
    %c0_i32_2 = arith.constant 0 : i32
    return %arg0, %c0_i32, %c0_i32_0, %c0_i32_1 : i32, i32, i32, i32
  }
  func.func @transform_1(%arg0: i32) -> (i32, i32) {
    %c0_i32 = arith.constant 0 : i32
    %c0_i32_0 = arith.constant 0 : i32
    %c0_i32_1 = arith.constant 0 : i32
    return %c0_i32, %c0_i32_0 : i32, i32
  }
  func.func @transform_2(%arg0: i32) -> (i32, i32) {
    %c0_i32 = arith.constant 0 : i32
    %c0_i32_0 = arith.constant 0 : i32
    %c0_i32_1 = arith.constant 0 : i32
    return %c0_i32, %c0_i32_0 : i32, i32
  }
  func.func @transform_3(%arg0: i32) -> (i32, i32) {
    %c0_i32 = arith.constant 0 : i32
    %c0_i32_0 = arith.constant 0 : i32
    %c0_i32_1 = arith.constant 0 : i32
    return %c0_i32, %c0_i32_0 : i32, i32
  }
  func.func @transform_4(%arg0: i32) -> (i32, i32) {
    %c0_i32 = arith.constant 0 : i32
    %c0_i32_0 = arith.constant 0 : i32
    %c0_i32_1 = arith.constant 0 : i32
    return %c0_i32, %c0_i32_0 : i32, i32
  }
  func.func @transform_5(%arg0: i32) -> (i32, i32) {
    %c0_i32 = arith.constant 0 : i32
    %c0_i32_0 = arith.constant 0 : i32
    %c0_i32_1 = arith.constant 0 : i32
    return %c0_i32, %c0_i32_0 : i32, i32
  }
  func.func @transform_6(%arg0: i32) -> (i32, i32) {
    %c0_i32 = arith.constant 0 : i32
    %c0_i32_0 = arith.constant 0 : i32
    %c0_i32_1 = arith.constant 0 : i32
    return %c0_i32, %c0_i32_0 : i32, i32
  }
  func.func @transform_7(%arg0: i32) -> (i32, i32) {
    %c0_i32 = arith.constant 0 : i32
    %c0_i32_0 = arith.constant 0 : i32
    %c0_i32_1 = arith.constant 0 : i32
    return %c0_i32, %c0_i32_0 : i32, i32
  }
  func.func @transform_8(%arg0: i32) -> (i32, i32) {
    %c0_i32 = arith.constant 0 : i32
    %c0_i32_0 = arith.constant 0 : i32
    %c0_i32_1 = arith.constant 0 : i32
    return %c0_i32, %c0_i32_0 : i32, i32
  }
  func.func @transform_9(%arg0: i32) -> (i32, i32) {
    %c0_i32 = arith.constant 0 : i32
    %c0_i32_0 = arith.constant 0 : i32
    %c0_i32_1 = arith.constant 0 : i32
    return %c0_i32, %c0_i32_0 : i32, i32
  }
  func.func @transform_10(%arg0: i32) -> (i32, i32) {
    %c0_i32 = arith.constant 0 : i32
    %c0_i32_0 = arith.constant 0 : i32
    %c0_i32_1 = arith.constant 0 : i32
    return %c0_i32, %c0_i32_0 : i32, i32
  }
  func.func @transform_11(%arg0: i32) -> (i32, i32) {
    %c0_i32 = arith.constant 0 : i32
    %c0_i32_0 = arith.constant 0 : i32
    %c0_i32_1 = arith.constant 0 : i32
    return %c0_i32, %c0_i32_0 : i32, i32
  }
  func.func @transform_12(%arg0: i32) -> (i32, i32) {
    %c0_i32 = arith.constant 0 : i32
    %c0_i32_0 = arith.constant 0 : i32
    %c0_i32_1 = arith.constant 0 : i32
    return %c0_i32, %c0_i32_0 : i32, i32
  }
  func.func @transform_13(%arg0: i32) -> (i32, i32) {
    %c0_i32 = arith.constant 0 : i32
    %c0_i32_0 = arith.constant 0 : i32
    %c0_i32_1 = arith.constant 0 : i32
    return %c0_i32, %c0_i32_0 : i32, i32
  }
  func.func @transform_14(%arg0: i32) -> (i32, i32) {
    %c0_i32 = arith.constant 0 : i32
    %c0_i32_0 = arith.constant 0 : i32
    %c0_i32_1 = arith.constant 0 : i32
    return %c0_i32, %c0_i32_0 : i32, i32
  }
  func.func @transform_15(%arg0: i32) -> (i32, i32) {
    %c0_i32 = arith.constant 0 : i32
    %c0_i32_0 = arith.constant 0 : i32
    %c0_i32_1 = arith.constant 0 : i32
    return %c0_i32, %c0_i32_0 : i32, i32
  }
  func.func @transform_16(%arg0: i32) -> (i32, i32) {
    %c0_i32 = arith.constant 0 : i32
    %c0_i32_0 = arith.constant 0 : i32
    %c0_i32_1 = arith.constant 0 : i32
    return %c0_i32, %c0_i32_0 : i32, i32
  }
  func.func @transform_17(%arg0: i32) -> (i32, i32) {
    %c0_i32 = arith.constant 0 : i32
    %c0_i32_0 = arith.constant 0 : i32
    %c0_i32_1 = arith.constant 0 : i32
    return %c0_i32, %c0_i32_0 : i32, i32
  }
  func.func @transform_18(%arg0: i32) -> (i32, i32) {
    %c0_i32 = arith.constant 0 : i32
    %c0_i32_0 = arith.constant 0 : i32
    %c0_i32_1 = arith.constant 0 : i32
    return %c0_i32, %c0_i32_0 : i32, i32
  }
  func.func @transform_19(%arg0: i32) -> (i32, i32) {
    %c0_i32 = arith.constant 0 : i32
    %c0_i32_0 = arith.constant 0 : i32
    %c0_i32_1 = arith.constant 0 : i32
    return %c0_i32, %c0_i32_0 : i32, i32
  }
  func.func @transform_20(%arg0: i32) -> (i32, i32) {
    %c0_i32 = arith.constant 0 : i32
    %c0_i32_0 = arith.constant 0 : i32
    %c0_i32_1 = arith.constant 0 : i32
    return %c0_i32, %c0_i32_0 : i32, i32
  }
  func.func @transform_21(%arg0: i32) -> (i32, i32) {
    %c0_i32 = arith.constant 0 : i32
    %c0_i32_0 = arith.constant 0 : i32
    %c0_i32_1 = arith.constant 0 : i32
    return %c0_i32, %c0_i32_0 : i32, i32
  }
  func.func @transform_22(%arg0: i32) -> (i32, i32) {
    %c0_i32 = arith.constant 0 : i32
    %c0_i32_0 = arith.constant 0 : i32
    %c0_i32_1 = arith.constant 0 : i32
    return %c0_i32, %c0_i32_0 : i32, i32
  }
  func.func @transform_23(%arg0: i32) -> (i32, i32) {
    %c0_i32 = arith.constant 0 : i32
    %c0_i32_0 = arith.constant 0 : i32
    %c0_i32_1 = arith.constant 0 : i32
    return %c0_i32, %c0_i32_0 : i32, i32
  }
  func.func @transform_24(%arg0: i32) -> (i32, i32) {
    %c0_i32 = arith.constant 0 : i32
    %c0_i32_0 = arith.constant 0 : i32
    %c0_i32_1 = arith.constant 0 : i32
    return %c0_i32, %c0_i32_0 : i32, i32
  }
  func.func @transform_25(%arg0: i32) -> (i32, i32) {
    %c0_i32 = arith.constant 0 : i32
    %c0_i32_0 = arith.constant 0 : i32
    %c0_i32_1 = arith.constant 0 : i32
    return %c0_i32, %c0_i32_0 : i32, i32
  }
  func.func @transform_26(%arg0: i32) -> (i32, i32, i32, i32) {
    %c0_i32 = arith.constant 0 : i32
    %c0_i32_0 = arith.constant 0 : i32
    %c0_i32_1 = arith.constant 0 : i32
    %c0_i32_2 = arith.constant 0 : i32
    return %arg0, %c0_i32, %c0_i32_0, %c0_i32_1 : i32, i32, i32, i32
  }
}

</mosaic_0001>

<llo_original>
// kernel: tpu_custom_call.1
$region0: #{tpu_custom_call.1}
  #allocation0 [shape = 'u32[]', space=smem, size = 0x4, offset = 0x4, fixed_abs, tag = 'smem constant byte address 0x4 - core index']
  #allocation1 [shape = 'u32[144,128]{1,0:T(1,128)}', space=vmem, size = 0x12000, scoped, tag = 'internal scratch']
  %s0 = inlined_call_operand.vmem [shape: f32[2,16,16,4], index: 0, kind: input, shape index: {}]
  %s1 = inlined_call_operand.vmem [shape: f32[1,256], index: 1, kind: input, shape index: {}]
  %s2 = inlined_call_operand.vmem [shape: f32[1,4], index: 2, kind: input, shape index: {}]
  %s3 = inlined_call_operand.vmem [shape: f32[1,4], index: 3, kind: input, shape index: {}]
  %s4 = inlined_call_operand.vmem [shape: bf16[4,4], index: 4, kind: input, shape index: {}]
  %s5 = inlined_call_operand.vmem [shape: bf16[4,4], index: 5, kind: input, shape index: {}]
  %s6 = inlined_call_operand.vmem [shape: f32[1,4], index: 6, kind: input, shape index: {}]
  %s7 = inlined_call_operand.vmem [shape: f32[1,4], index: 7, kind: input, shape index: {}]
  %s8 = inlined_call_operand.vmem [shape: f32[9,4], index: 8, kind: input, shape index: {}]
  %s9 = inlined_call_operand.vmem [shape: f32[9,4], index: 9, kind: input, shape index: {}]
  %s10 = inlined_call_operand.vmem [shape: f32[1,4], index: 10, kind: input, shape index: {}]
  %s11 = inlined_call_operand.vmem [shape: f32[1,4], index: 11, kind: input, shape index: {}]
  %s12 = inlined_call_operand.vmem [shape: bf16[4,4], index: 12, kind: input, shape index: {}]
  %s13 = inlined_call_operand.vmem [shape: f32[1,4], index: 13, kind: input, shape index: {}]
  %s14 = inlined_call_operand.vmem [shape: bf16[4,4], index: 14, kind: input, shape index: {}]
  %s15 = inlined_call_operand.vmem [shape: f32[1,4], index: 15, kind: input, shape index: {}]
  %s16 = inlined_call_operand.vmem [shape: f32[1,4], index: 16, kind: input, shape index: {}]
  %s17 = inlined_call_operand.vmem [shape: f32[1,4], index: 17, kind: input, shape index: {}]
  %s18 = inlined_call_operand.vmem [shape: bf16[4,4], index: 18, kind: input, shape index: {}]
  %s19 = inlined_call_operand.vmem [shape: bf16[4,4], index: 19, kind: input, shape index: {}]
  %s20 = inlined_call_operand.vmem [shape: f32[1,4], index: 20, kind: input, shape index: {}]
  %s21 = inlined_call_operand.vmem [shape: f32[1,4], index: 21, kind: input, shape index: {}]
  %s22 = inlined_call_operand.vmem [shape: bf16[4,4], index: 22, kind: input, shape index: {}]
  %s23 = inlined_call_operand.vmem [shape: f32[1,4], index: 23, kind: input, shape index: {}]
  %s24 = inlined_call_operand.vmem [shape: f32[1,4], index: 24, kind: input, shape index: {}]
  %s25 = inlined_call_operand.vmem [shape: f32[1,4], index: 25, kind: input, shape index: {}]
  %s26 = inlined_call_operand.vmem [shape: f32[2,16,16,4], index: 26, kind: output, shape index: {}]
  %s27 = sld [smem:[#allocation0]]
  $region137: #{tpu_custom_call.1} parent=0
    _
  %s29 = ssub.s32 1, %s27
  %s30 = scalar_select 0, %s29, %s27
  loop: start=0, step=1, limit=4
  $region2: #{tpu_custom_call.1} parent=0 // loop_pre_header
    _
  $region3: #{tpu_custom_call.1} parent=0 // loop_header
    %s32 = sphi 0, %s36
    %p33 = scmp.ge.s32.totalorder %s32, 4
    %s42 = sphi 0, %s44
    %s45 = sphi 0, %s42
    %s46 = sphi 0, %s45
    %s62 = sphi 0, %s46
    %s66 = sphi 0, %s66
    %s68 = sphi 0, %s66
    %s69 = sphi 0, %s68
    %s83 = sphi 0, %s69
    %s87 = sphi 0, %s87
    %s89 = sphi 0, %s87
    %s90 = sphi 0, %s89
    %s104 = sphi 0, %s90
    %s108 = sphi 0, %s108
    %s110 = sphi 0, %s108
    %s111 = sphi 0, %s110
    %s125 = sphi 0, %s111
    %s129 = sphi 0, %s129
    %s131 = sphi 0, %s129
    %s132 = sphi 0, %s131
    %s146 = sphi 0, %s132
    %s150 = sphi 0, %s150
    %s152 = sphi 0, %s150
    %s153 = sphi 0, %s152
    %s167 = sphi 0, %s153
    %s171 = sphi 0, %s171
    %s173 = sphi 0, %s171
    %s174 = sphi 0, %s173
    %s188 = sphi 0, %s174
    %s192 = sphi 0, %s192
    %s194 = sphi 0, %s192
    %s195 = sphi 0, %s194
    %s209 = sphi 0, %s195
    %s213 = sphi 0, %s213
    %s215 = sphi 0, %s213
    %s216 = sphi 0, %s215
    %s230 = sphi 0, %s216
    %s234 = sphi 0, %s234
    %s236 = sphi 0, %s234
    %s237 = sphi 0, %s236
    %s251 = sphi 0, %s237
    %s255 = sphi 0, %s255
    %s257 = sphi 0, %s255
    %s258 = sphi 0, %s257
    %s272 = sphi 0, %s258
    %s276 = sphi 0, %s276
    %s278 = sphi 0, %s276
    %s279 = sphi 0, %s278
    %s293 = sphi 0, %s279
    %s297 = sphi 0, %s297
    %s299 = sphi 0, %s297
    %s300 = sphi 0, %s299
    %s314 = sphi 0, %s300
    %s318 = sphi 0, %s318
    %s320 = sphi 0, %s318
    %s321 = sphi 0, %s320
    %s335 = sphi 0, %s321
    %s339 = sphi 0, %s339
    %s341 = sphi 0, %s339
    %s342 = sphi 0, %s341
    %s356 = sphi 0, %s342
    %s360 = sphi 0, %s360
    %s362 = sphi 0, %s360
    %s363 = sphi 0, %s362
    %s377 = sphi 0, %s363
    %s381 = sphi 0, %s381
    %s383 = sphi 0, %s381
    %s384 = sphi 0, %s383
    %s398 = sphi 0, %s384
    %s402 = sphi 0, %s402
    %s404 = sphi 0, %s402
    %s405 = sphi 0, %s404
    %s419 = sphi 0, %s405
    %s423 = sphi 0, %s423
    %s425 = sphi 0, %s423
    %s426 = sphi 0, %s425
    %s440 = sphi 0, %s426
    %s444 = sphi 0, %s444
    %s446 = sphi 0, %s444
    %s447 = sphi 0, %s446
    %s461 = sphi 0, %s447
    %s465 = sphi 0, %s465
    %s467 = sphi 0, %s465
    %s468 = sphi 0, %s467
    %s482 = sphi 0, %s468
    %s486 = sphi 0, %s486
    %s488 = sphi 0, %s486
    %s489 = sphi 0, %s488
    %s503 = sphi 0, %s489
    %s507 = sphi 0, %s507
    %s509 = sphi 0, %s507
    %s510 = sphi 0, %s509
    %s524 = sphi 0, %s510
    %s528 = sphi 0, %s528
    %s530 = sphi 0, %s528
    %s531 = sphi 0, %s530
    %s545 = sphi 0, %s531
    %s549 = sphi 0, %s549
    %s551 = sphi 0, %s549
    %s552 = sphi 0, %s551
    %s566 = sphi 0, %s552
    %s570 = sphi 0, %s570
    %s572 = sphi 0, %s570
    %s573 = sphi 0, %s572
    %s587 = sphi 0, %s573
    %s593 = sphi 0, %s595
    %s596 = sphi 0, %s593
    %s597 = sphi 0, %s596
    %s613 = sphi 0, %s597
  $region4: #{tpu_custom_call.1} parent=0 // loop_header_branch
    %35 = sbr.rel (%p33) target = $region8
  $region5: #{tpu_custom_call.1} parent=0 // loop_body
    %s37 = ssub.s32 %s32, 1
    %s38 = ssub.s32 %s32, 2
    %s39 = sadd.s32 %s32, 1
    %s40 = ssub.s32 %s32, %s39
    %p41 = scmp.eq.s32.totalorder %s40, 0
    %s43 = sadd.s32 %s42, 1
    %s44 = scalar_select %p41, %s42, %s43
    %p47 = pneg %p41
    %p48 = scmp.eq.s32.totalorder %s32, 1
    %p49 = por %p47, %p48
    %p50 = scmp.ne.s32.totalorder %s42, %s45
    %p51 = scmp.eq.s32.totalorder %s32, 0
    %p52 = por %p50, %p51
    %p53 = scmp.ne.s32.totalorder %s42, %s45
    %p54 = scmp.eq.s32.totalorder %s37, 1
    %p55 = por %p53, %p54
    %p56 = scmp.ne.s32.totalorder %s45, %s46
    %p57 = scmp.eq.s32.totalorder %s37, 0
    %p58 = por %p56, %p57
    %p59 = scmp.ne.s32.totalorder %s45, %s46
    %p60 = scmp.eq.s32.totalorder %s38, 1
    %p61 = por %p59, %p60
    %p63 = scmp.ne.s32.totalorder %s46, %s62
    %p64 = scmp.eq.s32.totalorder %s38, 0
    %p65 = por %p63, %p64
    %s67 = sadd.s32 %s66, 1
    %p70 = scmp.eq.s32.totalorder %s32, 1
    %p71 = scmp.ne.s32.totalorder %s66, %s68
    %p72 = scmp.eq.s32.totalorder %s32, 0
    %p73 = por %p71, %p72
    %p74 = scmp.ne.s32.totalorder %s66, %s68
    %p75 = scmp.eq.s32.totalorder %s37, 1
    %p76 = por %p74, %p75
    %p77 = scmp.ne.s32.totalorder %s68, %s69
    %p78 = scmp.eq.s32.totalorder %s37, 0
    %p79 = por %p77, %p78
    %p80 = scmp.ne.s32.totalorder %s68, %s69
    %p81 = scmp.eq.s32.totalorder %s38, 1
    %p82 = por %p80, %p81
    %p84 = scmp.ne.s32.totalorder %s69, %s83
    %p85 = scmp.eq.s32.totalorder %s38, 0
    %p86 = por %p84, %p85
    %s88 = sadd.s32 %s87, 1
    %p91 = scmp.eq.s32.totalorder %s32, 1
    %p92 = scmp.ne.s32.totalorder %s87, %s89
    %p93 = scmp.eq.s32.totalorder %s32, 0
    %p94 = por %p92, %p93
    %p95 = scmp.ne.s32.totalorder %s87, %s89
    %p96 = scmp.eq.s32.totalorder %s37, 1
    %p97 = por %p95, %p96
    %p98 = scmp.ne.s32.totalorder %s89, %s90
    %p99 = scmp.eq.s32.totalorder %s37, 0
    %p100 = por %p98, %p99
    %p101 = scmp.ne.s32.totalorder %s89, %s90
    %p102 = scmp.eq.s32.totalorder %s38, 1
    %p103 = por %p101, %p102
    %p105 = scmp.ne.s32.totalorder %s90, %s104
    %p106 = scmp.eq.s32.totalorder %s38, 0
    %p107 = por %p105, %p106
    %s109 = sadd.s32 %s108, 1
    %p112 = scmp.eq.s32.totalorder %s32, 1
    %p113 = scmp.ne.s32.totalorder %s108, %s110
    %p114 = scmp.eq.s32.totalorder %s32, 0
    %p115 = por %p113, %p114
    %p116 = scmp.ne.s32.totalorder %s108, %s110
    %p117 = scmp.eq.s32.totalorder %s37, 1
    %p118 = por %p116, %p117
    %p119 = scmp.ne.s32.totalorder %s110, %s111
    %p120 = scmp.eq.s32.totalorder %s37, 0
    %p121 = por %p119, %p120
    %p122 = scmp.ne.s32.totalorder %s110, %s111
    %p123 = scmp.eq.s32.totalorder %s38, 1
    %p124 = por %p122, %p123
    %p126 = scmp.ne.s32.totalorder %s111, %s125
    %p127 = scmp.eq.s32.totalorder %s38, 0
    %p128 = por %p126, %p127
    %s130 = sadd.s32 %s129, 1
    %p133 = scmp.eq.s32.totalorder %s32, 1
    %p134 = scmp.ne.s32.totalorder %s129, %s131
    %p135 = scmp.eq.s32.totalorder %s32, 0
    %p136 = por %p134, %p135
    %p137 = scmp.ne.s32.totalorder %s129, %s131
    %p138 = scmp.eq.s32.totalorder %s37, 1
    %p139 = por %p137, %p138
    %p140 = scmp.ne.s32.totalorder %s131, %s132
    %p141 = scmp.eq.s32.totalorder %s37, 0
    %p142 = por %p140, %p141
    %p143 = scmp.ne.s32.totalorder %s131, %s132
    %p144 = scmp.eq.s32.totalorder %s38, 1
    %p145 = por %p143, %p144
    %p147 = scmp.ne.s32.totalorder %s132, %s146
    %p148 = scmp.eq.s32.totalorder %s38, 0
    %p149 = por %p147, %p148
    %s151 = sadd.s32 %s150, 1
    %p154 = scmp.eq.s32.totalorder %s32, 1
    %p155 = scmp.ne.s32.totalorder %s150, %s152
    %p156 = scmp.eq.s32.totalorder %s32, 0
    %p157 = por %p155, %p156
    %p158 = scmp.ne.s32.totalorder %s150, %s152
    %p159 = scmp.eq.s32.totalorder %s37, 1
    %p160 = por %p158, %p159
    %p161 = scmp.ne.s32.totalorder %s152, %s153
    %p162 = scmp.eq.s32.totalorder %s37, 0
    %p163 = por %p161, %p162
    %p164 = scmp.ne.s32.totalorder %s152, %s153
    %p165 = scmp.eq.s32.totalorder %s38, 1
    %p166 = por %p164, %p165
    %p168 = scmp.ne.s32.totalorder %s153, %s167
    %p169 = scmp.eq.s32.totalorder %s38, 0
    %p170 = por %p168, %p169
    %s172 = sadd.s32 %s171, 1
    %p175 = scmp.eq.s32.totalorder %s32, 1
    %p176 = scmp.ne.s32.totalorder %s171, %s173
    %p177 = scmp.eq.s32.totalorder %s32, 0
    %p178 = por %p176, %p177
    %p179 = scmp.ne.s32.totalorder %s171, %s173
    %p180 = scmp.eq.s32.totalorder %s37, 1
    %p181 = por %p179, %p180
    %p182 = scmp.ne.s32.totalorder %s173, %s174
    %p183 = scmp.eq.s32.totalorder %s37, 0
    %p184 = por %p182, %p183
    %p185 = scmp.ne.s32.totalorder %s173, %s174
    %p186 = scmp.eq.s32.totalorder %s38, 1
    %p187 = por %p185, %p186
    %p189 = scmp.ne.s32.totalorder %s174, %s188
    %p190 = scmp.eq.s32.totalorder %s38, 0
    %p191 = por %p189, %p190
    %s193 = sadd.s32 %s192, 1
    %p196 = scmp.eq.s32.totalorder %s32, 1
    %p197 = scmp.ne.s32.totalorder %s192, %s194
    %p198 = scmp.eq.s32.totalorder %s32, 0
    %p199 = por %p197, %p198
    %p200 = scmp.ne.s32.totalorder %s192, %s194
    %p201 = scmp.eq.s32.totalorder %s37, 1
    %p202 = por %p200, %p201
    %p203 = scmp.ne.s32.totalorder %s194, %s195
    %p204 = scmp.eq.s32.totalorder %s37, 0
    %p205 = por %p203, %p204
    %p206 = scmp.ne.s32.totalorder %s194, %s195
    %p207 = scmp.eq.s32.totalorder %s38, 1
    %p208 = por %p206, %p207
    %p210 = scmp.ne.s32.totalorder %s195, %s209
    %p211 = scmp.eq.s32.totalorder %s38, 0
    %p212 = por %p210, %p211
    %s214 = sadd.s32 %s213, 1
    %p217 = scmp.eq.s32.totalorder %s32, 1
    %p218 = scmp.ne.s32.totalorder %s213, %s215
    %p219 = scmp.eq.s32.totalorder %s32, 0
    %p220 = por %p218, %p219
    %p221 = scmp.ne.s32.totalorder %s213, %s215
    %p222 = scmp.eq.s32.totalorder %s37, 1
    %p223 = por %p221, %p222
    %p224 = scmp.ne.s32.totalorder %s215, %s216
    %p225 = scmp.eq.s32.totalorder %s37, 0
    %p226 = por %p224, %p225
    %p227 = scmp.ne.s32.totalorder %s215, %s216
    %p228 = scmp.eq.s32.totalorder %s38, 1
    %p229 = por %p227, %p228
    %p231 = scmp.ne.s32.totalorder %s216, %s230
    %p232 = scmp.eq.s32.totalorder %s38, 0
    %p233 = por %p231, %p232
    %s235 = sadd.s32 %s234, 1
    %p238 = scmp.eq.s32.totalorder %s32, 1
    %p239 = scmp.ne.s32.totalorder %s234, %s236
    %p240 = scmp.eq.s32.totalorder %s32, 0
    %p241 = por %p239, %p240
    %p242 = scmp.ne.s32.totalorder %s234, %s236
    %p243 = scmp.eq.s32.totalorder %s37, 1
    %p244 = por %p242, %p243
    %p245 = scmp.ne.s32.totalorder %s236, %s237
    %p246 = scmp.eq.s32.totalorder %s37, 0
    %p247 = por %p245, %p246
    %p248 = scmp.ne.s32.totalorder %s236, %s237
    %p249 = scmp.eq.s32.totalorder %s38, 1
    %p250 = por %p248, %p249
    %p252 = scmp.ne.s32.totalorder %s237, %s251
    %p253 = scmp.eq.s32.totalorder %s38, 0
    %p254 = por %p252, %p253
    %s256 = sadd.s32 %s255, 1
    %p259 = scmp.eq.s32.totalorder %s32, 1
    %p260 = scmp.ne.s32.totalorder %s255, %s257
    %p261 = scmp.eq.s32.totalorder %s32, 0
    %p262 = por %p260, %p261
    %p263 = scmp.ne.s32.totalorder %s255, %s257
    %p264 = scmp.eq.s32.totalorder %s37, 1
    %p265 = por %p263, %p264
    %p266 = scmp.ne.s32.totalorder %s257, %s258
    %p267 = scmp.eq.s32.totalorder %s37, 0
    %p268 = por %p266, %p267
    %p269 = scmp.ne.s32.totalorder %s257, %s258
    %p270 = scmp.eq.s32.totalorder %s38, 1
    %p271 = por %p269, %p270
    %p273 = scmp.ne.s32.totalorder %s258, %s272
    %p274 = scmp.eq.s32.totalorder %s38, 0
    %p275 = por %p273, %p274
    %s277 = sadd.s32 %s276, 1
    %p280 = scmp.eq.s32.totalorder %s32, 1
    %p281 = scmp.ne.s32.totalorder %s276, %s278
    %p282 = scmp.eq.s32.totalorder %s32, 0
    %p283 = por %p281, %p282
    %p284 = scmp.ne.s32.totalorder %s276, %s278
    %p285 = scmp.eq.s32.totalorder %s37, 1
    %p286 = por %p284, %p285
    %p287 = scmp.ne.s32.totalorder %s278, %s279
    %p288 = scmp.eq.s32.totalorder %s37, 0
    %p289 = por %p287, %p288
    %p290 = scmp.ne.s32.totalorder %s278, %s279
    %p291 = scmp.eq.s32.totalorder %s38, 1
    %p292 = por %p290, %p291
    %p294 = scmp.ne.s32.totalorder %s279, %s293
    %p295 = scmp.eq.s32.totalorder %s38, 0
    %p296 = por %p294, %p295
    %s298 = sadd.s32 %s297, 1
    %p301 = scmp.eq.s32.totalorder %s32, 1
    %p302 = scmp.ne.s32.totalorder %s297, %s299
    %p303 = scmp.eq.s32.totalorder %s32, 0
    %p304 = por %p302, %p303
    %p305 = scmp.ne.s32.totalorder %s297, %s299
    %p306 = scmp.eq.s32.totalorder %s37, 1
    %p307 = por %p305, %p306
    %p308 = scmp.ne.s32.totalorder %s299, %s300
    %p309 = scmp.eq.s32.totalorder %s37, 0
    %p310 = por %p308, %p309
    %p311 = scmp.ne.s32.totalorder %s299, %s300
    %p312 = scmp.eq.s32.totalorder %s38, 1
    %p313 = por %p311, %p312
    %p315 = scmp.ne.s32.totalorder %s300, %s314
    %p316 = scmp.eq.s32.totalorder %s38, 0
    %p317 = por %p315, %p316
    %s319 = sadd.s32 %s318, 1
    %p322 = scmp.eq.s32.totalorder %s32, 1
    %p323 = scmp.ne.s32.totalorder %s318, %s320
    %p324 = scmp.eq.s32.totalorder %s32, 0
    %p325 = por %p323, %p324
    %p326 = scmp.ne.s32.totalorder %s318, %s320
    %p327 = scmp.eq.s32.totalorder %s37, 1
    %p328 = por %p326, %p327
    %p329 = scmp.ne.s32.totalorder %s320, %s321
    %p330 = scmp.eq.s32.totalorder %s37, 0
    %p331 = por %p329, %p330
    %p332 = scmp.ne.s32.totalorder %s320, %s321
    %p333 = scmp.eq.s32.totalorder %s38, 1
    %p334 = por %p332, %p333
    %p336 = scmp.ne.s32.totalorder %s321, %s335
    %p337 = scmp.eq.s32.totalorder %s38, 0
    %p338 = por %p336, %p337
    %s340 = sadd.s32 %s339, 1
    %p343 = scmp.eq.s32.totalorder %s32, 1
    %p344 = scmp.ne.s32.totalorder %s339, %s341
    %p345 = scmp.eq.s32.totalorder %s32, 0
    %p346 = por %p344, %p345
    %p347 = scmp.ne.s32.totalorder %s339, %s341
    %p348 = scmp.eq.s32.totalorder %s37, 1
    %p349 = por %p347, %p348
    %p350 = scmp.ne.s32.totalorder %s341, %s342
    %p351 = scmp.eq.s32.totalorder %s37, 0
    %p352 = por %p350, %p351
    %p353 = scmp.ne.s32.totalorder %s341, %s342
    %p354 = scmp.eq.s32.totalorder %s38, 1
    %p355 = por %p353, %p354
    %p357 = scmp.ne.s32.totalorder %s342, %s356
    %p358 = scmp.eq.s32.totalorder %s38, 0
    %p359 = por %p357, %p358
    %s361 = sadd.s32 %s360, 1
    %p364 = scmp.eq.s32.totalorder %s32, 1
    %p365 = scmp.ne.s32.totalorder %s360, %s362
    %p366 = scmp.eq.s32.totalorder %s32, 0
    %p367 = por %p365, %p366
    %p368 = scmp.ne.s32.totalorder %s360, %s362
    %p369 = scmp.eq.s32.totalorder %s37, 1
    %p370 = por %p368, %p369
    %p371 = scmp.ne.s32.totalorder %s362, %s363
    %p372 = scmp.eq.s32.totalorder %s37, 0
    %p373 = por %p371, %p372
    %p374 = scmp.ne.s32.totalorder %s362, %s363
    %p375 = scmp.eq.s32.totalorder %s38, 1
    %p376 = por %p374, %p375
    %p378 = scmp.ne.s32.totalorder %s363, %s377
    %p379 = scmp.eq.s32.totalorder %s38, 0
    %p380 = por %p378, %p379
    %s382 = sadd.s32 %s381, 1
    %p385 = scmp.eq.s32.totalorder %s32, 1
    %p386 = scmp.ne.s32.totalorder %s381, %s383
    %p387 = scmp.eq.s32.totalorder %s32, 0
    %p388 = por %p386, %p387
    %p389 = scmp.ne.s32.totalorder %s381, %s383
    %p390 = scmp.eq.s32.totalorder %s37, 1
    %p391 = por %p389, %p390
    %p392 = scmp.ne.s32.totalorder %s383, %s384
    %p393 = scmp.eq.s32.totalorder %s37, 0
    %p394 = por %p392, %p393
    %p395 = scmp.ne.s32.totalorder %s383, %s384
    %p396 = scmp.eq.s32.totalorder %s38, 1
    %p397 = por %p395, %p396
    %p399 = scmp.ne.s32.totalorder %s384, %s398
    %p400 = scmp.eq.s32.totalorder %s38, 0
    %p401 = por %p399, %p400
    %s403 = sadd.s32 %s402, 1
    %p406 = scmp.eq.s32.totalorder %s32, 1
    %p407 = scmp.ne.s32.totalorder %s402, %s404
    %p408 = scmp.eq.s32.totalorder %s32, 0
    %p409 = por %p407, %p408
    %p410 = scmp.ne.s32.totalorder %s402, %s404
    %p411 = scmp.eq.s32.totalorder %s37, 1
    %p412 = por %p410, %p411
    %p413 = scmp.ne.s32.totalorder %s404, %s405
    %p414 = scmp.eq.s32.totalorder %s37, 0
    %p415 = por %p413, %p414
    %p416 = scmp.ne.s32.totalorder %s404, %s405
    %p417 = scmp.eq.s32.totalorder %s38, 1
    %p418 = por %p416, %p417
    %p420 = scmp.ne.s32.totalorder %s405, %s419
    %p421 = scmp.eq.s32.totalorder %s38, 0
    %p422 = por %p420, %p421
    %s424 = sadd.s32 %s423, 1
    %p427 = scmp.eq.s32.totalorder %s32, 1
    %p428 = scmp.ne.s32.totalorder %s423, %s425
    %p429 = scmp.eq.s32.totalorder %s32, 0
    %p430 = por %p428, %p429
    %p431 = scmp.ne.s32.totalorder %s423, %s425
    %p432 = scmp.eq.s32.totalorder %s37, 1
    %p433 = por %p431, %p432
    %p434 = scmp.ne.s32.totalorder %s425, %s426
    %p435 = scmp.eq.s32.totalorder %s37, 0
    %p436 = por %p434, %p435
    %p437 = scmp.ne.s32.totalorder %s425, %s426
    %p438 = scmp.eq.s32.totalorder %s38, 1
    %p439 = por %p437, %p438
    %p441 = scmp.ne.s32.totalorder %s426, %s440
    %p442 = scmp.eq.s32.totalorder %s38, 0
    %p443 = por %p441, %p442
    %s445 = sadd.s32 %s444, 1
    %p448 = scmp.eq.s32.totalorder %s32, 1
    %p449 = scmp.ne.s32.totalorder %s444, %s446
    %p450 = scmp.eq.s32.totalorder %s32, 0
    %p451 = por %p449, %p450
    %p452 = scmp.ne.s32.totalorder %s444, %s446
    %p453 = scmp.eq.s32.totalorder %s37, 1
    %p454 = por %p452, %p453
    %p455 = scmp.ne.s32.totalorder %s446, %s447
    %p456 = scmp.eq.s32.totalorder %s37, 0
    %p457 = por %p455, %p456
    %p458 = scmp.ne.s32.totalorder %s446, %s447
    %p459 = scmp.eq.s32.totalorder %s38, 1
    %p460 = por %p458, %p459
    %p462 = scmp.ne.s32.totalorder %s447, %s461
    %p463 = scmp.eq.s32.totalorder %s38, 0
    %p464 = por %p462, %p463
    %s466 = sadd.s32 %s465, 1
    %p469 = scmp.eq.s32.totalorder %s32, 1
    %p470 = scmp.ne.s32.totalorder %s465, %s467
    %p471 = scmp.eq.s32.totalorder %s32, 0
    %p472 = por %p470, %p471
    %p473 = scmp.ne.s32.totalorder %s465, %s467
    %p474 = scmp.eq.s32.totalorder %s37, 1
    %p475 = por %p473, %p474
    %p476 = scmp.ne.s32.totalorder %s467, %s468
    %p477 = scmp.eq.s32.totalorder %s37, 0
    %p478 = por %p476, %p477
    %p479 = scmp.ne.s32.totalorder %s467, %s468
    %p480 = scmp.eq.s32.totalorder %s38, 1
    %p481 = por %p479, %p480
    %p483 = scmp.ne.s32.totalorder %s468, %s482
    %p484 = scmp.eq.s32.totalorder %s38, 0
    %p485 = por %p483, %p484
    %s487 = sadd.s32 %s486, 1
    %p490 = scmp.eq.s32.totalorder %s32, 1
    %p491 = scmp.ne.s32.totalorder %s486, %s488
    %p492 = scmp.eq.s32.totalorder %s32, 0
    %p493 = por %p491, %p492
    %p494 = scmp.ne.s32.totalorder %s486, %s488
    %p495 = scmp.eq.s32.totalorder %s37, 1
    %p496 = por %p494, %p495
    %p497 = scmp.ne.s32.totalorder %s488, %s489
    %p498 = scmp.eq.s32.totalorder %s37, 0
    %p499 = por %p497, %p498
    %p500 = scmp.ne.s32.totalorder %s488, %s489
    %p501 = scmp.eq.s32.totalorder %s38, 1
    %p502 = por %p500, %p501
    %p504 = scmp.ne.s32.totalorder %s489, %s503
    %p505 = scmp.eq.s32.totalorder %s38, 0
    %p506 = por %p504, %p505
    %s508 = sadd.s32 %s507, 1
    %p511 = scmp.eq.s32.totalorder %s32, 1
    %p512 = scmp.ne.s32.totalorder %s507, %s509
    %p513 = scmp.eq.s32.totalorder %s32, 0
    %p514 = por %p512, %p513
    %p515 = scmp.ne.s32.totalorder %s507, %s509
    %p516 = scmp.eq.s32.totalorder %s37, 1
    %p517 = por %p515, %p516
    %p518 = scmp.ne.s32.totalorder %s509, %s510
    %p519 = scmp.eq.s32.totalorder %s37, 0
    %p520 = por %p518, %p519
    %p521 = scmp.ne.s32.totalorder %s509, %s510
    %p522 = scmp.eq.s32.totalorder %s38, 1
    %p523 = por %p521, %p522
    %p525 = scmp.ne.s32.totalorder %s510, %s524
    %p526 = scmp.eq.s32.totalorder %s38, 0
    %p527 = por %p525, %p526
    %s529 = sadd.s32 %s528, 1
    %p532 = scmp.eq.s32.totalorder %s32, 1
    %p533 = scmp.ne.s32.totalorder %s528, %s530
    %p534 = scmp.eq.s32.totalorder %s32, 0
    %p535 = por %p533, %p534
    %p536 = scmp.ne.s32.totalorder %s528, %s530
    %p537 = scmp.eq.s32.totalorder %s37, 1
    %p538 = por %p536, %p537
    %p539 = scmp.ne.s32.totalorder %s530, %s531
    %p540 = scmp.eq.s32.totalorder %s37, 0
    %p541 = por %p539, %p540
    %p542 = scmp.ne.s32.totalorder %s530, %s531
    %p543 = scmp.eq.s32.totalorder %s38, 1
    %p544 = por %p542, %p543
    %p546 = scmp.ne.s32.totalorder %s531, %s545
    %p547 = scmp.eq.s32.totalorder %s38, 0
    %p548 = por %p546, %p547
    %s550 = sadd.s32 %s549, 1
    %p553 = scmp.eq.s32.totalorder %s32, 1
    %p554 = scmp.ne.s32.totalorder %s549, %s551
    %p555 = scmp.eq.s32.totalorder %s32, 0
    %p556 = por %p554, %p555
    %p557 = scmp.ne.s32.totalorder %s549, %s551
    %p558 = scmp.eq.s32.totalorder %s37, 1
    %p559 = por %p557, %p558
    %p560 = scmp.ne.s32.totalorder %s551, %s552
    %p561 = scmp.eq.s32.totalorder %s37, 0
    %p562 = por %p560, %p561
    %p563 = scmp.ne.s32.totalorder %s551, %s552
    %p564 = scmp.eq.s32.totalorder %s38, 1
    %p565 = por %p563, %p564
    %p567 = scmp.ne.s32.totalorder %s552, %s566
    %p568 = scmp.eq.s32.totalorder %s38, 0
    %p569 = por %p567, %p568
    %s571 = sadd.s32 %s570, 1
    %p574 = scmp.eq.s32.totalorder %s32, 1
    %p575 = scmp.ne.s32.totalorder %s570, %s572
    %p576 = scmp.eq.s32.totalorder %s32, 0
    %p577 = por %p575, %p576
    %p578 = scmp.ne.s32.totalorder %s570, %s572
    %p579 = scmp.eq.s32.totalorder %s37, 1
    %p580 = por %p578, %p579
    %p581 = scmp.ne.s32.totalorder %s572, %s573
    %p582 = scmp.eq.s32.totalorder %s37, 0
    %p583 = por %p581, %p582
    %p584 = scmp.ne.s32.totalorder %s572, %s573
    %p585 = scmp.eq.s32.totalorder %s38, 1
    %p586 = por %p584, %p585
    %p588 = scmp.ne.s32.totalorder %s573, %s587
    %p589 = scmp.eq.s32.totalorder %s38, 0
    %p590 = por %p588, %p589
    %s591 = ssub.s32 %s32, %s39
    %p592 = scmp.eq.s32.totalorder %s591, 0
    %s594 = sadd.s32 %s593, 1
    %s595 = scalar_select %p592, %s593, %s594
    %p598 = pneg %p592
    %p599 = scmp.eq.s32.totalorder %s32, 1
    %p600 = por %p598, %p599
    %p601 = scmp.ne.s32.totalorder %s593, %s596
    %p602 = scmp.eq.s32.totalorder %s32, 0
    %p603 = por %p601, %p602
    %p604 = scmp.ne.s32.totalorder %s593, %s596
    %p605 = scmp.eq.s32.totalorder %s37, 1
    %p606 = por %p604, %p605
    %p607 = scmp.ne.s32.totalorder %s596, %s597
    %p608 = scmp.eq.s32.totalorder %s37, 0
    %p609 = por %p607, %p608
    %p610 = scmp.ne.s32.totalorder %s596, %s597
    %p611 = scmp.eq.s32.totalorder %s38, 1
    %p612 = por %p610, %p611
    %p614 = scmp.ne.s32.totalorder %s597, %s613
    %p615 = scmp.eq.s32.totalorder %s38, 0
    %p616 = por %p614, %p615
    %p617 = scmp.le.s32.totalorder 1, %s32
    %p618 = scmp.lt.s32.totalorder %s32, 3
    %p619 = pnand %p617, %p618
    %p620 = pneg %p619
    // Predicated region
    $region9: #{tpu_custom_call.1} parent=5 // pred_check
      _
    $region10: #{tpu_custom_call.1} parent=5 // pred_check_branch
      %622 = sbr.rel (%p619) target = $region12
    $region11: #{tpu_custom_call.1} parent=5 // pred_region
      %s623 = ssub.s32 %s32, 1
      // Predicated region
      $region13: #{tpu_custom_call.1} parent=11 // pred_check
        %p624 = pneg %p79
      $region14: #{tpu_custom_call.1} parent=11 // pred_check_branch
        %626 = sbr.rel (%p624) target = $region16
      $region15: #{tpu_custom_call.1} parent=11 // pred_region
        _
      $region16: #{tpu_custom_call.1} parent=11 // pred_fallthru
        _
      // Predicated region
      $region17: #{tpu_custom_call.1} parent=11 // pred_check
        %p627 = pneg %p100
      $region18: #{tpu_custom_call.1} parent=11 // pred_check_branch
        %629 = sbr.rel (%p627) target = $region20
      $region19: #{tpu_custom_call.1} parent=11 // pred_region
        _
      $region20: #{tpu_custom_call.1} parent=11 // pred_fallthru
        _
      // Predicated region
      $region21: #{tpu_custom_call.1} parent=11 // pred_check
        %p630 = pneg %p121
      $region22: #{tpu_custom_call.1} parent=11 // pred_check_branch
        %632 = sbr.rel (%p630) target = $region24
      $region23: #{tpu_custom_call.1} parent=11 // pred_region
        _
      $region24: #{tpu_custom_call.1} parent=11 // pred_fallthru
        _
      // Predicated region
      $region25: #{tpu_custom_call.1} parent=11 // pred_check
        %p633 = pneg %p142
      $region26: #{tpu_custom_call.1} parent=11 // pred_check_branch
        %635 = sbr.rel (%p633) target = $region28
      $region27: #{tpu_custom_call.1} parent=11 // pred_region
        _
      $region28: #{tpu_custom_call.1} parent=11 // pred_fallthru
        _
      // Predicated region
      $region29: #{tpu_custom_call.1} parent=11 // pred_check
        %p636 = pneg %p163
      $region30: #{tpu_custom_call.1} parent=11 // pred_check_branch
        %638 = sbr.rel (%p636) target = $region32
      $region31: #{tpu_custom_call.1} parent=11 // pred_region
        _
      $region32: #{tpu_custom_call.1} parent=11 // pred_fallthru
        _
      // Predicated region
      $region33: #{tpu_custom_call.1} parent=11 // pred_check
        %p639 = pneg %p184
      $region34: #{tpu_custom_call.1} parent=11 // pred_check_branch
        %641 = sbr.rel (%p639) target = $region36
      $region35: #{tpu_custom_call.1} parent=11 // pred_region
        _
      $region36: #{tpu_custom_call.1} parent=11 // pred_fallthru
        _
      // Predicated region
      $region37: #{tpu_custom_call.1} parent=11 // pred_check
        %p642 = pneg %p205
      $region38: #{tpu_custom_call.1} parent=11 // pred_check_branch
        %644 = sbr.rel (%p642) target = $region40
      $region39: #{tpu_custom_call.1} parent=11 // pred_region
        _
      $region40: #{tpu_custom_call.1} parent=11 // pred_fallthru
        _
      // Predicated region
      $region41: #{tpu_custom_call.1} parent=11 // pred_check
        %p645 = pneg %p226
      $region42: #{tpu_custom_call.1} parent=11 // pred_check_branch
        %647 = sbr.rel (%p645) target = $region44
      $region43: #{tpu_custom_call.1} parent=11 // pred_region
        _
      $region44: #{tpu_custom_call.1} parent=11 // pred_fallthru
        _
      // Predicated region
      $region45: #{tpu_custom_call.1} parent=11 // pred_check
        %p648 = pneg %p247
      $region46: #{tpu_custom_call.1} parent=11 // pred_check_branch
        %650 = sbr.rel (%p648) target = $region48
      $region47: #{tpu_custom_call.1} parent=11 // pred_region
        _
      $region48: #{tpu_custom_call.1} parent=11 // pred_fallthru
        _
      // Predicated region
      $region49: #{tpu_custom_call.1} parent=11 // pred_check
        %p651 = pneg %p268
      $region50: #{tpu_custom_call.1} parent=11 // pred_check_branch
        %653 = sbr.rel (%p651) target = $region52
      $region51: #{tpu_custom_call.1} parent=11 // pred_region
        _
      $region52: #{tpu_custom_call.1} parent=11 // pred_fallthru
        _
      // Predicated region
      $region53: #{tpu_custom_call.1} parent=11 // pred_check
        %p654 = pneg %p289
      $region54: #{tpu_custom_call.1} parent=11 // pred_check_branch
        %656 = sbr.rel (%p654) target = $region56
      $region55: #{tpu_custom_call.1} parent=11 // pred_region
        _
      $region56: #{tpu_custom_call.1} parent=11 // pred_fallthru
        _
      // Predicated region
      $region57: #{tpu_custom_call.1} parent=11 // pred_check
        %p657 = pneg %p310
      $region58: #{tpu_custom_call.1} parent=11 // pred_check_branch
        %659 = sbr.rel (%p657) target = $region60
      $region59: #{tpu_custom_call.1} parent=11 // pred_region
        _
      $region60: #{tpu_custom_call.1} parent=11 // pred_fallthru
        _
      // Predicated region
      $region61: #{tpu_custom_call.1} parent=11 // pred_check
        %p660 = pneg %p331
      $region62: #{tpu_custom_call.1} parent=11 // pred_check_branch
        %662 = sbr.rel (%p660) target = $region64
      $region63: #{tpu_custom_call.1} parent=11 // pred_region
        _
      $region64: #{tpu_custom_call.1} parent=11 // pred_fallthru
        _
      // Predicated region
      $region65: #{tpu_custom_call.1} parent=11 // pred_check
        %p663 = pneg %p352
      $region66: #{tpu_custom_call.1} parent=11 // pred_check_branch
        %665 = sbr.rel (%p663) target = $region68
      $region67: #{tpu_custom_call.1} parent=11 // pred_region
        _
      $region68: #{tpu_custom_call.1} parent=11 // pred_fallthru
        _
      // Predicated region
      $region69: #{tpu_custom_call.1} parent=11 // pred_check
        %p666 = pneg %p373
      $region70: #{tpu_custom_call.1} parent=11 // pred_check_branch
        %668 = sbr.rel (%p666) target = $region72
      $region71: #{tpu_custom_call.1} parent=11 // pred_region
        _
      $region72: #{tpu_custom_call.1} parent=11 // pred_fallthru
        _
      // Predicated region
      $region73: #{tpu_custom_call.1} parent=11 // pred_check
        %p669 = pneg %p394
      $region74: #{tpu_custom_call.1} parent=11 // pred_check_branch
        %671 = sbr.rel (%p669) target = $region76
      $region75: #{tpu_custom_call.1} parent=11 // pred_region
        _
      $region76: #{tpu_custom_call.1} parent=11 // pred_fallthru
        _
      // Predicated region
      $region77: #{tpu_custom_call.1} parent=11 // pred_check
        %p672 = pneg %p415
      $region78: #{tpu_custom_call.1} parent=11 // pred_check_branch
        %674 = sbr.rel (%p672) target = $region80
      $region79: #{tpu_custom_call.1} parent=11 // pred_region
        _
      $region80: #{tpu_custom_call.1} parent=11 // pred_fallthru
        _
      // Predicated region
      $region81: #{tpu_custom_call.1} parent=11 // pred_check
        %p675 = pneg %p436
      $region82: #{tpu_custom_call.1} parent=11 // pred_check_branch
        %677 = sbr.rel (%p675) target = $region84
      $region83: #{tpu_custom_call.1} parent=11 // pred_region
        _
      $region84: #{tpu_custom_call.1} parent=11 // pred_fallthru
        _
      // Predicated region
      $region85: #{tpu_custom_call.1} parent=11 // pred_check
        %p678 = pneg %p457
      $region86: #{tpu_custom_call.1} parent=11 // pred_check_branch
        %680 = sbr.rel (%p678) target = $region88
      $region87: #{tpu_custom_call.1} parent=11 // pred_region
        _
      $region88: #{tpu_custom_call.1} parent=11 // pred_fallthru
        _
      // Predicated region
      $region89: #{tpu_custom_call.1} parent=11 // pred_check
        %p681 = pneg %p478
      $region90: #{tpu_custom_call.1} parent=11 // pred_check_branch
        %683 = sbr.rel (%p681) target = $region92
      $region91: #{tpu_custom_call.1} parent=11 // pred_region
        _
      $region92: #{tpu_custom_call.1} parent=11 // pred_fallthru
        _
      // Predicated region
      $region93: #{tpu_custom_call.1} parent=11 // pred_check
        %p684 = pneg %p499
      $region94: #{tpu_custom_call.1} parent=11 // pred_check_branch
        %686 = sbr.rel (%p684) target = $region96
      $region95: #{tpu_custom_call.1} parent=11 // pred_region
        _
      $region96: #{tpu_custom_call.1} parent=11 // pred_fallthru
        _
      // Predicated region
      $region97: #{tpu_custom_call.1} parent=11 // pred_check
        %p687 = pneg %p520
      $region98: #{tpu_custom_call.1} parent=11 // pred_check_branch
        %689 = sbr.rel (%p687) target = $region100
      $region99: #{tpu_custom_call.1} parent=11 // pred_region
        _
      $region100: #{tpu_custom_call.1} parent=11 // pred_fallthru
        _
      // Predicated region
      $region101: #{tpu_custom_call.1} parent=11 // pred_check
        %p690 = pneg %p541
      $region102: #{tpu_custom_call.1} parent=11 // pred_check_branch
        %692 = sbr.rel (%p690) target = $region104
      $region103: #{tpu_custom_call.1} parent=11 // pred_region
        _
      $region104: #{tpu_custom_call.1} parent=11 // pred_fallthru
        _
      // Predicated region
      $region105: #{tpu_custom_call.1} parent=11 // pred_check
        %p693 = pneg %p562
      $region106: #{tpu_custom_call.1} parent=11 // pred_check_branch
        %695 = sbr.rel (%p693) target = $region108
      $region107: #{tpu_custom_call.1} parent=11 // pred_region
        _
      $region108: #{tpu_custom_call.1} parent=11 // pred_fallthru
        _
      // Predicated region
      $region109: #{tpu_custom_call.1} parent=11 // pred_check
        %p696 = pneg %p583
      $region110: #{tpu_custom_call.1} parent=11 // pred_check_branch
        %698 = sbr.rel (%p696) target = $region112
      $region111: #{tpu_custom_call.1} parent=11 // pred_region
        _
      $region112: #{tpu_custom_call.1} parent=11 // pred_fallthru
        _
    $region12: #{tpu_custom_call.1} parent=5 // pred_fallthru
      _
    %p699 = scmp.lt.s32.totalorder %s32, 2
    // Predicated region
    $region113: #{tpu_custom_call.1} parent=5 // pred_check
      %p700 = pneg %p699
    $region114: #{tpu_custom_call.1} parent=5 // pred_check_branch
      %702 = sbr.rel (%p700) target = $region116
    $region115: #{tpu_custom_call.1} parent=5 // pred_region
      // Predicated region
      $region117: #{tpu_custom_call.1} parent=115 // pred_check
        %p703 = pneg %p52
      $region118: #{tpu_custom_call.1} parent=115 // pred_check_branch
        %705 = sbr.rel (%p703) target = $region120
      $region119: #{tpu_custom_call.1} parent=115 // pred_region
        %p706 = scmp.lt.s32.totalorder %s32, 1
        %s707 = scalar_select %p706, %s32, 1
        %s708 = smul.addr %s707, 32
        %s709 = smul.addr %s708, 8
        %s710 = scalar_lea.vmem %s0, %s709
      $region120: #{tpu_custom_call.1} parent=115 // pred_fallthru
        _
    $region116: #{tpu_custom_call.1} parent=5 // pred_fallthru
      _
    %p711 = scmp.le.s32.totalorder 1, %s32
    %p712 = scmp.lt.s32.totalorder %s32, 3
    %p713 = pnand %p711, %p712
    %p714 = pneg %p713
    // Predicated region
    $region121: #{tpu_custom_call.1} parent=5 // pred_check
      _
    $region122: #{tpu_custom_call.1} parent=5 // pred_check_branch
      %716 = sbr.rel (%p713) target = $region124
    $region123: #{tpu_custom_call.1} parent=5 // pred_region
      %s717 = ssub.s32 %s32, 1
      %p718 = scmp.lt.s32.totalorder %s37, 1
      %s719 = scalar_select %p718, %s37, 1
      %s720 = smul.addr %s719, 32
      %s721 = smul.addr %s720, 8
      %s722 = scalar_lea.vmem %s0, %s721
      %p723 = pneg %p58
      %p724 = pneg %p55
      %p725 = pneg %p79
      %p726 = pneg %p76
      %p727 = pneg %p100
      %p728 = pneg %p97
      %p729 = pneg %p121
      %p730 = pneg %p118
      %p731 = pneg %p142
      %p732 = pneg %p139
      %p733 = pneg %p163
      %p734 = pneg %p160
      %p735 = pneg %p184
      %p736 = pneg %p181
      %p737 = pneg %p205
      %p738 = pneg %p202
      %p739 = pneg %p226
      %p740 = pneg %p223
      %p741 = pneg %p247
      %p742 = pneg %p244
      %p743 = pneg %p268
      %p744 = pneg %p265
      %p745 = pneg %p289
      %p746 = pneg %p286
      %p747 = pneg %p310
      %p748 = pneg %p307
      %p749 = pneg %p331
      %p750 = pneg %p328
      %p751 = pneg %p352
      %p752 = pneg %p349
      %p753 = pneg %p373
      %p754 = pneg %p370
      %p755 = pneg %p394
      %p756 = pneg %p391
      %p757 = pneg %p415
      %p758 = pneg %p412
      %p759 = pneg %p436
      %p760 = pneg %p433
      %p761 = pneg %p457
      %p762 = pneg %p454
      %p763 = pneg %p478
      %p764 = pneg %p475
      %p765 = pneg %p499
      %p766 = pneg %p496
      %p767 = pneg %p520
      %p768 = pneg %p517
      %p769 = pneg %p541
      %p770 = pneg %p538
      %p771 = pneg %p562
      %p772 = pneg %p559
      %p773 = pneg %p583
      %p774 = pneg %p580
      %p775 = pneg %p609
      %p776 = pneg %p606
      %p777 = scmp.lt.s32.totalorder %s37, 1
      %s778 = scalar_select %p777, %s37, 1
      %s779 = smul.addr %s778, 32
      %s780 = smul.addr %s779, 8
      %s781 = scalar_lea.vmem %s26, %s780
      %p782 = scmp.lt.s32.totalorder %s37, 1
      %s783 = scalar_select %p782, %s37, 1
      %s784 = smul.addr %s783, 32
      %s785 = smul.addr %s784, 8
      %s786 = scalar_lea.vmem %s0, %s785
      %p787 = scmp.lt.s32.totalorder %s37, 1
      %s788 = scalar_select %p787, %s37, 1
      %s789 = smul.addr %s788, 32
      %s790 = smul.addr %s789, 8
      %s791 = scalar_lea.vmem %s26, %s790
      %v793 = vld [vmem:[%s786] sm:$0xff]
      %v794 = vld [vmem:[%s786 + $0x8] sm:$0xff]
      %v795 = vld [vmem:[%s786 + $0x10] sm:$0xff]
      %v796 = vld [vmem:[%s786 + $0x18] sm:$0xff]
      %v797 = vld [vmem:[%s786 + $0x20] sm:$0xff]
      %v798 = vld [vmem:[%s786 + $0x28] sm:$0xff]
      %v799 = vld [vmem:[%s786 + $0x30] sm:$0xff]
      %v800 = vld [vmem:[%s786 + $0x38] sm:$0xff]
      %v801 = vld [vmem:[%s786 + $0x40] sm:$0xff]
      %v802 = vld [vmem:[%s786 + $0x48] sm:$0xff]
      %v803 = vld [vmem:[%s786 + $0x50] sm:$0xff]
      %v804 = vld [vmem:[%s786 + $0x58] sm:$0xff]
      %v805 = vld [vmem:[%s786 + $0x60] sm:$0xff]
      %v806 = vld [vmem:[%s786 + $0x68] sm:$0xff]
      %v807 = vld [vmem:[%s786 + $0x70] sm:$0xff]
      %v808 = vld [vmem:[%s786 + $0x78] sm:$0xff]
      %v809 = vld [vmem:[%s786 + $0x80] sm:$0xff]
      %v810 = vld [vmem:[%s786 + $0x88] sm:$0xff]
      %v811 = vld [vmem:[%s786 + $0x90] sm:$0xff]
      %v812 = vld [vmem:[%s786 + $0x98] sm:$0xff]
      %v813 = vld [vmem:[%s786 + $0xa0] sm:$0xff]
      %v814 = vld [vmem:[%s786 + $0xa8] sm:$0xff]
      %v815 = vld [vmem:[%s786 + $0xb0] sm:$0xff]
      %v816 = vld [vmem:[%s786 + $0xb8] sm:$0xff]
      %v817 = vld [vmem:[%s786 + $0xc0] sm:$0xff]
      %v818 = vld [vmem:[%s786 + $0xc8] sm:$0xff]
      %v819 = vld [vmem:[%s786 + $0xd0] sm:$0xff]
      %v820 = vld [vmem:[%s786 + $0xd8] sm:$0xff]
      %v821 = vld [vmem:[%s786 + $0xe0] sm:$0xff]
      %v822 = vld [vmem:[%s786 + $0xe8] sm:$0xff]
      %v823 = vld [vmem:[%s786 + $0xf0] sm:$0xff]
      %v824 = vld [vmem:[%s786 + $0xf8] sm:$0xff]
      %v825 = vld [vmem:[%s2] sm:$0x1]
      %v826 = vld [vmem:[%s3] sm:$0x1]
      %vm827 = vcmask 31744
      %v828 = vsel %vm827, %v793, 0.0
      %829 = vadd.xlane.f32.xlu0 %v828
      %v830 = vpop.xlane.xlu0 %829
      %v831 = vsel %vm827, %v794, 0.0
      %832 = vadd.xlane.f32.xlu0 %v831
      %v833 = vpop.xlane.xlu0 %832
      %v834 = vsel %vm827, %v795, 0.0
      %835 = vadd.xlane.f32.xlu0 %v834
      %v836 = vpop.xlane.xlu0 %835
      %v837 = vsel %vm827, %v796, 0.0
      %838 = vadd.xlane.f32.xlu0 %v837
      %v839 = vpop.xlane.xlu0 %838
      %v840 = vsel %vm827, %v797, 0.0
      %841 = vadd.xlane.f32.xlu0 %v840
      %v842 = vpop.xlane.xlu0 %841
      %v843 = vsel %vm827, %v798, 0.0
      %844 = vadd.xlane.f32.xlu0 %v843
      %v845 = vpop.xlane.xlu0 %844
      %v846 = vsel %vm827, %v799, 0.0
      %847 = vadd.xlane.f32.xlu0 %v846
      %v848 = vpop.xlane.xlu0 %847
      %v849 = vsel %vm827, %v800, 0.0
      %850 = vadd.xlane.f32.xlu0 %v849
      %v851 = vpop.xlane.xlu0 %850
      %v852 = vsel %vm827, %v801, 0.0
      %853 = vadd.xlane.f32.xlu0 %v852
      %v854 = vpop.xlane.xlu0 %853
      %v855 = vsel %vm827, %v802, 0.0
      %856 = vadd.xlane.f32.xlu0 %v855
      %v857 = vpop.xlane.xlu0 %856
      %v858 = vsel %vm827, %v803, 0.0
      %859 = vadd.xlane.f32.xlu0 %v858
      %v860 = vpop.xlane.xlu0 %859
      %v861 = vsel %vm827, %v804, 0.0
      %862 = vadd.xlane.f32.xlu0 %v861
      %v863 = vpop.xlane.xlu0 %862
      %v864 = vsel %vm827, %v805, 0.0
      %865 = vadd.xlane.f32.xlu0 %v864
      %v866 = vpop.xlane.xlu0 %865
      %v867 = vsel %vm827, %v806, 0.0
      %868 = vadd.xlane.f32.xlu0 %v867
      %v869 = vpop.xlane.xlu0 %868
      %v870 = vsel %vm827, %v807, 0.0
      %871 = vadd.xlane.f32.xlu0 %v870
      %v872 = vpop.xlane.xlu0 %871
      %v873 = vsel %vm827, %v808, 0.0
      %874 = vadd.xlane.f32.xlu0 %v873
      %v875 = vpop.xlane.xlu0 %874
      %v876 = vsel %vm827, %v809, 0.0
      %877 = vadd.xlane.f32.xlu0 %v876
      %v878 = vpop.xlane.xlu0 %877
      %v879 = vsel %vm827, %v810, 0.0
      %880 = vadd.xlane.f32.xlu0 %v879
      %v881 = vpop.xlane.xlu0 %880
      %v882 = vsel %vm827, %v811, 0.0
      %883 = vadd.xlane.f32.xlu0 %v882
      %v884 = vpop.xlane.xlu0 %883
      %v885 = vsel %vm827, %v812, 0.0
      %886 = vadd.xlane.f32.xlu0 %v885
      %v887 = vpop.xlane.xlu0 %886
      %v888 = vsel %vm827, %v813, 0.0
      %889 = vadd.xlane.f32.xlu0 %v888
      %v890 = vpop.xlane.xlu0 %889
      %v891 = vsel %vm827, %v814, 0.0
      %892 = vadd.xlane.f32.xlu0 %v891
      %v893 = vpop.xlane.xlu0 %892
      %v894 = vsel %vm827, %v815, 0.0
      %895 = vadd.xlane.f32.xlu0 %v894
      %v896 = vpop.xlane.xlu0 %895
      %v897 = vsel %vm827, %v816, 0.0
      %898 = vadd.xlane.f32.xlu0 %v897
      %v899 = vpop.xlane.xlu0 %898
      %v900 = vsel %vm827, %v817, 0.0
      %901 = vadd.xlane.f32.xlu0 %v900
      %v902 = vpop.xlane.xlu0 %901
      %v903 = vsel %vm827, %v818, 0.0
      %904 = vadd.xlane.f32.xlu0 %v903
      %v905 = vpop.xlane.xlu0 %904
      %v906 = vsel %vm827, %v819, 0.0
      %907 = vadd.xlane.f32.xlu0 %v906
      %v908 = vpop.xlane.xlu0 %907
      %v909 = vsel %vm827, %v820, 0.0
      %910 = vadd.xlane.f32.xlu0 %v909
      %v911 = vpop.xlane.xlu0 %910
      %v912 = vsel %vm827, %v821, 0.0
      %913 = vadd.xlane.f32.xlu0 %v912
      %v914 = vpop.xlane.xlu0 %913
      %v915 = vsel %vm827, %v822, 0.0
      %916 = vadd.xlane.f32.xlu0 %v915
      %v917 = vpop.xlane.xlu0 %916
      %v918 = vsel %vm827, %v823, 0.0
      %919 = vadd.xlane.f32.xlu0 %v918
      %v920 = vpop.xlane.xlu0 %919
      %v921 = vsel %vm827, %v824, 0.0
      %922 = vadd.xlane.f32.xlu0 %v921
      %v923 = vpop.xlane.xlu0 %922
      %v924 = vrcp.pop 4.0
      %v925 = vmul.f32 %v830, %v924
      %v926 = vmul.f32 %v833, %v924
      %v927 = vmul.f32 %v836, %v924
      %v928 = vmul.f32 %v839, %v924
      %v929 = vmul.f32 %v842, %v924
      %v930 = vmul.f32 %v845, %v924
      %v931 = vmul.f32 %v848, %v924
      %v932 = vmul.f32 %v851, %v924
      %v933 = vmul.f32 %v854, %v924
      %v934 = vmul.f32 %v857, %v924
      %v935 = vmul.f32 %v860, %v924
      %v936 = vmul.f32 %v863, %v924
      %v937 = vmul.f32 %v866, %v924
      %v938 = vmul.f32 %v869, %v924
      %v939 = vmul.f32 %v872, %v924
      %v940 = vmul.f32 %v875, %v924
      %v941 = vmul.f32 %v878, %v924
      %v942 = vmul.f32 %v881, %v924
      %v943 = vmul.f32 %v884, %v924
      %v944 = vmul.f32 %v887, %v924
      %v945 = vmul.f32 %v890, %v924
      %v946 = vmul.f32 %v893, %v924
      %v947 = vmul.f32 %v896, %v924
      %v948 = vmul.f32 %v899, %v924
      %v949 = vmul.f32 %v902, %v924
      %v950 = vmul.f32 %v905, %v924
      %v951 = vmul.f32 %v908, %v924
      %v952 = vmul.f32 %v911, %v924
      %v953 = vmul.f32 %v914, %v924
      %v954 = vmul.f32 %v917, %v924
      %v955 = vmul.f32 %v920, %v924
      %v956 = vmul.f32 %v923, %v924
      %v957 = vsub.f32 %v793, %v925
      %v958 = vsub.f32 %v794, %v926
      %v959 = vsub.f32 %v795, %v927
      %v960 = vsub.f32 %v796, %v928
      %v961 = vsub.f32 %v797, %v929
      %v962 = vsub.f32 %v798, %v930
      %v963 = vsub.f32 %v799, %v931
      %v964 = vsub.f32 %v800, %v932
      %v965 = vsub.f32 %v801, %v933
      %v966 = vsub.f32 %v802, %v934
      %v967 = vsub.f32 %v803, %v935
      %v968 = vsub.f32 %v804, %v936
      %v969 = vsub.f32 %v805, %v937
      %v970 = vsub.f32 %v806, %v938
      %v971 = vsub.f32 %v807, %v939
      %v972 = vsub.f32 %v808, %v940
      %v973 = vsub.f32 %v809, %v941
      %v974 = vsub.f32 %v810, %v942
      %v975 = vsub.f32 %v811, %v943
      %v976 = vsub.f32 %v812, %v944
      %v977 = vsub.f32 %v813, %v945
      %v978 = vsub.f32 %v814, %v946
      %v979 = vsub.f32 %v815, %v947
      %v980 = vsub.f32 %v816, %v948
      %v981 = vsub.f32 %v817, %v949
      %v982 = vsub.f32 %v818, %v950
      %v983 = vsub.f32 %v819, %v951
      %v984 = vsub.f32 %v820, %v952
      %v985 = vsub.f32 %v821, %v953
      %v986 = vsub.f32 %v822, %v954
      %v987 = vsub.f32 %v823, %v955
      %v988 = vsub.f32 %v824, %v956
      %v989 = vmul.f32 %v957, %v957
      %v990 = vmul.f32 %v958, %v958
      %v991 = vmul.f32 %v959, %v959
      %v992 = vmul.f32 %v960, %v960
      %v993 = vmul.f32 %v961, %v961
      %v994 = vmul.f32 %v962, %v962
      %v995 = vmul.f32 %v963, %v963
      %v996 = vmul.f32 %v964, %v964
      %v997 = vmul.f32 %v965, %v965
      %v998 = vmul.f32 %v966, %v966
      %v999 = vmul.f32 %v967, %v967
      %v1000 = vmul.f32 %v968, %v968
      %v1001 = vmul.f32 %v969, %v969
      %v1002 = vmul.f32 %v970, %v970
      %v1003 = vmul.f32 %v971, %v971
      %v1004 = vmul.f32 %v972, %v972
      %v1005 = vmul.f32 %v973, %v973
      %v1006 = vmul.f32 %v974, %v974
      %v1007 = vmul.f32 %v975, %v975
      %v1008 = vmul.f32 %v976, %v976
      %v1009 = vmul.f32 %v977, %v977
      %v1010 = vmul.f32 %v978, %v978
      %v1011 = vmul.f32 %v979, %v979
      %v1012 = vmul.f32 %v980, %v980
      %v1013 = vmul.f32 %v981, %v981
      %v1014 = vmul.f32 %v982, %v982
      %v1015 = vmul.f32 %v983, %v983
      %v1016 = vmul.f32 %v984, %v984
      %v1017 = vmul.f32 %v985, %v985
      %v1018 = vmul.f32 %v986, %v986
      %v1019 = vmul.f32 %v987, %v987
      %v1020 = vmul.f32 %v988, %v988
      %v1021 = vsel %vm827, %v989, 0.0
      %1022 = vadd.xlane.f32.xlu0 %v1021
      %v1023 = vpop.xlane.xlu0 %1022
      %v1024 = vsel %vm827, %v990, 0.0
      %1025 = vadd.xlane.f32.xlu0 %v1024
      %v1026 = vpop.xlane.xlu0 %1025
      %v1027 = vsel %vm827, %v991, 0.0
      %1028 = vadd.xlane.f32.xlu0 %v1027
      %v1029 = vpop.xlane.xlu0 %1028
      %v1030 = vsel %vm827, %v992, 0.0
      %1031 = vadd.xlane.f32.xlu0 %v1030
      %v1032 = vpop.xlane.xlu0 %1031
      %v1033 = vsel %vm827, %v993, 0.0
      %1034 = vadd.xlane.f32.xlu0 %v1033
      %v1035 = vpop.xlane.xlu0 %1034
      %v1036 = vsel %vm827, %v994, 0.0
      %1037 = vadd.xlane.f32.xlu0 %v1036
      %v1038 = vpop.xlane.xlu0 %1037
      %v1039 = vsel %vm827, %v995, 0.0
      %1040 = vadd.xlane.f32.xlu0 %v1039
      %v1041 = vpop.xlane.xlu0 %1040
      %v1042 = vsel %vm827, %v996, 0.0
      %1043 = vadd.xlane.f32.xlu0 %v1042
      %v1044 = vpop.xlane.xlu0 %1043
      %v1045 = vsel %vm827, %v997, 0.0
      %1046 = vadd.xlane.f32.xlu0 %v1045
      %v1047 = vpop.xlane.xlu0 %1046
      %v1048 = vsel %vm827, %v998, 0.0
      %1049 = vadd.xlane.f32.xlu0 %v1048
      %v1050 = vpop.xlane.xlu0 %1049
      %v1051 = vsel %vm827, %v999, 0.0
      %1052 = vadd.xlane.f32.xlu0 %v1051
      %v1053 = vpop.xlane.xlu0 %1052
      %v1054 = vsel %vm827, %v1000, 0.0
      %1055 = vadd.xlane.f32.xlu0 %v1054
      %v1056 = vpop.xlane.xlu0 %1055
      %v1057 = vsel %vm827, %v1001, 0.0
      %1058 = vadd.xlane.f32.xlu0 %v1057
      %v1059 = vpop.xlane.xlu0 %1058
      %v1060 = vsel %vm827, %v1002, 0.0
      %1061 = vadd.xlane.f32.xlu0 %v1060
      %v1062 = vpop.xlane.xlu0 %1061
      %v1063 = vsel %vm827, %v1003, 0.0
      %1064 = vadd.xlane.f32.xlu0 %v1063
      %v1065 = vpop.xlane.xlu0 %1064
      %v1066 = vsel %vm827, %v1004, 0.0
      %1067 = vadd.xlane.f32.xlu0 %v1066
      %v1068 = vpop.xlane.xlu0 %1067
      %v1069 = vsel %vm827, %v1005, 0.0
      %1070 = vadd.xlane.f32.xlu0 %v1069
      %v1071 = vpop.xlane.xlu0 %1070
      %v1072 = vsel %vm827, %v1006, 0.0
      %1073 = vadd.xlane.f32.xlu0 %v1072
      %v1074 = vpop.xlane.xlu0 %1073
      %v1075 = vsel %vm827, %v1007, 0.0
      %1076 = vadd.xlane.f32.xlu0 %v1075
      %v1077 = vpop.xlane.xlu0 %1076
      %v1078 = vsel %vm827, %v1008, 0.0
      %1079 = vadd.xlane.f32.xlu0 %v1078
      %v1080 = vpop.xlane.xlu0 %1079
      %v1081 = vsel %vm827, %v1009, 0.0
      %1082 = vadd.xlane.f32.xlu0 %v1081
      %v1083 = vpop.xlane.xlu0 %1082
      %v1084 = vsel %vm827, %v1010, 0.0
      %1085 = vadd.xlane.f32.xlu0 %v1084
      %v1086 = vpop.xlane.xlu0 %1085
      %v1087 = vsel %vm827, %v1011, 0.0
      %1088 = vadd.xlane.f32.xlu0 %v1087
      %v1089 = vpop.xlane.xlu0 %1088
      %v1090 = vsel %vm827, %v1012, 0.0
      %1091 = vadd.xlane.f32.xlu0 %v1090
      %v1092 = vpop.xlane.xlu0 %1091
      %v1093 = vsel %vm827, %v1013, 0.0
      %1094 = vadd.xlane.f32.xlu0 %v1093
      %v1095 = vpop.xlane.xlu0 %1094
      %v1096 = vsel %vm827, %v1014, 0.0
      %1097 = vadd.xlane.f32.xlu0 %v1096
      %v1098 = vpop.xlane.xlu0 %1097
      %v1099 = vsel %vm827, %v1015, 0.0
      %1100 = vadd.xlane.f32.xlu0 %v1099
      %v1101 = vpop.xlane.xlu0 %1100
      %v1102 = vsel %vm827, %v1016, 0.0
      %1103 = vadd.xlane.f32.xlu0 %v1102
      %v1104 = vpop.xlane.xlu0 %1103
      %v1105 = vsel %vm827, %v1017, 0.0
      %1106 = vadd.xlane.f32.xlu0 %v1105
      %v1107 = vpop.xlane.xlu0 %1106
      %v1108 = vsel %vm827, %v1018, 0.0
      %1109 = vadd.xlane.f32.xlu0 %v1108
      %v1110 = vpop.xlane.xlu0 %1109
      %v1111 = vsel %vm827, %v1019, 0.0
      %1112 = vadd.xlane.f32.xlu0 %v1111
      %v1113 = vpop.xlane.xlu0 %1112
      %v1114 = vsel %vm827, %v1020, 0.0
      %1115 = vadd.xlane.f32.xlu0 %v1114
      %v1116 = vpop.xlane.xlu0 %1115
      %v1117 = vmul.f32 %v1023, %v924
      %v1118 = vmul.f32 %v1026, %v924
      %v1119 = vmul.f32 %v1029, %v924
      %v1120 = vmul.f32 %v1032, %v924
      %v1121 = vmul.f32 %v1035, %v924
      %v1122 = vmul.f32 %v1038, %v924
      %v1123 = vmul.f32 %v1041, %v924
      %v1124 = vmul.f32 %v1044, %v924
      %v1125 = vmul.f32 %v1047, %v924
      %v1126 = vmul.f32 %v1050, %v924
      %v1127 = vmul.f32 %v1053, %v924
      %v1128 = vmul.f32 %v1056, %v924
      %v1129 = vmul.f32 %v1059, %v924
      %v1130 = vmul.f32 %v1062, %v924
      %v1131 = vmul.f32 %v1065, %v924
      %v1132 = vmul.f32 %v1068, %v924
      %v1133 = vmul.f32 %v1071, %v924
      %v1134 = vmul.f32 %v1074, %v924
      %v1135 = vmul.f32 %v1077, %v924
      %v1136 = vmul.f32 %v1080, %v924
      %v1137 = vmul.f32 %v1083, %v924
      %v1138 = vmul.f32 %v1086, %v924
      %v1139 = vmul.f32 %v1089, %v924
      %v1140 = vmul.f32 %v1092, %v924
      %v1141 = vmul.f32 %v1095, %v924
      %v1142 = vmul.f32 %v1098, %v924
      %v1143 = vmul.f32 %v1101, %v924
      %v1144 = vmul.f32 %v1104, %v924
      %v1145 = vmul.f32 %v1107, %v924
      %v1146 = vmul.f32 %v1110, %v924
      %v1147 = vmul.f32 %v1113, %v924
      %v1148 = vmul.f32 %v1116, %v924
      %v1149 = vadd.f32 %v1117, 1e-06
      %v1150 = vadd.f32 %v1118, 1e-06
      %v1151 = vadd.f32 %v1119, 1e-06
      %v1152 = vadd.f32 %v1120, 1e-06
      %v1153 = vadd.f32 %v1121, 1e-06
      %v1154 = vadd.f32 %v1122, 1e-06
      %v1155 = vadd.f32 %v1123, 1e-06
      %v1156 = vadd.f32 %v1124, 1e-06
      %v1157 = vadd.f32 %v1125, 1e-06
      %v1158 = vadd.f32 %v1126, 1e-06
      %v1159 = vadd.f32 %v1127, 1e-06
      %v1160 = vadd.f32 %v1128, 1e-06
      %v1161 = vadd.f32 %v1129, 1e-06
      %v1162 = vadd.f32 %v1130, 1e-06
      %v1163 = vadd.f32 %v1131, 1e-06
      %v1164 = vadd.f32 %v1132, 1e-06
      %v1165 = vadd.f32 %v1133, 1e-06
      %v1166 = vadd.f32 %v1134, 1e-06
      %v1167 = vadd.f32 %v1135, 1e-06
      %v1168 = vadd.f32 %v1136, 1e-06
      %v1169 = vadd.f32 %v1137, 1e-06
      %v1170 = vadd.f32 %v1138, 1e-06
      %v1171 = vadd.f32 %v1139, 1e-06
      %v1172 = vadd.f32 %v1140, 1e-06
      %v1173 = vadd.f32 %v1141, 1e-06
      %v1174 = vadd.f32 %v1142, 1e-06
      %v1175 = vadd.f32 %v1143, 1e-06
      %v1176 = vadd.f32 %v1144, 1e-06
      %v1177 = vadd.f32 %v1145, 1e-06
      %v1178 = vadd.f32 %v1146, 1e-06
      %v1179 = vadd.f32 %v1147, 1e-06
      %v1180 = vadd.f32 %v1148, 1e-06
      %v1181 = vrsqrt.pop %v1149
      %v1182 = vrsqrt.pop %v1150
      %v1183 = vrsqrt.pop %v1151
      %v1184 = vrsqrt.pop %v1152
      %v1185 = vrsqrt.pop %v1153
      %v1186 = vrsqrt.pop %v1154
      %v1187 = vrsqrt.pop %v1155
      %v1188 = vrsqrt.pop %v1156
      %v1189 = vrsqrt.pop %v1157
      %v1190 = vrsqrt.pop %v1158
      %v1191 = vrsqrt.pop %v1159
      %v1192 = vrsqrt.pop %v1160
      %v1193 = vrsqrt.pop %v1161
      %v1194 = vrsqrt.pop %v1162
      %v1195 = vrsqrt.pop %v1163
      %v1196 = vrsqrt.pop %v1164
      %v1197 = vrsqrt.pop %v1165
      %v1198 = vrsqrt.pop %v1166
      %v1199 = vrsqrt.pop %v1167
      %v1200 = vrsqrt.pop %v1168
      %v1201 = vrsqrt.pop %v1169
      %v1202 = vrsqrt.pop %v1170
      %v1203 = vrsqrt.pop %v1171
      %v1204 = vrsqrt.pop %v1172
      %v1205 = vrsqrt.pop %v1173
      %v1206 = vrsqrt.pop %v1174
      %v1207 = vrsqrt.pop %v1175
      %v1208 = vrsqrt.pop %v1176
      %v1209 = vrsqrt.pop %v1177
      %v1210 = vrsqrt.pop %v1178
      %v1211 = vrsqrt.pop %v1179
      %v1212 = vrsqrt.pop %v1180
      %v1213 = vmul.f32 %v957, %v1181
      %v1214 = vmul.f32 %v958, %v1182
      %v1215 = vmul.f32 %v959, %v1183
      %v1216 = vmul.f32 %v960, %v1184
      %v1217 = vmul.f32 %v961, %v1185
      %v1218 = vmul.f32 %v962, %v1186
      %v1219 = vmul.f32 %v963, %v1187
      %v1220 = vmul.f32 %v964, %v1188
      %v1221 = vmul.f32 %v965, %v1189
      %v1222 = vmul.f32 %v966, %v1190
      %v1223 = vmul.f32 %v967, %v1191
      %v1224 = vmul.f32 %v968, %v1192
      %v1225 = vmul.f32 %v969, %v1193
      %v1226 = vmul.f32 %v970, %v1194
      %v1227 = vmul.f32 %v971, %v1195
      %v1228 = vmul.f32 %v972, %v1196
      %v1229 = vmul.f32 %v973, %v1197
      %v1230 = vmul.f32 %v974, %v1198
      %v1231 = vmul.f32 %v975, %v1199
      %v1232 = vmul.f32 %v976, %v1200
      %v1233 = vmul.f32 %v977, %v1201
      %v1234 = vmul.f32 %v978, %v1202
      %v1235 = vmul.f32 %v979, %v1203
      %v1236 = vmul.f32 %v980, %v1204
      %v1237 = vmul.f32 %v981, %v1205
      %v1238 = vmul.f32 %v982, %v1206
      %v1239 = vmul.f32 %v983, %v1207
      %v1240 = vmul.f32 %v984, %v1208
      %v1241 = vmul.f32 %v985, %v1209
      %v1242 = vmul.f32 %v986, %v1210
      %v1243 = vmul.f32 %v987, %v1211
      %v1244 = vmul.f32 %v988, %v1212
      %v1246 = vlaneseq
      %v1247 = vshrl.u32 %v1246, 7
      %v1248 = vsub.s32 0, %v1247
      %v1249 = vrot.slane %v825, %v1248
      %v1251 = vmul.f32 %v1213, %v1249
      %v1252 = vmul.f32 %v1214, %v1249
      %v1253 = vmul.f32 %v1215, %v1249
      %v1254 = vmul.f32 %v1216, %v1249
      %v1255 = vmul.f32 %v1217, %v1249
      %v1256 = vmul.f32 %v1218, %v1249
      %v1257 = vmul.f32 %v1219, %v1249
      %v1258 = vmul.f32 %v1220, %v1249
      %v1259 = vmul.f32 %v1221, %v1249
      %v1260 = vmul.f32 %v1222, %v1249
      %v1261 = vmul.f32 %v1223, %v1249
      %v1262 = vmul.f32 %v1224, %v1249
      %v1263 = vmul.f32 %v1225, %v1249
      %v1264 = vmul.f32 %v1226, %v1249
      %v1265 = vmul.f32 %v1227, %v1249
      %v1266 = vmul.f32 %v1228, %v1249
      %v1267 = vmul.f32 %v1229, %v1249
      %v1268 = vmul.f32 %v1230, %v1249
      %v1269 = vmul.f32 %v1231, %v1249
      %v1270 = vmul.f32 %v1232, %v1249
      %v1271 = vmul.f32 %v1233, %v1249
      %v1272 = vmul.f32 %v1234, %v1249
      %v1273 = vmul.f32 %v1235, %v1249
      %v1274 = vmul.f32 %v1236, %v1249
      %v1275 = vmul.f32 %v1237, %v1249
      %v1276 = vmul.f32 %v1238, %v1249
      %v1277 = vmul.f32 %v1239, %v1249
      %v1278 = vmul.f32 %v1240, %v1249
      %v1279 = vmul.f32 %v1241, %v1249
      %v1280 = vmul.f32 %v1242, %v1249
      %v1281 = vmul.f32 %v1243, %v1249
      %v1282 = vmul.f32 %v1244, %v1249
      %v1284 = vlaneseq
      %v1285 = vshrl.u32 %v1284, 7
      %v1286 = vsub.s32 0, %v1285
      %v1287 = vrot.slane %v826, %v1286
      %v1289 = vadd.f32 %v1251, %v1287
      %v1290 = vadd.f32 %v1252, %v1287
      %v1291 = vadd.f32 %v1253, %v1287
      %v1292 = vadd.f32 %v1254, %v1287
      %v1293 = vadd.f32 %v1255, %v1287
      %v1294 = vadd.f32 %v1256, %v1287
      %v1295 = vadd.f32 %v1257, %v1287
      %v1296 = vadd.f32 %v1258, %v1287
      %v1297 = vadd.f32 %v1259, %v1287
      %v1298 = vadd.f32 %v1260, %v1287
      %v1299 = vadd.f32 %v1261, %v1287
      %v1300 = vadd.f32 %v1262, %v1287
      %v1301 = vadd.f32 %v1263, %v1287
      %v1302 = vadd.f32 %v1264, %v1287
      %v1303 = vadd.f32 %v1265, %v1287
      %v1304 = vadd.f32 %v1266, %v1287
      %v1305 = vadd.f32 %v1267, %v1287
      %v1306 = vadd.f32 %v1268, %v1287
      %v1307 = vadd.f32 %v1269, %v1287
      %v1308 = vadd.f32 %v1270, %v1287
      %v1309 = vadd.f32 %v1271, %v1287
      %v1310 = vadd.f32 %v1272, %v1287
      %v1311 = vadd.f32 %v1273, %v1287
      %v1312 = vadd.f32 %v1274, %v1287
      %v1313 = vadd.f32 %v1275, %v1287
      %v1314 = vadd.f32 %v1276, %v1287
      %v1315 = vadd.f32 %v1277, %v1287
      %v1316 = vadd.f32 %v1278, %v1287
      %v1317 = vadd.f32 %v1279, %v1287
      %v1318 = vadd.f32 %v1280, %v1287
      %v1319 = vadd.f32 %v1281, %v1287
      %v1320 = vadd.f32 %v1282, %v1287
      %v1321 = vpack.c.bf16 %v1290, %v1289
      %v1322 = vpack.c.bf16 %v1292, %v1291
      %v1323 = vpack.c.bf16 %v1294, %v1293
      %v1324 = vpack.c.bf16 %v1296, %v1295
      %v1325 = vpack.c.bf16 %v1298, %v1297
      %v1326 = vpack.c.bf16 %v1300, %v1299
      %v1327 = vpack.c.bf16 %v1302, %v1301
      %v1328 = vpack.c.bf16 %v1304, %v1303
      %v1329 = vpack.c.bf16 %v1306, %v1305
      %v1330 = vpack.c.bf16 %v1308, %v1307
      %v1331 = vpack.c.bf16 %v1310, %v1309
      %v1332 = vpack.c.bf16 %v1312, %v1311
      %v1333 = vpack.c.bf16 %v1314, %v1313
      %v1334 = vpack.c.bf16 %v1316, %v1315
      %v1335 = vpack.c.bf16 %v1318, %v1317
      %v1336 = vpack.c.bf16 %v1320, %v1319
      %v1337 = vld [vmem:[%s4] sm:$0x3]
      %v1338 = vld [vmem:[%s6] sm:$0x1]
      %v1340 = vlaneseq
      %v1341 = vshrl.u32 %v1340, 7
      %v1342 = vsub.s32 0, %v1341
      %v1343 = vrot.slane %v1338, %v1342
      %v1346 = vsel %vm827, %v1321, 0
      %v1349 = vsel %vm827, %v1322, 0
      %v1352 = vsel %vm827, %v1323, 0
      %v1355 = vsel %vm827, %v1324, 0
      %v1358 = vsel %vm827, %v1325, 0
      %v1361 = vsel %vm827, %v1326, 0
      %v1364 = vsel %vm827, %v1327, 0
      %v1367 = vsel %vm827, %v1328, 0
      %v1370 = vsel %vm827, %v1329, 0
      %v1373 = vsel %vm827, %v1330, 0
      %v1376 = vsel %vm827, %v1331, 0
      %v1379 = vsel %vm827, %v1332, 0
      %v1382 = vsel %vm827, %v1333, 0
      %v1385 = vsel %vm827, %v1334, 0
      %v1388 = vsel %vm827, %v1335, 0
      %v1391 = vsel %vm827, %v1336, 0
      %vm1393 = vcmask 1041408
      %v1395 = vsel %vm1393, %v1337, 0
      %1397 = vmatprep.subr.bf16.mxu0 0
      %1398 = vmatpush1.bf16.msra.mxu0 %v1395
      %1399 = vmatprep.subr.bf16.mxu0 0
      %1400 = vmatpush1.bf16.msra.mxu0 0
      %1401 = vmatprep.subr.bf16.mxu0 0
      %1402 = vmatpush1.bf16.msra.mxu0 0
      %1403 = vmatprep.subr.bf16.mxu0 0
      %1404 = vmatpush1.bf16.msra.mxu0 0
      %1405 = vmatprep.subr.bf16.mxu0 0
      %1406 = vmatpush1.bf16.msra.mxu0 0
      %1407 = vmatprep.subr.bf16.mxu0 0
      %1408 = vmatpush1.bf16.msra.mxu0 0
      %1409 = vmatprep.subr.bf16.mxu0 0
      %1410 = vmatpush1.bf16.msra.mxu0 0
      %1411 = vmatprep.subr.bf16.mxu0 0
      %1412 = vmatpush1.bf16.msra.mxu0 0
      %1413 = vmatprep.subr.bf16.mxu0 0
      %1414 = vmatpush1.bf16.msra.mxu0 0
      %1415 = vmatprep.subr.bf16.mxu0 0
      %1416 = vmatpush1.bf16.msra.mxu0 0
      %1417 = vmatprep.subr.bf16.mxu0 0
      %1418 = vmatpush1.bf16.msra.mxu0 0
      %1419 = vmatprep.subr.bf16.mxu0 0
      %1420 = vmatpush1.bf16.msra.mxu0 0
      %1421 = vmatprep.subr.bf16.mxu0 0
      %1422 = vmatpush1.bf16.msra.mxu0 0
      %1423 = vmatprep.subr.bf16.mxu0 0
      %1424 = vmatpush1.bf16.msra.mxu0 0
      %1425 = vmatprep.subr.bf16.mxu0 0
      %1426 = vmatpush1.bf16.msra.mxu0 0
      %1427 = vmatprep.subr.bf16.mxu0 0
      %1428 = vmatpush1.bf16.msra.mxu0 0
      %1429 = vmatprep.mubr.bf16.mxu0 0
      %1430 = vmatmul.mubr.bf16.gmra.mrb[0].mxu0 %v1346
      %v1431 = vpop.f32.mrb[0].mxu0
      %v1432 = vadd.f32 %v1343, %v1431
      %v1433 = vpop.f32.mrb[0].mxu0
      %v1434 = vpop.f32.mrb[0].mxu0
      %v1435 = vadd.f32 %v1343, %v1434
      %v1436 = vpop.f32.mrb[0].mxu0
      %1437 = vmatprep.mubr.bf16.mxu0 0
      %1438 = vmatmul.mubr.bf16.gmra.mrb[0].mxu0 %v1349
      %v1439 = vpop.f32.mrb[0].mxu0
      %v1440 = vadd.f32 %v1343, %v1439
      %v1441 = vpop.f32.mrb[0].mxu0
      %v1442 = vpop.f32.mrb[0].mxu0
      %v1443 = vadd.f32 %v1343, %v1442
      %v1444 = vpop.f32.mrb[0].mxu0
      %1445 = vmatprep.mubr.bf16.mxu0 0
      %1446 = vmatmul.mubr.bf16.gmra.mrb[0].mxu0 %v1352
      %v1447 = vpop.f32.mrb[0].mxu0
      %v1448 = vadd.f32 %v1343, %v1447
      %v1449 = vpop.f32.mrb[0].mxu0
      %v1450 = vpop.f32.mrb[0].mxu0
      %v1451 = vadd.f32 %v1343, %v1450
      %v1452 = vpop.f32.mrb[0].mxu0
      %1453 = vmatprep.mubr.bf16.mxu0 0
      %1454 = vmatmul.mubr.bf16.gmra.mrb[0].mxu0 %v1355
      %v1455 = vpop.f32.mrb[0].mxu0
      %v1456 = vadd.f32 %v1343, %v1455
      %v1457 = vpop.f32.mrb[0].mxu0
      %v1458 = vpop.f32.mrb[0].mxu0
      %v1459 = vadd.f32 %v1343, %v1458
      %v1460 = vpop.f32.mrb[0].mxu0
      %1461 = vmatprep.mubr.bf16.mxu0 0
      %1462 = vmatmul.mubr.bf16.gmra.mrb[0].mxu0 %v1358
      %v1463 = vpop.f32.mrb[0].mxu0
      %v1464 = vadd.f32 %v1343, %v1463
      %v1465 = vpop.f32.mrb[0].mxu0
      %v1466 = vpop.f32.mrb[0].mxu0
      %v1467 = vadd.f32 %v1343, %v1466
      %v1468 = vpop.f32.mrb[0].mxu0
      %1469 = vmatprep.mubr.bf16.mxu0 0
      %1470 = vmatmul.mubr.bf16.gmra.mrb[0].mxu0 %v1361
      %v1471 = vpop.f32.mrb[0].mxu0
      %v1472 = vadd.f32 %v1343, %v1471
      %v1473 = vpop.f32.mrb[0].mxu0
      %v1474 = vpop.f32.mrb[0].mxu0
      %v1475 = vadd.f32 %v1343, %v1474
      %v1476 = vpop.f32.mrb[0].mxu0
      %1477 = vmatprep.mubr.bf16.mxu0 0
      %1478 = vmatmul.mubr.bf16.gmra.mrb[0].mxu0 %v1364
      %v1479 = vpop.f32.mrb[0].mxu0
      %v1480 = vadd.f32 %v1343, %v1479
      %v1481 = vpop.f32.mrb[0].mxu0
      %v1482 = vpop.f32.mrb[0].mxu0
      %v1483 = vadd.f32 %v1343, %v1482
      %v1484 = vpop.f32.mrb[0].mxu0
      %1485 = vmatprep.mubr.bf16.mxu0 0
      %1486 = vmatmul.mubr.bf16.gmra.mrb[0].mxu0 %v1367
      %v1487 = vpop.f32.mrb[0].mxu0
      %v1488 = vadd.f32 %v1343, %v1487
      %v1489 = vpop.f32.mrb[0].mxu0
      %v1490 = vpop.f32.mrb[0].mxu0
      %v1491 = vadd.f32 %v1343, %v1490
      %v1492 = vpop.f32.mrb[0].mxu0
      %1493 = vmatprep.mubr.bf16.mxu0 0
      %1494 = vmatmul.mubr.bf16.gmra.mrb[0].mxu0 %v1370
      %v1495 = vpop.f32.mrb[0].mxu0
      %v1496 = vadd.f32 %v1343, %v1495
      %v1497 = vpop.f32.mrb[0].mxu0
      %v1498 = vpop.f32.mrb[0].mxu0
      %v1499 = vadd.f32 %v1343, %v1498
      %v1500 = vpop.f32.mrb[0].mxu0
      %1501 = vmatprep.mubr.bf16.mxu0 0
      %1502 = vmatmul.mubr.bf16.gmra.mrb[0].mxu0 %v1373
      %v1503 = vpop.f32.mrb[0].mxu0
      %v1504 = vadd.f32 %v1343, %v1503
      %v1505 = vpop.f32.mrb[0].mxu0
      %v1506 = vpop.f32.mrb[0].mxu0
      %v1507 = vadd.f32 %v1343, %v1506
      %v1508 = vpop.f32.mrb[0].mxu0
      %1509 = vmatprep.mubr.bf16.mxu0 0
      %1510 = vmatmul.mubr.bf16.gmra.mrb[0].mxu0 %v1376
      %v1511 = vpop.f32.mrb[0].mxu0
      %v1512 = vadd.f32 %v1343, %v1511
      %v1513 = vpop.f32.mrb[0].mxu0
      %v1514 = vpop.f32.mrb[0].mxu0
      %v1515 = vadd.f32 %v1343, %v1514
      %v1516 = vpop.f32.mrb[0].mxu0
      %1517 = vmatprep.mubr.bf16.mxu0 0
      %1518 = vmatmul.mubr.bf16.gmra.mrb[0].mxu0 %v1379
      %v1519 = vpop.f32.mrb[0].mxu0
      %v1520 = vadd.f32 %v1343, %v1519
      %v1521 = vpop.f32.mrb[0].mxu0
      %v1522 = vpop.f32.mrb[0].mxu0
      %v1523 = vadd.f32 %v1343, %v1522
      %v1524 = vpop.f32.mrb[0].mxu0
      %1525 = vmatprep.mubr.bf16.mxu0 0
      %1526 = vmatmul.mubr.bf16.gmra.mrb[0].mxu0 %v1382
      %v1527 = vpop.f32.mrb[0].mxu0
      %v1528 = vadd.f32 %v1343, %v1527
      %v1529 = vpop.f32.mrb[0].mxu0
      %v1530 = vpop.f32.mrb[0].mxu0
      %v1531 = vadd.f32 %v1343, %v1530
      %v1532 = vpop.f32.mrb[0].mxu0
      %1533 = vmatprep.mubr.bf16.mxu0 0
      %1534 = vmatmul.mubr.bf16.gmra.mrb[0].mxu0 %v1385
      %v1535 = vpop.f32.mrb[0].mxu0
      %v1536 = vadd.f32 %v1343, %v1535
      %v1537 = vpop.f32.mrb[0].mxu0
      %v1538 = vpop.f32.mrb[0].mxu0
      %v1539 = vadd.f32 %v1343, %v1538
      %v1540 = vpop.f32.mrb[0].mxu0
      %1541 = vmatprep.mubr.bf16.mxu0 0
      %1542 = vmatmul.mubr.bf16.gmra.mrb[0].mxu0 %v1388
      %v1543 = vpop.f32.mrb[0].mxu0
      %v1544 = vadd.f32 %v1343, %v1543
      %v1545 = vpop.f32.mrb[0].mxu0
      %v1546 = vpop.f32.mrb[0].mxu0
      %v1547 = vadd.f32 %v1343, %v1546
      %v1548 = vpop.f32.mrb[0].mxu0
      %1549 = vmatprep.mubr.bf16.mxu0 0
      %1550 = vmatmul.mubr.bf16.gmra.mrb[0].mxu0 %v1391
      %v1551 = vpop.f32.mrb[0].mxu0
      %v1552 = vadd.f32 %v1343, %v1551
      %v1553 = vpop.f32.mrb[0].mxu0
      %v1554 = vpop.f32.mrb[0].mxu0
      %v1555 = vadd.f32 %v1343, %v1554
      %v1556 = vpop.f32.mrb[0].mxu0
      %1557 = vdwg.mxu0
      %v1558 = vld [vmem:[%s5] sm:$0x3]
      %v1559 = vld [vmem:[%s7] sm:$0x1]
      %v1561 = vlaneseq
      %v1562 = vshrl.u32 %v1561, 7
      %v1563 = vsub.s32 0, %v1562
      %v1564 = vrot.slane %v1559, %v1563
      %v1567 = vsel %vm1393, %v1558, 0
      %1569 = vmatprep.subr.bf16.mxu0 0
      %1570 = vmatpush1.bf16.msra.mxu0 %v1567
      %1571 = vmatprep.subr.bf16.mxu0 0
      %1572 = vmatpush1.bf16.msra.mxu0 0
      %1573 = vmatprep.subr.bf16.mxu0 0
      %1574 = vmatpush1.bf16.msra.mxu0 0
      %1575 = vmatprep.subr.bf16.mxu0 0
      %1576 = vmatpush1.bf16.msra.mxu0 0
      %1577 = vmatprep.subr.bf16.mxu0 0
      %1578 = vmatpush1.bf16.msra.mxu0 0
      %1579 = vmatprep.subr.bf16.mxu0 0
      %1580 = vmatpush1.bf16.msra.mxu0 0
      %1581 = vmatprep.subr.bf16.mxu0 0
      %1582 = vmatpush1.bf16.msra.mxu0 0
      %1583 = vmatprep.subr.bf16.mxu0 0
      %1584 = vmatpush1.bf16.msra.mxu0 0
      %1585 = vmatprep.subr.bf16.mxu0 0
      %1586 = vmatpush1.bf16.msra.mxu0 0
      %1587 = vmatprep.subr.bf16.mxu0 0
      %1588 = vmatpush1.bf16.msra.mxu0 0
      %1589 = vmatprep.subr.bf16.mxu0 0
      %1590 = vmatpush1.bf16.msra.mxu0 0
      %1591 = vmatprep.subr.bf16.mxu0 0
      %1592 = vmatpush1.bf16.msra.mxu0 0
      %1593 = vmatprep.subr.bf16.mxu0 0
      %1594 = vmatpush1.bf16.msra.mxu0 0
      %1595 = vmatprep.subr.bf16.mxu0 0
      %1596 = vmatpush1.bf16.msra.mxu0 0
      %1597 = vmatprep.subr.bf16.mxu0 0
      %1598 = vmatpush1.bf16.msra.mxu0 0
      %1599 = vmatprep.subr.bf16.mxu0 0
      %1600 = vmatpush1.bf16.msra.mxu0 0
      %1601 = vmatprep.mubr.bf16.mxu0 0
      %1602 = vmatmul.mubr.bf16.gmra.mrb[0].mxu0 %v1346
      %v1603 = vpop.f32.mrb[0].mxu0
      %v1604 = vadd.f32 %v1564, %v1603
      %v1605 = vpop.f32.mrb[0].mxu0
      %v1606 = vpop.f32.mrb[0].mxu0
      %v1607 = vadd.f32 %v1564, %v1606
      %v1608 = vpop.f32.mrb[0].mxu0
      %1609 = vmatprep.mubr.bf16.mxu0 0
      %1610 = vmatmul.mubr.bf16.gmra.mrb[0].mxu0 %v1349
      %v1611 = vpop.f32.mrb[0].mxu0
      %v1612 = vadd.f32 %v1564, %v1611
      %v1613 = vpop.f32.mrb[0].mxu0
      %v1614 = vpop.f32.mrb[0].mxu0
      %v1615 = vadd.f32 %v1564, %v1614
      %v1616 = vpop.f32.mrb[0].mxu0
      %1617 = vmatprep.mubr.bf16.mxu0 0
      %1618 = vmatmul.mubr.bf16.gmra.mrb[0].mxu0 %v1352
      %v1619 = vpop.f32.mrb[0].mxu0
      %v1620 = vadd.f32 %v1564, %v1619
      %v1621 = vpop.f32.mrb[0].mxu0
      %v1622 = vpop.f32.mrb[0].mxu0
      %v1623 = vadd.f32 %v1564, %v1622
      %v1624 = vpop.f32.mrb[0].mxu0
      %1625 = vmatprep.mubr.bf16.mxu0 0
      %1626 = vmatmul.mubr.bf16.gmra.mrb[0].mxu0 %v1355
      %v1627 = vpop.f32.mrb[0].mxu0
      %v1628 = vadd.f32 %v1564, %v1627
      %v1629 = vpop.f32.mrb[0].mxu0
      %v1630 = vpop.f32.mrb[0].mxu0
      %v1631 = vadd.f32 %v1564, %v1630
      %v1632 = vpop.f32.mrb[0].mxu0
      %1633 = vmatprep.mubr.bf16.mxu0 0
      %1634 = vmatmul.mubr.bf16.gmra.mrb[0].mxu0 %v1358
      %v1635 = vpop.f32.mrb[0].mxu0
      %v1636 = vadd.f32 %v1564, %v1635
      %v1637 = vpop.f32.mrb[0].mxu0
      %v1638 = vpop.f32.mrb[0].mxu0
      %v1639 = vadd.f32 %v1564, %v1638
      %v1640 = vpop.f32.mrb[0].mxu0
      %1641 = vmatprep.mubr.bf16.mxu0 0
      %1642 = vmatmul.mubr.bf16.gmra.mrb[0].mxu0 %v1361
      %v1643 = vpop.f32.mrb[0].mxu0
      %v1644 = vadd.f32 %v1564, %v1643
      %v1645 = vpop.f32.mrb[0].mxu0
      %v1646 = vpop.f32.mrb[0].mxu0
      %v1647 = vadd.f32 %v1564, %v1646
      %v1648 = vpop.f32.mrb[0].mxu0
      %1649 = vmatprep.mubr.bf16.mxu0 0
      %1650 = vmatmul.mubr.bf16.gmra.mrb[0].mxu0 %v1364
      %v1651 = vpop.f32.mrb[0].mxu0
      %v1652 = vadd.f32 %v1564, %v1651
      %v1653 = vpop.f32.mrb[0].mxu0
      %v1654 = vpop.f32.mrb[0].mxu0
      %v1655 = vadd.f32 %v1564, %v1654
      %v1656 = vpop.f32.mrb[0].mxu0
      %1657 = vmatprep.mubr.bf16.mxu0 0
      %1658 = vmatmul.mubr.bf16.gmra.mrb[0].mxu0 %v1367
      %v1659 = vpop.f32.mrb[0].mxu0
      %v1660 = vadd.f32 %v1564, %v1659
      %v1661 = vpop.f32.mrb[0].mxu0
      %v1662 = vpop.f32.mrb[0].mxu0
      %v1663 = vadd.f32 %v1564, %v1662
      %v1664 = vpop.f32.mrb[0].mxu0
      %1665 = vmatprep.mubr.bf16.mxu0 0
      %1666 = vmatmul.mubr.bf16.gmra.mrb[0].mxu0 %v1370
      %v1667 = vpop.f32.mrb[0].mxu0
      %v1668 = vadd.f32 %v1564, %v1667
      %v1669 = vpop.f32.mrb[0].mxu0
      %v1670 = vpop.f32.mrb[0].mxu0
      %v1671 = vadd.f32 %v1564, %v1670
      %v1672 = vpop.f32.mrb[0].mxu0
      %1673 = vmatprep.mubr.bf16.mxu0 0
      %1674 = vmatmul.mubr.bf16.gmra.mrb[0].mxu0 %v1373
      %v1675 = vpop.f32.mrb[0].mxu0
      %v1676 = vadd.f32 %v1564, %v1675
      %v1677 = vpop.f32.mrb[0].mxu0
      %v1678 = vpop.f32.mrb[0].mxu0
      %v1679 = vadd.f32 %v1564, %v1678
      %v1680 = vpop.f32.mrb[0].mxu0
      %1681 = vmatprep.mubr.bf16.mxu0 0
      %1682 = vmatmul.mubr.bf16.gmra.mrb[0].mxu0 %v1376
      %v1683 = vpop.f32.mrb[0].mxu0
      %v1684 = vadd.f32 %v1564, %v1683
      %v1685 = vpop.f32.mrb[0].mxu0
      %v1686 = vpop.f32.mrb[0].mxu0
      %v1687 = vadd.f32 %v1564, %v1686
      %v1688 = vpop.f32.mrb[0].mxu0
      %1689 = vmatprep.mubr.bf16.mxu0 0
      %1690 = vmatmul.mubr.bf16.gmra.mrb[0].mxu0 %v1379
      %v1691 = vpop.f32.mrb[0].mxu0
      %v1692 = vadd.f32 %v1564, %v1691
      %v1693 = vpop.f32.mrb[0].mxu0
      %v1694 = vpop.f32.mrb[0].mxu0
      %v1695 = vadd.f32 %v1564, %v1694
      %v1696 = vpop.f32.mrb[0].mxu0
      %1697 = vmatprep.mubr.bf16.mxu0 0
      %1698 = vmatmul.mubr.bf16.gmra.mrb[0].mxu0 %v1382
      %v1699 = vpop.f32.mrb[0].mxu0
      %v1700 = vadd.f32 %v1564, %v1699
      %v1701 = vpop.f32.mrb[0].mxu0
      %v1702 = vpop.f32.mrb[0].mxu0
      %v1703 = vadd.f32 %v1564, %v1702
      %v1704 = vpop.f32.mrb[0].mxu0
      %1705 = vmatprep.mubr.bf16.mxu0 0
      %1706 = vmatmul.mubr.bf16.gmra.mrb[0].mxu0 %v1385
      %v1707 = vpop.f32.mrb[0].mxu0
      %v1708 = vadd.f32 %v1564, %v1707
      %v1709 = vpop.f32.mrb[0].mxu0
      %v1710 = vpop.f32.mrb[0].mxu0
      %v1711 = vadd.f32 %v1564, %v1710
      %v1712 = vpop.f32.mrb[0].mxu0
      %1713 = vmatprep.mubr.bf16.mxu0 0
      %1714 = vmatmul.mubr.bf16.gmra.mrb[0].mxu0 %v1388
      %v1715 = vpop.f32.mrb[0].mxu0
      %v1716 = vadd.f32 %v1564, %v1715
      %v1717 = vpop.f32.mrb[0].mxu0
      %v1718 = vpop.f32.mrb[0].mxu0
      %v1719 = vadd.f32 %v1564, %v1718
      %v1720 = vpop.f32.mrb[0].mxu0
      %1721 = vmatprep.mubr.bf16.mxu0 0
      %1722 = vmatmul.mubr.bf16.gmra.mrb[0].mxu0 %v1391
      %v1723 = vpop.f32.mrb[0].mxu0
      %v1724 = vadd.f32 %v1564, %v1723
      %v1725 = vpop.f32.mrb[0].mxu0
      %v1726 = vpop.f32.mrb[0].mxu0
      %v1727 = vadd.f32 %v1564, %v1726
      %v1728 = vpop.f32.mrb[0].mxu0
      %1729 = vdwg.mxu0
      %v1730 = vld [vmem:[%s8] sm:$0xff]
      %v1731 = vld [vmem:[%s8 + $0x8] sm:$0x1]
      %v1732 = vld [vmem:[%s10] sm:$0x1]
      %vm1765 = vcmask 1040384
      %v1766 = vrot.slane %v1432, 7
      %v1767 = vrot.slane %v1435, 7
      %v1768 = vsel %vm1765, %v1766, %v1767
      %v1769 = vrot.slane %v1440, 7
      %v1770 = vrot.slane %v1443, 7
      %v1771 = vsel %vm1765, %v1769, %v1770
      %v1772 = vrot.slane %v1448, 7
      %v1773 = vrot.slane %v1451, 7
      %v1774 = vsel %vm1765, %v1772, %v1773
      %v1775 = vrot.slane %v1456, 7
      %v1776 = vrot.slane %v1459, 7
      %v1777 = vsel %vm1765, %v1775, %v1776
      %v1778 = vrot.slane %v1464, 7
      %v1779 = vrot.slane %v1467, 7
      %v1780 = vsel %vm1765, %v1778, %v1779
      %v1781 = vrot.slane %v1472, 7
      %v1782 = vrot.slane %v1475, 7
      %v1783 = vsel %vm1765, %v1781, %v1782
      %v1784 = vrot.slane %v1480, 7
      %v1785 = vrot.slane %v1483, 7
      %v1786 = vsel %vm1765, %v1784, %v1785
      %v1787 = vrot.slane %v1488, 7
      %v1788 = vrot.slane %v1491, 7
      %v1789 = vsel %vm1765, %v1787, %v1788
      %v1790 = vrot.slane %v1496, 7
      %v1791 = vrot.slane %v1499, 7
      %v1792 = vsel %vm1765, %v1790, %v1791
      %v1793 = vrot.slane %v1504, 7
      %v1794 = vrot.slane %v1507, 7
      %v1795 = vsel %vm1765, %v1793, %v1794
      %v1796 = vrot.slane %v1512, 7
      %v1797 = vrot.slane %v1515, 7
      %v1798 = vsel %vm1765, %v1796, %v1797
      %v1799 = vrot.slane %v1520, 7
      %v1800 = vrot.slane %v1523, 7
      %v1801 = vsel %vm1765, %v1799, %v1800
      %v1802 = vrot.slane %v1528, 7
      %v1803 = vrot.slane %v1531, 7
      %v1804 = vsel %vm1765, %v1802, %v1803
      %v1805 = vrot.slane %v1536, 7
      %v1806 = vrot.slane %v1539, 7
      %v1807 = vsel %vm1765, %v1805, %v1806
      %v1808 = vrot.slane %v1544, 7
      %v1809 = vrot.slane %v1547, 7
      %v1810 = vsel %vm1765, %v1808, %v1809
      %v1811 = vrot.slane %v1552, 7
      %v1812 = vrot.slane %v1555, 7
      %v1813 = vsel %vm1765, %v1811, %v1812
      %v1846 = vsel %vm1765, 0.0, %v1766
      %v1847 = vsel %vm1765, 0.0, %v1769
      %v1848 = vsel %vm1765, 0.0, %v1772
      %v1849 = vsel %vm1765, 0.0, %v1775
      %v1850 = vsel %vm1765, 0.0, %v1778
      %v1851 = vsel %vm1765, 0.0, %v1781
      %v1852 = vsel %vm1765, 0.0, %v1784
      %v1853 = vsel %vm1765, 0.0, %v1787
      %v1854 = vsel %vm1765, 0.0, %v1790
      %v1855 = vsel %vm1765, 0.0, %v1793
      %v1856 = vsel %vm1765, 0.0, %v1796
      %v1857 = vsel %vm1765, 0.0, %v1799
      %v1858 = vsel %vm1765, 0.0, %v1802
      %v1859 = vsel %vm1765, 0.0, %v1805
      %v1860 = vsel %vm1765, 0.0, %v1808
      %v1861 = vsel %vm1765, 0.0, %v1811
      %vm1862 = vcmask 1046528
      %v1863 = vrot.slane %v1432, 1
      %v1864 = vrot.slane %v1435, 1
      %v1865 = vsel %vm1862, %v1863, %v1864
      %v1866 = vrot.slane %v1440, 1
      %v1867 = vrot.slane %v1443, 1
      %v1868 = vsel %vm1862, %v1866, %v1867
      %v1869 = vrot.slane %v1448, 1
      %v1870 = vrot.slane %v1451, 1
      %v1871 = vsel %vm1862, %v1869, %v1870
      %v1872 = vrot.slane %v1456, 1
      %v1873 = vrot.slane %v1459, 1
      %v1874 = vsel %vm1862, %v1872, %v1873
      %v1875 = vrot.slane %v1464, 1
      %v1876 = vrot.slane %v1467, 1
      %v1877 = vsel %vm1862, %v1875, %v1876
      %v1878 = vrot.slane %v1472, 1
      %v1879 = vrot.slane %v1475, 1
      %v1880 = vsel %vm1862, %v1878, %v1879
      %v1881 = vrot.slane %v1480, 1
      %v1882 = vrot.slane %v1483, 1
      %v1883 = vsel %vm1862, %v1881, %v1882
      %v1884 = vrot.slane %v1488, 1
      %v1885 = vrot.slane %v1491, 1
      %v1886 = vsel %vm1862, %v1884, %v1885
      %v1887 = vrot.slane %v1496, 1
      %v1888 = vrot.slane %v1499, 1
      %v1889 = vsel %vm1862, %v1887, %v1888
      %v1890 = vrot.slane %v1504, 1
      %v1891 = vrot.slane %v1507, 1
      %v1892 = vsel %vm1862, %v1890, %v1891
      %v1893 = vrot.slane %v1512, 1
      %v1894 = vrot.slane %v1515, 1
      %v1895 = vsel %vm1862, %v1893, %v1894
      %v1896 = vrot.slane %v1520, 1
      %v1897 = vrot.slane %v1523, 1
      %v1898 = vsel %vm1862, %v1896, %v1897
      %v1899 = vrot.slane %v1528, 1
      %v1900 = vrot.slane %v1531, 1
      %v1901 = vsel %vm1862, %v1899, %v1900
      %v1902 = vrot.slane %v1536, 1
      %v1903 = vrot.slane %v1539, 1
      %v1904 = vsel %vm1862, %v1902, %v1903
      %v1905 = vrot.slane %v1544, 1
      %v1906 = vrot.slane %v1547, 1
      %v1907 = vsel %vm1862, %v1905, %v1906
      %v1908 = vrot.slane %v1552, 1
      %v1909 = vrot.slane %v1555, 1
      %v1910 = vsel %vm1862, %v1908, %v1909
      %v1943 = vsel %vm1862, %v1864, 0.0
      %v1944 = vsel %vm1862, %v1867, 0.0
      %v1945 = vsel %vm1862, %v1870, 0.0
      %v1946 = vsel %vm1862, %v1873, 0.0
      %v1947 = vsel %vm1862, %v1876, 0.0
      %v1948 = vsel %vm1862, %v1879, 0.0
      %v1949 = vsel %vm1862, %v1882, 0.0
      %v1950 = vsel %vm1862, %v1885, 0.0
      %v1951 = vsel %vm1862, %v1888, 0.0
      %v1952 = vsel %vm1862, %v1891, 0.0
      %v1953 = vsel %vm1862, %v1894, 0.0
      %v1954 = vsel %vm1862, %v1897, 0.0
      %v1955 = vsel %vm1862, %v1900, 0.0
      %v1956 = vsel %vm1862, %v1903, 0.0
      %v1957 = vsel %vm1862, %v1906, 0.0
      %v1958 = vsel %vm1862, %v1909, 0.0
      %v1959 = vlaneseq
      %v1960 = vshrl.u32 %v1959, 7
      %v1961 = vsub.s32 0, %v1960
      %v1962 = vrot.slane %v1730, %v1961
      %v1963 = vmul.f32 %v1962, 0.0
      %v1964 = vmul.f32 %v1846, %v1962
      %v1965 = vmul.f32 %v1768, %v1962
      %v1966 = vmul.f32 %v1847, %v1962
      %v1967 = vmul.f32 %v1771, %v1962
      %v1968 = vmul.f32 %v1848, %v1962
      %v1969 = vmul.f32 %v1774, %v1962
      %v1970 = vmul.f32 %v1849, %v1962
      %v1971 = vmul.f32 %v1777, %v1962
      %v1972 = vmul.f32 %v1850, %v1962
      %v1973 = vmul.f32 %v1780, %v1962
      %v1974 = vmul.f32 %v1851, %v1962
      %v1975 = vmul.f32 %v1783, %v1962
      %v1976 = vmul.f32 %v1852, %v1962
      %v1977 = vmul.f32 %v1786, %v1962
      %v1978 = vmul.f32 %v1853, %v1962
      %v1979 = vmul.f32 %v1789, %v1962
      %v1980 = vmul.f32 %v1854, %v1962
      %v1981 = vmul.f32 %v1792, %v1962
      %v1982 = vmul.f32 %v1855, %v1962
      %v1983 = vmul.f32 %v1795, %v1962
      %v1984 = vmul.f32 %v1856, %v1962
      %v1985 = vmul.f32 %v1798, %v1962
      %v1986 = vmul.f32 %v1857, %v1962
      %v1987 = vmul.f32 %v1801, %v1962
      %v1988 = vmul.f32 %v1858, %v1962
      %v1989 = vmul.f32 %v1804, %v1962
      %v1990 = vmul.f32 %v1859, %v1962
      %v1991 = vmul.f32 %v1807, %v1962
      %v1992 = vmul.f32 %v1860, %v1962
      %v1993 = vmul.f32 %v1810, %v1962
      %v1994 = vadd.f32 %v1963, 0.0
      %v1995 = vadd.f32 %v1964, 0.0
      %v1996 = vadd.f32 %v1965, 0.0
      %v1997 = vadd.f32 %v1966, 0.0
      %v1998 = vadd.f32 %v1967, 0.0
      %v1999 = vadd.f32 %v1968, 0.0
      %v2000 = vadd.f32 %v1969, 0.0
      %v2001 = vadd.f32 %v1970, 0.0
      %v2002 = vadd.f32 %v1971, 0.0
      %v2003 = vadd.f32 %v1972, 0.0
      %v2004 = vadd.f32 %v1973, 0.0
      %v2005 = vadd.f32 %v1974, 0.0
      %v2006 = vadd.f32 %v1975, 0.0
      %v2007 = vadd.f32 %v1976, 0.0
      %v2008 = vadd.f32 %v1977, 0.0
      %v2009 = vadd.f32 %v1978, 0.0
      %v2010 = vadd.f32 %v1979, 0.0
      %v2011 = vadd.f32 %v1980, 0.0
      %v2012 = vadd.f32 %v1981, 0.0
      %v2013 = vadd.f32 %v1982, 0.0
      %v2014 = vadd.f32 %v1983, 0.0
      %v2015 = vadd.f32 %v1984, 0.0
      %v2016 = vadd.f32 %v1985, 0.0
      %v2017 = vadd.f32 %v1986, 0.0
      %v2018 = vadd.f32 %v1987, 0.0
      %v2019 = vadd.f32 %v1988, 0.0
      %v2020 = vadd.f32 %v1989, 0.0
      %v2021 = vadd.f32 %v1990, 0.0
      %v2022 = vadd.f32 %v1991, 0.0
      %v2023 = vadd.f32 %v1992, 0.0
      %v2024 = vadd.f32 %v1993, 0.0
      %v2025 = vlaneseq
      %v2026 = vshrl.u32 %v2025, 7
      %v2027 = vsub.s32 1, %v2026
      %v2028 = vrot.slane %v1730, %v2027
      %v2029 = vmul.f32 %v2028, 0.0
      %v2030 = vmul.f32 %v1432, %v2028
      %v2031 = vmul.f32 %v1435, %v2028
      %v2032 = vmul.f32 %v1440, %v2028
      %v2033 = vmul.f32 %v1443, %v2028
      %v2034 = vmul.f32 %v1448, %v2028
      %v2035 = vmul.f32 %v1451, %v2028
      %v2036 = vmul.f32 %v1456, %v2028
      %v2037 = vmul.f32 %v1459, %v2028
      %v2038 = vmul.f32 %v1464, %v2028
      %v2039 = vmul.f32 %v1467, %v2028
      %v2040 = vmul.f32 %v1472, %v2028
      %v2041 = vmul.f32 %v1475, %v2028
      %v2042 = vmul.f32 %v1480, %v2028
      %v2043 = vmul.f32 %v1483, %v2028
      %v2044 = vmul.f32 %v1488, %v2028
      %v2045 = vmul.f32 %v1491, %v2028
      %v2046 = vmul.f32 %v1496, %v2028
      %v2047 = vmul.f32 %v1499, %v2028
      %v2048 = vmul.f32 %v1504, %v2028
      %v2049 = vmul.f32 %v1507, %v2028
      %v2050 = vmul.f32 %v1512, %v2028
      %v2051 = vmul.f32 %v1515, %v2028
      %v2052 = vmul.f32 %v1520, %v2028
      %v2053 = vmul.f32 %v1523, %v2028
      %v2054 = vmul.f32 %v1528, %v2028
      %v2055 = vmul.f32 %v1531, %v2028
      %v2056 = vmul.f32 %v1536, %v2028
      %v2057 = vmul.f32 %v1539, %v2028
      %v2058 = vmul.f32 %v1544, %v2028
      %v2059 = vmul.f32 %v1547, %v2028
      %v2060 = vadd.f32 %v1994, %v2029
      %v2061 = vadd.f32 %v1995, %v2030
      %v2062 = vadd.f32 %v1996, %v2031
      %v2063 = vadd.f32 %v1997, %v2032
      %v2064 = vadd.f32 %v1998, %v2033
      %v2065 = vadd.f32 %v1999, %v2034
      %v2066 = vadd.f32 %v2000, %v2035
      %v2067 = vadd.f32 %v2001, %v2036
      %v2068 = vadd.f32 %v2002, %v2037
      %v2069 = vadd.f32 %v2003, %v2038
      %v2070 = vadd.f32 %v2004, %v2039
      %v2071 = vadd.f32 %v2005, %v2040
      %v2072 = vadd.f32 %v2006, %v2041
      %v2073 = vadd.f32 %v2007, %v2042
      %v2074 = vadd.f32 %v2008, %v2043
      %v2075 = vadd.f32 %v2009, %v2044
      %v2076 = vadd.f32 %v2010, %v2045
      %v2077 = vadd.f32 %v2011, %v2046
      %v2078 = vadd.f32 %v2012, %v2047
      %v2079 = vadd.f32 %v2013, %v2048
      %v2080 = vadd.f32 %v2014, %v2049
      %v2081 = vadd.f32 %v2015, %v2050
      %v2082 = vadd.f32 %v2016, %v2051
      %v2083 = vadd.f32 %v2017, %v2052
      %v2084 = vadd.f32 %v2018, %v2053
      %v2085 = vadd.f32 %v2019, %v2054
      %v2086 = vadd.f32 %v2020, %v2055
      %v2087 = vadd.f32 %v2021, %v2056
      %v2088 = vadd.f32 %v2022, %v2057
      %v2089 = vadd.f32 %v2023, %v2058
      %v2090 = vadd.f32 %v2024, %v2059
      %v2091 = vlaneseq
      %v2092 = vshrl.u32 %v2091, 7
      %v2093 = vsub.s32 2, %v2092
      %v2094 = vrot.slane %v1730, %v2093
      %v2095 = vmul.f32 %v2094, 0.0
      %v2096 = vmul.f32 %v1865, %v2094
      %v2097 = vmul.f32 %v1943, %v2094
      %v2098 = vmul.f32 %v1868, %v2094
      %v2099 = vmul.f32 %v1944, %v2094
      %v2100 = vmul.f32 %v1871, %v2094
      %v2101 = vmul.f32 %v1945, %v2094
      %v2102 = vmul.f32 %v1874, %v2094
      %v2103 = vmul.f32 %v1946, %v2094
      %v2104 = vmul.f32 %v1877, %v2094
      %v2105 = vmul.f32 %v1947, %v2094
      %v2106 = vmul.f32 %v1880, %v2094
      %v2107 = vmul.f32 %v1948, %v2094
      %v2108 = vmul.f32 %v1883, %v2094
      %v2109 = vmul.f32 %v1949, %v2094
      %v2110 = vmul.f32 %v1886, %v2094
      %v2111 = vmul.f32 %v1950, %v2094
      %v2112 = vmul.f32 %v1889, %v2094
      %v2113 = vmul.f32 %v1951, %v2094
      %v2114 = vmul.f32 %v1892, %v2094
      %v2115 = vmul.f32 %v1952, %v2094
      %v2116 = vmul.f32 %v1895, %v2094
      %v2117 = vmul.f32 %v1953, %v2094
      %v2118 = vmul.f32 %v1898, %v2094
      %v2119 = vmul.f32 %v1954, %v2094
      %v2120 = vmul.f32 %v1901, %v2094
      %v2121 = vmul.f32 %v1955, %v2094
      %v2122 = vmul.f32 %v1904, %v2094
      %v2123 = vmul.f32 %v1956, %v2094
      %v2124 = vmul.f32 %v1907, %v2094
      %v2125 = vmul.f32 %v1957, %v2094
      %v2126 = vadd.f32 %v2060, %v2095
      %v2127 = vadd.f32 %v2061, %v2096
      %v2128 = vadd.f32 %v2062, %v2097
      %v2129 = vadd.f32 %v2063, %v2098
      %v2130 = vadd.f32 %v2064, %v2099
      %v2131 = vadd.f32 %v2065, %v2100
      %v2132 = vadd.f32 %v2066, %v2101
      %v2133 = vadd.f32 %v2067, %v2102
      %v2134 = vadd.f32 %v2068, %v2103
      %v2135 = vadd.f32 %v2069, %v2104
      %v2136 = vadd.f32 %v2070, %v2105
      %v2137 = vadd.f32 %v2071, %v2106
      %v2138 = vadd.f32 %v2072, %v2107
      %v2139 = vadd.f32 %v2073, %v2108
      %v2140 = vadd.f32 %v2074, %v2109
      %v2141 = vadd.f32 %v2075, %v2110
      %v2142 = vadd.f32 %v2076, %v2111
      %v2143 = vadd.f32 %v2077, %v2112
      %v2144 = vadd.f32 %v2078, %v2113
      %v2145 = vadd.f32 %v2079, %v2114
      %v2146 = vadd.f32 %v2080, %v2115
      %v2147 = vadd.f32 %v2081, %v2116
      %v2148 = vadd.f32 %v2082, %v2117
      %v2149 = vadd.f32 %v2083, %v2118
      %v2150 = vadd.f32 %v2084, %v2119
      %v2151 = vadd.f32 %v2085, %v2120
      %v2152 = vadd.f32 %v2086, %v2121
      %v2153 = vadd.f32 %v2087, %v2122
      %v2154 = vadd.f32 %v2088, %v2123
      %v2155 = vadd.f32 %v2089, %v2124
      %v2156 = vadd.f32 %v2090, %v2125
      %v2157 = vlaneseq
      %v2158 = vshrl.u32 %v2157, 7
      %v2159 = vsub.s32 3, %v2158
      %v2160 = vrot.slane %v1730, %v2159
      %v2161 = vmul.f32 %v1846, %v2160
      %v2162 = vmul.f32 %v1768, %v2160
      %v2163 = vmul.f32 %v1847, %v2160
      %v2164 = vmul.f32 %v1771, %v2160
      %v2165 = vmul.f32 %v1848, %v2160
      %v2166 = vmul.f32 %v1774, %v2160
      %v2167 = vmul.f32 %v1849, %v2160
      %v2168 = vmul.f32 %v1777, %v2160
      %v2169 = vmul.f32 %v1850, %v2160
      %v2170 = vmul.f32 %v1780, %v2160
      %v2171 = vmul.f32 %v1851, %v2160
      %v2172 = vmul.f32 %v1783, %v2160
      %v2173 = vmul.f32 %v1852, %v2160
      %v2174 = vmul.f32 %v1786, %v2160
      %v2175 = vmul.f32 %v1853, %v2160
      %v2176 = vmul.f32 %v1789, %v2160
      %v2177 = vmul.f32 %v1854, %v2160
      %v2178 = vmul.f32 %v1792, %v2160
      %v2179 = vmul.f32 %v1855, %v2160
      %v2180 = vmul.f32 %v1795, %v2160
      %v2181 = vmul.f32 %v1856, %v2160
      %v2182 = vmul.f32 %v1798, %v2160
      %v2183 = vmul.f32 %v1857, %v2160
      %v2184 = vmul.f32 %v1801, %v2160
      %v2185 = vmul.f32 %v1858, %v2160
      %v2186 = vmul.f32 %v1804, %v2160
      %v2187 = vmul.f32 %v1859, %v2160
      %v2188 = vmul.f32 %v1807, %v2160
      %v2189 = vmul.f32 %v1860, %v2160
      %v2190 = vmul.f32 %v1810, %v2160
      %v2191 = vmul.f32 %v1861, %v2160
      %v2192 = vmul.f32 %v1813, %v2160
      %v2193 = vadd.f32 %v2126, %v2161
      %v2194 = vadd.f32 %v2126, %v2162
      %v2195 = vadd.f32 %v2127, %v2163
      %v2196 = vadd.f32 %v2128, %v2164
      %v2197 = vadd.f32 %v2129, %v2165
      %v2198 = vadd.f32 %v2130, %v2166
      %v2199 = vadd.f32 %v2131, %v2167
      %v2200 = vadd.f32 %v2132, %v2168
      %v2201 = vadd.f32 %v2133, %v2169
      %v2202 = vadd.f32 %v2134, %v2170
      %v2203 = vadd.f32 %v2135, %v2171
      %v2204 = vadd.f32 %v2136, %v2172
      %v2205 = vadd.f32 %v2137, %v2173
      %v2206 = vadd.f32 %v2138, %v2174
      %v2207 = vadd.f32 %v2139, %v2175
      %v2208 = vadd.f32 %v2140, %v2176
      %v2209 = vadd.f32 %v2141, %v2177
      %v2210 = vadd.f32 %v2142, %v2178
      %v2211 = vadd.f32 %v2143, %v2179
      %v2212 = vadd.f32 %v2144, %v2180
      %v2213 = vadd.f32 %v2145, %v2181
      %v2214 = vadd.f32 %v2146, %v2182
      %v2215 = vadd.f32 %v2147, %v2183
      %v2216 = vadd.f32 %v2148, %v2184
      %v2217 = vadd.f32 %v2149, %v2185
      %v2218 = vadd.f32 %v2150, %v2186
      %v2219 = vadd.f32 %v2151, %v2187
      %v2220 = vadd.f32 %v2152, %v2188
      %v2221 = vadd.f32 %v2153, %v2189
      %v2222 = vadd.f32 %v2154, %v2190
      %v2223 = vadd.f32 %v2155, %v2191
      %v2224 = vadd.f32 %v2156, %v2192
      %v2225 = vlaneseq
      %v2226 = vshrl.u32 %v2225, 7
      %v2227 = vsub.s32 4, %v2226
      %v2228 = vrot.slane %v1730, %v2227
      %v2229 = vmul.f32 %v1432, %v2228
      %v2230 = vmul.f32 %v1435, %v2228
      %v2231 = vmul.f32 %v1440, %v2228
      %v2232 = vmul.f32 %v1443, %v2228
      %v2233 = vmul.f32 %v1448, %v2228
      %v2234 = vmul.f32 %v1451, %v2228
      %v2235 = vmul.f32 %v1456, %v2228
      %v2236 = vmul.f32 %v1459, %v2228
      %v2237 = vmul.f32 %v1464, %v2228
      %v2238 = vmul.f32 %v1467, %v2228
      %v2239 = vmul.f32 %v1472, %v2228
      %v2240 = vmul.f32 %v1475, %v2228
      %v2241 = vmul.f32 %v1480, %v2228
      %v2242 = vmul.f32 %v1483, %v2228
      %v2243 = vmul.f32 %v1488, %v2228
      %v2244 = vmul.f32 %v1491, %v2228
      %v2245 = vmul.f32 %v1496, %v2228
      %v2246 = vmul.f32 %v1499, %v2228
      %v2247 = vmul.f32 %v1504, %v2228
      %v2248 = vmul.f32 %v1507, %v2228
      %v2249 = vmul.f32 %v1512, %v2228
      %v2250 = vmul.f32 %v1515, %v2228
      %v2251 = vmul.f32 %v1520, %v2228
      %v2252 = vmul.f32 %v1523, %v2228
      %v2253 = vmul.f32 %v1528, %v2228
      %v2254 = vmul.f32 %v1531, %v2228
      %v2255 = vmul.f32 %v1536, %v2228
      %v2256 = vmul.f32 %v1539, %v2228
      %v2257 = vmul.f32 %v1544, %v2228
      %v2258 = vmul.f32 %v1547, %v2228
      %v2259 = vmul.f32 %v1552, %v2228
      %v2260 = vmul.f32 %v1555, %v2228
      %v2261 = vadd.f32 %v2193, %v2229
      %v2262 = vadd.f32 %v2194, %v2230
      %v2263 = vadd.f32 %v2195, %v2231
      %v2264 = vadd.f32 %v2196, %v2232
      %v2265 = vadd.f32 %v2197, %v2233
      %v2266 = vadd.f32 %v2198, %v2234
      %v2267 = vadd.f32 %v2199, %v2235
      %v2268 = vadd.f32 %v2200, %v2236
      %v2269 = vadd.f32 %v2201, %v2237
      %v2270 = vadd.f32 %v2202, %v2238
      %v2271 = vadd.f32 %v2203, %v2239
      %v2272 = vadd.f32 %v2204, %v2240
      %v2273 = vadd.f32 %v2205, %v2241
      %v2274 = vadd.f32 %v2206, %v2242
      %v2275 = vadd.f32 %v2207, %v2243
      %v2276 = vadd.f32 %v2208, %v2244
      %v2277 = vadd.f32 %v2209, %v2245
      %v2278 = vadd.f32 %v2210, %v2246
      %v2279 = vadd.f32 %v2211, %v2247
      %v2280 = vadd.f32 %v2212, %v2248
      %v2281 = vadd.f32 %v2213, %v2249
      %v2282 = vadd.f32 %v2214, %v2250
      %v2283 = vadd.f32 %v2215, %v2251
      %v2284 = vadd.f32 %v2216, %v2252
      %v2285 = vadd.f32 %v2217, %v2253
      %v2286 = vadd.f32 %v2218, %v2254
      %v2287 = vadd.f32 %v2219, %v2255
      %v2288 = vadd.f32 %v2220, %v2256
      %v2289 = vadd.f32 %v2221, %v2257
      %v2290 = vadd.f32 %v2222, %v2258
      %v2291 = vadd.f32 %v2223, %v2259
      %v2292 = vadd.f32 %v2224, %v2260
      %v2293 = vlaneseq
      %v2294 = vshrl.u32 %v2293, 7
      %v2295 = vsub.s32 5, %v2294
      %v2296 = vrot.slane %v1730, %v2295
      %v2297 = vmul.f32 %v1865, %v2296
      %v2298 = vmul.f32 %v1943, %v2296
      %v2299 = vmul.f32 %v1868, %v2296
      %v2300 = vmul.f32 %v1944, %v2296
      %v2301 = vmul.f32 %v1871, %v2296
      %v2302 = vmul.f32 %v1945, %v2296
      %v2303 = vmul.f32 %v1874, %v2296
      %v2304 = vmul.f32 %v1946, %v2296
      %v2305 = vmul.f32 %v1877, %v2296
      %v2306 = vmul.f32 %v1947, %v2296
      %v2307 = vmul.f32 %v1880, %v2296
      %v2308 = vmul.f32 %v1948, %v2296
      %v2309 = vmul.f32 %v1883, %v2296
      %v2310 = vmul.f32 %v1949, %v2296
      %v2311 = vmul.f32 %v1886, %v2296
      %v2312 = vmul.f32 %v1950, %v2296
      %v2313 = vmul.f32 %v1889, %v2296
      %v2314 = vmul.f32 %v1951, %v2296
      %v2315 = vmul.f32 %v1892, %v2296
      %v2316 = vmul.f32 %v1952, %v2296
      %v2317 = vmul.f32 %v1895, %v2296
      %v2318 = vmul.f32 %v1953, %v2296
      %v2319 = vmul.f32 %v1898, %v2296
      %v2320 = vmul.f32 %v1954, %v2296
      %v2321 = vmul.f32 %v1901, %v2296
      %v2322 = vmul.f32 %v1955, %v2296
      %v2323 = vmul.f32 %v1904, %v2296
      %v2324 = vmul.f32 %v1956, %v2296
      %v2325 = vmul.f32 %v1907, %v2296
      %v2326 = vmul.f32 %v1957, %v2296
      %v2327 = vmul.f32 %v1910, %v2296
      %v2328 = vmul.f32 %v1958, %v2296
      %v2329 = vadd.f32 %v2261, %v2297
      %v2330 = vadd.f32 %v2262, %v2298
      %v2331 = vadd.f32 %v2263, %v2299
      %v2332 = vadd.f32 %v2264, %v2300
      %v2333 = vadd.f32 %v2265, %v2301
      %v2334 = vadd.f32 %v2266, %v2302
      %v2335 = vadd.f32 %v2267, %v2303
      %v2336 = vadd.f32 %v2268, %v2304
      %v2337 = vadd.f32 %v2269, %v2305
      %v2338 = vadd.f32 %v2270, %v2306
      %v2339 = vadd.f32 %v2271, %v2307
      %v2340 = vadd.f32 %v2272, %v2308
      %v2341 = vadd.f32 %v2273, %v2309
      %v2342 = vadd.f32 %v2274, %v2310
      %v2343 = vadd.f32 %v2275, %v2311
      %v2344 = vadd.f32 %v2276, %v2312
      %v2345 = vadd.f32 %v2277, %v2313
      %v2346 = vadd.f32 %v2278, %v2314
      %v2347 = vadd.f32 %v2279, %v2315
      %v2348 = vadd.f32 %v2280, %v2316
      %v2349 = vadd.f32 %v2281, %v2317
      %v2350 = vadd.f32 %v2282, %v2318
      %v2351 = vadd.f32 %v2283, %v2319
      %v2352 = vadd.f32 %v2284, %v2320
      %v2353 = vadd.f32 %v2285, %v2321
      %v2354 = vadd.f32 %v2286, %v2322
      %v2355 = vadd.f32 %v2287, %v2323
      %v2356 = vadd.f32 %v2288, %v2324
      %v2357 = vadd.f32 %v2289, %v2325
      %v2358 = vadd.f32 %v2290, %v2326
      %v2359 = vadd.f32 %v2291, %v2327
      %v2360 = vadd.f32 %v2292, %v2328
      %v2361 = vlaneseq
      %v2362 = vshrl.u32 %v2361, 7
      %v2363 = vsub.s32 6, %v2362
      %v2364 = vrot.slane %v1730, %v2363
      %v2365 = vmul.f32 %v1847, %v2364
      %v2366 = vmul.f32 %v1771, %v2364
      %v2367 = vmul.f32 %v1848, %v2364
      %v2368 = vmul.f32 %v1774, %v2364
      %v2369 = vmul.f32 %v1849, %v2364
      %v2370 = vmul.f32 %v1777, %v2364
      %v2371 = vmul.f32 %v1850, %v2364
      %v2372 = vmul.f32 %v1780, %v2364
      %v2373 = vmul.f32 %v1851, %v2364
      %v2374 = vmul.f32 %v1783, %v2364
      %v2375 = vmul.f32 %v1852, %v2364
      %v2376 = vmul.f32 %v1786, %v2364
      %v2377 = vmul.f32 %v1853, %v2364
      %v2378 = vmul.f32 %v1789, %v2364
      %v2379 = vmul.f32 %v1854, %v2364
      %v2380 = vmul.f32 %v1792, %v2364
      %v2381 = vmul.f32 %v1855, %v2364
      %v2382 = vmul.f32 %v1795, %v2364
      %v2383 = vmul.f32 %v1856, %v2364
      %v2384 = vmul.f32 %v1798, %v2364
      %v2385 = vmul.f32 %v1857, %v2364
      %v2386 = vmul.f32 %v1801, %v2364
      %v2387 = vmul.f32 %v1858, %v2364
      %v2388 = vmul.f32 %v1804, %v2364
      %v2389 = vmul.f32 %v1859, %v2364
      %v2390 = vmul.f32 %v1807, %v2364
      %v2391 = vmul.f32 %v1860, %v2364
      %v2392 = vmul.f32 %v1810, %v2364
      %v2393 = vmul.f32 %v1861, %v2364
      %v2394 = vmul.f32 %v1813, %v2364
      %v2395 = vmul.f32 %v2364, 0.0
      %v2396 = vadd.f32 %v2329, %v2365
      %v2397 = vadd.f32 %v2330, %v2366
      %v2398 = vadd.f32 %v2331, %v2367
      %v2399 = vadd.f32 %v2332, %v2368
      %v2400 = vadd.f32 %v2333, %v2369
      %v2401 = vadd.f32 %v2334, %v2370
      %v2402 = vadd.f32 %v2335, %v2371
      %v2403 = vadd.f32 %v2336, %v2372
      %v2404 = vadd.f32 %v2337, %v2373
      %v2405 = vadd.f32 %v2338, %v2374
      %v2406 = vadd.f32 %v2339, %v2375
      %v2407 = vadd.f32 %v2340, %v2376
      %v2408 = vadd.f32 %v2341, %v2377
      %v2409 = vadd.f32 %v2342, %v2378
      %v2410 = vadd.f32 %v2343, %v2379
      %v2411 = vadd.f32 %v2344, %v2380
      %v2412 = vadd.f32 %v2345, %v2381
      %v2413 = vadd.f32 %v2346, %v2382
      %v2414 = vadd.f32 %v2347, %v2383
      %v2415 = vadd.f32 %v2348, %v2384
      %v2416 = vadd.f32 %v2349, %v2385
      %v2417 = vadd.f32 %v2350, %v2386
      %v2418 = vadd.f32 %v2351, %v2387
      %v2419 = vadd.f32 %v2352, %v2388
      %v2420 = vadd.f32 %v2353, %v2389
      %v2421 = vadd.f32 %v2354, %v2390
      %v2422 = vadd.f32 %v2355, %v2391
      %v2423 = vadd.f32 %v2356, %v2392
      %v2424 = vadd.f32 %v2357, %v2393
      %v2425 = vadd.f32 %v2358, %v2394
      %v2426 = vadd.f32 %v2359, %v2395
      %v2427 = vadd.f32 %v2360, %v2395
      %v2428 = vlaneseq
      %v2429 = vshrl.u32 %v2428, 7
      %v2430 = vsub.s32 7, %v2429
      %v2431 = vrot.slane %v1730, %v2430
      %v2432 = vmul.f32 %v1440, %v2431
      %v2433 = vmul.f32 %v1443, %v2431
      %v2434 = vmul.f32 %v1448, %v2431
      %v2435 = vmul.f32 %v1451, %v2431
      %v2436 = vmul.f32 %v1456, %v2431
      %v2437 = vmul.f32 %v1459, %v2431
      %v2438 = vmul.f32 %v1464, %v2431
      %v2439 = vmul.f32 %v1467, %v2431
      %v2440 = vmul.f32 %v1472, %v2431
      %v2441 = vmul.f32 %v1475, %v2431
      %v2442 = vmul.f32 %v1480, %v2431
      %v2443 = vmul.f32 %v1483, %v2431
      %v2444 = vmul.f32 %v1488, %v2431
      %v2445 = vmul.f32 %v1491, %v2431
      %v2446 = vmul.f32 %v1496, %v2431
      %v2447 = vmul.f32 %v1499, %v2431
      %v2448 = vmul.f32 %v1504, %v2431
      %v2449 = vmul.f32 %v1507, %v2431
      %v2450 = vmul.f32 %v1512, %v2431
      %v2451 = vmul.f32 %v1515, %v2431
      %v2452 = vmul.f32 %v1520, %v2431
      %v2453 = vmul.f32 %v1523, %v2431
      %v2454 = vmul.f32 %v1528, %v2431
      %v2455 = vmul.f32 %v1531, %v2431
      %v2456 = vmul.f32 %v1536, %v2431
      %v2457 = vmul.f32 %v1539, %v2431
      %v2458 = vmul.f32 %v1544, %v2431
      %v2459 = vmul.f32 %v1547, %v2431
      %v2460 = vmul.f32 %v1552, %v2431
      %v2461 = vmul.f32 %v1555, %v2431
      %v2462 = vmul.f32 %v2431, 0.0
      %v2463 = vadd.f32 %v2396, %v2432
      %v2464 = vadd.f32 %v2397, %v2433
      %v2465 = vadd.f32 %v2398, %v2434
      %v2466 = vadd.f32 %v2399, %v2435
      %v2467 = vadd.f32 %v2400, %v2436
      %v2468 = vadd.f32 %v2401, %v2437
      %v2469 = vadd.f32 %v2402, %v2438
      %v2470 = vadd.f32 %v2403, %v2439
      %v2471 = vadd.f32 %v2404, %v2440
      %v2472 = vadd.f32 %v2405, %v2441
      %v2473 = vadd.f32 %v2406, %v2442
      %v2474 = vadd.f32 %v2407, %v2443
      %v2475 = vadd.f32 %v2408, %v2444
      %v2476 = vadd.f32 %v2409, %v2445
      %v2477 = vadd.f32 %v2410, %v2446
      %v2478 = vadd.f32 %v2411, %v2447
      %v2479 = vadd.f32 %v2412, %v2448
      %v2480 = vadd.f32 %v2413, %v2449
      %v2481 = vadd.f32 %v2414, %v2450
      %v2482 = vadd.f32 %v2415, %v2451
      %v2483 = vadd.f32 %v2416, %v2452
      %v2484 = vadd.f32 %v2417, %v2453
      %v2485 = vadd.f32 %v2418, %v2454
      %v2486 = vadd.f32 %v2419, %v2455
      %v2487 = vadd.f32 %v2420, %v2456
      %v2488 = vadd.f32 %v2421, %v2457
      %v2489 = vadd.f32 %v2422, %v2458
      %v2490 = vadd.f32 %v2423, %v2459
      %v2491 = vadd.f32 %v2424, %v2460
      %v2492 = vadd.f32 %v2425, %v2461
      %v2493 = vadd.f32 %v2426, %v2462
      %v2494 = vadd.f32 %v2427, %v2462
      %v2495 = vlaneseq
      %v2496 = vshrl.u32 %v2495, 7
      %v2497 = vsub.s32 0, %v2496
      %v2498 = vrot.slane %v1731, %v2497
      %v2499 = vmul.f32 %v1868, %v2498
      %v2500 = vmul.f32 %v1944, %v2498
      %v2501 = vmul.f32 %v1871, %v2498
      %v2502 = vmul.f32 %v1945, %v2498
      %v2503 = vmul.f32 %v1874, %v2498
      %v2504 = vmul.f32 %v1946, %v2498
      %v2505 = vmul.f32 %v1877, %v2498
      %v2506 = vmul.f32 %v1947, %v2498
      %v2507 = vmul.f32 %v1880, %v2498
      %v2508 = vmul.f32 %v1948, %v2498
      %v2509 = vmul.f32 %v1883, %v2498
      %v2510 = vmul.f32 %v1949, %v2498
      %v2511 = vmul.f32 %v1886, %v2498
      %v2512 = vmul.f32 %v1950, %v2498
      %v2513 = vmul.f32 %v1889, %v2498
      %v2514 = vmul.f32 %v1951, %v2498
      %v2515 = vmul.f32 %v1892, %v2498
      %v2516 = vmul.f32 %v1952, %v2498
      %v2517 = vmul.f32 %v1895, %v2498
      %v2518 = vmul.f32 %v1953, %v2498
      %v2519 = vmul.f32 %v1898, %v2498
      %v2520 = vmul.f32 %v1954, %v2498
      %v2521 = vmul.f32 %v1901, %v2498
      %v2522 = vmul.f32 %v1955, %v2498
      %v2523 = vmul.f32 %v1904, %v2498
      %v2524 = vmul.f32 %v1956, %v2498
      %v2525 = vmul.f32 %v1907, %v2498
      %v2526 = vmul.f32 %v1957, %v2498
      %v2527 = vmul.f32 %v1910, %v2498
      %v2528 = vmul.f32 %v1958, %v2498
      %v2529 = vmul.f32 %v2498, 0.0
      %v2530 = vadd.f32 %v2463, %v2499
      %v2531 = vadd.f32 %v2464, %v2500
      %v2532 = vadd.f32 %v2465, %v2501
      %v2533 = vadd.f32 %v2466, %v2502
      %v2534 = vadd.f32 %v2467, %v2503
      %v2535 = vadd.f32 %v2468, %v2504
      %v2536 = vadd.f32 %v2469, %v2505
      %v2537 = vadd.f32 %v2470, %v2506
      %v2538 = vadd.f32 %v2471, %v2507
      %v2539 = vadd.f32 %v2472, %v2508
      %v2540 = vadd.f32 %v2473, %v2509
      %v2541 = vadd.f32 %v2474, %v2510
      %v2542 = vadd.f32 %v2475, %v2511
      %v2543 = vadd.f32 %v2476, %v2512
      %v2544 = vadd.f32 %v2477, %v2513
      %v2545 = vadd.f32 %v2478, %v2514
      %v2546 = vadd.f32 %v2479, %v2515
      %v2547 = vadd.f32 %v2480, %v2516
      %v2548 = vadd.f32 %v2481, %v2517
      %v2549 = vadd.f32 %v2482, %v2518
      %v2550 = vadd.f32 %v2483, %v2519
      %v2551 = vadd.f32 %v2484, %v2520
      %v2552 = vadd.f32 %v2485, %v2521
      %v2553 = vadd.f32 %v2486, %v2522
      %v2554 = vadd.f32 %v2487, %v2523
      %v2555 = vadd.f32 %v2488, %v2524
      %v2556 = vadd.f32 %v2489, %v2525
      %v2557 = vadd.f32 %v2490, %v2526
      %v2558 = vadd.f32 %v2491, %v2527
      %v2559 = vadd.f32 %v2492, %v2528
      %v2560 = vadd.f32 %v2493, %v2529
      %v2561 = vadd.f32 %v2494, %v2529
      %v2563 = vlaneseq
      %v2564 = vshrl.u32 %v2563, 7
      %v2565 = vsub.s32 0, %v2564
      %v2566 = vrot.slane %v1732, %v2565
      %v2568 = vadd.f32 %v2530, %v2566
      %v2569 = vadd.f32 %v2531, %v2566
      %v2570 = vadd.f32 %v2532, %v2566
      %v2571 = vadd.f32 %v2533, %v2566
      %v2572 = vadd.f32 %v2534, %v2566
      %v2573 = vadd.f32 %v2535, %v2566
      %v2574 = vadd.f32 %v2536, %v2566
      %v2575 = vadd.f32 %v2537, %v2566
      %v2576 = vadd.f32 %v2538, %v2566
      %v2577 = vadd.f32 %v2539, %v2566
      %v2578 = vadd.f32 %v2540, %v2566
      %v2579 = vadd.f32 %v2541, %v2566
      %v2580 = vadd.f32 %v2542, %v2566
      %v2581 = vadd.f32 %v2543, %v2566
      %v2582 = vadd.f32 %v2544, %v2566
      %v2583 = vadd.f32 %v2545, %v2566
      %v2584 = vadd.f32 %v2546, %v2566
      %v2585 = vadd.f32 %v2547, %v2566
      %v2586 = vadd.f32 %v2548, %v2566
      %v2587 = vadd.f32 %v2549, %v2566
      %v2588 = vadd.f32 %v2550, %v2566
      %v2589 = vadd.f32 %v2551, %v2566
      %v2590 = vadd.f32 %v2552, %v2566
      %v2591 = vadd.f32 %v2553, %v2566
      %v2592 = vadd.f32 %v2554, %v2566
      %v2593 = vadd.f32 %v2555, %v2566
      %v2594 = vadd.f32 %v2556, %v2566
      %v2595 = vadd.f32 %v2557, %v2566
      %v2596 = vadd.f32 %v2558, %v2566
      %v2597 = vadd.f32 %v2559, %v2566
      %v2598 = vadd.f32 %v2560, %v2566
      %v2599 = vadd.f32 %v2561, %v2566
      %v2600 = vld [vmem:[%s9] sm:$0xff]
      %v2601 = vld [vmem:[%s9 + $0x8] sm:$0x1]
      %v2602 = vld [vmem:[%s11] sm:$0x1]
      %v2635 = vrot.slane %v1604, 7
      %v2636 = vrot.slane %v1607, 7
      %v2637 = vsel %vm1765, %v2635, %v2636
      %v2638 = vrot.slane %v1612, 7
      %v2639 = vrot.slane %v1615, 7
      %v2640 = vsel %vm1765, %v2638, %v2639
      %v2641 = vrot.slane %v1620, 7
      %v2642 = vrot.slane %v1623, 7
      %v2643 = vsel %vm1765, %v2641, %v2642
      %v2644 = vrot.slane %v1628, 7
      %v2645 = vrot.slane %v1631, 7
      %v2646 = vsel %vm1765, %v2644, %v2645
      %v2647 = vrot.slane %v1636, 7
      %v2648 = vrot.slane %v1639, 7
      %v2649 = vsel %vm1765, %v2647, %v2648
      %v2650 = vrot.slane %v1644, 7
      %v2651 = vrot.slane %v1647, 7
      %v2652 = vsel %vm1765, %v2650, %v2651
      %v2653 = vrot.slane %v1652, 7
      %v2654 = vrot.slane %v1655, 7
      %v2655 = vsel %vm1765, %v2653, %v2654
      %v2656 = vrot.slane %v1660, 7
      %v2657 = vrot.slane %v1663, 7
      %v2658 = vsel %vm1765, %v2656, %v2657
      %v2659 = vrot.slane %v1668, 7
      %v2660 = vrot.slane %v1671, 7
      %v2661 = vsel %vm1765, %v2659, %v2660
      %v2662 = vrot.slane %v1676, 7
      %v2663 = vrot.slane %v1679, 7
      %v2664 = vsel %vm1765, %v2662, %v2663
      %v2665 = vrot.slane %v1684, 7
      %v2666 = vrot.slane %v1687, 7
      %v2667 = vsel %vm1765, %v2665, %v2666
      %v2668 = vrot.slane %v1692, 7
      %v2669 = vrot.slane %v1695, 7
      %v2670 = vsel %vm1765, %v2668, %v2669
      %v2671 = vrot.slane %v1700, 7
      %v2672 = vrot.slane %v1703, 7
      %v2673 = vsel %vm1765, %v2671, %v2672
      %v2674 = vrot.slane %v1708, 7
      %v2675 = vrot.slane %v1711, 7
      %v2676 = vsel %vm1765, %v2674, %v2675
      %v2677 = vrot.slane %v1716, 7
      %v2678 = vrot.slane %v1719, 7
      %v2679 = vsel %vm1765, %v2677, %v2678
      %v2680 = vrot.slane %v1724, 7
      %v2681 = vrot.slane %v1727, 7
      %v2682 = vsel %vm1765, %v2680, %v2681
      %v2715 = vsel %vm1765, 0.0, %v2635
      %v2716 = vsel %vm1765, 0.0, %v2638
      %v2717 = vsel %vm1765, 0.0, %v2641
      %v2718 = vsel %vm1765, 0.0, %v2644
      %v2719 = vsel %vm1765, 0.0, %v2647
      %v2720 = vsel %vm1765, 0.0, %v2650
      %v2721 = vsel %vm1765, 0.0, %v2653
      %v2722 = vsel %vm1765, 0.0, %v2656
      %v2723 = vsel %vm1765, 0.0, %v2659
      %v2724 = vsel %vm1765, 0.0, %v2662
      %v2725 = vsel %vm1765, 0.0, %v2665
      %v2726 = vsel %vm1765, 0.0, %v2668
      %v2727 = vsel %vm1765, 0.0, %v2671
      %v2728 = vsel %vm1765, 0.0, %v2674
      %v2729 = vsel %vm1765, 0.0, %v2677
      %v2730 = vsel %vm1765, 0.0, %v2680
      %v2731 = vrot.slane %v1604, 1
      %v2732 = vrot.slane %v1607, 1
      %v2733 = vsel %vm1862, %v2731, %v2732
      %v2734 = vrot.slane %v1612, 1
      %v2735 = vrot.slane %v1615, 1
      %v2736 = vsel %vm1862, %v2734, %v2735
      %v2737 = vrot.slane %v1620, 1
      %v2738 = vrot.slane %v1623, 1
      %v2739 = vsel %vm1862, %v2737, %v2738
      %v2740 = vrot.slane %v1628, 1
      %v2741 = vrot.slane %v1631, 1
      %v2742 = vsel %vm1862, %v2740, %v2741
      %v2743 = vrot.slane %v1636, 1
      %v2744 = vrot.slane %v1639, 1
      %v2745 = vsel %vm1862, %v2743, %v2744
      %v2746 = vrot.slane %v1644, 1
      %v2747 = vrot.slane %v1647, 1
      %v2748 = vsel %vm1862, %v2746, %v2747
      %v2749 = vrot.slane %v1652, 1
      %v2750 = vrot.slane %v1655, 1
      %v2751 = vsel %vm1862, %v2749, %v2750
      %v2752 = vrot.slane %v1660, 1
      %v2753 = vrot.slane %v1663, 1
      %v2754 = vsel %vm1862, %v2752, %v2753
      %v2755 = vrot.slane %v1668, 1
      %v2756 = vrot.slane %v1671, 1
      %v2757 = vsel %vm1862, %v2755, %v2756
      %v2758 = vrot.slane %v1676, 1
      %v2759 = vrot.slane %v1679, 1
      %v2760 = vsel %vm1862, %v2758, %v2759
      %v2761 = vrot.slane %v1684, 1
      %v2762 = vrot.slane %v1687, 1
      %v2763 = vsel %vm1862, %v2761, %v2762
      %v2764 = vrot.slane %v1692, 1
      %v2765 = vrot.slane %v1695, 1
      %v2766 = vsel %vm1862, %v2764, %v2765
      %v2767 = vrot.slane %v1700, 1
      %v2768 = vrot.slane %v1703, 1
      %v2769 = vsel %vm1862, %v2767, %v2768
      %v2770 = vrot.slane %v1708, 1
      %v2771 = vrot.slane %v1711, 1
      %v2772 = vsel %vm1862, %v2770, %v2771
      %v2773 = vrot.slane %v1716, 1
      %v2774 = vrot.slane %v1719, 1
      %v2775 = vsel %vm1862, %v2773, %v2774
      %v2776 = vrot.slane %v1724, 1
      %v2777 = vrot.slane %v1727, 1
      %v2778 = vsel %vm1862, %v2776, %v2777
      %v2811 = vsel %vm1862, %v2732, 0.0
      %v2812 = vsel %vm1862, %v2735, 0.0
      %v2813 = vsel %vm1862, %v2738, 0.0
      %v2814 = vsel %vm1862, %v2741, 0.0
      %v2815 = vsel %vm1862, %v2744, 0.0
      %v2816 = vsel %vm1862, %v2747, 0.0
      %v2817 = vsel %vm1862, %v2750, 0.0
      %v2818 = vsel %vm1862, %v2753, 0.0
      %v2819 = vsel %vm1862, %v2756, 0.0
      %v2820 = vsel %vm1862, %v2759, 0.0
      %v2821 = vsel %vm1862, %v2762, 0.0
      %v2822 = vsel %vm1862, %v2765, 0.0
      %v2823 = vsel %vm1862, %v2768, 0.0
      %v2824 = vsel %vm1862, %v2771, 0.0
      %v2825 = vsel %vm1862, %v2774, 0.0
      %v2826 = vsel %vm1862, %v2777, 0.0
      %v2827 = vlaneseq
      %v2828 = vshrl.u32 %v2827, 7
      %v2829 = vsub.s32 0, %v2828
      %v2830 = vrot.slane %v2600, %v2829
      %v2831 = vmul.f32 %v2830, 0.0
      %v2832 = vmul.f32 %v2715, %v2830
      %v2833 = vmul.f32 %v2637, %v2830
      %v2834 = vmul.f32 %v2716, %v2830
      %v2835 = vmul.f32 %v2640, %v2830
      %v2836 = vmul.f32 %v2717, %v2830
      %v2837 = vmul.f32 %v2643, %v2830
      %v2838 = vmul.f32 %v2718, %v2830
      %v2839 = vmul.f32 %v2646, %v2830
      %v2840 = vmul.f32 %v2719, %v2830
      %v2841 = vmul.f32 %v2649, %v2830
      %v2842 = vmul.f32 %v2720, %v2830
      %v2843 = vmul.f32 %v2652, %v2830
      %v2844 = vmul.f32 %v2721, %v2830
      %v2845 = vmul.f32 %v2655, %v2830
      %v2846 = vmul.f32 %v2722, %v2830
      %v2847 = vmul.f32 %v2658, %v2830
      %v2848 = vmul.f32 %v2723, %v2830
      %v2849 = vmul.f32 %v2661, %v2830
      %v2850 = vmul.f32 %v2724, %v2830
      %v2851 = vmul.f32 %v2664, %v2830
      %v2852 = vmul.f32 %v2725, %v2830
      %v2853 = vmul.f32 %v2667, %v2830
      %v2854 = vmul.f32 %v2726, %v2830
      %v2855 = vmul.f32 %v2670, %v2830
      %v2856 = vmul.f32 %v2727, %v2830
      %v2857 = vmul.f32 %v2673, %v2830
      %v2858 = vmul.f32 %v2728, %v2830
      %v2859 = vmul.f32 %v2676, %v2830
      %v2860 = vmul.f32 %v2729, %v2830
      %v2861 = vmul.f32 %v2679, %v2830
      %v2862 = vadd.f32 %v2831, 0.0
      %v2863 = vadd.f32 %v2832, 0.0
      %v2864 = vadd.f32 %v2833, 0.0
      %v2865 = vadd.f32 %v2834, 0.0
      %v2866 = vadd.f32 %v2835, 0.0
      %v2867 = vadd.f32 %v2836, 0.0
      %v2868 = vadd.f32 %v2837, 0.0
      %v2869 = vadd.f32 %v2838, 0.0
      %v2870 = vadd.f32 %v2839, 0.0
      %v2871 = vadd.f32 %v2840, 0.0
      %v2872 = vadd.f32 %v2841, 0.0
      %v2873 = vadd.f32 %v2842, 0.0
      %v2874 = vadd.f32 %v2843, 0.0
      %v2875 = vadd.f32 %v2844, 0.0
      %v2876 = vadd.f32 %v2845, 0.0
      %v2877 = vadd.f32 %v2846, 0.0
      %v2878 = vadd.f32 %v2847, 0.0
      %v2879 = vadd.f32 %v2848, 0.0
      %v2880 = vadd.f32 %v2849, 0.0
      %v2881 = vadd.f32 %v2850, 0.0
      %v2882 = vadd.f32 %v2851, 0.0
      %v2883 = vadd.f32 %v2852, 0.0
      %v2884 = vadd.f32 %v2853, 0.0
      %v2885 = vadd.f32 %v2854, 0.0
      %v2886 = vadd.f32 %v2855, 0.0
      %v2887 = vadd.f32 %v2856, 0.0
      %v2888 = vadd.f32 %v2857, 0.0
      %v2889 = vadd.f32 %v2858, 0.0
      %v2890 = vadd.f32 %v2859, 0.0
      %v2891 = vadd.f32 %v2860, 0.0
      %v2892 = vadd.f32 %v2861, 0.0
      %v2893 = vlaneseq
      %v2894 = vshrl.u32 %v2893, 7
      %v2895 = vsub.s32 1, %v2894
      %v2896 = vrot.slane %v2600, %v2895
      %v2897 = vmul.f32 %v2896, 0.0
      %v2898 = vmul.f32 %v1604, %v2896
      %v2899 = vmul.f32 %v1607, %v2896
      %v2900 = vmul.f32 %v1612, %v2896
      %v2901 = vmul.f32 %v1615, %v2896
      %v2902 = vmul.f32 %v1620, %v2896
      %v2903 = vmul.f32 %v1623, %v2896
      %v2904 = vmul.f32 %v1628, %v2896
      %v2905 = vmul.f32 %v1631, %v2896
      %v2906 = vmul.f32 %v1636, %v2896
      %v2907 = vmul.f32 %v1639, %v2896
      %v2908 = vmul.f32 %v1644, %v2896
      %v2909 = vmul.f32 %v1647, %v2896
      %v2910 = vmul.f32 %v1652, %v2896
      %v2911 = vmul.f32 %v1655, %v2896
      %v2912 = vmul.f32 %v1660, %v2896
      %v2913 = vmul.f32 %v1663, %v2896
      %v2914 = vmul.f32 %v1668, %v2896
      %v2915 = vmul.f32 %v1671, %v2896
      %v2916 = vmul.f32 %v1676, %v2896
      %v2917 = vmul.f32 %v1679, %v2896
      %v2918 = vmul.f32 %v1684, %v2896
      %v2919 = vmul.f32 %v1687, %v2896
      %v2920 = vmul.f32 %v1692, %v2896
      %v2921 = vmul.f32 %v1695, %v2896
      %v2922 = vmul.f32 %v1700, %v2896
      %v2923 = vmul.f32 %v1703, %v2896
      %v2924 = vmul.f32 %v1708, %v2896
      %v2925 = vmul.f32 %v1711, %v2896
      %v2926 = vmul.f32 %v1716, %v2896
      %v2927 = vmul.f32 %v1719, %v2896
      %v2928 = vadd.f32 %v2862, %v2897
      %v2929 = vadd.f32 %v2863, %v2898
      %v2930 = vadd.f32 %v2864, %v2899
      %v2931 = vadd.f32 %v2865, %v2900
      %v2932 = vadd.f32 %v2866, %v2901
      %v2933 = vadd.f32 %v2867, %v2902
      %v2934 = vadd.f32 %v2868, %v2903
      %v2935 = vadd.f32 %v2869, %v2904
      %v2936 = vadd.f32 %v2870, %v2905
      %v2937 = vadd.f32 %v2871, %v2906
      %v2938 = vadd.f32 %v2872, %v2907
      %v2939 = vadd.f32 %v2873, %v2908
      %v2940 = vadd.f32 %v2874, %v2909
      %v2941 = vadd.f32 %v2875, %v2910
      %v2942 = vadd.f32 %v2876, %v2911
      %v2943 = vadd.f32 %v2877, %v2912
      %v2944 = vadd.f32 %v2878, %v2913
      %v2945 = vadd.f32 %v2879, %v2914
      %v2946 = vadd.f32 %v2880, %v2915
      %v2947 = vadd.f32 %v2881, %v2916
      %v2948 = vadd.f32 %v2882, %v2917
      %v2949 = vadd.f32 %v2883, %v2918
      %v2950 = vadd.f32 %v2884, %v2919
      %v2951 = vadd.f32 %v2885, %v2920
      %v2952 = vadd.f32 %v2886, %v2921
      %v2953 = vadd.f32 %v2887, %v2922
      %v2954 = vadd.f32 %v2888, %v2923
      %v2955 = vadd.f32 %v2889, %v2924
      %v2956 = vadd.f32 %v2890, %v2925
      %v2957 = vadd.f32 %v2891, %v2926
      %v2958 = vadd.f32 %v2892, %v2927
      %v2959 = vlaneseq
      %v2960 = vshrl.u32 %v2959, 7
      %v2961 = vsub.s32 2, %v2960
      %v2962 = vrot.slane %v2600, %v2961
      %v2963 = vmul.f32 %v2962, 0.0
      %v2964 = vmul.f32 %v2733, %v2962
      %v2965 = vmul.f32 %v2811, %v2962
      %v2966 = vmul.f32 %v2736, %v2962
      %v2967 = vmul.f32 %v2812, %v2962
      %v2968 = vmul.f32 %v2739, %v2962
      %v2969 = vmul.f32 %v2813, %v2962
      %v2970 = vmul.f32 %v2742, %v2962
      %v2971 = vmul.f32 %v2814, %v2962
      %v2972 = vmul.f32 %v2745, %v2962
      %v2973 = vmul.f32 %v2815, %v2962
      %v2974 = vmul.f32 %v2748, %v2962
      %v2975 = vmul.f32 %v2816, %v2962
      %v2976 = vmul.f32 %v2751, %v2962
      %v2977 = vmul.f32 %v2817, %v2962
      %v2978 = vmul.f32 %v2754, %v2962
      %v2979 = vmul.f32 %v2818, %v2962
      %v2980 = vmul.f32 %v2757, %v2962
      %v2981 = vmul.f32 %v2819, %v2962
      %v2982 = vmul.f32 %v2760, %v2962
      %v2983 = vmul.f32 %v2820, %v2962
      %v2984 = vmul.f32 %v2763, %v2962
      %v2985 = vmul.f32 %v2821, %v2962
      %v2986 = vmul.f32 %v2766, %v2962
      %v2987 = vmul.f32 %v2822, %v2962
      %v2988 = vmul.f32 %v2769, %v2962
      %v2989 = vmul.f32 %v2823, %v2962
      %v2990 = vmul.f32 %v2772, %v2962
      %v2991 = vmul.f32 %v2824, %v2962
      %v2992 = vmul.f32 %v2775, %v2962
      %v2993 = vmul.f32 %v2825, %v2962
      %v2994 = vadd.f32 %v2928, %v2963
      %v2995 = vadd.f32 %v2929, %v2964
      %v2996 = vadd.f32 %v2930, %v2965
      %v2997 = vadd.f32 %v2931, %v2966
      %v2998 = vadd.f32 %v2932, %v2967
      %v2999 = vadd.f32 %v2933, %v2968
      %v3000 = vadd.f32 %v2934, %v2969
      %v3001 = vadd.f32 %v2935, %v2970
      %v3002 = vadd.f32 %v2936, %v2971
      %v3003 = vadd.f32 %v2937, %v2972
      %v3004 = vadd.f32 %v2938, %v2973
      %v3005 = vadd.f32 %v2939, %v2974
      %v3006 = vadd.f32 %v2940, %v2975
      %v3007 = vadd.f32 %v2941, %v2976
      %v3008 = vadd.f32 %v2942, %v2977
      %v3009 = vadd.f32 %v2943, %v2978
      %v3010 = vadd.f32 %v2944, %v2979
      %v3011 = vadd.f32 %v2945, %v2980
      %v3012 = vadd.f32 %v2946, %v2981
      %v3013 = vadd.f32 %v2947, %v2982
      %v3014 = vadd.f32 %v2948, %v2983
      %v3015 = vadd.f32 %v2949, %v2984
      %v3016 = vadd.f32 %v2950, %v2985
      %v3017 = vadd.f32 %v2951, %v2986
      %v3018 = vadd.f32 %v2952, %v2987
      %v3019 = vadd.f32 %v2953, %v2988
      %v3020 = vadd.f32 %v2954, %v2989
      %v3021 = vadd.f32 %v2955, %v2990
      %v3022 = vadd.f32 %v2956, %v2991
      %v3023 = vadd.f32 %v2957, %v2992
      %v3024 = vadd.f32 %v2958, %v2993
      %v3025 = vlaneseq
      %v3026 = vshrl.u32 %v3025, 7
      %v3027 = vsub.s32 3, %v3026
      %v3028 = vrot.slane %v2600, %v3027
      %v3029 = vmul.f32 %v2715, %v3028
      %v3030 = vmul.f32 %v2637, %v3028
      %v3031 = vmul.f32 %v2716, %v3028
      %v3032 = vmul.f32 %v2640, %v3028
      %v3033 = vmul.f32 %v2717, %v3028
      %v3034 = vmul.f32 %v2643, %v3028
      %v3035 = vmul.f32 %v2718, %v3028
      %v3036 = vmul.f32 %v2646, %v3028
      %v3037 = vmul.f32 %v2719, %v3028
      %v3038 = vmul.f32 %v2649, %v3028
      %v3039 = vmul.f32 %v2720, %v3028
      %v3040 = vmul.f32 %v2652, %v3028
      %v3041 = vmul.f32 %v2721, %v3028
      %v3042 = vmul.f32 %v2655, %v3028
      %v3043 = vmul.f32 %v2722, %v3028
      %v3044 = vmul.f32 %v2658, %v3028
      %v3045 = vmul.f32 %v2723, %v3028
      %v3046 = vmul.f32 %v2661, %v3028
      %v3047 = vmul.f32 %v2724, %v3028
      %v3048 = vmul.f32 %v2664, %v3028
      %v3049 = vmul.f32 %v2725, %v3028
      %v3050 = vmul.f32 %v2667, %v3028
      %v3051 = vmul.f32 %v2726, %v3028
      %v3052 = vmul.f32 %v2670, %v3028
      %v3053 = vmul.f32 %v2727, %v3028
      %v3054 = vmul.f32 %v2673, %v3028
      %v3055 = vmul.f32 %v2728, %v3028
      %v3056 = vmul.f32 %v2676, %v3028
      %v3057 = vmul.f32 %v2729, %v3028
      %v3058 = vmul.f32 %v2679, %v3028
      %v3059 = vmul.f32 %v2730, %v3028
      %v3060 = vmul.f32 %v2682, %v3028
      %v3061 = vadd.f32 %v2994, %v3029
      %v3062 = vadd.f32 %v2994, %v3030
      %v3063 = vadd.f32 %v2995, %v3031
      %v3064 = vadd.f32 %v2996, %v3032
      %v3065 = vadd.f32 %v2997, %v3033
      %v3066 = vadd.f32 %v2998, %v3034
      %v3067 = vadd.f32 %v2999, %v3035
      %v3068 = vadd.f32 %v3000, %v3036
      %v3069 = vadd.f32 %v3001, %v3037
      %v3070 = vadd.f32 %v3002, %v3038
      %v3071 = vadd.f32 %v3003, %v3039
      %v3072 = vadd.f32 %v3004, %v3040
      %v3073 = vadd.f32 %v3005, %v3041
      %v3074 = vadd.f32 %v3006, %v3042
      %v3075 = vadd.f32 %v3007, %v3043
      %v3076 = vadd.f32 %v3008, %v3044
      %v3077 = vadd.f32 %v3009, %v3045
      %v3078 = vadd.f32 %v3010, %v3046
      %v3079 = vadd.f32 %v3011, %v3047
      %v3080 = vadd.f32 %v3012, %v3048
      %v3081 = vadd.f32 %v3013, %v3049
      %v3082 = vadd.f32 %v3014, %v3050
      %v3083 = vadd.f32 %v3015, %v3051
      %v3084 = vadd.f32 %v3016, %v3052
      %v3085 = vadd.f32 %v3017, %v3053
      %v3086 = vadd.f32 %v3018, %v3054
      %v3087 = vadd.f32 %v3019, %v3055
      %v3088 = vadd.f32 %v3020, %v3056
      %v3089 = vadd.f32 %v3021, %v3057
      %v3090 = vadd.f32 %v3022, %v3058
      %v3091 = vadd.f32 %v3023, %v3059
      %v3092 = vadd.f32 %v3024, %v3060
      %v3093 = vlaneseq
      %v3094 = vshrl.u32 %v3093, 7
      %v3095 = vsub.s32 4, %v3094
      %v3096 = vrot.slane %v2600, %v3095
      %v3097 = vmul.f32 %v1604, %v3096
      %v3098 = vmul.f32 %v1607, %v3096
      %v3099 = vmul.f32 %v1612, %v3096
      %v3100 = vmul.f32 %v1615, %v3096
      %v3101 = vmul.f32 %v1620, %v3096
      %v3102 = vmul.f32 %v1623, %v3096
      %v3103 = vmul.f32 %v1628, %v3096
      %v3104 = vmul.f32 %v1631, %v3096
      %v3105 = vmul.f32 %v1636, %v3096
      %v3106 = vmul.f32 %v1639, %v3096
      %v3107 = vmul.f32 %v1644, %v3096
      %v3108 = vmul.f32 %v1647, %v3096
      %v3109 = vmul.f32 %v1652, %v3096
      %v3110 = vmul.f32 %v1655, %v3096
      %v3111 = vmul.f32 %v1660, %v3096
      %v3112 = vmul.f32 %v1663, %v3096
      %v3113 = vmul.f32 %v1668, %v3096
      %v3114 = vmul.f32 %v1671, %v3096
      %v3115 = vmul.f32 %v1676, %v3096
      %v3116 = vmul.f32 %v1679, %v3096
      %v3117 = vmul.f32 %v1684, %v3096
      %v3118 = vmul.f32 %v1687, %v3096
      %v3119 = vmul.f32 %v1692, %v3096
      %v3120 = vmul.f32 %v1695, %v3096
      %v3121 = vmul.f32 %v1700, %v3096
      %v3122 = vmul.f32 %v1703, %v3096
      %v3123 = vmul.f32 %v1708, %v3096
      %v3124 = vmul.f32 %v1711, %v3096
      %v3125 = vmul.f32 %v1716, %v3096
      %v3126 = vmul.f32 %v1719, %v3096
      %v3127 = vmul.f32 %v1724, %v3096
      %v3128 = vmul.f32 %v1727, %v3096
      %v3129 = vadd.f32 %v3061, %v3097
      %v3130 = vadd.f32 %v3062, %v3098
      %v3131 = vadd.f32 %v3063, %v3099
      %v3132 = vadd.f32 %v3064, %v3100
      %v3133 = vadd.f32 %v3065, %v3101
      %v3134 = vadd.f32 %v3066, %v3102
      %v3135 = vadd.f32 %v3067, %v3103
      %v3136 = vadd.f32 %v3068, %v3104
      %v3137 = vadd.f32 %v3069, %v3105
      %v3138 = vadd.f32 %v3070, %v3106
      %v3139 = vadd.f32 %v3071, %v3107
      %v3140 = vadd.f32 %v3072, %v3108
      %v3141 = vadd.f32 %v3073, %v3109
      %v3142 = vadd.f32 %v3074, %v3110
      %v3143 = vadd.f32 %v3075, %v3111
      %v3144 = vadd.f32 %v3076, %v3112
      %v3145 = vadd.f32 %v3077, %v3113
      %v3146 = vadd.f32 %v3078, %v3114
      %v3147 = vadd.f32 %v3079, %v3115
      %v3148 = vadd.f32 %v3080, %v3116
      %v3149 = vadd.f32 %v3081, %v3117
      %v3150 = vadd.f32 %v3082, %v3118
      %v3151 = vadd.f32 %v3083, %v3119
      %v3152 = vadd.f32 %v3084, %v3120
      %v3153 = vadd.f32 %v3085, %v3121
      %v3154 = vadd.f32 %v3086, %v3122
      %v3155 = vadd.f32 %v3087, %v3123
      %v3156 = vadd.f32 %v3088, %v3124
      %v3157 = vadd.f32 %v3089, %v3125
      %v3158 = vadd.f32 %v3090, %v3126
      %v3159 = vadd.f32 %v3091, %v3127
      %v3160 = vadd.f32 %v3092, %v3128
      %v3161 = vlaneseq
      %v3162 = vshrl.u32 %v3161, 7
      %v3163 = vsub.s32 5, %v3162
      %v3164 = vrot.slane %v2600, %v3163
      %v3165 = vmul.f32 %v2733, %v3164
      %v3166 = vmul.f32 %v2811, %v3164
      %v3167 = vmul.f32 %v2736, %v3164
      %v3168 = vmul.f32 %v2812, %v3164
      %v3169 = vmul.f32 %v2739, %v3164
      %v3170 = vmul.f32 %v2813, %v3164
      %v3171 = vmul.f32 %v2742, %v3164
      %v3172 = vmul.f32 %v2814, %v3164
      %v3173 = vmul.f32 %v2745, %v3164
      %v3174 = vmul.f32 %v2815, %v3164
      %v3175 = vmul.f32 %v2748, %v3164
      %v3176 = vmul.f32 %v2816, %v3164
      %v3177 = vmul.f32 %v2751, %v3164
      %v3178 = vmul.f32 %v2817, %v3164
      %v3179 = vmul.f32 %v2754, %v3164
      %v3180 = vmul.f32 %v2818, %v3164
      %v3181 = vmul.f32 %v2757, %v3164
      %v3182 = vmul.f32 %v2819, %v3164
      %v3183 = vmul.f32 %v2760, %v3164
      %v3184 = vmul.f32 %v2820, %v3164
      %v3185 = vmul.f32 %v2763, %v3164
      %v3186 = vmul.f32 %v2821, %v3164
      %v3187 = vmul.f32 %v2766, %v3164
      %v3188 = vmul.f32 %v2822, %v3164
      %v3189 = vmul.f32 %v2769, %v3164
      %v3190 = vmul.f32 %v2823, %v3164
      %v3191 = vmul.f32 %v2772, %v3164
      %v3192 = vmul.f32 %v2824, %v3164
      %v3193 = vmul.f32 %v2775, %v3164
      %v3194 = vmul.f32 %v2825, %v3164
      %v3195 = vmul.f32 %v2778, %v3164
      %v3196 = vmul.f32 %v2826, %v3164
      %v3197 = vadd.f32 %v3129, %v3165
      %v3198 = vadd.f32 %v3130, %v3166
      %v3199 = vadd.f32 %v3131, %v3167
      %v3200 = vadd.f32 %v3132, %v3168
      %v3201 = vadd.f32 %v3133, %v3169
      %v3202 = vadd.f32 %v3134, %v3170
      %v3203 = vadd.f32 %v3135, %v3171
      %v3204 = vadd.f32 %v3136, %v3172
      %v3205 = vadd.f32 %v3137, %v3173
      %v3206 = vadd.f32 %v3138, %v3174
      %v3207 = vadd.f32 %v3139, %v3175
      %v3208 = vadd.f32 %v3140, %v3176
      %v3209 = vadd.f32 %v3141, %v3177
      %v3210 = vadd.f32 %v3142, %v3178
      %v3211 = vadd.f32 %v3143, %v3179
      %v3212 = vadd.f32 %v3144, %v3180
      %v3213 = vadd.f32 %v3145, %v3181
      %v3214 = vadd.f32 %v3146, %v3182
      %v3215 = vadd.f32 %v3147, %v3183
      %v3216 = vadd.f32 %v3148, %v3184
      %v3217 = vadd.f32 %v3149, %v3185
      %v3218 = vadd.f32 %v3150, %v3186
      %v3219 = vadd.f32 %v3151, %v3187
      %v3220 = vadd.f32 %v3152, %v3188
      %v3221 = vadd.f32 %v3153, %v3189
      %v3222 = vadd.f32 %v3154, %v3190
      %v3223 = vadd.f32 %v3155, %v3191
      %v3224 = vadd.f32 %v3156, %v3192
      %v3225 = vadd.f32 %v3157, %v3193
      %v3226 = vadd.f32 %v3158, %v3194
      %v3227 = vadd.f32 %v3159, %v3195
      %v3228 = vadd.f32 %v3160, %v3196
      %v3229 = vlaneseq
      %v3230 = vshrl.u32 %v3229, 7
      %v3231 = vsub.s32 6, %v3230
      %v3232 = vrot.slane %v2600, %v3231
      %v3233 = vmul.f32 %v2716, %v3232
      %v3234 = vmul.f32 %v2640, %v3232
      %v3235 = vmul.f32 %v2717, %v3232
      %v3236 = vmul.f32 %v2643, %v3232
      %v3237 = vmul.f32 %v2718, %v3232
      %v3238 = vmul.f32 %v2646, %v3232
      %v3239 = vmul.f32 %v2719, %v3232
      %v3240 = vmul.f32 %v2649, %v3232
      %v3241 = vmul.f32 %v2720, %v3232
      %v3242 = vmul.f32 %v2652, %v3232
      %v3243 = vmul.f32 %v2721, %v3232
      %v3244 = vmul.f32 %v2655, %v3232
      %v3245 = vmul.f32 %v2722, %v3232
      %v3246 = vmul.f32 %v2658, %v3232
      %v3247 = vmul.f32 %v2723, %v3232
      %v3248 = vmul.f32 %v2661, %v3232
      %v3249 = vmul.f32 %v2724, %v3232
      %v3250 = vmul.f32 %v2664, %v3232
      %v3251 = vmul.f32 %v2725, %v3232
      %v3252 = vmul.f32 %v2667, %v3232
      %v3253 = vmul.f32 %v2726, %v3232
      %v3254 = vmul.f32 %v2670, %v3232
      %v3255 = vmul.f32 %v2727, %v3232
      %v3256 = vmul.f32 %v2673, %v3232
      %v3257 = vmul.f32 %v2728, %v3232
      %v3258 = vmul.f32 %v2676, %v3232
      %v3259 = vmul.f32 %v2729, %v3232
      %v3260 = vmul.f32 %v2679, %v3232
      %v3261 = vmul.f32 %v2730, %v3232
      %v3262 = vmul.f32 %v2682, %v3232
      %v3263 = vmul.f32 %v3232, 0.0
      %v3264 = vadd.f32 %v3197, %v3233
      %v3265 = vadd.f32 %v3198, %v3234
      %v3266 = vadd.f32 %v3199, %v3235
      %v3267 = vadd.f32 %v3200, %v3236
      %v3268 = vadd.f32 %v3201, %v3237
      %v3269 = vadd.f32 %v3202, %v3238
      %v3270 = vadd.f32 %v3203, %v3239
      %v3271 = vadd.f32 %v3204, %v3240
      %v3272 = vadd.f32 %v3205, %v3241
      %v3273 = vadd.f32 %v3206, %v3242
      %v3274 = vadd.f32 %v3207, %v3243
      %v3275 = vadd.f32 %v3208, %v3244
      %v3276 = vadd.f32 %v3209, %v3245
      %v3277 = vadd.f32 %v3210, %v3246
      %v3278 = vadd.f32 %v3211, %v3247
      %v3279 = vadd.f32 %v3212, %v3248
      %v3280 = vadd.f32 %v3213, %v3249
      %v3281 = vadd.f32 %v3214, %v3250
      %v3282 = vadd.f32 %v3215, %v3251
      %v3283 = vadd.f32 %v3216, %v3252
      %v3284 = vadd.f32 %v3217, %v3253
      %v3285 = vadd.f32 %v3218, %v3254
      %v3286 = vadd.f32 %v3219, %v3255
      %v3287 = vadd.f32 %v3220, %v3256
      %v3288 = vadd.f32 %v3221, %v3257
      %v3289 = vadd.f32 %v3222, %v3258
      %v3290 = vadd.f32 %v3223, %v3259
      %v3291 = vadd.f32 %v3224, %v3260
      %v3292 = vadd.f32 %v3225, %v3261
      %v3293 = vadd.f32 %v3226, %v3262
      %v3294 = vadd.f32 %v3227, %v3263
      %v3295 = vadd.f32 %v3228, %v3263
      %v3296 = vlaneseq
      %v3297 = vshrl.u32 %v3296, 7
      %v3298 = vsub.s32 7, %v3297
      %v3299 = vrot.slane %v2600, %v3298
      %v3300 = vmul.f32 %v1612, %v3299
      %v3301 = vmul.f32 %v1615, %v3299
      %v3302 = vmul.f32 %v1620, %v3299
      %v3303 = vmul.f32 %v1623, %v3299
      %v3304 = vmul.f32 %v1628, %v3299
      %v3305 = vmul.f32 %v1631, %v3299
      %v3306 = vmul.f32 %v1636, %v3299
      %v3307 = vmul.f32 %v1639, %v3299
      %v3308 = vmul.f32 %v1644, %v3299
      %v3309 = vmul.f32 %v1647, %v3299
      %v3310 = vmul.f32 %v1652, %v3299
      %v3311 = vmul.f32 %v1655, %v3299
      %v3312 = vmul.f32 %v1660, %v3299
      %v3313 = vmul.f32 %v1663, %v3299
      %v3314 = vmul.f32 %v1668, %v3299
      %v3315 = vmul.f32 %v1671, %v3299
      %v3316 = vmul.f32 %v1676, %v3299
      %v3317 = vmul.f32 %v1679, %v3299
      %v3318 = vmul.f32 %v1684, %v3299
      %v3319 = vmul.f32 %v1687, %v3299
      %v3320 = vmul.f32 %v1692, %v3299
      %v3321 = vmul.f32 %v1695, %v3299
      %v3322 = vmul.f32 %v1700, %v3299
      %v3323 = vmul.f32 %v1703, %v3299
      %v3324 = vmul.f32 %v1708, %v3299
      %v3325 = vmul.f32 %v1711, %v3299
      %v3326 = vmul.f32 %v1716, %v3299
      %v3327 = vmul.f32 %v1719, %v3299
      %v3328 = vmul.f32 %v1724, %v3299
      %v3329 = vmul.f32 %v1727, %v3299
      %v3330 = vmul.f32 %v3299, 0.0
      %v3331 = vadd.f32 %v3264, %v3300
      %v3332 = vadd.f32 %v3265, %v3301
      %v3333 = vadd.f32 %v3266, %v3302
      %v3334 = vadd.f32 %v3267, %v3303
      %v3335 = vadd.f32 %v3268, %v3304
      %v3336 = vadd.f32 %v3269, %v3305
      %v3337 = vadd.f32 %v3270, %v3306
      %v3338 = vadd.f32 %v3271, %v3307
      %v3339 = vadd.f32 %v3272, %v3308
      %v3340 = vadd.f32 %v3273, %v3309
      %v3341 = vadd.f32 %v3274, %v3310
      %v3342 = vadd.f32 %v3275, %v3311
      %v3343 = vadd.f32 %v3276, %v3312
      %v3344 = vadd.f32 %v3277, %v3313
      %v3345 = vadd.f32 %v3278, %v3314
      %v3346 = vadd.f32 %v3279, %v3315
      %v3347 = vadd.f32 %v3280, %v3316
      %v3348 = vadd.f32 %v3281, %v3317
      %v3349 = vadd.f32 %v3282, %v3318
      %v3350 = vadd.f32 %v3283, %v3319
      %v3351 = vadd.f32 %v3284, %v3320
      %v3352 = vadd.f32 %v3285, %v3321
      %v3353 = vadd.f32 %v3286, %v3322
      %v3354 = vadd.f32 %v3287, %v3323
      %v3355 = vadd.f32 %v3288, %v3324
      %v3356 = vadd.f32 %v3289, %v3325
      %v3357 = vadd.f32 %v3290, %v3326
      %v3358 = vadd.f32 %v3291, %v3327
      %v3359 = vadd.f32 %v3292, %v3328
      %v3360 = vadd.f32 %v3293, %v3329
      %v3361 = vadd.f32 %v3294, %v3330
      %v3362 = vadd.f32 %v3295, %v3330
      %v3363 = vlaneseq
      %v3364 = vshrl.u32 %v3363, 7
      %v3365 = vsub.s32 0, %v3364
      %v3366 = vrot.slane %v2601, %v3365
      %v3367 = vmul.f32 %v2736, %v3366
      %v3368 = vmul.f32 %v2812, %v3366
      %v3369 = vmul.f32 %v2739, %v3366
      %v3370 = vmul.f32 %v2813, %v3366
      %v3371 = vmul.f32 %v2742, %v3366
      %v3372 = vmul.f32 %v2814, %v3366
      %v3373 = vmul.f32 %v2745, %v3366
      %v3374 = vmul.f32 %v2815, %v3366
      %v3375 = vmul.f32 %v2748, %v3366
      %v3376 = vmul.f32 %v2816, %v3366
      %v3377 = vmul.f32 %v2751, %v3366
      %v3378 = vmul.f32 %v2817, %v3366
      %v3379 = vmul.f32 %v2754, %v3366
      %v3380 = vmul.f32 %v2818, %v3366
      %v3381 = vmul.f32 %v2757, %v3366
      %v3382 = vmul.f32 %v2819, %v3366
      %v3383 = vmul.f32 %v2760, %v3366
      %v3384 = vmul.f32 %v2820, %v3366
      %v3385 = vmul.f32 %v2763, %v3366
      %v3386 = vmul.f32 %v2821, %v3366
      %v3387 = vmul.f32 %v2766, %v3366
      %v3388 = vmul.f32 %v2822, %v3366
      %v3389 = vmul.f32 %v2769, %v3366
      %v3390 = vmul.f32 %v2823, %v3366
      %v3391 = vmul.f32 %v2772, %v3366
      %v3392 = vmul.f32 %v2824, %v3366
      %v3393 = vmul.f32 %v2775, %v3366
      %v3394 = vmul.f32 %v2825, %v3366
      %v3395 = vmul.f32 %v2778, %v3366
      %v3396 = vmul.f32 %v2826, %v3366
      %v3397 = vmul.f32 %v3366, 0.0
      %v3398 = vadd.f32 %v3331, %v3367
      %v3399 = vadd.f32 %v3332, %v3368
      %v3400 = vadd.f32 %v3333, %v3369
      %v3401 = vadd.f32 %v3334, %v3370
      %v3402 = vadd.f32 %v3335, %v3371
      %v3403 = vadd.f32 %v3336, %v3372
      %v3404 = vadd.f32 %v3337, %v3373
      %v3405 = vadd.f32 %v3338, %v3374
      %v3406 = vadd.f32 %v3339, %v3375
      %v3407 = vadd.f32 %v3340, %v3376
      %v3408 = vadd.f32 %v3341, %v3377
      %v3409 = vadd.f32 %v3342, %v3378
      %v3410 = vadd.f32 %v3343, %v3379
      %v3411 = vadd.f32 %v3344, %v3380
      %v3412 = vadd.f32 %v3345, %v3381
      %v3413 = vadd.f32 %v3346, %v3382
      %v3414 = vadd.f32 %v3347, %v3383
      %v3415 = vadd.f32 %v3348, %v3384
      %v3416 = vadd.f32 %v3349, %v3385
      %v3417 = vadd.f32 %v3350, %v3386
      %v3418 = vadd.f32 %v3351, %v3387
      %v3419 = vadd.f32 %v3352, %v3388
      %v3420 = vadd.f32 %v3353, %v3389
      %v3421 = vadd.f32 %v3354, %v3390
      %v3422 = vadd.f32 %v3355, %v3391
      %v3423 = vadd.f32 %v3356, %v3392
      %v3424 = vadd.f32 %v3357, %v3393
      %v3425 = vadd.f32 %v3358, %v3394
      %v3426 = vadd.f32 %v3359, %v3395
      %v3427 = vadd.f32 %v3360, %v3396
      %v3428 = vadd.f32 %v3361, %v3397
      %v3429 = vadd.f32 %v3362, %v3397
      %v3431 = vlaneseq
      %v3432 = vshrl.u32 %v3431, 7
      %v3433 = vsub.s32 0, %v3432
      %v3434 = vrot.slane %v2602, %v3433
      %v3436 = vadd.f32 %v3398, %v3434
      %v3437 = vadd.f32 %v3399, %v3434
      %v3438 = vadd.f32 %v3400, %v3434
      %v3439 = vadd.f32 %v3401, %v3434
      %v3440 = vadd.f32 %v3402, %v3434
      %v3441 = vadd.f32 %v3403, %v3434
      %v3442 = vadd.f32 %v3404, %v3434
      %v3443 = vadd.f32 %v3405, %v3434
      %v3444 = vadd.f32 %v3406, %v3434
      %v3445 = vadd.f32 %v3407, %v3434
      %v3446 = vadd.f32 %v3408, %v3434
      %v3447 = vadd.f32 %v3409, %v3434
      %v3448 = vadd.f32 %v3410, %v3434
      %v3449 = vadd.f32 %v3411, %v3434
      %v3450 = vadd.f32 %v3412, %v3434
      %v3451 = vadd.f32 %v3413, %v3434
      %v3452 = vadd.f32 %v3414, %v3434
      %v3453 = vadd.f32 %v3415, %v3434
      %v3454 = vadd.f32 %v3416, %v3434
      %v3455 = vadd.f32 %v3417, %v3434
      %v3456 = vadd.f32 %v3418, %v3434
      %v3457 = vadd.f32 %v3419, %v3434
      %v3458 = vadd.f32 %v3420, %v3434
      %v3459 = vadd.f32 %v3421, %v3434
      %v3460 = vadd.f32 %v3422, %v3434
      %v3461 = vadd.f32 %v3423, %v3434
      %v3462 = vadd.f32 %v3424, %v3434
      %v3463 = vadd.f32 %v3425, %v3434
      %v3464 = vadd.f32 %v3426, %v3434
      %v3465 = vadd.f32 %v3427, %v3434
      %v3466 = vadd.f32 %v3428, %v3434
      %v3467 = vadd.f32 %v3429, %v3434
      %v3468 = vmul.f32 %v3436, 0.70710677
      %v3469 = vmul.f32 %v3437, 0.70710677
      %v3470 = vmul.f32 %v3438, 0.70710677
      %v3471 = vmul.f32 %v3439, 0.70710677
      %v3472 = vmul.f32 %v3440, 0.70710677
      %v3473 = vmul.f32 %v3441, 0.70710677
      %v3474 = vmul.f32 %v3442, 0.70710677
      %v3475 = vmul.f32 %v3443, 0.70710677
      %v3476 = vmul.f32 %v3444, 0.70710677
      %v3477 = vmul.f32 %v3445, 0.70710677
      %v3478 = vmul.f32 %v3446, 0.70710677
      %v3479 = vmul.f32 %v3447, 0.70710677
      %v3480 = vmul.f32 %v3448, 0.70710677
      %v3481 = vmul.f32 %v3449, 0.70710677
      %v3482 = vmul.f32 %v3450, 0.70710677
      %v3483 = vmul.f32 %v3451, 0.70710677
      %v3484 = vmul.f32 %v3452, 0.70710677
      %v3485 = vmul.f32 %v3453, 0.70710677
      %v3486 = vmul.f32 %v3454, 0.70710677
      %v3487 = vmul.f32 %v3455, 0.70710677
      %v3488 = vmul.f32 %v3456, 0.70710677
      %v3489 = vmul.f32 %v3457, 0.70710677
      %v3490 = vmul.f32 %v3458, 0.70710677
      %v3491 = vmul.f32 %v3459, 0.70710677
      %v3492 = vmul.f32 %v3460, 0.70710677
      %v3493 = vmul.f32 %v3461, 0.70710677
      %v3494 = vmul.f32 %v3462, 0.70710677
      %v3495 = vmul.f32 %v3463, 0.70710677
      %v3496 = vmul.f32 %v3464, 0.70710677
      %v3497 = vmul.f32 %v3465, 0.70710677
      %v3498 = vmul.f32 %v3466, 0.70710677
      %v3499 = vmul.f32 %v3467, 0.70710677
      %vm3500 = vcmp.lt.f32.partialorder %v3468, 0.0
      %vm3501 = vcmp.lt.f32.partialorder %v3469, 0.0
      %vm3502 = vcmp.lt.f32.partialorder %v3470, 0.0
      %vm3503 = vcmp.lt.f32.partialorder %v3471, 0.0
      %vm3504 = vcmp.lt.f32.partialorder %v3472, 0.0
      %vm3505 = vcmp.lt.f32.partialorder %v3473, 0.0
      %vm3506 = vcmp.lt.f32.partialorder %v3474, 0.0
      %vm3507 = vcmp.lt.f32.partialorder %v3475, 0.0
      %vm3508 = vcmp.lt.f32.partialorder %v3476, 0.0
      %vm3509 = vcmp.lt.f32.partialorder %v3477, 0.0
      %vm3510 = vcmp.lt.f32.partialorder %v3478, 0.0
      %vm3511 = vcmp.lt.f32.partialorder %v3479, 0.0
      %vm3512 = vcmp.lt.f32.partialorder %v3480, 0.0
      %vm3513 = vcmp.lt.f32.partialorder %v3481, 0.0
      %vm3514 = vcmp.lt.f32.partialorder %v3482, 0.0
      %vm3515 = vcmp.lt.f32.partialorder %v3483, 0.0
      %vm3516 = vcmp.lt.f32.partialorder %v3484, 0.0
      %vm3517 = vcmp.lt.f32.partialorder %v3485, 0.0
      %vm3518 = vcmp.lt.f32.partialorder %v3486, 0.0
      %vm3519 = vcmp.lt.f32.partialorder %v3487, 0.0
      %vm3520 = vcmp.lt.f32.partialorder %v3488, 0.0
      %vm3521 = vcmp.lt.f32.partialorder %v3489, 0.0
      %vm3522 = vcmp.lt.f32.partialorder %v3490, 0.0
      %vm3523 = vcmp.lt.f32.partialorder %v3491, 0.0
      %vm3524 = vcmp.lt.f32.partialorder %v3492, 0.0
      %vm3525 = vcmp.lt.f32.partialorder %v3493, 0.0
      %vm3526 = vcmp.lt.f32.partialorder %v3494, 0.0
      %vm3527 = vcmp.lt.f32.partialorder %v3495, 0.0
      %vm3528 = vcmp.lt.f32.partialorder %v3496, 0.0
      %vm3529 = vcmp.lt.f32.partialorder %v3497, 0.0
      %vm3530 = vcmp.lt.f32.partialorder %v3498, 0.0
      %vm3531 = vcmp.lt.f32.partialorder %v3499, 0.0
      %v3532 = vsel %vm3500, -1.0, 1.0
      %v3533 = vsel %vm3501, -1.0, 1.0
      %v3534 = vsel %vm3502, -1.0, 1.0
      %v3535 = vsel %vm3503, -1.0, 1.0
      %v3536 = vsel %vm3504, -1.0, 1.0
      %v3537 = vsel %vm3505, -1.0, 1.0
      %v3538 = vsel %vm3506, -1.0, 1.0
      %v3539 = vsel %vm3507, -1.0, 1.0
      %v3540 = vsel %vm3508, -1.0, 1.0
      %v3541 = vsel %vm3509, -1.0, 1.0
      %v3542 = vsel %vm3510, -1.0, 1.0
      %v3543 = vsel %vm3511, -1.0, 1.0
      %v3544 = vsel %vm3512, -1.0, 1.0
      %v3545 = vsel %vm3513, -1.0, 1.0
      %v3546 = vsel %vm3514, -1.0, 1.0
      %v3547 = vsel %vm3515, -1.0, 1.0
      %v3548 = vsel %vm3516, -1.0, 1.0
      %v3549 = vsel %vm3517, -1.0, 1.0
      %v3550 = vsel %vm3518, -1.0, 1.0
      %v3551 = vsel %vm3519, -1.0, 1.0
      %v3552 = vsel %vm3520, -1.0, 1.0
      %v3553 = vsel %vm3521, -1.0, 1.0
      %v3554 = vsel %vm3522, -1.0, 1.0
      %v3555 = vsel %vm3523, -1.0, 1.0
      %v3556 = vsel %vm3524, -1.0, 1.0
      %v3557 = vsel %vm3525, -1.0, 1.0
      %v3558 = vsel %vm3526, -1.0, 1.0
      %v3559 = vsel %vm3527, -1.0, 1.0
      %v3560 = vsel %vm3528, -1.0, 1.0
      %v3561 = vsel %vm3529, -1.0, 1.0
      %v3562 = vsel %vm3530, -1.0, 1.0
      %v3563 = vsel %vm3531, -1.0, 1.0
      %v3564 = vand.u32 2147483647, %v3468
      %v3565 = vand.u32 2147483647, %v3469
      %v3566 = vand.u32 2147483647, %v3470
      %v3567 = vand.u32 2147483647, %v3471
      %v3568 = vand.u32 2147483647, %v3472
      %v3569 = vand.u32 2147483647, %v3473
      %v3570 = vand.u32 2147483647, %v3474
      %v3571 = vand.u32 2147483647, %v3475
      %v3572 = vand.u32 2147483647, %v3476
      %v3573 = vand.u32 2147483647, %v3477
      %v3574 = vand.u32 2147483647, %v3478
      %v3575 = vand.u32 2147483647, %v3479
      %v3576 = vand.u32 2147483647, %v3480
      %v3577 = vand.u32 2147483647, %v3481
      %v3578 = vand.u32 2147483647, %v3482
      %v3579 = vand.u32 2147483647, %v3483
      %v3580 = vand.u32 2147483647, %v3484
      %v3581 = vand.u32 2147483647, %v3485
      %v3582 = vand.u32 2147483647, %v3486
      %v3583 = vand.u32 2147483647, %v3487
      %v3584 = vand.u32 2147483647, %v3488
      %v3585 = vand.u32 2147483647, %v3489
      %v3586 = vand.u32 2147483647, %v3490
      %v3587 = vand.u32 2147483647, %v3491
      %v3588 = vand.u32 2147483647, %v3492
      %v3589 = vand.u32 2147483647, %v3493
      %v3590 = vand.u32 2147483647, %v3494
      %v3591 = vand.u32 2147483647, %v3495
      %v3592 = vand.u32 2147483647, %v3496
      %v3593 = vand.u32 2147483647, %v3497
      %v3594 = vand.u32 2147483647, %v3498
      %v3595 = vand.u32 2147483647, %v3499
      %v3596 = vmul.f32 %v3564, 0.3275911
      %v3597 = vmul.f32 %v3565, 0.3275911
      %v3598 = vmul.f32 %v3566, 0.3275911
      %v3599 = vmul.f32 %v3567, 0.3275911
      %v3600 = vmul.f32 %v3568, 0.3275911
      %v3601 = vmul.f32 %v3569, 0.3275911
      %v3602 = vmul.f32 %v3570, 0.3275911
      %v3603 = vmul.f32 %v3571, 0.3275911
      %v3604 = vmul.f32 %v3572, 0.3275911
      %v3605 = vmul.f32 %v3573, 0.3275911
      %v3606 = vmul.f32 %v3574, 0.3275911
      %v3607 = vmul.f32 %v3575, 0.3275911
      %v3608 = vmul.f32 %v3576, 0.3275911
      %v3609 = vmul.f32 %v3577, 0.3275911
      %v3610 = vmul.f32 %v3578, 0.3275911
      %v3611 = vmul.f32 %v3579, 0.3275911
      %v3612 = vmul.f32 %v3580, 0.3275911
      %v3613 = vmul.f32 %v3581, 0.3275911
      %v3614 = vmul.f32 %v3582, 0.3275911
      %v3615 = vmul.f32 %v3583, 0.3275911
      %v3616 = vmul.f32 %v3584, 0.3275911
      %v3617 = vmul.f32 %v3585, 0.3275911
      %v3618 = vmul.f32 %v3586, 0.3275911
      %v3619 = vmul.f32 %v3587, 0.3275911
      %v3620 = vmul.f32 %v3588, 0.3275911
      %v3621 = vmul.f32 %v3589, 0.3275911
      %v3622 = vmul.f32 %v3590, 0.3275911
      %v3623 = vmul.f32 %v3591, 0.3275911
      %v3624 = vmul.f32 %v3592, 0.3275911
      %v3625 = vmul.f32 %v3593, 0.3275911
      %v3626 = vmul.f32 %v3594, 0.3275911
      %v3627 = vmul.f32 %v3595, 0.3275911
      %v3628 = vadd.f32 %v3596, 1.0
      %v3629 = vadd.f32 %v3597, 1.0
      %v3630 = vadd.f32 %v3598, 1.0
      %v3631 = vadd.f32 %v3599, 1.0
      %v3632 = vadd.f32 %v3600, 1.0
      %v3633 = vadd.f32 %v3601, 1.0
      %v3634 = vadd.f32 %v3602, 1.0
      %v3635 = vadd.f32 %v3603, 1.0
      %v3636 = vadd.f32 %v3604, 1.0
      %v3637 = vadd.f32 %v3605, 1.0
      %v3638 = vadd.f32 %v3606, 1.0
      %v3639 = vadd.f32 %v3607, 1.0
      %v3640 = vadd.f32 %v3608, 1.0
      %v3641 = vadd.f32 %v3609, 1.0
      %v3642 = vadd.f32 %v3610, 1.0
      %v3643 = vadd.f32 %v3611, 1.0
      %v3644 = vadd.f32 %v3612, 1.0
      %v3645 = vadd.f32 %v3613, 1.0
      %v3646 = vadd.f32 %v3614, 1.0
      %v3647 = vadd.f32 %v3615, 1.0
      %v3648 = vadd.f32 %v3616, 1.0
      %v3649 = vadd.f32 %v3617, 1.0
      %v3650 = vadd.f32 %v3618, 1.0
      %v3651 = vadd.f32 %v3619, 1.0
      %v3652 = vadd.f32 %v3620, 1.0
      %v3653 = vadd.f32 %v3621, 1.0
      %v3654 = vadd.f32 %v3622, 1.0
      %v3655 = vadd.f32 %v3623, 1.0
      %v3656 = vadd.f32 %v3624, 1.0
      %v3657 = vadd.f32 %v3625, 1.0
      %v3658 = vadd.f32 %v3626, 1.0
      %v3659 = vadd.f32 %v3627, 1.0
      %v3660 = vrcp.pop %v3628
      %v3661 = vrcp.pop %v3629
      %v3662 = vrcp.pop %v3630
      %v3663 = vrcp.pop %v3631
      %v3664 = vrcp.pop %v3632
      %v3665 = vrcp.pop %v3633
      %v3666 = vrcp.pop %v3634
      %v3667 = vrcp.pop %v3635
      %v3668 = vrcp.pop %v3636
      %v3669 = vrcp.pop %v3637
      %v3670 = vrcp.pop %v3638
      %v3671 = vrcp.pop %v3639
      %v3672 = vrcp.pop %v3640
      %v3673 = vrcp.pop %v3641
      %v3674 = vrcp.pop %v3642
      %v3675 = vrcp.pop %v3643
      %v3676 = vrcp.pop %v3644
      %v3677 = vrcp.pop %v3645
      %v3678 = vrcp.pop %v3646
      %v3679 = vrcp.pop %v3647
      %v3680 = vrcp.pop %v3648
      %v3681 = vrcp.pop %v3649
      %v3682 = vrcp.pop %v3650
      %v3683 = vrcp.pop %v3651
      %v3684 = vrcp.pop %v3652
      %v3685 = vrcp.pop %v3653
      %v3686 = vrcp.pop %v3654
      %v3687 = vrcp.pop %v3655
      %v3688 = vrcp.pop %v3656
      %v3689 = vrcp.pop %v3657
      %v3690 = vrcp.pop %v3658
      %v3691 = vrcp.pop %v3659
      %v3692 = vmul.f32 %v3660, 1.0614054
      %v3693 = vmul.f32 %v3661, 1.0614054
      %v3694 = vmul.f32 %v3662, 1.0614054
      %v3695 = vmul.f32 %v3663, 1.0614054
      %v3696 = vmul.f32 %v3664, 1.0614054
      %v3697 = vmul.f32 %v3665, 1.0614054
      %v3698 = vmul.f32 %v3666, 1.0614054
      %v3699 = vmul.f32 %v3667, 1.0614054
      %v3700 = vmul.f32 %v3668, 1.0614054
      %v3701 = vmul.f32 %v3669, 1.0614054
      %v3702 = vmul.f32 %v3670, 1.0614054
      %v3703 = vmul.f32 %v3671, 1.0614054
      %v3704 = vmul.f32 %v3672, 1.0614054
      %v3705 = vmul.f32 %v3673, 1.0614054
      %v3706 = vmul.f32 %v3674, 1.0614054
      %v3707 = vmul.f32 %v3675, 1.0614054
      %v3708 = vmul.f32 %v3676, 1.0614054
      %v3709 = vmul.f32 %v3677, 1.0614054
      %v3710 = vmul.f32 %v3678, 1.0614054
      %v3711 = vmul.f32 %v3679, 1.0614054
      %v3712 = vmul.f32 %v3680, 1.0614054
      %v3713 = vmul.f32 %v3681, 1.0614054
      %v3714 = vmul.f32 %v3682, 1.0614054
      %v3715 = vmul.f32 %v3683, 1.0614054
      %v3716 = vmul.f32 %v3684, 1.0614054
      %v3717 = vmul.f32 %v3685, 1.0614054
      %v3718 = vmul.f32 %v3686, 1.0614054
      %v3719 = vmul.f32 %v3687, 1.0614054
      %v3720 = vmul.f32 %v3688, 1.0614054
      %v3721 = vmul.f32 %v3689, 1.0614054
      %v3722 = vmul.f32 %v3690, 1.0614054
      %v3723 = vmul.f32 %v3691, 1.0614054
      %v3724 = vadd.f32 %v3692, -1.4531521
      %v3725 = vadd.f32 %v3693, -1.4531521
      %v3726 = vadd.f32 %v3694, -1.4531521
      %v3727 = vadd.f32 %v3695, -1.4531521
      %v3728 = vadd.f32 %v3696, -1.4531521
      %v3729 = vadd.f32 %v3697, -1.4531521
      %v3730 = vadd.f32 %v3698, -1.4531521
      %v3731 = vadd.f32 %v3699, -1.4531521
      %v3732 = vadd.f32 %v3700, -1.4531521
      %v3733 = vadd.f32 %v3701, -1.4531521
      %v3734 = vadd.f32 %v3702, -1.4531521
      %v3735 = vadd.f32 %v3703, -1.4531521
      %v3736 = vadd.f32 %v3704, -1.4531521
      %v3737 = vadd.f32 %v3705, -1.4531521
      %v3738 = vadd.f32 %v3706, -1.4531521
      %v3739 = vadd.f32 %v3707, -1.4531521
      %v3740 = vadd.f32 %v3708, -1.4531521
      %v3741 = vadd.f32 %v3709, -1.4531521
      %v3742 = vadd.f32 %v3710, -1.4531521
      %v3743 = vadd.f32 %v3711, -1.4531521
      %v3744 = vadd.f32 %v3712, -1.4531521
      %v3745 = vadd.f32 %v3713, -1.4531521
      %v3746 = vadd.f32 %v3714, -1.4531521
      %v3747 = vadd.f32 %v3715, -1.4531521
      %v3748 = vadd.f32 %v3716, -1.4531521
      %v3749 = vadd.f32 %v3717, -1.4531521
      %v3750 = vadd.f32 %v3718, -1.4531521
      %v3751 = vadd.f32 %v3719, -1.4531521
      %v3752 = vadd.f32 %v3720, -1.4531521
      %v3753 = vadd.f32 %v3721, -1.4531521
      %v3754 = vadd.f32 %v3722, -1.4531521
      %v3755 = vadd.f32 %v3723, -1.4531521
      %v3756 = vmul.f32 %v3660, %v3724
      %v3757 = vmul.f32 %v3661, %v3725
      %v3758 = vmul.f32 %v3662, %v3726
      %v3759 = vmul.f32 %v3663, %v3727
      %v3760 = vmul.f32 %v3664, %v3728
      %v3761 = vmul.f32 %v3665, %v3729
      %v3762 = vmul.f32 %v3666, %v3730
      %v3763 = vmul.f32 %v3667, %v3731
      %v3764 = vmul.f32 %v3668, %v3732
      %v3765 = vmul.f32 %v3669, %v3733
      %v3766 = vmul.f32 %v3670, %v3734
      %v3767 = vmul.f32 %v3671, %v3735
      %v3768 = vmul.f32 %v3672, %v3736
      %v3769 = vmul.f32 %v3673, %v3737
      %v3770 = vmul.f32 %v3674, %v3738
      %v3771 = vmul.f32 %v3675, %v3739
      %v3772 = vmul.f32 %v3676, %v3740
      %v3773 = vmul.f32 %v3677, %v3741
      %v3774 = vmul.f32 %v3678, %v3742
      %v3775 = vmul.f32 %v3679, %v3743
      %v3776 = vmul.f32 %v3680, %v3744
      %v3777 = vmul.f32 %v3681, %v3745
      %v3778 = vmul.f32 %v3682, %v3746
      %v3779 = vmul.f32 %v3683, %v3747
      %v3780 = vmul.f32 %v3684, %v3748
      %v3781 = vmul.f32 %v3685, %v3749
      %v3782 = vmul.f32 %v3686, %v3750
      %v3783 = vmul.f32 %v3687, %v3751
      %v3784 = vmul.f32 %v3688, %v3752
      %v3785 = vmul.f32 %v3689, %v3753
      %v3786 = vmul.f32 %v3690, %v3754
      %v3787 = vmul.f32 %v3691, %v3755
      %v3788 = vadd.f32 %v3756, 1.4214138
      %v3789 = vadd.f32 %v3757, 1.4214138
      %v3790 = vadd.f32 %v3758, 1.4214138
      %v3791 = vadd.f32 %v3759, 1.4214138
      %v3792 = vadd.f32 %v3760, 1.4214138
      %v3793 = vadd.f32 %v3761, 1.4214138
      %v3794 = vadd.f32 %v3762, 1.4214138
      %v3795 = vadd.f32 %v3763, 1.4214138
      %v3796 = vadd.f32 %v3764, 1.4214138
      %v3797 = vadd.f32 %v3765, 1.4214138
      %v3798 = vadd.f32 %v3766, 1.4214138
      %v3799 = vadd.f32 %v3767, 1.4214138
      %v3800 = vadd.f32 %v3768, 1.4214138
      %v3801 = vadd.f32 %v3769, 1.4214138
      %v3802 = vadd.f32 %v3770, 1.4214138
      %v3803 = vadd.f32 %v3771, 1.4214138
      %v3804 = vadd.f32 %v3772, 1.4214138
      %v3805 = vadd.f32 %v3773, 1.4214138
      %v3806 = vadd.f32 %v3774, 1.4214138
      %v3807 = vadd.f32 %v3775, 1.4214138
      %v3808 = vadd.f32 %v3776, 1.4214138
      %v3809 = vadd.f32 %v3777, 1.4214138
      %v3810 = vadd.f32 %v3778, 1.4214138
      %v3811 = vadd.f32 %v3779, 1.4214138
      %v3812 = vadd.f32 %v3780, 1.4214138
      %v3813 = vadd.f32 %v3781, 1.4214138
      %v3814 = vadd.f32 %v3782, 1.4214138
      %v3815 = vadd.f32 %v3783, 1.4214138
      %v3816 = vadd.f32 %v3784, 1.4214138
      %v3817 = vadd.f32 %v3785, 1.4214138
      %v3818 = vadd.f32 %v3786, 1.4214138
      %v3819 = vadd.f32 %v3787, 1.4214138
      %v3820 = vmul.f32 %v3660, %v3788
      %v3821 = vmul.f32 %v3661, %v3789
      %v3822 = vmul.f32 %v3662, %v3790
      %v3823 = vmul.f32 %v3663, %v3791
      %v3824 = vmul.f32 %v3664, %v3792
      %v3825 = vmul.f32 %v3665, %v3793
      %v3826 = vmul.f32 %v3666, %v3794
      %v3827 = vmul.f32 %v3667, %v3795
      %v3828 = vmul.f32 %v3668, %v3796
      %v3829 = vmul.f32 %v3669, %v3797
      %v3830 = vmul.f32 %v3670, %v3798
      %v3831 = vmul.f32 %v3671, %v3799
      %v3832 = vmul.f32 %v3672, %v3800
      %v3833 = vmul.f32 %v3673, %v3801
      %v3834 = vmul.f32 %v3674, %v3802
      %v3835 = vmul.f32 %v3675, %v3803
      %v3836 = vmul.f32 %v3676, %v3804
      %v3837 = vmul.f32 %v3677, %v3805
      %v3838 = vmul.f32 %v3678, %v3806
      %v3839 = vmul.f32 %v3679, %v3807
      %v3840 = vmul.f32 %v3680, %v3808
      %v3841 = vmul.f32 %v3681, %v3809
      %v3842 = vmul.f32 %v3682, %v3810
      %v3843 = vmul.f32 %v3683, %v3811
      %v3844 = vmul.f32 %v3684, %v3812
      %v3845 = vmul.f32 %v3685, %v3813
      %v3846 = vmul.f32 %v3686, %v3814
      %v3847 = vmul.f32 %v3687, %v3815
      %v3848 = vmul.f32 %v3688, %v3816
      %v3849 = vmul.f32 %v3689, %v3817
      %v3850 = vmul.f32 %v3690, %v3818
      %v3851 = vmul.f32 %v3691, %v3819
      %v3852 = vadd.f32 %v3820, -0.28449672
      %v3853 = vadd.f32 %v3821, -0.28449672
      %v3854 = vadd.f32 %v3822, -0.28449672
      %v3855 = vadd.f32 %v3823, -0.28449672
      %v3856 = vadd.f32 %v3824, -0.28449672
      %v3857 = vadd.f32 %v3825, -0.28449672
      %v3858 = vadd.f32 %v3826, -0.28449672
      %v3859 = vadd.f32 %v3827, -0.28449672
      %v3860 = vadd.f32 %v3828, -0.28449672
      %v3861 = vadd.f32 %v3829, -0.28449672
      %v3862 = vadd.f32 %v3830, -0.28449672
      %v3863 = vadd.f32 %v3831, -0.28449672
      %v3864 = vadd.f32 %v3832, -0.28449672
      %v3865 = vadd.f32 %v3833, -0.28449672
      %v3866 = vadd.f32 %v3834, -0.28449672
      %v3867 = vadd.f32 %v3835, -0.28449672
      %v3868 = vadd.f32 %v3836, -0.28449672
      %v3869 = vadd.f32 %v3837, -0.28449672
      %v3870 = vadd.f32 %v3838, -0.28449672
      %v3871 = vadd.f32 %v3839, -0.28449672
      %v3872 = vadd.f32 %v3840, -0.28449672
      %v3873 = vadd.f32 %v3841, -0.28449672
      %v3874 = vadd.f32 %v3842, -0.28449672
      %v3875 = vadd.f32 %v3843, -0.28449672
      %v3876 = vadd.f32 %v3844, -0.28449672
      %v3877 = vadd.f32 %v3845, -0.28449672
      %v3878 = vadd.f32 %v3846, -0.28449672
      %v3879 = vadd.f32 %v3847, -0.28449672
      %v3880 = vadd.f32 %v3848, -0.28449672
      %v3881 = vadd.f32 %v3849, -0.28449672
      %v3882 = vadd.f32 %v3850, -0.28449672
      %v3883 = vadd.f32 %v3851, -0.28449672
      %v3884 = vmul.f32 %v3660, %v3852
      %v3885 = vmul.f32 %v3661, %v3853
      %v3886 = vmul.f32 %v3662, %v3854
      %v3887 = vmul.f32 %v3663, %v3855
      %v3888 = vmul.f32 %v3664, %v3856
      %v3889 = vmul.f32 %v3665, %v3857
      %v3890 = vmul.f32 %v3666, %v3858
      %v3891 = vmul.f32 %v3667, %v3859
      %v3892 = vmul.f32 %v3668, %v3860
      %v3893 = vmul.f32 %v3669, %v3861
      %v3894 = vmul.f32 %v3670, %v3862
      %v3895 = vmul.f32 %v3671, %v3863
      %v3896 = vmul.f32 %v3672, %v3864
      %v3897 = vmul.f32 %v3673, %v3865
      %v3898 = vmul.f32 %v3674, %v3866
      %v3899 = vmul.f32 %v3675, %v3867
      %v3900 = vmul.f32 %v3676, %v3868
      %v3901 = vmul.f32 %v3677, %v3869
      %v3902 = vmul.f32 %v3678, %v3870
      %v3903 = vmul.f32 %v3679, %v3871
      %v3904 = vmul.f32 %v3680, %v3872
      %v3905 = vmul.f32 %v3681, %v3873
      %v3906 = vmul.f32 %v3682, %v3874
      %v3907 = vmul.f32 %v3683, %v3875
      %v3908 = vmul.f32 %v3684, %v3876
      %v3909 = vmul.f32 %v3685, %v3877
      %v3910 = vmul.f32 %v3686, %v3878
      %v3911 = vmul.f32 %v3687, %v3879
      %v3912 = vmul.f32 %v3688, %v3880
      %v3913 = vmul.f32 %v3689, %v3881
      %v3914 = vmul.f32 %v3690, %v3882
      %v3915 = vmul.f32 %v3691, %v3883
      %v3916 = vadd.f32 %v3884, 0.2548296
      %v3917 = vadd.f32 %v3885, 0.2548296
      %v3918 = vadd.f32 %v3886, 0.2548296
      %v3919 = vadd.f32 %v3887, 0.2548296
      %v3920 = vadd.f32 %v3888, 0.2548296
      %v3921 = vadd.f32 %v3889, 0.2548296
      %v3922 = vadd.f32 %v3890, 0.2548296
      %v3923 = vadd.f32 %v3891, 0.2548296
      %v3924 = vadd.f32 %v3892, 0.2548296
      %v3925 = vadd.f32 %v3893, 0.2548296
      %v3926 = vadd.f32 %v3894, 0.2548296
      %v3927 = vadd.f32 %v3895, 0.2548296
      %v3928 = vadd.f32 %v3896, 0.2548296
      %v3929 = vadd.f32 %v3897, 0.2548296
      %v3930 = vadd.f32 %v3898, 0.2548296
      %v3931 = vadd.f32 %v3899, 0.2548296
      %v3932 = vadd.f32 %v3900, 0.2548296
      %v3933 = vadd.f32 %v3901, 0.2548296
      %v3934 = vadd.f32 %v3902, 0.2548296
      %v3935 = vadd.f32 %v3903, 0.2548296
      %v3936 = vadd.f32 %v3904, 0.2548296
      %v3937 = vadd.f32 %v3905, 0.2548296
      %v3938 = vadd.f32 %v3906, 0.2548296
      %v3939 = vadd.f32 %v3907, 0.2548296
      %v3940 = vadd.f32 %v3908, 0.2548296
      %v3941 = vadd.f32 %v3909, 0.2548296
      %v3942 = vadd.f32 %v3910, 0.2548296
      %v3943 = vadd.f32 %v3911, 0.2548296
      %v3944 = vadd.f32 %v3912, 0.2548296
      %v3945 = vadd.f32 %v3913, 0.2548296
      %v3946 = vadd.f32 %v3914, 0.2548296
      %v3947 = vadd.f32 %v3915, 0.2548296
      %v3948 = vmul.f32 %v3660, %v3916
      %v3949 = vmul.f32 %v3661, %v3917
      %v3950 = vmul.f32 %v3662, %v3918
      %v3951 = vmul.f32 %v3663, %v3919
      %v3952 = vmul.f32 %v3664, %v3920
      %v3953 = vmul.f32 %v3665, %v3921
      %v3954 = vmul.f32 %v3666, %v3922
      %v3955 = vmul.f32 %v3667, %v3923
      %v3956 = vmul.f32 %v3668, %v3924
      %v3957 = vmul.f32 %v3669, %v3925
      %v3958 = vmul.f32 %v3670, %v3926
      %v3959 = vmul.f32 %v3671, %v3927
      %v3960 = vmul.f32 %v3672, %v3928
      %v3961 = vmul.f32 %v3673, %v3929
      %v3962 = vmul.f32 %v3674, %v3930
      %v3963 = vmul.f32 %v3675, %v3931
      %v3964 = vmul.f32 %v3676, %v3932
      %v3965 = vmul.f32 %v3677, %v3933
      %v3966 = vmul.f32 %v3678, %v3934
      %v3967 = vmul.f32 %v3679, %v3935
      %v3968 = vmul.f32 %v3680, %v3936
      %v3969 = vmul.f32 %v3681, %v3937
      %v3970 = vmul.f32 %v3682, %v3938
      %v3971 = vmul.f32 %v3683, %v3939
      %v3972 = vmul.f32 %v3684, %v3940
      %v3973 = vmul.f32 %v3685, %v3941
      %v3974 = vmul.f32 %v3686, %v3942
      %v3975 = vmul.f32 %v3687, %v3943
      %v3976 = vmul.f32 %v3688, %v3944
      %v3977 = vmul.f32 %v3689, %v3945
      %v3978 = vmul.f32 %v3690, %v3946
      %v3979 = vmul.f32 %v3691, %v3947
      %v3980 = vsub.f32 0.0, %v3564
      %v3981 = vsub.f32 0.0, %v3565
      %v3982 = vsub.f32 0.0, %v3566
      %v3983 = vsub.f32 0.0, %v3567
      %v3984 = vsub.f32 0.0, %v3568
      %v3985 = vsub.f32 0.0, %v3569
      %v3986 = vsub.f32 0.0, %v3570
      %v3987 = vsub.f32 0.0, %v3571
      %v3988 = vsub.f32 0.0, %v3572
      %v3989 = vsub.f32 0.0, %v3573
      %v3990 = vsub.f32 0.0, %v3574
      %v3991 = vsub.f32 0.0, %v3575
      %v3992 = vsub.f32 0.0, %v3576
      %v3993 = vsub.f32 0.0, %v3577
      %v3994 = vsub.f32 0.0, %v3578
      %v3995 = vsub.f32 0.0, %v3579
      %v3996 = vsub.f32 0.0, %v3580
      %v3997 = vsub.f32 0.0, %v3581
      %v3998 = vsub.f32 0.0, %v3582
      %v3999 = vsub.f32 0.0, %v3583
      %v4000 = vsub.f32 0.0, %v3584
      %v4001 = vsub.f32 0.0, %v3585
      %v4002 = vsub.f32 0.0, %v3586
      %v4003 = vsub.f32 0.0, %v3587
      %v4004 = vsub.f32 0.0, %v3588
      %v4005 = vsub.f32 0.0, %v3589
      %v4006 = vsub.f32 0.0, %v3590
      %v4007 = vsub.f32 0.0, %v3591
      %v4008 = vsub.f32 0.0, %v3592
      %v4009 = vsub.f32 0.0, %v3593
      %v4010 = vsub.f32 0.0, %v3594
      %v4011 = vsub.f32 0.0, %v3595
      %v4012 = vmul.f32 %v3980, %v3564
      %v4013 = vmul.f32 %v3981, %v3565
      %v4014 = vmul.f32 %v3982, %v3566
      %v4015 = vmul.f32 %v3983, %v3567
      %v4016 = vmul.f32 %v3984, %v3568
      %v4017 = vmul.f32 %v3985, %v3569
      %v4018 = vmul.f32 %v3986, %v3570
      %v4019 = vmul.f32 %v3987, %v3571
      %v4020 = vmul.f32 %v3988, %v3572
      %v4021 = vmul.f32 %v3989, %v3573
      %v4022 = vmul.f32 %v3990, %v3574
      %v4023 = vmul.f32 %v3991, %v3575
      %v4024 = vmul.f32 %v3992, %v3576
      %v4025 = vmul.f32 %v3993, %v3577
      %v4026 = vmul.f32 %v3994, %v3578
      %v4027 = vmul.f32 %v3995, %v3579
      %v4028 = vmul.f32 %v3996, %v3580
      %v4029 = vmul.f32 %v3997, %v3581
      %v4030 = vmul.f32 %v3998, %v3582
      %v4031 = vmul.f32 %v3999, %v3583
      %v4032 = vmul.f32 %v4000, %v3584
      %v4033 = vmul.f32 %v4001, %v3585
      %v4034 = vmul.f32 %v4002, %v3586
      %v4035 = vmul.f32 %v4003, %v3587
      %v4036 = vmul.f32 %v4004, %v3588
      %v4037 = vmul.f32 %v4005, %v3589
      %v4038 = vmul.f32 %v4006, %v3590
      %v4039 = vmul.f32 %v4007, %v3591
      %v4040 = vmul.f32 %v4008, %v3592
      %v4041 = vmul.f32 %v4009, %v3593
      %v4042 = vmul.f32 %v4010, %v3594
      %v4043 = vmul.f32 %v4011, %v3595
      %v4044 = vmul.f32 %v4012, 1.442695
      %v4045 = vpow.pop %v4044
      %v4046 = vmul.f32 %v4013, 1.442695
      %v4047 = vpow.pop %v4046
      %v4048 = vmul.f32 %v4014, 1.442695
      %v4049 = vpow.pop %v4048
      %v4050 = vmul.f32 %v4015, 1.442695
      %v4051 = vpow.pop %v4050
      %v4052 = vmul.f32 %v4016, 1.442695
      %v4053 = vpow.pop %v4052
      %v4054 = vmul.f32 %v4017, 1.442695
      %v4055 = vpow.pop %v4054
      %v4056 = vmul.f32 %v4018, 1.442695
      %v4057 = vpow.pop %v4056
      %v4058 = vmul.f32 %v4019, 1.442695
      %v4059 = vpow.pop %v4058
      %v4060 = vmul.f32 %v4020, 1.442695
      %v4061 = vpow.pop %v4060
      %v4062 = vmul.f32 %v4021, 1.442695
      %v4063 = vpow.pop %v4062
      %v4064 = vmul.f32 %v4022, 1.442695
      %v4065 = vpow.pop %v4064
      %v4066 = vmul.f32 %v4023, 1.442695
      %v4067 = vpow.pop %v4066
      %v4068 = vmul.f32 %v4024, 1.442695
      %v4069 = vpow.pop %v4068
      %v4070 = vmul.f32 %v4025, 1.442695
      %v4071 = vpow.pop %v4070
      %v4072 = vmul.f32 %v4026, 1.442695
      %v4073 = vpow.pop %v4072
      %v4074 = vmul.f32 %v4027, 1.442695
      %v4075 = vpow.pop %v4074
      %v4076 = vmul.f32 %v4028, 1.442695
      %v4077 = vpow.pop %v4076
      %v4078 = vmul.f32 %v4029, 1.442695
      %v4079 = vpow.pop %v4078
      %v4080 = vmul.f32 %v4030, 1.442695
      %v4081 = vpow.pop %v4080
      %v4082 = vmul.f32 %v4031, 1.442695
      %v4083 = vpow.pop %v4082
      %v4084 = vmul.f32 %v4032, 1.442695
      %v4085 = vpow.pop %v4084
      %v4086 = vmul.f32 %v4033, 1.442695
      %v4087 = vpow.pop %v4086
      %v4088 = vmul.f32 %v4034, 1.442695
      %v4089 = vpow.pop %v4088
      %v4090 = vmul.f32 %v4035, 1.442695
      %v4091 = vpow.pop %v4090
      %v4092 = vmul.f32 %v4036, 1.442695
      %v4093 = vpow.pop %v4092
      %v4094 = vmul.f32 %v4037, 1.442695
      %v4095 = vpow.pop %v4094
      %v4096 = vmul.f32 %v4038, 1.442695
      %v4097 = vpow.pop %v4096
      %v4098 = vmul.f32 %v4039, 1.442695
      %v4099 = vpow.pop %v4098
      %v4100 = vmul.f32 %v4040, 1.442695
      %v4101 = vpow.pop %v4100
      %v4102 = vmul.f32 %v4041, 1.442695
      %v4103 = vpow.pop %v4102
      %v4104 = vmul.f32 %v4042, 1.442695
      %v4105 = vpow.pop %v4104
      %v4106 = vmul.f32 %v4043, 1.442695
      %v4107 = vpow.pop %v4106
      %v4108 = vmul.f32 %v3948, %v4045
      %v4109 = vmul.f32 %v3949, %v4047
      %v4110 = vmul.f32 %v3950, %v4049
      %v4111 = vmul.f32 %v3951, %v4051
      %v4112 = vmul.f32 %v3952, %v4053
      %v4113 = vmul.f32 %v3953, %v4055
      %v4114 = vmul.f32 %v3954, %v4057
      %v4115 = vmul.f32 %v3955, %v4059
      %v4116 = vmul.f32 %v3956, %v4061
      %v4117 = vmul.f32 %v3957, %v4063
      %v4118 = vmul.f32 %v3958, %v4065
      %v4119 = vmul.f32 %v3959, %v4067
      %v4120 = vmul.f32 %v3960, %v4069
      %v4121 = vmul.f32 %v3961, %v4071
      %v4122 = vmul.f32 %v3962, %v4073
      %v4123 = vmul.f32 %v3963, %v4075
      %v4124 = vmul.f32 %v3964, %v4077
      %v4125 = vmul.f32 %v3965, %v4079
      %v4126 = vmul.f32 %v3966, %v4081
      %v4127 = vmul.f32 %v3967, %v4083
      %v4128 = vmul.f32 %v3968, %v4085
      %v4129 = vmul.f32 %v3969, %v4087
      %v4130 = vmul.f32 %v3970, %v4089
      %v4131 = vmul.f32 %v3971, %v4091
      %v4132 = vmul.f32 %v3972, %v4093
      %v4133 = vmul.f32 %v3973, %v4095
      %v4134 = vmul.f32 %v3974, %v4097
      %v4135 = vmul.f32 %v3975, %v4099
      %v4136 = vmul.f32 %v3976, %v4101
      %v4137 = vmul.f32 %v3977, %v4103
      %v4138 = vmul.f32 %v3978, %v4105
      %v4139 = vmul.f32 %v3979, %v4107
      %v4140 = vsub.f32 1.0, %v4108
      %v4141 = vsub.f32 1.0, %v4109
      %v4142 = vsub.f32 1.0, %v4110
      %v4143 = vsub.f32 1.0, %v4111
      %v4144 = vsub.f32 1.0, %v4112
      %v4145 = vsub.f32 1.0, %v4113
      %v4146 = vsub.f32 1.0, %v4114
      %v4147 = vsub.f32 1.0, %v4115
      %v4148 = vsub.f32 1.0, %v4116
      %v4149 = vsub.f32 1.0, %v4117
      %v4150 = vsub.f32 1.0, %v4118
      %v4151 = vsub.f32 1.0, %v4119
      %v4152 = vsub.f32 1.0, %v4120
      %v4153 = vsub.f32 1.0, %v4121
      %v4154 = vsub.f32 1.0, %v4122
      %v4155 = vsub.f32 1.0, %v4123
      %v4156 = vsub.f32 1.0, %v4124
      %v4157 = vsub.f32 1.0, %v4125
      %v4158 = vsub.f32 1.0, %v4126
      %v4159 = vsub.f32 1.0, %v4127
      %v4160 = vsub.f32 1.0, %v4128
      %v4161 = vsub.f32 1.0, %v4129
      %v4162 = vsub.f32 1.0, %v4130
      %v4163 = vsub.f32 1.0, %v4131
      %v4164 = vsub.f32 1.0, %v4132
      %v4165 = vsub.f32 1.0, %v4133
      %v4166 = vsub.f32 1.0, %v4134
      %v4167 = vsub.f32 1.0, %v4135
      %v4168 = vsub.f32 1.0, %v4136
      %v4169 = vsub.f32 1.0, %v4137
      %v4170 = vsub.f32 1.0, %v4138
      %v4171 = vsub.f32 1.0, %v4139
      %v4172 = vmul.f32 %v3532, %v4140
      %v4173 = vmul.f32 %v3533, %v4141
      %v4174 = vmul.f32 %v3534, %v4142
      %v4175 = vmul.f32 %v3535, %v4143
      %v4176 = vmul.f32 %v3536, %v4144
      %v4177 = vmul.f32 %v3537, %v4145
      %v4178 = vmul.f32 %v3538, %v4146
      %v4179 = vmul.f32 %v3539, %v4147
      %v4180 = vmul.f32 %v3540, %v4148
      %v4181 = vmul.f32 %v3541, %v4149
      %v4182 = vmul.f32 %v3542, %v4150
      %v4183 = vmul.f32 %v3543, %v4151
      %v4184 = vmul.f32 %v3544, %v4152
      %v4185 = vmul.f32 %v3545, %v4153
      %v4186 = vmul.f32 %v3546, %v4154
      %v4187 = vmul.f32 %v3547, %v4155
      %v4188 = vmul.f32 %v3548, %v4156
      %v4189 = vmul.f32 %v3549, %v4157
      %v4190 = vmul.f32 %v3550, %v4158
      %v4191 = vmul.f32 %v3551, %v4159
      %v4192 = vmul.f32 %v3552, %v4160
      %v4193 = vmul.f32 %v3553, %v4161
      %v4194 = vmul.f32 %v3554, %v4162
      %v4195 = vmul.f32 %v3555, %v4163
      %v4196 = vmul.f32 %v3556, %v4164
      %v4197 = vmul.f32 %v3557, %v4165
      %v4198 = vmul.f32 %v3558, %v4166
      %v4199 = vmul.f32 %v3559, %v4167
      %v4200 = vmul.f32 %v3560, %v4168
      %v4201 = vmul.f32 %v3561, %v4169
      %v4202 = vmul.f32 %v3562, %v4170
      %v4203 = vmul.f32 %v3563, %v4171
      %v4204 = vadd.f32 %v4172, 1.0
      %v4205 = vadd.f32 %v4173, 1.0
      %v4206 = vadd.f32 %v4174, 1.0
      %v4207 = vadd.f32 %v4175, 1.0
      %v4208 = vadd.f32 %v4176, 1.0
      %v4209 = vadd.f32 %v4177, 1.0
      %v4210 = vadd.f32 %v4178, 1.0
      %v4211 = vadd.f32 %v4179, 1.0
      %v4212 = vadd.f32 %v4180, 1.0
      %v4213 = vadd.f32 %v4181, 1.0
      %v4214 = vadd.f32 %v4182, 1.0
      %v4215 = vadd.f32 %v4183, 1.0
      %v4216 = vadd.f32 %v4184, 1.0
      %v4217 = vadd.f32 %v4185, 1.0
      %v4218 = vadd.f32 %v4186, 1.0
      %v4219 = vadd.f32 %v4187, 1.0
      %v4220 = vadd.f32 %v4188, 1.0
      %v4221 = vadd.f32 %v4189, 1.0
      %v4222 = vadd.f32 %v4190, 1.0
      %v4223 = vadd.f32 %v4191, 1.0
      %v4224 = vadd.f32 %v4192, 1.0
      %v4225 = vadd.f32 %v4193, 1.0
      %v4226 = vadd.f32 %v4194, 1.0
      %v4227 = vadd.f32 %v4195, 1.0
      %v4228 = vadd.f32 %v4196, 1.0
      %v4229 = vadd.f32 %v4197, 1.0
      %v4230 = vadd.f32 %v4198, 1.0
      %v4231 = vadd.f32 %v4199, 1.0
      %v4232 = vadd.f32 %v4200, 1.0
      %v4233 = vadd.f32 %v4201, 1.0
      %v4234 = vadd.f32 %v4202, 1.0
      %v4235 = vadd.f32 %v4203, 1.0
      %v4236 = vmul.f32 %v4204, 0.5
      %v4237 = vmul.f32 %v4205, 0.5
      %v4238 = vmul.f32 %v4206, 0.5
      %v4239 = vmul.f32 %v4207, 0.5
      %v4240 = vmul.f32 %v4208, 0.5
      %v4241 = vmul.f32 %v4209, 0.5
      %v4242 = vmul.f32 %v4210, 0.5
      %v4243 = vmul.f32 %v4211, 0.5
      %v4244 = vmul.f32 %v4212, 0.5
      %v4245 = vmul.f32 %v4213, 0.5
      %v4246 = vmul.f32 %v4214, 0.5
      %v4247 = vmul.f32 %v4215, 0.5
      %v4248 = vmul.f32 %v4216, 0.5
      %v4249 = vmul.f32 %v4217, 0.5
      %v4250 = vmul.f32 %v4218, 0.5
      %v4251 = vmul.f32 %v4219, 0.5
      %v4252 = vmul.f32 %v4220, 0.5
      %v4253 = vmul.f32 %v4221, 0.5
      %v4254 = vmul.f32 %v4222, 0.5
      %v4255 = vmul.f32 %v4223, 0.5
      %v4256 = vmul.f32 %v4224, 0.5
      %v4257 = vmul.f32 %v4225, 0.5
      %v4258 = vmul.f32 %v4226, 0.5
      %v4259 = vmul.f32 %v4227, 0.5
      %v4260 = vmul.f32 %v4228, 0.5
      %v4261 = vmul.f32 %v4229, 0.5
      %v4262 = vmul.f32 %v4230, 0.5
      %v4263 = vmul.f32 %v4231, 0.5
      %v4264 = vmul.f32 %v4232, 0.5
      %v4265 = vmul.f32 %v4233, 0.5
      %v4266 = vmul.f32 %v4234, 0.5
      %v4267 = vmul.f32 %v4235, 0.5
      %v4268 = vmul.f32 %v2568, %v4236
      %v4269 = vmul.f32 %v2569, %v4237
      %v4270 = vmul.f32 %v2570, %v4238
      %v4271 = vmul.f32 %v2571, %v4239
      %v4272 = vmul.f32 %v2572, %v4240
      %v4273 = vmul.f32 %v2573, %v4241
      %v4274 = vmul.f32 %v2574, %v4242
      %v4275 = vmul.f32 %v2575, %v4243
      %v4276 = vmul.f32 %v2576, %v4244
      %v4277 = vmul.f32 %v2577, %v4245
      %v4278 = vmul.f32 %v2578, %v4246
      %v4279 = vmul.f32 %v2579, %v4247
      %v4280 = vmul.f32 %v2580, %v4248
      %v4281 = vmul.f32 %v2581, %v4249
      %v4282 = vmul.f32 %v2582, %v4250
      %v4283 = vmul.f32 %v2583, %v4251
      %v4284 = vmul.f32 %v2584, %v4252
      %v4285 = vmul.f32 %v2585, %v4253
      %v4286 = vmul.f32 %v2586, %v4254
      %v4287 = vmul.f32 %v2587, %v4255
      %v4288 = vmul.f32 %v2588, %v4256
      %v4289 = vmul.f32 %v2589, %v4257
      %v4290 = vmul.f32 %v2590, %v4258
      %v4291 = vmul.f32 %v2591, %v4259
      %v4292 = vmul.f32 %v2592, %v4260
      %v4293 = vmul.f32 %v2593, %v4261
      %v4294 = vmul.f32 %v2594, %v4262
      %v4295 = vmul.f32 %v2595, %v4263
      %v4296 = vmul.f32 %v2596, %v4264
      %v4297 = vmul.f32 %v2597, %v4265
      %v4298 = vmul.f32 %v2598, %v4266
      %v4299 = vmul.f32 %v2599, %v4267
      %v4300 = vld [vmem:[%s1] sm:$0x3]
      %v4302 = vlaneseq
      %v4303 = vshrl.u32 %v4302, 7
      %v4304 = vsub.s32 0, %v4303
      %v4305 = vrot.slane %v4300, %v4304
      %v4306 = vlaneseq
      %v4307 = vshrl.u32 %v4306, 7
      %v4308 = vsub.s32 1, %v4307
      %v4309 = vrot.slane %v4300, %v4308
      %4312 = vmatprep.subr.mxu0 0.0
      %4313 = vmatpush1.msra.mxu0 %v4268
      %4314 = vmatprep.subr.mxu0 0.0
      %4315 = vmatpush1.msra.mxu0 %v4269
      %4316 = vmatprep.subr.mxu0 0.0
      %4317 = vmatpush1.msra.mxu0 %v4270
      %4318 = vmatprep.subr.mxu0 0.0
      %4319 = vmatpush1.msra.mxu0 %v4271
      %4320 = vmatprep.subr.mxu0 0.0
      %4321 = vmatpush1.msra.mxu0 %v4272
      %4322 = vmatprep.subr.mxu0 0.0
      %4323 = vmatpush1.msra.mxu0 %v4273
      %4324 = vmatprep.subr.mxu0 0.0
      %4325 = vmatpush1.msra.mxu0 %v4274
      %4326 = vmatprep.subr.mxu0 0.0
      %4327 = vmatpush1.msra.mxu0 %v4275
      %4328 = vmatprep.subr.mxu0 0.0
      %4329 = vmatpush1.msra.mxu0 %v4276
      %4330 = vmatprep.subr.mxu0 0.0
      %4331 = vmatpush1.msra.mxu0 %v4277
      %4332 = vmatprep.subr.mxu0 0.0
      %4333 = vmatpush1.msra.mxu0 %v4278
      %4334 = vmatprep.subr.mxu0 0.0
      %4335 = vmatpush1.msra.mxu0 %v4279
      %4336 = vmatprep.subr.mxu0 0.0
      %4337 = vmatpush1.msra.mxu0 %v4280
      %4338 = vmatprep.subr.mxu0 0.0
      %4339 = vmatpush1.msra.mxu0 %v4281
      %4340 = vmatprep.subr.mxu0 0.0
      %4341 = vmatpush1.msra.mxu0 %v4282
      %4342 = vmatprep.subr.mxu0 0.0
      %4343 = vmatpush1.msra.mxu0 %v4283
      %4344 = vmatprep.subr.mxu0 0.0
      %4345 = vmatpush1.msra.mxu0 %v4284
      %4346 = vmatprep.subr.mxu0 0.0
      %4347 = vmatpush1.msra.mxu0 %v4285
      %4348 = vmatprep.subr.mxu0 0.0
      %4349 = vmatpush1.msra.mxu0 %v4286
      %4350 = vmatprep.subr.mxu0 0.0
      %4351 = vmatpush1.msra.mxu0 %v4287
      %4352 = vmatprep.subr.mxu0 0.0
      %4353 = vmatpush1.msra.mxu0 %v4288
      %4354 = vmatprep.subr.mxu0 0.0
      %4355 = vmatpush1.msra.mxu0 %v4289
      %4356 = vmatprep.subr.mxu0 0.0
      %4357 = vmatpush1.msra.mxu0 %v4290
      %4358 = vmatprep.subr.mxu0 0.0
      %4359 = vmatpush1.msra.mxu0 %v4291
      %4360 = vmatprep.subr.mxu0 0.0
      %4361 = vmatpush1.msra.mxu0 %v4292
      %4362 = vmatprep.subr.mxu0 0.0
      %4363 = vmatpush1.msra.mxu0 %v4293
      %4364 = vmatprep.subr.mxu0 0.0
      %4365 = vmatpush1.msra.mxu0 %v4294
      %4366 = vmatprep.subr.mxu0 0.0
      %4367 = vmatpush1.msra.mxu0 %v4295
      %4368 = vmatprep.subr.mxu0 0.0
      %4369 = vmatpush1.msra.mxu0 %v4296
      %4370 = vmatprep.subr.mxu0 0.0
      %4371 = vmatpush1.msra.mxu0 %v4297
      %4372 = vmatprep.subr.mxu0 0.0
      %4373 = vmatpush1.msra.mxu0 %v4298
      %4374 = vmatprep.subr.mxu0 0.0
      %4375 = vmatpush1.msra.mxu0 %v4299
      %4376 = vmatprep.mubr.f32.mxu0 %v4309
      %4377 = vmatmul.mubr.f32.gmra.mrb[0].mxu0 %v4305
      %v4378 = vpop.f32.mrb[0].mxu0
      %v4379 = vadd.f32 0.0, %v4378
      %v4380 = vpop.f32.mrb[0].mxu0
      %4381 = vdwg.mxu0
      %v4382 = vpack.c.bf16 %v4379, %v4379
      %v4383 = vld [vmem:[%s12] sm:$0x3]
      %v4384 = vld [vmem:[%s13] sm:$0x1]
      %v4386 = vsel %vm827, %v4382, 0
      %v4389 = vsel %vm1393, %v4383, 0
      %4391 = vmatprep.subr.bf16.mxu0 0
      %4392 = vmatpush1.bf16.msra.mxu0 %v4389
      %4393 = vmatprep.subr.bf16.mxu0 0
      %4394 = vmatpush1.bf16.msra.mxu0 0
      %4395 = vmatprep.subr.bf16.mxu0 0
      %4396 = vmatpush1.bf16.msra.mxu0 0
      %4397 = vmatprep.subr.bf16.mxu0 0
      %4398 = vmatpush1.bf16.msra.mxu0 0
      %4399 = vmatprep.subr.bf16.mxu0 0
      %4400 = vmatpush1.bf16.msra.mxu0 0
      %4401 = vmatprep.subr.bf16.mxu0 0
      %4402 = vmatpush1.bf16.msra.mxu0 0
      %4403 = vmatprep.subr.bf16.mxu0 0
      %4404 = vmatpush1.bf16.msra.mxu0 0
      %4405 = vmatprep.subr.bf16.mxu0 0
      %4406 = vmatpush1.bf16.msra.mxu0 0
      %4407 = vmatprep.subr.bf16.mxu0 0
      %4408 = vmatpush1.bf16.msra.mxu0 0
      %4409 = vmatprep.subr.bf16.mxu0 0
      %4410 = vmatpush1.bf16.msra.mxu0 0
      %4411 = vmatprep.subr.bf16.mxu0 0
      %4412 = vmatpush1.bf16.msra.mxu0 0
      %4413 = vmatprep.subr.bf16.mxu0 0
      %4414 = vmatpush1.bf16.msra.mxu0 0
      %4415 = vmatprep.subr.bf16.mxu0 0
      %4416 = vmatpush1.bf16.msra.mxu0 0
      %4417 = vmatprep.subr.bf16.mxu0 0
      %4418 = vmatpush1.bf16.msra.mxu0 0
      %4419 = vmatprep.subr.bf16.mxu0 0
      %4420 = vmatpush1.bf16.msra.mxu0 0
      %4421 = vmatprep.subr.bf16.mxu0 0
      %4422 = vmatpush1.bf16.msra.mxu0 0
      %4423 = vmatprep.mubr.bf16.mxu0 0
      %4424 = vmatmul.mubr.bf16.gmra.mrb[0].mxu0 %v4386
      %v4425 = vpop.f32.mrb[0].mxu0
      %v4426 = vadd.f32 %v4384, %v4425
      %v4427 = vpop.f32.mrb[0].mxu0
      %v4428 = vpop.f32.mrb[0].mxu0
      %v4429 = vpop.f32.mrb[0].mxu0
      %4430 = vdwg.mxu0
      %v4431 = vlaneseq
      %v4432 = vshrl.u32 %v4431, 7
      %v4433 = vsub.s32 0, %v4432
      %v4434 = vrot.slane %v4426, %v4433
      %v4435 = vmul.f32 %v4268, %v4434
      %v4436 = vmul.f32 %v4269, %v4434
      %v4437 = vmul.f32 %v4270, %v4434
      %v4438 = vmul.f32 %v4271, %v4434
      %v4439 = vmul.f32 %v4272, %v4434
      %v4440 = vmul.f32 %v4273, %v4434
      %v4441 = vmul.f32 %v4274, %v4434
      %v4442 = vmul.f32 %v4275, %v4434
      %v4443 = vmul.f32 %v4276, %v4434
      %v4444 = vmul.f32 %v4277, %v4434
      %v4445 = vmul.f32 %v4278, %v4434
      %v4446 = vmul.f32 %v4279, %v4434
      %v4447 = vmul.f32 %v4280, %v4434
      %v4448 = vmul.f32 %v4281, %v4434
      %v4449 = vmul.f32 %v4282, %v4434
      %v4450 = vmul.f32 %v4283, %v4434
      %v4451 = vmul.f32 %v4284, %v4434
      %v4452 = vmul.f32 %v4285, %v4434
      %v4453 = vmul.f32 %v4286, %v4434
      %v4454 = vmul.f32 %v4287, %v4434
      %v4455 = vmul.f32 %v4288, %v4434
      %v4456 = vmul.f32 %v4289, %v4434
      %v4457 = vmul.f32 %v4290, %v4434
      %v4458 = vmul.f32 %v4291, %v4434
      %v4459 = vmul.f32 %v4292, %v4434
      %v4460 = vmul.f32 %v4293, %v4434
      %v4461 = vmul.f32 %v4294, %v4434
      %v4462 = vmul.f32 %v4295, %v4434
      %v4463 = vmul.f32 %v4296, %v4434
      %v4464 = vmul.f32 %v4297, %v4434
      %v4465 = vmul.f32 %v4298, %v4434
      %v4466 = vmul.f32 %v4299, %v4434
      %v4467 = vpack.c.bf16 %v4436, %v4435
      %v4468 = vpack.c.bf16 %v4438, %v4437
      %v4469 = vpack.c.bf16 %v4440, %v4439
      %v4470 = vpack.c.bf16 %v4442, %v4441
      %v4471 = vpack.c.bf16 %v4444, %v4443
      %v4472 = vpack.c.bf16 %v4446, %v4445
      %v4473 = vpack.c.bf16 %v4448, %v4447
      %v4474 = vpack.c.bf16 %v4450, %v4449
      %v4475 = vpack.c.bf16 %v4452, %v4451
      %v4476 = vpack.c.bf16 %v4454, %v4453
      %v4477 = vpack.c.bf16 %v4456, %v4455
      %v4478 = vpack.c.bf16 %v4458, %v4457
      %v4479 = vpack.c.bf16 %v4460, %v4459
      %v4480 = vpack.c.bf16 %v4462, %v4461
      %v4481 = vpack.c.bf16 %v4464, %v4463
      %v4482 = vpack.c.bf16 %v4466, %v4465
      %v4483 = vld [vmem:[%s14] sm:$0x3]
      %v4484 = vld [vmem:[%s15] sm:$0x1]
      %v4486 = vlaneseq
      %v4487 = vshrl.u32 %v4486, 7
      %v4488 = vsub.s32 0, %v4487
      %v4489 = vrot.slane %v4484, %v4488
      %v4492 = vsel %vm827, %v4467, 0
      %v4495 = vsel %vm827, %v4468, 0
      %v4498 = vsel %vm827, %v4469, 0
      %v4501 = vsel %vm827, %v4470, 0
      %v4504 = vsel %vm827, %v4471, 0
      %v4507 = vsel %vm827, %v4472, 0
      %v4510 = vsel %vm827, %v4473, 0
      %v4513 = vsel %vm827, %v4474, 0
      %v4516 = vsel %vm827, %v4475, 0
      %v4519 = vsel %vm827, %v4476, 0
      %v4522 = vsel %vm827, %v4477, 0
      %v4525 = vsel %vm827, %v4478, 0
      %v4528 = vsel %vm827, %v4479, 0
      %v4531 = vsel %vm827, %v4480, 0
      %v4534 = vsel %vm827, %v4481, 0
      %v4537 = vsel %vm827, %v4482, 0
      %v4540 = vsel %vm1393, %v4483, 0
      %4542 = vmatprep.subr.bf16.mxu0 0
      %4543 = vmatpush1.bf16.msra.mxu0 %v4540
      %4544 = vmatprep.subr.bf16.mxu0 0
      %4545 = vmatpush1.bf16.msra.mxu0 0
      %4546 = vmatprep.subr.bf16.mxu0 0
      %4547 = vmatpush1.bf16.msra.mxu0 0
      %4548 = vmatprep.subr.bf16.mxu0 0
      %4549 = vmatpush1.bf16.msra.mxu0 0
      %4550 = vmatprep.subr.bf16.mxu0 0
      %4551 = vmatpush1.bf16.msra.mxu0 0
      %4552 = vmatprep.subr.bf16.mxu0 0
      %4553 = vmatpush1.bf16.msra.mxu0 0
      %4554 = vmatprep.subr.bf16.mxu0 0
      %4555 = vmatpush1.bf16.msra.mxu0 0
      %4556 = vmatprep.subr.bf16.mxu0 0
      %4557 = vmatpush1.bf16.msra.mxu0 0
      %4558 = vmatprep.subr.bf16.mxu0 0
      %4559 = vmatpush1.bf16.msra.mxu0 0
      %4560 = vmatprep.subr.bf16.mxu0 0
      %4561 = vmatpush1.bf16.msra.mxu0 0
      %4562 = vmatprep.subr.bf16.mxu0 0
      %4563 = vmatpush1.bf16.msra.mxu0 0
      %4564 = vmatprep.subr.bf16.mxu0 0
      %4565 = vmatpush1.bf16.msra.mxu0 0
      %4566 = vmatprep.subr.bf16.mxu0 0
      %4567 = vmatpush1.bf16.msra.mxu0 0
      %4568 = vmatprep.subr.bf16.mxu0 0
      %4569 = vmatpush1.bf16.msra.mxu0 0
      %4570 = vmatprep.subr.bf16.mxu0 0
      %4571 = vmatpush1.bf16.msra.mxu0 0
      %4572 = vmatprep.subr.bf16.mxu0 0
      %4573 = vmatpush1.bf16.msra.mxu0 0
      %4574 = vmatprep.mubr.bf16.mxu0 0
      %4575 = vmatmul.mubr.bf16.gmra.mrb[0].mxu0 %v4492
      %v4576 = vpop.f32.mrb[0].mxu0
      %v4577 = vadd.f32 %v4489, %v4576
      %v4578 = vpop.f32.mrb[0].mxu0
      %v4579 = vpop.f32.mrb[0].mxu0
      %v4580 = vadd.f32 %v4489, %v4579
      %v4581 = vpop.f32.mrb[0].mxu0
      %4582 = vmatprep.mubr.bf16.mxu0 0
      %4583 = vmatmul.mubr.bf16.gmra.mrb[0].mxu0 %v4495
      %v4584 = vpop.f32.mrb[0].mxu0
      %v4585 = vadd.f32 %v4489, %v4584
      %v4586 = vpop.f32.mrb[0].mxu0
      %v4587 = vpop.f32.mrb[0].mxu0
      %v4588 = vadd.f32 %v4489, %v4587
      %v4589 = vpop.f32.mrb[0].mxu0
      %4590 = vmatprep.mubr.bf16.mxu0 0
      %4591 = vmatmul.mubr.bf16.gmra.mrb[0].mxu0 %v4498
      %v4592 = vpop.f32.mrb[0].mxu0
      %v4593 = vadd.f32 %v4489, %v4592
      %v4594 = vpop.f32.mrb[0].mxu0
      %v4595 = vpop.f32.mrb[0].mxu0
      %v4596 = vadd.f32 %v4489, %v4595
      %v4597 = vpop.f32.mrb[0].mxu0
      %4598 = vmatprep.mubr.bf16.mxu0 0
      %4599 = vmatmul.mubr.bf16.gmra.mrb[0].mxu0 %v4501
      %v4600 = vpop.f32.mrb[0].mxu0
      %v4601 = vadd.f32 %v4489, %v4600
      %v4602 = vpop.f32.mrb[0].mxu0
      %v4603 = vpop.f32.mrb[0].mxu0
      %v4604 = vadd.f32 %v4489, %v4603
      %v4605 = vpop.f32.mrb[0].mxu0
      %4606 = vmatprep.mubr.bf16.mxu0 0
      %4607 = vmatmul.mubr.bf16.gmra.mrb[0].mxu0 %v4504
      %v4608 = vpop.f32.mrb[0].mxu0
      %v4609 = vadd.f32 %v4489, %v4608
      %v4610 = vpop.f32.mrb[0].mxu0
      %v4611 = vpop.f32.mrb[0].mxu0
      %v4612 = vadd.f32 %v4489, %v4611
      %v4613 = vpop.f32.mrb[0].mxu0
      %4614 = vmatprep.mubr.bf16.mxu0 0
      %4615 = vmatmul.mubr.bf16.gmra.mrb[0].mxu0 %v4507
      %v4616 = vpop.f32.mrb[0].mxu0
      %v4617 = vadd.f32 %v4489, %v4616
      %v4618 = vpop.f32.mrb[0].mxu0
      %v4619 = vpop.f32.mrb[0].mxu0
      %v4620 = vadd.f32 %v4489, %v4619
      %v4621 = vpop.f32.mrb[0].mxu0
      %4622 = vmatprep.mubr.bf16.mxu0 0
      %4623 = vmatmul.mubr.bf16.gmra.mrb[0].mxu0 %v4510
      %v4624 = vpop.f32.mrb[0].mxu0
      %v4625 = vadd.f32 %v4489, %v4624
      %v4626 = vpop.f32.mrb[0].mxu0
      %v4627 = vpop.f32.mrb[0].mxu0
      %v4628 = vadd.f32 %v4489, %v4627
      %v4629 = vpop.f32.mrb[0].mxu0
      %4630 = vmatprep.mubr.bf16.mxu0 0
      %4631 = vmatmul.mubr.bf16.gmra.mrb[0].mxu0 %v4513
      %v4632 = vpop.f32.mrb[0].mxu0
      %v4633 = vadd.f32 %v4489, %v4632
      %v4634 = vpop.f32.mrb[0].mxu0
      %v4635 = vpop.f32.mrb[0].mxu0
      %v4636 = vadd.f32 %v4489, %v4635
      %v4637 = vpop.f32.mrb[0].mxu0
      %4638 = vmatprep.mubr.bf16.mxu0 0
      %4639 = vmatmul.mubr.bf16.gmra.mrb[0].mxu0 %v4516
      %v4640 = vpop.f32.mrb[0].mxu0
      %v4641 = vadd.f32 %v4489, %v4640
      %v4642 = vpop.f32.mrb[0].mxu0
      %v4643 = vpop.f32.mrb[0].mxu0
      %v4644 = vadd.f32 %v4489, %v4643
      %v4645 = vpop.f32.mrb[0].mxu0
      %4646 = vmatprep.mubr.bf16.mxu0 0
      %4647 = vmatmul.mubr.bf16.gmra.mrb[0].mxu0 %v4519
      %v4648 = vpop.f32.mrb[0].mxu0
      %v4649 = vadd.f32 %v4489, %v4648
      %v4650 = vpop.f32.mrb[0].mxu0
      %v4651 = vpop.f32.mrb[0].mxu0
      %v4652 = vadd.f32 %v4489, %v4651
      %v4653 = vpop.f32.mrb[0].mxu0
      %4654 = vmatprep.mubr.bf16.mxu0 0
      %4655 = vmatmul.mubr.bf16.gmra.mrb[0].mxu0 %v4522
      %v4656 = vpop.f32.mrb[0].mxu0
      %v4657 = vadd.f32 %v4489, %v4656
      %v4658 = vpop.f32.mrb[0].mxu0
      %v4659 = vpop.f32.mrb[0].mxu0
      %v4660 = vadd.f32 %v4489, %v4659
      %v4661 = vpop.f32.mrb[0].mxu0
      %4662 = vmatprep.mubr.bf16.mxu0 0
      %4663 = vmatmul.mubr.bf16.gmra.mrb[0].mxu0 %v4525
      %v4664 = vpop.f32.mrb[0].mxu0
      %v4665 = vadd.f32 %v4489, %v4664
      %v4666 = vpop.f32.mrb[0].mxu0
      %v4667 = vpop.f32.mrb[0].mxu0
      %v4668 = vadd.f32 %v4489, %v4667
      %v4669 = vpop.f32.mrb[0].mxu0
      %4670 = vmatprep.mubr.bf16.mxu0 0
      %4671 = vmatmul.mubr.bf16.gmra.mrb[0].mxu0 %v4528
      %v4672 = vpop.f32.mrb[0].mxu0
      %v4673 = vadd.f32 %v4489, %v4672
      %v4674 = vpop.f32.mrb[0].mxu0
      %v4675 = vpop.f32.mrb[0].mxu0
      %v4676 = vadd.f32 %v4489, %v4675
      %v4677 = vpop.f32.mrb[0].mxu0
      %4678 = vmatprep.mubr.bf16.mxu0 0
      %4679 = vmatmul.mubr.bf16.gmra.mrb[0].mxu0 %v4531
      %v4680 = vpop.f32.mrb[0].mxu0
      %v4681 = vadd.f32 %v4489, %v4680
      %v4682 = vpop.f32.mrb[0].mxu0
      %v4683 = vpop.f32.mrb[0].mxu0
      %v4684 = vadd.f32 %v4489, %v4683
      %v4685 = vpop.f32.mrb[0].mxu0
      %4686 = vmatprep.mubr.bf16.mxu0 0
      %4687 = vmatmul.mubr.bf16.gmra.mrb[0].mxu0 %v4534
      %v4688 = vpop.f32.mrb[0].mxu0
      %v4689 = vadd.f32 %v4489, %v4688
      %v4690 = vpop.f32.mrb[0].mxu0
      %v4691 = vpop.f32.mrb[0].mxu0
      %v4692 = vadd.f32 %v4489, %v4691
      %v4693 = vpop.f32.mrb[0].mxu0
      %4694 = vmatprep.mubr.bf16.mxu0 0
      %4695 = vmatmul.mubr.bf16.gmra.mrb[0].mxu0 %v4537
      %v4696 = vpop.f32.mrb[0].mxu0
      %v4697 = vadd.f32 %v4489, %v4696
      %v4698 = vpop.f32.mrb[0].mxu0
      %v4699 = vpop.f32.mrb[0].mxu0
      %v4700 = vadd.f32 %v4489, %v4699
      %v4701 = vpop.f32.mrb[0].mxu0
      %4702 = vdwg.mxu0
      %v4703 = vld [vmem:[%s24] sm:$0x1]
      %v4705 = vlaneseq
      %v4706 = vshrl.u32 %v4705, 7
      %v4707 = vsub.s32 0, %v4706
      %v4708 = vrot.slane %v4703, %v4707
      %v4710 = vmul.f32 %v4577, %v4708
      %v4711 = vmul.f32 %v4580, %v4708
      %v4712 = vmul.f32 %v4585, %v4708
      %v4713 = vmul.f32 %v4588, %v4708
      %v4714 = vmul.f32 %v4593, %v4708
      %v4715 = vmul.f32 %v4596, %v4708
      %v4716 = vmul.f32 %v4601, %v4708
      %v4717 = vmul.f32 %v4604, %v4708
      %v4718 = vmul.f32 %v4609, %v4708
      %v4719 = vmul.f32 %v4612, %v4708
      %v4720 = vmul.f32 %v4617, %v4708
      %v4721 = vmul.f32 %v4620, %v4708
      %v4722 = vmul.f32 %v4625, %v4708
      %v4723 = vmul.f32 %v4628, %v4708
      %v4724 = vmul.f32 %v4633, %v4708
      %v4725 = vmul.f32 %v4636, %v4708
      %v4726 = vmul.f32 %v4641, %v4708
      %v4727 = vmul.f32 %v4644, %v4708
      %v4728 = vmul.f32 %v4649, %v4708
      %v4729 = vmul.f32 %v4652, %v4708
      %v4730 = vmul.f32 %v4657, %v4708
      %v4731 = vmul.f32 %v4660, %v4708
      %v4732 = vmul.f32 %v4665, %v4708
      %v4733 = vmul.f32 %v4668, %v4708
      %v4734 = vmul.f32 %v4673, %v4708
      %v4735 = vmul.f32 %v4676, %v4708
      %v4736 = vmul.f32 %v4681, %v4708
      %v4737 = vmul.f32 %v4684, %v4708
      %v4738 = vmul.f32 %v4689, %v4708
      %v4739 = vmul.f32 %v4692, %v4708
      %v4740 = vmul.f32 %v4697, %v4708
      %v4741 = vmul.f32 %v4700, %v4708
      %v4742 = vadd.f32 %v793, %v4710
      %v4743 = vadd.f32 %v794, %v4711
      %v4744 = vadd.f32 %v795, %v4712
      %v4745 = vadd.f32 %v796, %v4713
      %v4746 = vadd.f32 %v797, %v4714
      %v4747 = vadd.f32 %v798, %v4715
      %v4748 = vadd.f32 %v799, %v4716
      %v4749 = vadd.f32 %v800, %v4717
      %v4750 = vadd.f32 %v801, %v4718
      %v4751 = vadd.f32 %v802, %v4719
      %v4752 = vadd.f32 %v803, %v4720
      %v4753 = vadd.f32 %v804, %v4721
      %v4754 = vadd.f32 %v805, %v4722
      %v4755 = vadd.f32 %v806, %v4723
      %v4756 = vadd.f32 %v807, %v4724
      %v4757 = vadd.f32 %v808, %v4725
      %v4758 = vadd.f32 %v809, %v4726
      %v4759 = vadd.f32 %v810, %v4727
      %v4760 = vadd.f32 %v811, %v4728
      %v4761 = vadd.f32 %v812, %v4729
      %v4762 = vadd.f32 %v813, %v4730
      %v4763 = vadd.f32 %v814, %v4731
      %v4764 = vadd.f32 %v815, %v4732
      %v4765 = vadd.f32 %v816, %v4733
      %v4766 = vadd.f32 %v817, %v4734
      %v4767 = vadd.f32 %v818, %v4735
      %v4768 = vadd.f32 %v819, %v4736
      %v4769 = vadd.f32 %v820, %v4737
      %v4770 = vadd.f32 %v821, %v4738
      %v4771 = vadd.f32 %v822, %v4739
      %v4772 = vadd.f32 %v823, %v4740
      %v4773 = vadd.f32 %v824, %v4741
      %v4774 = vld [vmem:[%s16] sm:$0x1]
      %v4775 = vld [vmem:[%s17] sm:$0x1]
      %v4776 = vsel %vm827, %v4742, 0.0
      %4777 = vadd.xlane.f32.xlu0 %v4776
      %v4778 = vpop.xlane.xlu0 %4777
      %v4779 = vsel %vm827, %v4743, 0.0
      %4780 = vadd.xlane.f32.xlu0 %v4779
      %v4781 = vpop.xlane.xlu0 %4780
      %v4782 = vsel %vm827, %v4744, 0.0
      %4783 = vadd.xlane.f32.xlu0 %v4782
      %v4784 = vpop.xlane.xlu0 %4783
      %v4785 = vsel %vm827, %v4745, 0.0
      %4786 = vadd.xlane.f32.xlu0 %v4785
      %v4787 = vpop.xlane.xlu0 %4786
      %v4788 = vsel %vm827, %v4746, 0.0
      %4789 = vadd.xlane.f32.xlu0 %v4788
      %v4790 = vpop.xlane.xlu0 %4789
      %v4791 = vsel %vm827, %v4747, 0.0
      %4792 = vadd.xlane.f32.xlu0 %v4791
      %v4793 = vpop.xlane.xlu0 %4792
      %v4794 = vsel %vm827, %v4748, 0.0
      %4795 = vadd.xlane.f32.xlu0 %v4794
      %v4796 = vpop.xlane.xlu0 %4795
      %v4797 = vsel %vm827, %v4749, 0.0
      %4798 = vadd.xlane.f32.xlu0 %v4797
      %v4799 = vpop.xlane.xlu0 %4798
      %v4800 = vsel %vm827, %v4750, 0.0
      %4801 = vadd.xlane.f32.xlu0 %v4800
      %v4802 = vpop.xlane.xlu0 %4801
      %v4803 = vsel %vm827, %v4751, 0.0
      %4804 = vadd.xlane.f32.xlu0 %v4803
      %v4805 = vpop.xlane.xlu0 %4804
      %v4806 = vsel %vm827, %v4752, 0.0
      %4807 = vadd.xlane.f32.xlu0 %v4806
      %v4808 = vpop.xlane.xlu0 %4807
      %v4809 = vsel %vm827, %v4753, 0.0
      %4810 = vadd.xlane.f32.xlu0 %v4809
      %v4811 = vpop.xlane.xlu0 %4810
      %v4812 = vsel %vm827, %v4754, 0.0
      %4813 = vadd.xlane.f32.xlu0 %v4812
      %v4814 = vpop.xlane.xlu0 %4813
      %v4815 = vsel %vm827, %v4755, 0.0
      %4816 = vadd.xlane.f32.xlu0 %v4815
      %v4817 = vpop.xlane.xlu0 %4816
      %v4818 = vsel %vm827, %v4756, 0.0
      %4819 = vadd.xlane.f32.xlu0 %v4818
      %v4820 = vpop.xlane.xlu0 %4819
      %v4821 = vsel %vm827, %v4757, 0.0
      %4822 = vadd.xlane.f32.xlu0 %v4821
      %v4823 = vpop.xlane.xlu0 %4822
      %v4824 = vsel %vm827, %v4758, 0.0
      %4825 = vadd.xlane.f32.xlu0 %v4824
      %v4826 = vpop.xlane.xlu0 %4825
      %v4827 = vsel %vm827, %v4759, 0.0
      %4828 = vadd.xlane.f32.xlu0 %v4827
      %v4829 = vpop.xlane.xlu0 %4828
      %v4830 = vsel %vm827, %v4760, 0.0
      %4831 = vadd.xlane.f32.xlu0 %v4830
      %v4832 = vpop.xlane.xlu0 %4831
      %v4833 = vsel %vm827, %v4761, 0.0
      %4834 = vadd.xlane.f32.xlu0 %v4833
      %v4835 = vpop.xlane.xlu0 %4834
      %v4836 = vsel %vm827, %v4762, 0.0
      %4837 = vadd.xlane.f32.xlu0 %v4836
      %v4838 = vpop.xlane.xlu0 %4837
      %v4839 = vsel %vm827, %v4763, 0.0
      %4840 = vadd.xlane.f32.xlu0 %v4839
      %v4841 = vpop.xlane.xlu0 %4840
      %v4842 = vsel %vm827, %v4764, 0.0
      %4843 = vadd.xlane.f32.xlu0 %v4842
      %v4844 = vpop.xlane.xlu0 %4843
      %v4845 = vsel %vm827, %v4765, 0.0
      %4846 = vadd.xlane.f32.xlu0 %v4845
      %v4847 = vpop.xlane.xlu0 %4846
      %v4848 = vsel %vm827, %v4766, 0.0
      %4849 = vadd.xlane.f32.xlu0 %v4848
      %v4850 = vpop.xlane.xlu0 %4849
      %v4851 = vsel %vm827, %v4767, 0.0
      %4852 = vadd.xlane.f32.xlu0 %v4851
      %v4853 = vpop.xlane.xlu0 %4852
      %v4854 = vsel %vm827, %v4768, 0.0
      %4855 = vadd.xlane.f32.xlu0 %v4854
      %v4856 = vpop.xlane.xlu0 %4855
      %v4857 = vsel %vm827, %v4769, 0.0
      %4858 = vadd.xlane.f32.xlu0 %v4857
      %v4859 = vpop.xlane.xlu0 %4858
      %v4860 = vsel %vm827, %v4770, 0.0
      %4861 = vadd.xlane.f32.xlu0 %v4860
      %v4862 = vpop.xlane.xlu0 %4861
      %v4863 = vsel %vm827, %v4771, 0.0
      %4864 = vadd.xlane.f32.xlu0 %v4863
      %v4865 = vpop.xlane.xlu0 %4864
      %v4866 = vsel %vm827, %v4772, 0.0
      %4867 = vadd.xlane.f32.xlu0 %v4866
      %v4868 = vpop.xlane.xlu0 %4867
      %v4869 = vsel %vm827, %v4773, 0.0
      %4870 = vadd.xlane.f32.xlu0 %v4869
      %v4871 = vpop.xlane.xlu0 %4870
      %v4872 = vmul.f32 %v4778, %v924
      %v4873 = vmul.f32 %v4781, %v924
      %v4874 = vmul.f32 %v4784, %v924
      %v4875 = vmul.f32 %v4787, %v924
      %v4876 = vmul.f32 %v4790, %v924
      %v4877 = vmul.f32 %v4793, %v924
      %v4878 = vmul.f32 %v4796, %v924
      %v4879 = vmul.f32 %v4799, %v924
      %v4880 = vmul.f32 %v4802, %v924
      %v4881 = vmul.f32 %v4805, %v924
      %v4882 = vmul.f32 %v4808, %v924
      %v4883 = vmul.f32 %v4811, %v924
      %v4884 = vmul.f32 %v4814, %v924
      %v4885 = vmul.f32 %v4817, %v924
      %v4886 = vmul.f32 %v4820, %v924
      %v4887 = vmul.f32 %v4823, %v924
      %v4888 = vmul.f32 %v4826, %v924
      %v4889 = vmul.f32 %v4829, %v924
      %v4890 = vmul.f32 %v4832, %v924
      %v4891 = vmul.f32 %v4835, %v924
      %v4892 = vmul.f32 %v4838, %v924
      %v4893 = vmul.f32 %v4841, %v924
      %v4894 = vmul.f32 %v4844, %v924
      %v4895 = vmul.f32 %v4847, %v924
      %v4896 = vmul.f32 %v4850, %v924
      %v4897 = vmul.f32 %v4853, %v924
      %v4898 = vmul.f32 %v4856, %v924
      %v4899 = vmul.f32 %v4859, %v924
      %v4900 = vmul.f32 %v4862, %v924
      %v4901 = vmul.f32 %v4865, %v924
      %v4902 = vmul.f32 %v4868, %v924
      %v4903 = vmul.f32 %v4871, %v924
      %v4904 = vsub.f32 %v4742, %v4872
      %v4905 = vsub.f32 %v4743, %v4873
      %v4906 = vsub.f32 %v4744, %v4874
      %v4907 = vsub.f32 %v4745, %v4875
      %v4908 = vsub.f32 %v4746, %v4876
      %v4909 = vsub.f32 %v4747, %v4877
      %v4910 = vsub.f32 %v4748, %v4878
      %v4911 = vsub.f32 %v4749, %v4879
      %v4912 = vsub.f32 %v4750, %v4880
      %v4913 = vsub.f32 %v4751, %v4881
      %v4914 = vsub.f32 %v4752, %v4882
      %v4915 = vsub.f32 %v4753, %v4883
      %v4916 = vsub.f32 %v4754, %v4884
      %v4917 = vsub.f32 %v4755, %v4885
      %v4918 = vsub.f32 %v4756, %v4886
      %v4919 = vsub.f32 %v4757, %v4887
      %v4920 = vsub.f32 %v4758, %v4888
      %v4921 = vsub.f32 %v4759, %v4889
      %v4922 = vsub.f32 %v4760, %v4890
      %v4923 = vsub.f32 %v4761, %v4891
      %v4924 = vsub.f32 %v4762, %v4892
      %v4925 = vsub.f32 %v4763, %v4893
      %v4926 = vsub.f32 %v4764, %v4894
      %v4927 = vsub.f32 %v4765, %v4895
      %v4928 = vsub.f32 %v4766, %v4896
      %v4929 = vsub.f32 %v4767, %v4897
      %v4930 = vsub.f32 %v4768, %v4898
      %v4931 = vsub.f32 %v4769, %v4899
      %v4932 = vsub.f32 %v4770, %v4900
      %v4933 = vsub.f32 %v4771, %v4901
      %v4934 = vsub.f32 %v4772, %v4902
      %v4935 = vsub.f32 %v4773, %v4903
      %v4936 = vmul.f32 %v4904, %v4904
      %v4937 = vmul.f32 %v4905, %v4905
      %v4938 = vmul.f32 %v4906, %v4906
      %v4939 = vmul.f32 %v4907, %v4907
      %v4940 = vmul.f32 %v4908, %v4908
      %v4941 = vmul.f32 %v4909, %v4909
      %v4942 = vmul.f32 %v4910, %v4910
      %v4943 = vmul.f32 %v4911, %v4911
      %v4944 = vmul.f32 %v4912, %v4912
      %v4945 = vmul.f32 %v4913, %v4913
      %v4946 = vmul.f32 %v4914, %v4914
      %v4947 = vmul.f32 %v4915, %v4915
      %v4948 = vmul.f32 %v4916, %v4916
      %v4949 = vmul.f32 %v4917, %v4917
      %v4950 = vmul.f32 %v4918, %v4918
      %v4951 = vmul.f32 %v4919, %v4919
      %v4952 = vmul.f32 %v4920, %v4920
      %v4953 = vmul.f32 %v4921, %v4921
      %v4954 = vmul.f32 %v4922, %v4922
      %v4955 = vmul.f32 %v4923, %v4923
      %v4956 = vmul.f32 %v4924, %v4924
      %v4957 = vmul.f32 %v4925, %v4925
      %v4958 = vmul.f32 %v4926, %v4926
      %v4959 = vmul.f32 %v4927, %v4927
      %v4960 = vmul.f32 %v4928, %v4928
      %v4961 = vmul.f32 %v4929, %v4929
      %v4962 = vmul.f32 %v4930, %v4930
      %v4963 = vmul.f32 %v4931, %v4931
      %v4964 = vmul.f32 %v4932, %v4932
      %v4965 = vmul.f32 %v4933, %v4933
      %v4966 = vmul.f32 %v4934, %v4934
      %v4967 = vmul.f32 %v4935, %v4935
      %v4968 = vsel %vm827, %v4936, 0.0
      %4969 = vadd.xlane.f32.xlu0 %v4968
      %v4970 = vpop.xlane.xlu0 %4969
      %v4971 = vsel %vm827, %v4937, 0.0
      %4972 = vadd.xlane.f32.xlu0 %v4971
      %v4973 = vpop.xlane.xlu0 %4972
      %v4974 = vsel %vm827, %v4938, 0.0
      %4975 = vadd.xlane.f32.xlu0 %v4974
      %v4976 = vpop.xlane.xlu0 %4975
      %v4977 = vsel %vm827, %v4939, 0.0
      %4978 = vadd.xlane.f32.xlu0 %v4977
      %v4979 = vpop.xlane.xlu0 %4978
      %v4980 = vsel %vm827, %v4940, 0.0
      %4981 = vadd.xlane.f32.xlu0 %v4980
      %v4982 = vpop.xlane.xlu0 %4981
      %v4983 = vsel %vm827, %v4941, 0.0
      %4984 = vadd.xlane.f32.xlu0 %v4983
      %v4985 = vpop.xlane.xlu0 %4984
      %v4986 = vsel %vm827, %v4942, 0.0
      %4987 = vadd.xlane.f32.xlu0 %v4986
      %v4988 = vpop.xlane.xlu0 %4987
      %v4989 = vsel %vm827, %v4943, 0.0
      %4990 = vadd.xlane.f32.xlu0 %v4989
      %v4991 = vpop.xlane.xlu0 %4990
      %v4992 = vsel %vm827, %v4944, 0.0
      %4993 = vadd.xlane.f32.xlu0 %v4992
      %v4994 = vpop.xlane.xlu0 %4993
      %v4995 = vsel %vm827, %v4945, 0.0
      %4996 = vadd.xlane.f32.xlu0 %v4995
      %v4997 = vpop.xlane.xlu0 %4996
      %v4998 = vsel %vm827, %v4946, 0.0
      %4999 = vadd.xlane.f32.xlu0 %v4998
      %v5000 = vpop.xlane.xlu0 %4999
      %v5001 = vsel %vm827, %v4947, 0.0
      %5002 = vadd.xlane.f32.xlu0 %v5001
      %v5003 = vpop.xlane.xlu0 %5002
      %v5004 = vsel %vm827, %v4948, 0.0
      %5005 = vadd.xlane.f32.xlu0 %v5004
      %v5006 = vpop.xlane.xlu0 %5005
      %v5007 = vsel %vm827, %v4949, 0.0
      %5008 = vadd.xlane.f32.xlu0 %v5007
      %v5009 = vpop.xlane.xlu0 %5008
      %v5010 = vsel %vm827, %v4950, 0.0
      %5011 = vadd.xlane.f32.xlu0 %v5010
      %v5012 = vpop.xlane.xlu0 %5011
      %v5013 = vsel %vm827, %v4951, 0.0
      %5014 = vadd.xlane.f32.xlu0 %v5013
      %v5015 = vpop.xlane.xlu0 %5014
      %v5016 = vsel %vm827, %v4952, 0.0
      %5017 = vadd.xlane.f32.xlu0 %v5016
      %v5018 = vpop.xlane.xlu0 %5017
      %v5019 = vsel %vm827, %v4953, 0.0
      %5020 = vadd.xlane.f32.xlu0 %v5019
      %v5021 = vpop.xlane.xlu0 %5020
      %v5022 = vsel %vm827, %v4954, 0.0
      %5023 = vadd.xlane.f32.xlu0 %v5022
      %v5024 = vpop.xlane.xlu0 %5023
      %v5025 = vsel %vm827, %v4955, 0.0
      %5026 = vadd.xlane.f32.xlu0 %v5025
      %v5027 = vpop.xlane.xlu0 %5026
      %v5028 = vsel %vm827, %v4956, 0.0
      %5029 = vadd.xlane.f32.xlu0 %v5028
      %v5030 = vpop.xlane.xlu0 %5029
      %v5031 = vsel %vm827, %v4957, 0.0
      %5032 = vadd.xlane.f32.xlu0 %v5031
      %v5033 = vpop.xlane.xlu0 %5032
      %v5034 = vsel %vm827, %v4958, 0.0
      %5035 = vadd.xlane.f32.xlu0 %v5034
      %v5036 = vpop.xlane.xlu0 %5035
      %v5037 = vsel %vm827, %v4959, 0.0
      %5038 = vadd.xlane.f32.xlu0 %v5037
      %v5039 = vpop.xlane.xlu0 %5038
      %v5040 = vsel %vm827, %v4960, 0.0
      %5041 = vadd.xlane.f32.xlu0 %v5040
      %v5042 = vpop.xlane.xlu0 %5041
      %v5043 = vsel %vm827, %v4961, 0.0
      %5044 = vadd.xlane.f32.xlu0 %v5043
      %v5045 = vpop.xlane.xlu0 %5044
      %v5046 = vsel %vm827, %v4962, 0.0
      %5047 = vadd.xlane.f32.xlu0 %v5046
      %v5048 = vpop.xlane.xlu0 %5047
      %v5049 = vsel %vm827, %v4963, 0.0
      %5050 = vadd.xlane.f32.xlu0 %v5049
      %v5051 = vpop.xlane.xlu0 %5050
      %v5052 = vsel %vm827, %v4964, 0.0
      %5053 = vadd.xlane.f32.xlu0 %v5052
      %v5054 = vpop.xlane.xlu0 %5053
      %v5055 = vsel %vm827, %v4965, 0.0
      %5056 = vadd.xlane.f32.xlu0 %v5055
      %v5057 = vpop.xlane.xlu0 %5056
      %v5058 = vsel %vm827, %v4966, 0.0
      %5059 = vadd.xlane.f32.xlu0 %v5058
      %v5060 = vpop.xlane.xlu0 %5059
      %v5061 = vsel %vm827, %v4967, 0.0
      %5062 = vadd.xlane.f32.xlu0 %v5061
      %v5063 = vpop.xlane.xlu0 %5062
      %v5064 = vmul.f32 %v4970, %v924
      %v5065 = vmul.f32 %v4973, %v924
      %v5066 = vmul.f32 %v4976, %v924
      %v5067 = vmul.f32 %v4979, %v924
      %v5068 = vmul.f32 %v4982, %v924
      %v5069 = vmul.f32 %v4985, %v924
      %v5070 = vmul.f32 %v4988, %v924
      %v5071 = vmul.f32 %v4991, %v924
      %v5072 = vmul.f32 %v4994, %v924
      %v5073 = vmul.f32 %v4997, %v924
      %v5074 = vmul.f32 %v5000, %v924
      %v5075 = vmul.f32 %v5003, %v924
      %v5076 = vmul.f32 %v5006, %v924
      %v5077 = vmul.f32 %v5009, %v924
      %v5078 = vmul.f32 %v5012, %v924
      %v5079 = vmul.f32 %v5015, %v924
      %v5080 = vmul.f32 %v5018, %v924
      %v5081 = vmul.f32 %v5021, %v924
      %v5082 = vmul.f32 %v5024, %v924
      %v5083 = vmul.f32 %v5027, %v924
      %v5084 = vmul.f32 %v5030, %v924
      %v5085 = vmul.f32 %v5033, %v924
      %v5086 = vmul.f32 %v5036, %v924
      %v5087 = vmul.f32 %v5039, %v924
      %v5088 = vmul.f32 %v5042, %v924
      %v5089 = vmul.f32 %v5045, %v924
      %v5090 = vmul.f32 %v5048, %v924
      %v5091 = vmul.f32 %v5051, %v924
      %v5092 = vmul.f32 %v5054, %v924
      %v5093 = vmul.f32 %v5057, %v924
      %v5094 = vmul.f32 %v5060, %v924
      %v5095 = vmul.f32 %v5063, %v924
      %v5096 = vadd.f32 %v5064, 1e-06
      %v5097 = vadd.f32 %v5065, 1e-06
      %v5098 = vadd.f32 %v5066, 1e-06
      %v5099 = vadd.f32 %v5067, 1e-06
      %v5100 = vadd.f32 %v5068, 1e-06
      %v5101 = vadd.f32 %v5069, 1e-06
      %v5102 = vadd.f32 %v5070, 1e-06
      %v5103 = vadd.f32 %v5071, 1e-06
      %v5104 = vadd.f32 %v5072, 1e-06
      %v5105 = vadd.f32 %v5073, 1e-06
      %v5106 = vadd.f32 %v5074, 1e-06
      %v5107 = vadd.f32 %v5075, 1e-06
      %v5108 = vadd.f32 %v5076, 1e-06
      %v5109 = vadd.f32 %v5077, 1e-06
      %v5110 = vadd.f32 %v5078, 1e-06
      %v5111 = vadd.f32 %v5079, 1e-06
      %v5112 = vadd.f32 %v5080, 1e-06
      %v5113 = vadd.f32 %v5081, 1e-06
      %v5114 = vadd.f32 %v5082, 1e-06
      %v5115 = vadd.f32 %v5083, 1e-06
      %v5116 = vadd.f32 %v5084, 1e-06
      %v5117 = vadd.f32 %v5085, 1e-06
      %v5118 = vadd.f32 %v5086, 1e-06
      %v5119 = vadd.f32 %v5087, 1e-06
      %v5120 = vadd.f32 %v5088, 1e-06
      %v5121 = vadd.f32 %v5089, 1e-06
      %v5122 = vadd.f32 %v5090, 1e-06
      %v5123 = vadd.f32 %v5091, 1e-06
      %v5124 = vadd.f32 %v5092, 1e-06
      %v5125 = vadd.f32 %v5093, 1e-06
      %v5126 = vadd.f32 %v5094, 1e-06
      %v5127 = vadd.f32 %v5095, 1e-06
      %v5128 = vrsqrt.pop %v5096
      %v5129 = vrsqrt.pop %v5097
      %v5130 = vrsqrt.pop %v5098
      %v5131 = vrsqrt.pop %v5099
      %v5132 = vrsqrt.pop %v5100
      %v5133 = vrsqrt.pop %v5101
      %v5134 = vrsqrt.pop %v5102
      %v5135 = vrsqrt.pop %v5103
      %v5136 = vrsqrt.pop %v5104
      %v5137 = vrsqrt.pop %v5105
      %v5138 = vrsqrt.pop %v5106
      %v5139 = vrsqrt.pop %v5107
      %v5140 = vrsqrt.pop %v5108
      %v5141 = vrsqrt.pop %v5109
      %v5142 = vrsqrt.pop %v5110
      %v5143 = vrsqrt.pop %v5111
      %v5144 = vrsqrt.pop %v5112
      %v5145 = vrsqrt.pop %v5113
      %v5146 = vrsqrt.pop %v5114
      %v5147 = vrsqrt.pop %v5115
      %v5148 = vrsqrt.pop %v5116
      %v5149 = vrsqrt.pop %v5117
      %v5150 = vrsqrt.pop %v5118
      %v5151 = vrsqrt.pop %v5119
      %v5152 = vrsqrt.pop %v5120
      %v5153 = vrsqrt.pop %v5121
      %v5154 = vrsqrt.pop %v5122
      %v5155 = vrsqrt.pop %v5123
      %v5156 = vrsqrt.pop %v5124
      %v5157 = vrsqrt.pop %v5125
      %v5158 = vrsqrt.pop %v5126
      %v5159 = vrsqrt.pop %v5127
      %v5160 = vmul.f32 %v4904, %v5128
      %v5161 = vmul.f32 %v4905, %v5129
      %v5162 = vmul.f32 %v4906, %v5130
      %v5163 = vmul.f32 %v4907, %v5131
      %v5164 = vmul.f32 %v4908, %v5132
      %v5165 = vmul.f32 %v4909, %v5133
      %v5166 = vmul.f32 %v4910, %v5134
      %v5167 = vmul.f32 %v4911, %v5135
      %v5168 = vmul.f32 %v4912, %v5136
      %v5169 = vmul.f32 %v4913, %v5137
      %v5170 = vmul.f32 %v4914, %v5138
      %v5171 = vmul.f32 %v4915, %v5139
      %v5172 = vmul.f32 %v4916, %v5140
      %v5173 = vmul.f32 %v4917, %v5141
      %v5174 = vmul.f32 %v4918, %v5142
      %v5175 = vmul.f32 %v4919, %v5143
      %v5176 = vmul.f32 %v4920, %v5144
      %v5177 = vmul.f32 %v4921, %v5145
      %v5178 = vmul.f32 %v4922, %v5146
      %v5179 = vmul.f32 %v4923, %v5147
      %v5180 = vmul.f32 %v4924, %v5148
      %v5181 = vmul.f32 %v4925, %v5149
      %v5182 = vmul.f32 %v4926, %v5150
      %v5183 = vmul.f32 %v4927, %v5151
      %v5184 = vmul.f32 %v4928, %v5152
      %v5185 = vmul.f32 %v4929, %v5153
      %v5186 = vmul.f32 %v4930, %v5154
      %v5187 = vmul.f32 %v4931, %v5155
      %v5188 = vmul.f32 %v4932, %v5156
      %v5189 = vmul.f32 %v4933, %v5157
      %v5190 = vmul.f32 %v4934, %v5158
      %v5191 = vmul.f32 %v4935, %v5159
      %v5193 = vlaneseq
      %v5194 = vshrl.u32 %v5193, 7
      %v5195 = vsub.s32 0, %v5194
      %v5196 = vrot.slane %v4774, %v5195
      %v5198 = vmul.f32 %v5160, %v5196
      %v5199 = vmul.f32 %v5161, %v5196
      %v5200 = vmul.f32 %v5162, %v5196
      %v5201 = vmul.f32 %v5163, %v5196
      %v5202 = vmul.f32 %v5164, %v5196
      %v5203 = vmul.f32 %v5165, %v5196
      %v5204 = vmul.f32 %v5166, %v5196
      %v5205 = vmul.f32 %v5167, %v5196
      %v5206 = vmul.f32 %v5168, %v5196
      %v5207 = vmul.f32 %v5169, %v5196
      %v5208 = vmul.f32 %v5170, %v5196
      %v5209 = vmul.f32 %v5171, %v5196
      %v5210 = vmul.f32 %v5172, %v5196
      %v5211 = vmul.f32 %v5173, %v5196
      %v5212 = vmul.f32 %v5174, %v5196
      %v5213 = vmul.f32 %v5175, %v5196
      %v5214 = vmul.f32 %v5176, %v5196
      %v5215 = vmul.f32 %v5177, %v5196
      %v5216 = vmul.f32 %v5178, %v5196
      %v5217 = vmul.f32 %v5179, %v5196
      %v5218 = vmul.f32 %v5180, %v5196
      %v5219 = vmul.f32 %v5181, %v5196
      %v5220 = vmul.f32 %v5182, %v5196
      %v5221 = vmul.f32 %v5183, %v5196
      %v5222 = vmul.f32 %v5184, %v5196
      %v5223 = vmul.f32 %v5185, %v5196
      %v5224 = vmul.f32 %v5186, %v5196
      %v5225 = vmul.f32 %v5187, %v5196
      %v5226 = vmul.f32 %v5188, %v5196
      %v5227 = vmul.f32 %v5189, %v5196
      %v5228 = vmul.f32 %v5190, %v5196
      %v5229 = vmul.f32 %v5191, %v5196
      %v5231 = vlaneseq
      %v5232 = vshrl.u32 %v5231, 7
      %v5233 = vsub.s32 0, %v5232
      %v5234 = vrot.slane %v4775, %v5233
      %v5236 = vadd.f32 %v5198, %v5234
      %v5237 = vadd.f32 %v5199, %v5234
      %v5238 = vadd.f32 %v5200, %v5234
      %v5239 = vadd.f32 %v5201, %v5234
      %v5240 = vadd.f32 %v5202, %v5234
      %v5241 = vadd.f32 %v5203, %v5234
      %v5242 = vadd.f32 %v5204, %v5234
      %v5243 = vadd.f32 %v5205, %v5234
      %v5244 = vadd.f32 %v5206, %v5234
      %v5245 = vadd.f32 %v5207, %v5234
      %v5246 = vadd.f32 %v5208, %v5234
      %v5247 = vadd.f32 %v5209, %v5234
      %v5248 = vadd.f32 %v5210, %v5234
      %v5249 = vadd.f32 %v5211, %v5234
      %v5250 = vadd.f32 %v5212, %v5234
      %v5251 = vadd.f32 %v5213, %v5234
      %v5252 = vadd.f32 %v5214, %v5234
      %v5253 = vadd.f32 %v5215, %v5234
      %v5254 = vadd.f32 %v5216, %v5234
      %v5255 = vadd.f32 %v5217, %v5234
      %v5256 = vadd.f32 %v5218, %v5234
      %v5257 = vadd.f32 %v5219, %v5234
      %v5258 = vadd.f32 %v5220, %v5234
      %v5259 = vadd.f32 %v5221, %v5234
      %v5260 = vadd.f32 %v5222, %v5234
      %v5261 = vadd.f32 %v5223, %v5234
      %v5262 = vadd.f32 %v5224, %v5234
      %v5263 = vadd.f32 %v5225, %v5234
      %v5264 = vadd.f32 %v5226, %v5234
      %v5265 = vadd.f32 %v5227, %v5234
      %v5266 = vadd.f32 %v5228, %v5234
      %v5267 = vadd.f32 %v5229, %v5234
      %v5268 = vpack.c.bf16 %v5237, %v5236
      %v5269 = vpack.c.bf16 %v5239, %v5238
      %v5270 = vpack.c.bf16 %v5241, %v5240
      %v5271 = vpack.c.bf16 %v5243, %v5242
      %v5272 = vpack.c.bf16 %v5245, %v5244
      %v5273 = vpack.c.bf16 %v5247, %v5246
      %v5274 = vpack.c.bf16 %v5249, %v5248
      %v5275 = vpack.c.bf16 %v5251, %v5250
      %v5276 = vpack.c.bf16 %v5253, %v5252
      %v5277 = vpack.c.bf16 %v5255, %v5254
      %v5278 = vpack.c.bf16 %v5257, %v5256
      %v5279 = vpack.c.bf16 %v5259, %v5258
      %v5280 = vpack.c.bf16 %v5261, %v5260
      %v5281 = vpack.c.bf16 %v5263, %v5262
      %v5282 = vpack.c.bf16 %v5265, %v5264
      %v5283 = vpack.c.bf16 %v5267, %v5266
      %v5284 = vld [vmem:[%s18] sm:$0x3]
      %v5285 = vld [vmem:[%s20] sm:$0x1]
      %v5287 = vlaneseq
      %v5288 = vshrl.u32 %v5287, 7
      %v5289 = vsub.s32 0, %v5288
      %v5290 = vrot.slane %v5285, %v5289
      %v5293 = vsel %vm827, %v5268, 0
      %v5296 = vsel %vm827, %v5269, 0
      %v5299 = vsel %vm827, %v5270, 0
      %v5302 = vsel %vm827, %v5271, 0
      %v5305 = vsel %vm827, %v5272, 0
      %v5308 = vsel %vm827, %v5273, 0
      %v5311 = vsel %vm827, %v5274, 0
      %v5314 = vsel %vm827, %v5275, 0
      %v5317 = vsel %vm827, %v5276, 0
      %v5320 = vsel %vm827, %v5277, 0
      %v5323 = vsel %vm827, %v5278, 0
      %v5326 = vsel %vm827, %v5279, 0
      %v5329 = vsel %vm827, %v5280, 0
      %v5332 = vsel %vm827, %v5281, 0
      %v5335 = vsel %vm827, %v5282, 0
      %v5338 = vsel %vm827, %v5283, 0
      %v5341 = vsel %vm1393, %v5284, 0
      %5343 = vmatprep.subr.bf16.mxu0 0
      %5344 = vmatpush1.bf16.msra.mxu0 %v5341
      %5345 = vmatprep.subr.bf16.mxu0 0
      %5346 = vmatpush1.bf16.msra.mxu0 0
      %5347 = vmatprep.subr.bf16.mxu0 0
      %5348 = vmatpush1.bf16.msra.mxu0 0
      %5349 = vmatprep.subr.bf16.mxu0 0
      %5350 = vmatpush1.bf16.msra.mxu0 0
      %5351 = vmatprep.subr.bf16.mxu0 0
      %5352 = vmatpush1.bf16.msra.mxu0 0
      %5353 = vmatprep.subr.bf16.mxu0 0
      %5354 = vmatpush1.bf16.msra.mxu0 0
      %5355 = vmatprep.subr.bf16.mxu0 0
      %5356 = vmatpush1.bf16.msra.mxu0 0
      %5357 = vmatprep.subr.bf16.mxu0 0
      %5358 = vmatpush1.bf16.msra.mxu0 0
      %5359 = vmatprep.subr.bf16.mxu0 0
      %5360 = vmatpush1.bf16.msra.mxu0 0
      %5361 = vmatprep.subr.bf16.mxu0 0
      %5362 = vmatpush1.bf16.msra.mxu0 0
      %5363 = vmatprep.subr.bf16.mxu0 0
      %5364 = vmatpush1.bf16.msra.mxu0 0
      %5365 = vmatprep.subr.bf16.mxu0 0
      %5366 = vmatpush1.bf16.msra.mxu0 0
      %5367 = vmatprep.subr.bf16.mxu0 0
      %5368 = vmatpush1.bf16.msra.mxu0 0
      %5369 = vmatprep.subr.bf16.mxu0 0
      %5370 = vmatpush1.bf16.msra.mxu0 0
      %5371 = vmatprep.subr.bf16.mxu0 0
      %5372 = vmatpush1.bf16.msra.mxu0 0
      %5373 = vmatprep.subr.bf16.mxu0 0
      %5374 = vmatpush1.bf16.msra.mxu0 0
      %5375 = vmatprep.mubr.bf16.mxu0 0
      %5376 = vmatmul.mubr.bf16.gmra.mrb[0].mxu0 %v5293
      %v5377 = vpop.f32.mrb[0].mxu0
      %v5378 = vadd.f32 %v5290, %v5377
      %v5379 = vpop.f32.mrb[0].mxu0
      %v5380 = vpop.f32.mrb[0].mxu0
      %v5381 = vadd.f32 %v5290, %v5380
      %v5382 = vpop.f32.mrb[0].mxu0
      %5383 = vmatprep.mubr.bf16.mxu0 0
      %5384 = vmatmul.mubr.bf16.gmra.mrb[0].mxu0 %v5296
      %v5385 = vpop.f32.mrb[0].mxu0
      %v5386 = vadd.f32 %v5290, %v5385
      %v5387 = vpop.f32.mrb[0].mxu0
      %v5388 = vpop.f32.mrb[0].mxu0
      %v5389 = vadd.f32 %v5290, %v5388
      %v5390 = vpop.f32.mrb[0].mxu0
      %5391 = vmatprep.mubr.bf16.mxu0 0
      %5392 = vmatmul.mubr.bf16.gmra.mrb[0].mxu0 %v5299
      %v5393 = vpop.f32.mrb[0].mxu0
      %v5394 = vadd.f32 %v5290, %v5393
      %v5395 = vpop.f32.mrb[0].mxu0
      %v5396 = vpop.f32.mrb[0].mxu0
      %v5397 = vadd.f32 %v5290, %v5396
      %v5398 = vpop.f32.mrb[0].mxu0
      %5399 = vmatprep.mubr.bf16.mxu0 0
      %5400 = vmatmul.mubr.bf16.gmra.mrb[0].mxu0 %v5302
      %v5401 = vpop.f32.mrb[0].mxu0
      %v5402 = vadd.f32 %v5290, %v5401
      %v5403 = vpop.f32.mrb[0].mxu0
      %v5404 = vpop.f32.mrb[0].mxu0
      %v5405 = vadd.f32 %v5290, %v5404
      %v5406 = vpop.f32.mrb[0].mxu0
      %5407 = vmatprep.mubr.bf16.mxu0 0
      %5408 = vmatmul.mubr.bf16.gmra.mrb[0].mxu0 %v5305
      %v5409 = vpop.f32.mrb[0].mxu0
      %v5410 = vadd.f32 %v5290, %v5409
      %v5411 = vpop.f32.mrb[0].mxu0
      %v5412 = vpop.f32.mrb[0].mxu0
      %v5413 = vadd.f32 %v5290, %v5412
      %v5414 = vpop.f32.mrb[0].mxu0
      %5415 = vmatprep.mubr.bf16.mxu0 0
      %5416 = vmatmul.mubr.bf16.gmra.mrb[0].mxu0 %v5308
      %v5417 = vpop.f32.mrb[0].mxu0
      %v5418 = vadd.f32 %v5290, %v5417
      %v5419 = vpop.f32.mrb[0].mxu0
      %v5420 = vpop.f32.mrb[0].mxu0
      %v5421 = vadd.f32 %v5290, %v5420
      %v5422 = vpop.f32.mrb[0].mxu0
      %5423 = vmatprep.mubr.bf16.mxu0 0
      %5424 = vmatmul.mubr.bf16.gmra.mrb[0].mxu0 %v5311
      %v5425 = vpop.f32.mrb[0].mxu0
      %v5426 = vadd.f32 %v5290, %v5425
      %v5427 = vpop.f32.mrb[0].mxu0
      %v5428 = vpop.f32.mrb[0].mxu0
      %v5429 = vadd.f32 %v5290, %v5428
      %v5430 = vpop.f32.mrb[0].mxu0
      %5431 = vmatprep.mubr.bf16.mxu0 0
      %5432 = vmatmul.mubr.bf16.gmra.mrb[0].mxu0 %v5314
      %v5433 = vpop.f32.mrb[0].mxu0
      %v5434 = vadd.f32 %v5290, %v5433
      %v5435 = vpop.f32.mrb[0].mxu0
      %v5436 = vpop.f32.mrb[0].mxu0
      %v5437 = vadd.f32 %v5290, %v5436
      %v5438 = vpop.f32.mrb[0].mxu0
      %5439 = vmatprep.mubr.bf16.mxu0 0
      %5440 = vmatmul.mubr.bf16.gmra.mrb[0].mxu0 %v5317
      %v5441 = vpop.f32.mrb[0].mxu0
      %v5442 = vadd.f32 %v5290, %v5441
      %v5443 = vpop.f32.mrb[0].mxu0
      %v5444 = vpop.f32.mrb[0].mxu0
      %v5445 = vadd.f32 %v5290, %v5444
      %v5446 = vpop.f32.mrb[0].mxu0
      %5447 = vmatprep.mubr.bf16.mxu0 0
      %5448 = vmatmul.mubr.bf16.gmra.mrb[0].mxu0 %v5320
      %v5449 = vpop.f32.mrb[0].mxu0
      %v5450 = vadd.f32 %v5290, %v5449
      %v5451 = vpop.f32.mrb[0].mxu0
      %v5452 = vpop.f32.mrb[0].mxu0
      %v5453 = vadd.f32 %v5290, %v5452
      %v5454 = vpop.f32.mrb[0].mxu0
      %5455 = vmatprep.mubr.bf16.mxu0 0
      %5456 = vmatmul.mubr.bf16.gmra.mrb[0].mxu0 %v5323
      %v5457 = vpop.f32.mrb[0].mxu0
      %v5458 = vadd.f32 %v5290, %v5457
      %v5459 = vpop.f32.mrb[0].mxu0
      %v5460 = vpop.f32.mrb[0].mxu0
      %v5461 = vadd.f32 %v5290, %v5460
      %v5462 = vpop.f32.mrb[0].mxu0
      %5463 = vmatprep.mubr.bf16.mxu0 0
      %5464 = vmatmul.mubr.bf16.gmra.mrb[0].mxu0 %v5326
      %v5465 = vpop.f32.mrb[0].mxu0
      %v5466 = vadd.f32 %v5290, %v5465
      %v5467 = vpop.f32.mrb[0].mxu0
      %v5468 = vpop.f32.mrb[0].mxu0
      %v5469 = vadd.f32 %v5290, %v5468
      %v5470 = vpop.f32.mrb[0].mxu0
      %5471 = vmatprep.mubr.bf16.mxu0 0
      %5472 = vmatmul.mubr.bf16.gmra.mrb[0].mxu0 %v5329
      %v5473 = vpop.f32.mrb[0].mxu0
      %v5474 = vadd.f32 %v5290, %v5473
      %v5475 = vpop.f32.mrb[0].mxu0
      %v5476 = vpop.f32.mrb[0].mxu0
      %v5477 = vadd.f32 %v5290, %v5476
      %v5478 = vpop.f32.mrb[0].mxu0
      %5479 = vmatprep.mubr.bf16.mxu0 0
      %5480 = vmatmul.mubr.bf16.gmra.mrb[0].mxu0 %v5332
      %v5481 = vpop.f32.mrb[0].mxu0
      %v5482 = vadd.f32 %v5290, %v5481
      %v5483 = vpop.f32.mrb[0].mxu0
      %v5484 = vpop.f32.mrb[0].mxu0
      %v5485 = vadd.f32 %v5290, %v5484
      %v5486 = vpop.f32.mrb[0].mxu0
      %5487 = vmatprep.mubr.bf16.mxu0 0
      %5488 = vmatmul.mubr.bf16.gmra.mrb[0].mxu0 %v5335
      %v5489 = vpop.f32.mrb[0].mxu0
      %v5490 = vadd.f32 %v5290, %v5489
      %v5491 = vpop.f32.mrb[0].mxu0
      %v5492 = vpop.f32.mrb[0].mxu0
      %v5493 = vadd.f32 %v5290, %v5492
      %v5494 = vpop.f32.mrb[0].mxu0
      %5495 = vmatprep.mubr.bf16.mxu0 0
      %5496 = vmatmul.mubr.bf16.gmra.mrb[0].mxu0 %v5338
      %v5497 = vpop.f32.mrb[0].mxu0
      %v5498 = vadd.f32 %v5290, %v5497
      %v5499 = vpop.f32.mrb[0].mxu0
      %v5500 = vpop.f32.mrb[0].mxu0
      %v5501 = vadd.f32 %v5290, %v5500
      %v5502 = vpop.f32.mrb[0].mxu0
      %5503 = vdwg.mxu0
      %v5504 = vld [vmem:[%s19] sm:$0x3]
      %v5505 = vld [vmem:[%s21] sm:$0x1]
      %v5507 = vlaneseq
      %v5508 = vshrl.u32 %v5507, 7
      %v5509 = vsub.s32 0, %v5508
      %v5510 = vrot.slane %v5505, %v5509
      %v5513 = vsel %vm1393, %v5504, 0
      %5515 = vmatprep.subr.bf16.mxu0 0
      %5516 = vmatpush1.bf16.msra.mxu0 %v5513
      %5517 = vmatprep.subr.bf16.mxu0 0
      %5518 = vmatpush1.bf16.msra.mxu0 0
      %5519 = vmatprep.subr.bf16.mxu0 0
      %5520 = vmatpush1.bf16.msra.mxu0 0
      %5521 = vmatprep.subr.bf16.mxu0 0
      %5522 = vmatpush1.bf16.msra.mxu0 0
      %5523 = vmatprep.subr.bf16.mxu0 0
      %5524 = vmatpush1.bf16.msra.mxu0 0
      %5525 = vmatprep.subr.bf16.mxu0 0
      %5526 = vmatpush1.bf16.msra.mxu0 0
      %5527 = vmatprep.subr.bf16.mxu0 0
      %5528 = vmatpush1.bf16.msra.mxu0 0
      %5529 = vmatprep.subr.bf16.mxu0 0
      %5530 = vmatpush1.bf16.msra.mxu0 0
      %5531 = vmatprep.subr.bf16.mxu0 0
      %5532 = vmatpush1.bf16.msra.mxu0 0
      %5533 = vmatprep.subr.bf16.mxu0 0
      %5534 = vmatpush1.bf16.msra.mxu0 0
      %5535 = vmatprep.subr.bf16.mxu0 0
      %5536 = vmatpush1.bf16.msra.mxu0 0
      %5537 = vmatprep.subr.bf16.mxu0 0
      %5538 = vmatpush1.bf16.msra.mxu0 0
      %5539 = vmatprep.subr.bf16.mxu0 0
      %5540 = vmatpush1.bf16.msra.mxu0 0
      %5541 = vmatprep.subr.bf16.mxu0 0
      %5542 = vmatpush1.bf16.msra.mxu0 0
      %5543 = vmatprep.subr.bf16.mxu0 0
      %5544 = vmatpush1.bf16.msra.mxu0 0
      %5545 = vmatprep.subr.bf16.mxu0 0
      %5546 = vmatpush1.bf16.msra.mxu0 0
      %5547 = vmatprep.mubr.bf16.mxu0 0
      %5548 = vmatmul.mubr.bf16.gmra.mrb[0].mxu0 %v5293
      %v5549 = vpop.f32.mrb[0].mxu0
      %v5550 = vadd.f32 %v5510, %v5549
      %v5551 = vpop.f32.mrb[0].mxu0
      %v5552 = vpop.f32.mrb[0].mxu0
      %v5553 = vadd.f32 %v5510, %v5552
      %v5554 = vpop.f32.mrb[0].mxu0
      %5555 = vmatprep.mubr.bf16.mxu0 0
      %5556 = vmatmul.mubr.bf16.gmra.mrb[0].mxu0 %v5296
      %v5557 = vpop.f32.mrb[0].mxu0
      %v5558 = vadd.f32 %v5510, %v5557
      %v5559 = vpop.f32.mrb[0].mxu0
      %v5560 = vpop.f32.mrb[0].mxu0
      %v5561 = vadd.f32 %v5510, %v5560
      %v5562 = vpop.f32.mrb[0].mxu0
      %5563 = vmatprep.mubr.bf16.mxu0 0
      %5564 = vmatmul.mubr.bf16.gmra.mrb[0].mxu0 %v5299
      %v5565 = vpop.f32.mrb[0].mxu0
      %v5566 = vadd.f32 %v5510, %v5565
      %v5567 = vpop.f32.mrb[0].mxu0
      %v5568 = vpop.f32.mrb[0].mxu0
      %v5569 = vadd.f32 %v5510, %v5568
      %v5570 = vpop.f32.mrb[0].mxu0
      %5571 = vmatprep.mubr.bf16.mxu0 0
      %5572 = vmatmul.mubr.bf16.gmra.mrb[0].mxu0 %v5302
      %v5573 = vpop.f32.mrb[0].mxu0
      %v5574 = vadd.f32 %v5510, %v5573
      %v5575 = vpop.f32.mrb[0].mxu0
      %v5576 = vpop.f32.mrb[0].mxu0
      %v5577 = vadd.f32 %v5510, %v5576
      %v5578 = vpop.f32.mrb[0].mxu0
      %5579 = vmatprep.mubr.bf16.mxu0 0
      %5580 = vmatmul.mubr.bf16.gmra.mrb[0].mxu0 %v5305
      %v5581 = vpop.f32.mrb[0].mxu0
      %v5582 = vadd.f32 %v5510, %v5581
      %v5583 = vpop.f32.mrb[0].mxu0
      %v5584 = vpop.f32.mrb[0].mxu0
      %v5585 = vadd.f32 %v5510, %v5584
      %v5586 = vpop.f32.mrb[0].mxu0
      %5587 = vmatprep.mubr.bf16.mxu0 0
      %5588 = vmatmul.mubr.bf16.gmra.mrb[0].mxu0 %v5308
      %v5589 = vpop.f32.mrb[0].mxu0
      %v5590 = vadd.f32 %v5510, %v5589
      %v5591 = vpop.f32.mrb[0].mxu0
      %v5592 = vpop.f32.mrb[0].mxu0
      %v5593 = vadd.f32 %v5510, %v5592
      %v5594 = vpop.f32.mrb[0].mxu0
      %5595 = vmatprep.mubr.bf16.mxu0 0
      %5596 = vmatmul.mubr.bf16.gmra.mrb[0].mxu0 %v5311
      %v5597 = vpop.f32.mrb[0].mxu0
      %v5598 = vadd.f32 %v5510, %v5597
      %v5599 = vpop.f32.mrb[0].mxu0
      %v5600 = vpop.f32.mrb[0].mxu0
      %v5601 = vadd.f32 %v5510, %v5600
      %v5602 = vpop.f32.mrb[0].mxu0
      %5603 = vmatprep.mubr.bf16.mxu0 0
      %5604 = vmatmul.mubr.bf16.gmra.mrb[0].mxu0 %v5314
      %v5605 = vpop.f32.mrb[0].mxu0
      %v5606 = vadd.f32 %v5510, %v5605
      %v5607 = vpop.f32.mrb[0].mxu0
      %v5608 = vpop.f32.mrb[0].mxu0
      %v5609 = vadd.f32 %v5510, %v5608
      %v5610 = vpop.f32.mrb[0].mxu0
      %5611 = vmatprep.mubr.bf16.mxu0 0
      %5612 = vmatmul.mubr.bf16.gmra.mrb[0].mxu0 %v5317
      %v5613 = vpop.f32.mrb[0].mxu0
      %v5614 = vadd.f32 %v5510, %v5613
      %v5615 = vpop.f32.mrb[0].mxu0
      %v5616 = vpop.f32.mrb[0].mxu0
      %v5617 = vadd.f32 %v5510, %v5616
      %v5618 = vpop.f32.mrb[0].mxu0
      %5619 = vmatprep.mubr.bf16.mxu0 0
      %5620 = vmatmul.mubr.bf16.gmra.mrb[0].mxu0 %v5320
      %v5621 = vpop.f32.mrb[0].mxu0
      %v5622 = vadd.f32 %v5510, %v5621
      %v5623 = vpop.f32.mrb[0].mxu0
      %v5624 = vpop.f32.mrb[0].mxu0
      %v5625 = vadd.f32 %v5510, %v5624
      %v5626 = vpop.f32.mrb[0].mxu0
      %5627 = vmatprep.mubr.bf16.mxu0 0
      %5628 = vmatmul.mubr.bf16.gmra.mrb[0].mxu0 %v5323
      %v5629 = vpop.f32.mrb[0].mxu0
      %v5630 = vadd.f32 %v5510, %v5629
      %v5631 = vpop.f32.mrb[0].mxu0
      %v5632 = vpop.f32.mrb[0].mxu0
      %v5633 = vadd.f32 %v5510, %v5632
      %v5634 = vpop.f32.mrb[0].mxu0
      %5635 = vmatprep.mubr.bf16.mxu0 0
      %5636 = vmatmul.mubr.bf16.gmra.mrb[0].mxu0 %v5326
      %v5637 = vpop.f32.mrb[0].mxu0
      %v5638 = vadd.f32 %v5510, %v5637
      %v5639 = vpop.f32.mrb[0].mxu0
      %v5640 = vpop.f32.mrb[0].mxu0
      %v5641 = vadd.f32 %v5510, %v5640
      %v5642 = vpop.f32.mrb[0].mxu0
      %5643 = vmatprep.mubr.bf16.mxu0 0
      %5644 = vmatmul.mubr.bf16.gmra.mrb[0].mxu0 %v5329
      %v5645 = vpop.f32.mrb[0].mxu0
      %v5646 = vadd.f32 %v5510, %v5645
      %v5647 = vpop.f32.mrb[0].mxu0
      %v5648 = vpop.f32.mrb[0].mxu0
      %v5649 = vadd.f32 %v5510, %v5648
      %v5650 = vpop.f32.mrb[0].mxu0
      %5651 = vmatprep.mubr.bf16.mxu0 0
      %5652 = vmatmul.mubr.bf16.gmra.mrb[0].mxu0 %v5332
      %v5653 = vpop.f32.mrb[0].mxu0
      %v5654 = vadd.f32 %v5510, %v5653
      %v5655 = vpop.f32.mrb[0].mxu0
      %v5656 = vpop.f32.mrb[0].mxu0
      %v5657 = vadd.f32 %v5510, %v5656
      %v5658 = vpop.f32.mrb[0].mxu0
      %5659 = vmatprep.mubr.bf16.mxu0 0
      %5660 = vmatmul.mubr.bf16.gmra.mrb[0].mxu0 %v5335
      %v5661 = vpop.f32.mrb[0].mxu0
      %v5662 = vadd.f32 %v5510, %v5661
      %v5663 = vpop.f32.mrb[0].mxu0
      %v5664 = vpop.f32.mrb[0].mxu0
      %v5665 = vadd.f32 %v5510, %v5664
      %v5666 = vpop.f32.mrb[0].mxu0
      %5667 = vmatprep.mubr.bf16.mxu0 0
      %5668 = vmatmul.mubr.bf16.gmra.mrb[0].mxu0 %v5338
      %v5669 = vpop.f32.mrb[0].mxu0
      %v5670 = vadd.f32 %v5510, %v5669
      %v5671 = vpop.f32.mrb[0].mxu0
      %v5672 = vpop.f32.mrb[0].mxu0
      %v5673 = vadd.f32 %v5510, %v5672
      %v5674 = vpop.f32.mrb[0].mxu0
      %5675 = vdwg.mxu0
      %v5676 = vmul.f32 %v5550, 0.70710677
      %v5677 = vmul.f32 %v5553, 0.70710677
      %v5678 = vmul.f32 %v5558, 0.70710677
      %v5679 = vmul.f32 %v5561, 0.70710677
      %v5680 = vmul.f32 %v5566, 0.70710677
      %v5681 = vmul.f32 %v5569, 0.70710677
      %v5682 = vmul.f32 %v5574, 0.70710677
      %v5683 = vmul.f32 %v5577, 0.70710677
      %v5684 = vmul.f32 %v5582, 0.70710677
      %v5685 = vmul.f32 %v5585, 0.70710677
      %v5686 = vmul.f32 %v5590, 0.70710677
      %v5687 = vmul.f32 %v5593, 0.70710677
      %v5688 = vmul.f32 %v5598, 0.70710677
      %v5689 = vmul.f32 %v5601, 0.70710677
      %v5690 = vmul.f32 %v5606, 0.70710677
      %v5691 = vmul.f32 %v5609, 0.70710677
      %v5692 = vmul.f32 %v5614, 0.70710677
      %v5693 = vmul.f32 %v5617, 0.70710677
      %v5694 = vmul.f32 %v5622, 0.70710677
      %v5695 = vmul.f32 %v5625, 0.70710677
      %v5696 = vmul.f32 %v5630, 0.70710677
      %v5697 = vmul.f32 %v5633, 0.70710677
      %v5698 = vmul.f32 %v5638, 0.70710677
      %v5699 = vmul.f32 %v5641, 0.70710677
      %v5700 = vmul.f32 %v5646, 0.70710677
      %v5701 = vmul.f32 %v5649, 0.70710677
      %v5702 = vmul.f32 %v5654, 0.70710677
      %v5703 = vmul.f32 %v5657, 0.70710677
      %v5704 = vmul.f32 %v5662, 0.70710677
      %v5705 = vmul.f32 %v5665, 0.70710677
      %v5706 = vmul.f32 %v5670, 0.70710677
      %v5707 = vmul.f32 %v5673, 0.70710677
      %vm5708 = vcmp.lt.f32.partialorder %v5676, 0.0
      %vm5709 = vcmp.lt.f32.partialorder %v5677, 0.0
      %vm5710 = vcmp.lt.f32.partialorder %v5678, 0.0
      %vm5711 = vcmp.lt.f32.partialorder %v5679, 0.0
      %vm5712 = vcmp.lt.f32.partialorder %v5680, 0.0
      %vm5713 = vcmp.lt.f32.partialorder %v5681, 0.0
      %vm5714 = vcmp.lt.f32.partialorder %v5682, 0.0
      %vm5715 = vcmp.lt.f32.partialorder %v5683, 0.0
      %vm5716 = vcmp.lt.f32.partialorder %v5684, 0.0
      %vm5717 = vcmp.lt.f32.partialorder %v5685, 0.0
      %vm5718 = vcmp.lt.f32.partialorder %v5686, 0.0
      %vm5719 = vcmp.lt.f32.partialorder %v5687, 0.0
      %vm5720 = vcmp.lt.f32.partialorder %v5688, 0.0
      %vm5721 = vcmp.lt.f32.partialorder %v5689, 0.0
      %vm5722 = vcmp.lt.f32.partialorder %v5690, 0.0
      %vm5723 = vcmp.lt.f32.partialorder %v5691, 0.0
      %vm5724 = vcmp.lt.f32.partialorder %v5692, 0.0
      %vm5725 = vcmp.lt.f32.partialorder %v5693, 0.0
      %vm5726 = vcmp.lt.f32.partialorder %v5694, 0.0
      %vm5727 = vcmp.lt.f32.partialorder %v5695, 0.0
      %vm5728 = vcmp.lt.f32.partialorder %v5696, 0.0
      %vm5729 = vcmp.lt.f32.partialorder %v5697, 0.0
      %vm5730 = vcmp.lt.f32.partialorder %v5698, 0.0
      %vm5731 = vcmp.lt.f32.partialorder %v5699, 0.0
      %vm5732 = vcmp.lt.f32.partialorder %v5700, 0.0
      %vm5733 = vcmp.lt.f32.partialorder %v5701, 0.0
      %vm5734 = vcmp.lt.f32.partialorder %v5702, 0.0
      %vm5735 = vcmp.lt.f32.partialorder %v5703, 0.0
      %vm5736 = vcmp.lt.f32.partialorder %v5704, 0.0
      %vm5737 = vcmp.lt.f32.partialorder %v5705, 0.0
      %vm5738 = vcmp.lt.f32.partialorder %v5706, 0.0
      %vm5739 = vcmp.lt.f32.partialorder %v5707, 0.0
      %v5740 = vsel %vm5708, -1.0, 1.0
      %v5741 = vsel %vm5709, -1.0, 1.0
      %v5742 = vsel %vm5710, -1.0, 1.0
      %v5743 = vsel %vm5711, -1.0, 1.0
      %v5744 = vsel %vm5712, -1.0, 1.0
      %v5745 = vsel %vm5713, -1.0, 1.0
      %v5746 = vsel %vm5714, -1.0, 1.0
      %v5747 = vsel %vm5715, -1.0, 1.0
      %v5748 = vsel %vm5716, -1.0, 1.0
      %v5749 = vsel %vm5717, -1.0, 1.0
      %v5750 = vsel %vm5718, -1.0, 1.0
      %v5751 = vsel %vm5719, -1.0, 1.0
      %v5752 = vsel %vm5720, -1.0, 1.0
      %v5753 = vsel %vm5721, -1.0, 1.0
      %v5754 = vsel %vm5722, -1.0, 1.0
      %v5755 = vsel %vm5723, -1.0, 1.0
      %v5756 = vsel %vm5724, -1.0, 1.0
      %v5757 = vsel %vm5725, -1.0, 1.0
      %v5758 = vsel %vm5726, -1.0, 1.0
      %v5759 = vsel %vm5727, -1.0, 1.0
      %v5760 = vsel %vm5728, -1.0, 1.0
      %v5761 = vsel %vm5729, -1.0, 1.0
      %v5762 = vsel %vm5730, -1.0, 1.0
      %v5763 = vsel %vm5731, -1.0, 1.0
      %v5764 = vsel %vm5732, -1.0, 1.0
      %v5765 = vsel %vm5733, -1.0, 1.0
      %v5766 = vsel %vm5734, -1.0, 1.0
      %v5767 = vsel %vm5735, -1.0, 1.0
      %v5768 = vsel %vm5736, -1.0, 1.0
      %v5769 = vsel %vm5737, -1.0, 1.0
      %v5770 = vsel %vm5738, -1.0, 1.0
      %v5771 = vsel %vm5739, -1.0, 1.0
      %v5772 = vand.u32 2147483647, %v5676
      %v5773 = vand.u32 2147483647, %v5677
      %v5774 = vand.u32 2147483647, %v5678
      %v5775 = vand.u32 2147483647, %v5679
      %v5776 = vand.u32 2147483647, %v5680
      %v5777 = vand.u32 2147483647, %v5681
      %v5778 = vand.u32 2147483647, %v5682
      %v5779 = vand.u32 2147483647, %v5683
      %v5780 = vand.u32 2147483647, %v5684
      %v5781 = vand.u32 2147483647, %v5685
      %v5782 = vand.u32 2147483647, %v5686
      %v5783 = vand.u32 2147483647, %v5687
      %v5784 = vand.u32 2147483647, %v5688
      %v5785 = vand.u32 2147483647, %v5689
      %v5786 = vand.u32 2147483647, %v5690
      %v5787 = vand.u32 2147483647, %v5691
      %v5788 = vand.u32 2147483647, %v5692
      %v5789 = vand.u32 2147483647, %v5693
      %v5790 = vand.u32 2147483647, %v5694
      %v5791 = vand.u32 2147483647, %v5695
      %v5792 = vand.u32 2147483647, %v5696
      %v5793 = vand.u32 2147483647, %v5697
      %v5794 = vand.u32 2147483647, %v5698
      %v5795 = vand.u32 2147483647, %v5699
      %v5796 = vand.u32 2147483647, %v5700
      %v5797 = vand.u32 2147483647, %v5701
      %v5798 = vand.u32 2147483647, %v5702
      %v5799 = vand.u32 2147483647, %v5703
      %v5800 = vand.u32 2147483647, %v5704
      %v5801 = vand.u32 2147483647, %v5705
      %v5802 = vand.u32 2147483647, %v5706
      %v5803 = vand.u32 2147483647, %v5707
      %v5804 = vmul.f32 %v5772, 0.3275911
      %v5805 = vmul.f32 %v5773, 0.3275911
      %v5806 = vmul.f32 %v5774, 0.3275911
      %v5807 = vmul.f32 %v5775, 0.3275911
      %v5808 = vmul.f32 %v5776, 0.3275911
      %v5809 = vmul.f32 %v5777, 0.3275911
      %v5810 = vmul.f32 %v5778, 0.3275911
      %v5811 = vmul.f32 %v5779, 0.3275911
      %v5812 = vmul.f32 %v5780, 0.3275911
      %v5813 = vmul.f32 %v5781, 0.3275911
      %v5814 = vmul.f32 %v5782, 0.3275911
      %v5815 = vmul.f32 %v5783, 0.3275911
      %v5816 = vmul.f32 %v5784, 0.3275911
      %v5817 = vmul.f32 %v5785, 0.3275911
      %v5818 = vmul.f32 %v5786, 0.3275911
      %v5819 = vmul.f32 %v5787, 0.3275911
      %v5820 = vmul.f32 %v5788, 0.3275911
      %v5821 = vmul.f32 %v5789, 0.3275911
      %v5822 = vmul.f32 %v5790, 0.3275911
      %v5823 = vmul.f32 %v5791, 0.3275911
      %v5824 = vmul.f32 %v5792, 0.3275911
      %v5825 = vmul.f32 %v5793, 0.3275911
      %v5826 = vmul.f32 %v5794, 0.3275911
      %v5827 = vmul.f32 %v5795, 0.3275911
      %v5828 = vmul.f32 %v5796, 0.3275911
      %v5829 = vmul.f32 %v5797, 0.3275911
      %v5830 = vmul.f32 %v5798, 0.3275911
      %v5831 = vmul.f32 %v5799, 0.3275911
      %v5832 = vmul.f32 %v5800, 0.3275911
      %v5833 = vmul.f32 %v5801, 0.3275911
      %v5834 = vmul.f32 %v5802, 0.3275911
      %v5835 = vmul.f32 %v5803, 0.3275911
      %v5836 = vadd.f32 %v5804, 1.0
      %v5837 = vadd.f32 %v5805, 1.0
      %v5838 = vadd.f32 %v5806, 1.0
      %v5839 = vadd.f32 %v5807, 1.0
      %v5840 = vadd.f32 %v5808, 1.0
      %v5841 = vadd.f32 %v5809, 1.0
      %v5842 = vadd.f32 %v5810, 1.0
      %v5843 = vadd.f32 %v5811, 1.0
      %v5844 = vadd.f32 %v5812, 1.0
      %v5845 = vadd.f32 %v5813, 1.0
      %v5846 = vadd.f32 %v5814, 1.0
      %v5847 = vadd.f32 %v5815, 1.0
      %v5848 = vadd.f32 %v5816, 1.0
      %v5849 = vadd.f32 %v5817, 1.0
      %v5850 = vadd.f32 %v5818, 1.0
      %v5851 = vadd.f32 %v5819, 1.0
      %v5852 = vadd.f32 %v5820, 1.0
      %v5853 = vadd.f32 %v5821, 1.0
      %v5854 = vadd.f32 %v5822, 1.0
      %v5855 = vadd.f32 %v5823, 1.0
      %v5856 = vadd.f32 %v5824, 1.0
      %v5857 = vadd.f32 %v5825, 1.0
      %v5858 = vadd.f32 %v5826, 1.0
      %v5859 = vadd.f32 %v5827, 1.0
      %v5860 = vadd.f32 %v5828, 1.0
      %v5861 = vadd.f32 %v5829, 1.0
      %v5862 = vadd.f32 %v5830, 1.0
      %v5863 = vadd.f32 %v5831, 1.0
      %v5864 = vadd.f32 %v5832, 1.0
      %v5865 = vadd.f32 %v5833, 1.0
      %v5866 = vadd.f32 %v5834, 1.0
      %v5867 = vadd.f32 %v5835, 1.0
      %v5868 = vrcp.pop %v5836
      %v5869 = vrcp.pop %v5837
      %v5870 = vrcp.pop %v5838
      %v5871 = vrcp.pop %v5839
      %v5872 = vrcp.pop %v5840
      %v5873 = vrcp.pop %v5841
      %v5874 = vrcp.pop %v5842
      %v5875 = vrcp.pop %v5843
      %v5876 = vrcp.pop %v5844
      %v5877 = vrcp.pop %v5845
      %v5878 = vrcp.pop %v5846
      %v5879 = vrcp.pop %v5847
      %v5880 = vrcp.pop %v5848
      %v5881 = vrcp.pop %v5849
      %v5882 = vrcp.pop %v5850
      %v5883 = vrcp.pop %v5851
      %v5884 = vrcp.pop %v5852
      %v5885 = vrcp.pop %v5853
      %v5886 = vrcp.pop %v5854
      %v5887 = vrcp.pop %v5855
      %v5888 = vrcp.pop %v5856
      %v5889 = vrcp.pop %v5857
      %v5890 = vrcp.pop %v5858
      %v5891 = vrcp.pop %v5859
      %v5892 = vrcp.pop %v5860
      %v5893 = vrcp.pop %v5861
      %v5894 = vrcp.pop %v5862
      %v5895 = vrcp.pop %v5863
      %v5896 = vrcp.pop %v5864
      %v5897 = vrcp.pop %v5865
      %v5898 = vrcp.pop %v5866
      %v5899 = vrcp.pop %v5867
      %v5900 = vmul.f32 %v5868, 1.0614054
      %v5901 = vmul.f32 %v5869, 1.0614054
      %v5902 = vmul.f32 %v5870, 1.0614054
      %v5903 = vmul.f32 %v5871, 1.0614054
      %v5904 = vmul.f32 %v5872, 1.0614054
      %v5905 = vmul.f32 %v5873, 1.0614054
      %v5906 = vmul.f32 %v5874, 1.0614054
      %v5907 = vmul.f32 %v5875, 1.0614054
      %v5908 = vmul.f32 %v5876, 1.0614054
      %v5909 = vmul.f32 %v5877, 1.0614054
      %v5910 = vmul.f32 %v5878, 1.0614054
      %v5911 = vmul.f32 %v5879, 1.0614054
      %v5912 = vmul.f32 %v5880, 1.0614054
      %v5913 = vmul.f32 %v5881, 1.0614054
      %v5914 = vmul.f32 %v5882, 1.0614054
      %v5915 = vmul.f32 %v5883, 1.0614054
      %v5916 = vmul.f32 %v5884, 1.0614054
      %v5917 = vmul.f32 %v5885, 1.0614054
      %v5918 = vmul.f32 %v5886, 1.0614054
      %v5919 = vmul.f32 %v5887, 1.0614054
      %v5920 = vmul.f32 %v5888, 1.0614054
      %v5921 = vmul.f32 %v5889, 1.0614054
      %v5922 = vmul.f32 %v5890, 1.0614054
      %v5923 = vmul.f32 %v5891, 1.0614054
      %v5924 = vmul.f32 %v5892, 1.0614054
      %v5925 = vmul.f32 %v5893, 1.0614054
      %v5926 = vmul.f32 %v5894, 1.0614054
      %v5927 = vmul.f32 %v5895, 1.0614054
      %v5928 = vmul.f32 %v5896, 1.0614054
      %v5929 = vmul.f32 %v5897, 1.0614054
      %v5930 = vmul.f32 %v5898, 1.0614054
      %v5931 = vmul.f32 %v5899, 1.0614054
      %v5932 = vadd.f32 %v5900, -1.4531521
      %v5933 = vadd.f32 %v5901, -1.4531521
      %v5934 = vadd.f32 %v5902, -1.4531521
      %v5935 = vadd.f32 %v5903, -1.4531521
      %v5936 = vadd.f32 %v5904, -1.4531521
      %v5937 = vadd.f32 %v5905, -1.4531521
      %v5938 = vadd.f32 %v5906, -1.4531521
      %v5939 = vadd.f32 %v5907, -1.4531521
      %v5940 = vadd.f32 %v5908, -1.4531521
      %v5941 = vadd.f32 %v5909, -1.4531521
      %v5942 = vadd.f32 %v5910, -1.4531521
      %v5943 = vadd.f32 %v5911, -1.4531521
      %v5944 = vadd.f32 %v5912, -1.4531521
      %v5945 = vadd.f32 %v5913, -1.4531521
      %v5946 = vadd.f32 %v5914, -1.4531521
      %v5947 = vadd.f32 %v5915, -1.4531521
      %v5948 = vadd.f32 %v5916, -1.4531521
      %v5949 = vadd.f32 %v5917, -1.4531521
      %v5950 = vadd.f32 %v5918, -1.4531521
      %v5951 = vadd.f32 %v5919, -1.4531521
      %v5952 = vadd.f32 %v5920, -1.4531521
      %v5953 = vadd.f32 %v5921, -1.4531521
      %v5954 = vadd.f32 %v5922, -1.4531521
      %v5955 = vadd.f32 %v5923, -1.4531521
      %v5956 = vadd.f32 %v5924, -1.4531521
      %v5957 = vadd.f32 %v5925, -1.4531521
      %v5958 = vadd.f32 %v5926, -1.4531521
      %v5959 = vadd.f32 %v5927, -1.4531521
      %v5960 = vadd.f32 %v5928, -1.4531521
      %v5961 = vadd.f32 %v5929, -1.4531521
      %v5962 = vadd.f32 %v5930, -1.4531521
      %v5963 = vadd.f32 %v5931, -1.4531521
      %v5964 = vmul.f32 %v5868, %v5932
      %v5965 = vmul.f32 %v5869, %v5933
      %v5966 = vmul.f32 %v5870, %v5934
      %v5967 = vmul.f32 %v5871, %v5935
      %v5968 = vmul.f32 %v5872, %v5936
      %v5969 = vmul.f32 %v5873, %v5937
      %v5970 = vmul.f32 %v5874, %v5938
      %v5971 = vmul.f32 %v5875, %v5939
      %v5972 = vmul.f32 %v5876, %v5940
      %v5973 = vmul.f32 %v5877, %v5941
      %v5974 = vmul.f32 %v5878, %v5942
      %v5975 = vmul.f32 %v5879, %v5943
      %v5976 = vmul.f32 %v5880, %v5944
      %v5977 = vmul.f32 %v5881, %v5945
      %v5978 = vmul.f32 %v5882, %v5946
      %v5979 = vmul.f32 %v5883, %v5947
      %v5980 = vmul.f32 %v5884, %v5948
      %v5981 = vmul.f32 %v5885, %v5949
      %v5982 = vmul.f32 %v5886, %v5950
      %v5983 = vmul.f32 %v5887, %v5951
      %v5984 = vmul.f32 %v5888, %v5952
      %v5985 = vmul.f32 %v5889, %v5953
      %v5986 = vmul.f32 %v5890, %v5954
      %v5987 = vmul.f32 %v5891, %v5955
      %v5988 = vmul.f32 %v5892, %v5956
      %v5989 = vmul.f32 %v5893, %v5957
      %v5990 = vmul.f32 %v5894, %v5958
      %v5991 = vmul.f32 %v5895, %v5959
      %v5992 = vmul.f32 %v5896, %v5960
      %v5993 = vmul.f32 %v5897, %v5961
      %v5994 = vmul.f32 %v5898, %v5962
      %v5995 = vmul.f32 %v5899, %v5963
      %v5996 = vadd.f32 %v5964, 1.4214138
      %v5997 = vadd.f32 %v5965, 1.4214138
      %v5998 = vadd.f32 %v5966, 1.4214138
      %v5999 = vadd.f32 %v5967, 1.4214138
      %v6000 = vadd.f32 %v5968, 1.4214138
      %v6001 = vadd.f32 %v5969, 1.4214138
      %v6002 = vadd.f32 %v5970, 1.4214138
      %v6003 = vadd.f32 %v5971, 1.4214138
      %v6004 = vadd.f32 %v5972, 1.4214138
      %v6005 = vadd.f32 %v5973, 1.4214138
      %v6006 = vadd.f32 %v5974, 1.4214138
      %v6007 = vadd.f32 %v5975, 1.4214138
      %v6008 = vadd.f32 %v5976, 1.4214138
      %v6009 = vadd.f32 %v5977, 1.4214138
      %v6010 = vadd.f32 %v5978, 1.4214138
      %v6011 = vadd.f32 %v5979, 1.4214138
      %v6012 = vadd.f32 %v5980, 1.4214138
      %v6013 = vadd.f32 %v5981, 1.4214138
      %v6014 = vadd.f32 %v5982, 1.4214138
      %v6015 = vadd.f32 %v5983, 1.4214138
      %v6016 = vadd.f32 %v5984, 1.4214138
      %v6017 = vadd.f32 %v5985, 1.4214138
      %v6018 = vadd.f32 %v5986, 1.4214138
      %v6019 = vadd.f32 %v5987, 1.4214138
      %v6020 = vadd.f32 %v5988, 1.4214138
      %v6021 = vadd.f32 %v5989, 1.4214138
      %v6022 = vadd.f32 %v5990, 1.4214138
      %v6023 = vadd.f32 %v5991, 1.4214138
      %v6024 = vadd.f32 %v5992, 1.4214138
      %v6025 = vadd.f32 %v5993, 1.4214138
      %v6026 = vadd.f32 %v5994, 1.4214138
      %v6027 = vadd.f32 %v5995, 1.4214138
      %v6028 = vmul.f32 %v5868, %v5996
      %v6029 = vmul.f32 %v5869, %v5997
      %v6030 = vmul.f32 %v5870, %v5998
      %v6031 = vmul.f32 %v5871, %v5999
      %v6032 = vmul.f32 %v5872, %v6000
      %v6033 = vmul.f32 %v5873, %v6001
      %v6034 = vmul.f32 %v5874, %v6002
      %v6035 = vmul.f32 %v5875, %v6003
      %v6036 = vmul.f32 %v5876, %v6004
      %v6037 = vmul.f32 %v5877, %v6005
      %v6038 = vmul.f32 %v5878, %v6006
      %v6039 = vmul.f32 %v5879, %v6007
      %v6040 = vmul.f32 %v5880, %v6008
      %v6041 = vmul.f32 %v5881, %v6009
      %v6042 = vmul.f32 %v5882, %v6010
      %v6043 = vmul.f32 %v5883, %v6011
      %v6044 = vmul.f32 %v5884, %v6012
      %v6045 = vmul.f32 %v5885, %v6013
      %v6046 = vmul.f32 %v5886, %v6014
      %v6047 = vmul.f32 %v5887, %v6015
      %v6048 = vmul.f32 %v5888, %v6016
      %v6049 = vmul.f32 %v5889, %v6017
      %v6050 = vmul.f32 %v5890, %v6018
      %v6051 = vmul.f32 %v5891, %v6019
      %v6052 = vmul.f32 %v5892, %v6020
      %v6053 = vmul.f32 %v5893, %v6021
      %v6054 = vmul.f32 %v5894, %v6022
      %v6055 = vmul.f32 %v5895, %v6023
      %v6056 = vmul.f32 %v5896, %v6024
      %v6057 = vmul.f32 %v5897, %v6025
      %v6058 = vmul.f32 %v5898, %v6026
      %v6059 = vmul.f32 %v5899, %v6027
      %v6060 = vadd.f32 %v6028, -0.28449672
      %v6061 = vadd.f32 %v6029, -0.28449672
      %v6062 = vadd.f32 %v6030, -0.28449672
      %v6063 = vadd.f32 %v6031, -0.28449672
      %v6064 = vadd.f32 %v6032, -0.28449672
      %v6065 = vadd.f32 %v6033, -0.28449672
      %v6066 = vadd.f32 %v6034, -0.28449672
      %v6067 = vadd.f32 %v6035, -0.28449672
      %v6068 = vadd.f32 %v6036, -0.28449672
      %v6069 = vadd.f32 %v6037, -0.28449672
      %v6070 = vadd.f32 %v6038, -0.28449672
      %v6071 = vadd.f32 %v6039, -0.28449672
      %v6072 = vadd.f32 %v6040, -0.28449672
      %v6073 = vadd.f32 %v6041, -0.28449672
      %v6074 = vadd.f32 %v6042, -0.28449672
      %v6075 = vadd.f32 %v6043, -0.28449672
      %v6076 = vadd.f32 %v6044, -0.28449672
      %v6077 = vadd.f32 %v6045, -0.28449672
      %v6078 = vadd.f32 %v6046, -0.28449672
      %v6079 = vadd.f32 %v6047, -0.28449672
      %v6080 = vadd.f32 %v6048, -0.28449672
      %v6081 = vadd.f32 %v6049, -0.28449672
      %v6082 = vadd.f32 %v6050, -0.28449672
      %v6083 = vadd.f32 %v6051, -0.28449672
      %v6084 = vadd.f32 %v6052, -0.28449672
      %v6085 = vadd.f32 %v6053, -0.28449672
      %v6086 = vadd.f32 %v6054, -0.28449672
      %v6087 = vadd.f32 %v6055, -0.28449672
      %v6088 = vadd.f32 %v6056, -0.28449672
      %v6089 = vadd.f32 %v6057, -0.28449672
      %v6090 = vadd.f32 %v6058, -0.28449672
      %v6091 = vadd.f32 %v6059, -0.28449672
      %v6092 = vmul.f32 %v5868, %v6060
      %v6093 = vmul.f32 %v5869, %v6061
      %v6094 = vmul.f32 %v5870, %v6062
      %v6095 = vmul.f32 %v5871, %v6063
      %v6096 = vmul.f32 %v5872, %v6064
      %v6097 = vmul.f32 %v5873, %v6065
      %v6098 = vmul.f32 %v5874, %v6066
      %v6099 = vmul.f32 %v5875, %v6067
      %v6100 = vmul.f32 %v5876, %v6068
      %v6101 = vmul.f32 %v5877, %v6069
      %v6102 = vmul.f32 %v5878, %v6070
      %v6103 = vmul.f32 %v5879, %v6071
      %v6104 = vmul.f32 %v5880, %v6072
      %v6105 = vmul.f32 %v5881, %v6073
      %v6106 = vmul.f32 %v5882, %v6074
      %v6107 = vmul.f32 %v5883, %v6075
      %v6108 = vmul.f32 %v5884, %v6076
      %v6109 = vmul.f32 %v5885, %v6077
      %v6110 = vmul.f32 %v5886, %v6078
      %v6111 = vmul.f32 %v5887, %v6079
      %v6112 = vmul.f32 %v5888, %v6080
      %v6113 = vmul.f32 %v5889, %v6081
      %v6114 = vmul.f32 %v5890, %v6082
      %v6115 = vmul.f32 %v5891, %v6083
      %v6116 = vmul.f32 %v5892, %v6084
      %v6117 = vmul.f32 %v5893, %v6085
      %v6118 = vmul.f32 %v5894, %v6086
      %v6119 = vmul.f32 %v5895, %v6087
      %v6120 = vmul.f32 %v5896, %v6088
      %v6121 = vmul.f32 %v5897, %v6089
      %v6122 = vmul.f32 %v5898, %v6090
      %v6123 = vmul.f32 %v5899, %v6091
      %v6124 = vadd.f32 %v6092, 0.2548296
      %v6125 = vadd.f32 %v6093, 0.2548296
      %v6126 = vadd.f32 %v6094, 0.2548296
      %v6127 = vadd.f32 %v6095, 0.2548296
      %v6128 = vadd.f32 %v6096, 0.2548296
      %v6129 = vadd.f32 %v6097, 0.2548296
      %v6130 = vadd.f32 %v6098, 0.2548296
      %v6131 = vadd.f32 %v6099, 0.2548296
      %v6132 = vadd.f32 %v6100, 0.2548296
      %v6133 = vadd.f32 %v6101, 0.2548296
      %v6134 = vadd.f32 %v6102, 0.2548296
      %v6135 = vadd.f32 %v6103, 0.2548296
      %v6136 = vadd.f32 %v6104, 0.2548296
      %v6137 = vadd.f32 %v6105, 0.2548296
      %v6138 = vadd.f32 %v6106, 0.2548296
      %v6139 = vadd.f32 %v6107, 0.2548296
      %v6140 = vadd.f32 %v6108, 0.2548296
      %v6141 = vadd.f32 %v6109, 0.2548296
      %v6142 = vadd.f32 %v6110, 0.2548296
      %v6143 = vadd.f32 %v6111, 0.2548296
      %v6144 = vadd.f32 %v6112, 0.2548296
      %v6145 = vadd.f32 %v6113, 0.2548296
      %v6146 = vadd.f32 %v6114, 0.2548296
      %v6147 = vadd.f32 %v6115, 0.2548296
      %v6148 = vadd.f32 %v6116, 0.2548296
      %v6149 = vadd.f32 %v6117, 0.2548296
      %v6150 = vadd.f32 %v6118, 0.2548296
      %v6151 = vadd.f32 %v6119, 0.2548296
      %v6152 = vadd.f32 %v6120, 0.2548296
      %v6153 = vadd.f32 %v6121, 0.2548296
      %v6154 = vadd.f32 %v6122, 0.2548296
      %v6155 = vadd.f32 %v6123, 0.2548296
      %v6156 = vmul.f32 %v5868, %v6124
      %v6157 = vmul.f32 %v5869, %v6125
      %v6158 = vmul.f32 %v5870, %v6126
      %v6159 = vmul.f32 %v5871, %v6127
      %v6160 = vmul.f32 %v5872, %v6128
      %v6161 = vmul.f32 %v5873, %v6129
      %v6162 = vmul.f32 %v5874, %v6130
      %v6163 = vmul.f32 %v5875, %v6131
      %v6164 = vmul.f32 %v5876, %v6132
      %v6165 = vmul.f32 %v5877, %v6133
      %v6166 = vmul.f32 %v5878, %v6134
      %v6167 = vmul.f32 %v5879, %v6135
      %v6168 = vmul.f32 %v5880, %v6136
      %v6169 = vmul.f32 %v5881, %v6137
      %v6170 = vmul.f32 %v5882, %v6138
      %v6171 = vmul.f32 %v5883, %v6139
      %v6172 = vmul.f32 %v5884, %v6140
      %v6173 = vmul.f32 %v5885, %v6141
      %v6174 = vmul.f32 %v5886, %v6142
      %v6175 = vmul.f32 %v5887, %v6143
      %v6176 = vmul.f32 %v5888, %v6144
      %v6177 = vmul.f32 %v5889, %v6145
      %v6178 = vmul.f32 %v5890, %v6146
      %v6179 = vmul.f32 %v5891, %v6147
      %v6180 = vmul.f32 %v5892, %v6148
      %v6181 = vmul.f32 %v5893, %v6149
      %v6182 = vmul.f32 %v5894, %v6150
      %v6183 = vmul.f32 %v5895, %v6151
      %v6184 = vmul.f32 %v5896, %v6152
      %v6185 = vmul.f32 %v5897, %v6153
      %v6186 = vmul.f32 %v5898, %v6154
      %v6187 = vmul.f32 %v5899, %v6155
      %v6188 = vsub.f32 0.0, %v5772
      %v6189 = vsub.f32 0.0, %v5773
      %v6190 = vsub.f32 0.0, %v5774
      %v6191 = vsub.f32 0.0, %v5775
      %v6192 = vsub.f32 0.0, %v5776
      %v6193 = vsub.f32 0.0, %v5777
      %v6194 = vsub.f32 0.0, %v5778
      %v6195 = vsub.f32 0.0, %v5779
      %v6196 = vsub.f32 0.0, %v5780
      %v6197 = vsub.f32 0.0, %v5781
      %v6198 = vsub.f32 0.0, %v5782
      %v6199 = vsub.f32 0.0, %v5783
      %v6200 = vsub.f32 0.0, %v5784
      %v6201 = vsub.f32 0.0, %v5785
      %v6202 = vsub.f32 0.0, %v5786
      %v6203 = vsub.f32 0.0, %v5787
      %v6204 = vsub.f32 0.0, %v5788
      %v6205 = vsub.f32 0.0, %v5789
      %v6206 = vsub.f32 0.0, %v5790
      %v6207 = vsub.f32 0.0, %v5791
      %v6208 = vsub.f32 0.0, %v5792
      %v6209 = vsub.f32 0.0, %v5793
      %v6210 = vsub.f32 0.0, %v5794
      %v6211 = vsub.f32 0.0, %v5795
      %v6212 = vsub.f32 0.0, %v5796
      %v6213 = vsub.f32 0.0, %v5797
      %v6214 = vsub.f32 0.0, %v5798
      %v6215 = vsub.f32 0.0, %v5799
      %v6216 = vsub.f32 0.0, %v5800
      %v6217 = vsub.f32 0.0, %v5801
      %v6218 = vsub.f32 0.0, %v5802
      %v6219 = vsub.f32 0.0, %v5803
      %v6220 = vmul.f32 %v6188, %v5772
      %v6221 = vmul.f32 %v6189, %v5773
      %v6222 = vmul.f32 %v6190, %v5774
      %v6223 = vmul.f32 %v6191, %v5775
      %v6224 = vmul.f32 %v6192, %v5776
      %v6225 = vmul.f32 %v6193, %v5777
      %v6226 = vmul.f32 %v6194, %v5778
      %v6227 = vmul.f32 %v6195, %v5779
      %v6228 = vmul.f32 %v6196, %v5780
      %v6229 = vmul.f32 %v6197, %v5781
      %v6230 = vmul.f32 %v6198, %v5782
      %v6231 = vmul.f32 %v6199, %v5783
      %v6232 = vmul.f32 %v6200, %v5784
      %v6233 = vmul.f32 %v6201, %v5785
      %v6234 = vmul.f32 %v6202, %v5786
      %v6235 = vmul.f32 %v6203, %v5787
      %v6236 = vmul.f32 %v6204, %v5788
      %v6237 = vmul.f32 %v6205, %v5789
      %v6238 = vmul.f32 %v6206, %v5790
      %v6239 = vmul.f32 %v6207, %v5791
      %v6240 = vmul.f32 %v6208, %v5792
      %v6241 = vmul.f32 %v6209, %v5793
      %v6242 = vmul.f32 %v6210, %v5794
      %v6243 = vmul.f32 %v6211, %v5795
      %v6244 = vmul.f32 %v6212, %v5796
      %v6245 = vmul.f32 %v6213, %v5797
      %v6246 = vmul.f32 %v6214, %v5798
      %v6247 = vmul.f32 %v6215, %v5799
      %v6248 = vmul.f32 %v6216, %v5800
      %v6249 = vmul.f32 %v6217, %v5801
      %v6250 = vmul.f32 %v6218, %v5802
      %v6251 = vmul.f32 %v6219, %v5803
      %v6252 = vmul.f32 %v6220, 1.442695
      %v6253 = vpow.pop %v6252
      %v6254 = vmul.f32 %v6221, 1.442695
      %v6255 = vpow.pop %v6254
      %v6256 = vmul.f32 %v6222, 1.442695
      %v6257 = vpow.pop %v6256
      %v6258 = vmul.f32 %v6223, 1.442695
      %v6259 = vpow.pop %v6258
      %v6260 = vmul.f32 %v6224, 1.442695
      %v6261 = vpow.pop %v6260
      %v6262 = vmul.f32 %v6225, 1.442695
      %v6263 = vpow.pop %v6262
      %v6264 = vmul.f32 %v6226, 1.442695
      %v6265 = vpow.pop %v6264
      %v6266 = vmul.f32 %v6227, 1.442695
      %v6267 = vpow.pop %v6266
      %v6268 = vmul.f32 %v6228, 1.442695
      %v6269 = vpow.pop %v6268
      %v6270 = vmul.f32 %v6229, 1.442695
      %v6271 = vpow.pop %v6270
      %v6272 = vmul.f32 %v6230, 1.442695
      %v6273 = vpow.pop %v6272
      %v6274 = vmul.f32 %v6231, 1.442695
      %v6275 = vpow.pop %v6274
      %v6276 = vmul.f32 %v6232, 1.442695
      %v6277 = vpow.pop %v6276
      %v6278 = vmul.f32 %v6233, 1.442695
      %v6279 = vpow.pop %v6278
      %v6280 = vmul.f32 %v6234, 1.442695
      %v6281 = vpow.pop %v6280
      %v6282 = vmul.f32 %v6235, 1.442695
      %v6283 = vpow.pop %v6282
      %v6284 = vmul.f32 %v6236, 1.442695
      %v6285 = vpow.pop %v6284
      %v6286 = vmul.f32 %v6237, 1.442695
      %v6287 = vpow.pop %v6286
      %v6288 = vmul.f32 %v6238, 1.442695
      %v6289 = vpow.pop %v6288
      %v6290 = vmul.f32 %v6239, 1.442695
      %v6291 = vpow.pop %v6290
      %v6292 = vmul.f32 %v6240, 1.442695
      %v6293 = vpow.pop %v6292
      %v6294 = vmul.f32 %v6241, 1.442695
      %v6295 = vpow.pop %v6294
      %v6296 = vmul.f32 %v6242, 1.442695
      %v6297 = vpow.pop %v6296
      %v6298 = vmul.f32 %v6243, 1.442695
      %v6299 = vpow.pop %v6298
      %v6300 = vmul.f32 %v6244, 1.442695
      %v6301 = vpow.pop %v6300
      %v6302 = vmul.f32 %v6245, 1.442695
      %v6303 = vpow.pop %v6302
      %v6304 = vmul.f32 %v6246, 1.442695
      %v6305 = vpow.pop %v6304
      %v6306 = vmul.f32 %v6247, 1.442695
      %v6307 = vpow.pop %v6306
      %v6308 = vmul.f32 %v6248, 1.442695
      %v6309 = vpow.pop %v6308
      %v6310 = vmul.f32 %v6249, 1.442695
      %v6311 = vpow.pop %v6310
      %v6312 = vmul.f32 %v6250, 1.442695
      %v6313 = vpow.pop %v6312
      %v6314 = vmul.f32 %v6251, 1.442695
      %v6315 = vpow.pop %v6314
      %v6316 = vmul.f32 %v6156, %v6253
      %v6317 = vmul.f32 %v6157, %v6255
      %v6318 = vmul.f32 %v6158, %v6257
      %v6319 = vmul.f32 %v6159, %v6259
      %v6320 = vmul.f32 %v6160, %v6261
      %v6321 = vmul.f32 %v6161, %v6263
      %v6322 = vmul.f32 %v6162, %v6265
      %v6323 = vmul.f32 %v6163, %v6267
      %v6324 = vmul.f32 %v6164, %v6269
      %v6325 = vmul.f32 %v6165, %v6271
      %v6326 = vmul.f32 %v6166, %v6273
      %v6327 = vmul.f32 %v6167, %v6275
      %v6328 = vmul.f32 %v6168, %v6277
      %v6329 = vmul.f32 %v6169, %v6279
      %v6330 = vmul.f32 %v6170, %v6281
      %v6331 = vmul.f32 %v6171, %v6283
      %v6332 = vmul.f32 %v6172, %v6285
      %v6333 = vmul.f32 %v6173, %v6287
      %v6334 = vmul.f32 %v6174, %v6289
      %v6335 = vmul.f32 %v6175, %v6291
      %v6336 = vmul.f32 %v6176, %v6293
      %v6337 = vmul.f32 %v6177, %v6295
      %v6338 = vmul.f32 %v6178, %v6297
      %v6339 = vmul.f32 %v6179, %v6299
      %v6340 = vmul.f32 %v6180, %v6301
      %v6341 = vmul.f32 %v6181, %v6303
      %v6342 = vmul.f32 %v6182, %v6305
      %v6343 = vmul.f32 %v6183, %v6307
      %v6344 = vmul.f32 %v6184, %v6309
      %v6345 = vmul.f32 %v6185, %v6311
      %v6346 = vmul.f32 %v6186, %v6313
      %v6347 = vmul.f32 %v6187, %v6315
      %v6348 = vsub.f32 1.0, %v6316
      %v6349 = vsub.f32 1.0, %v6317
      %v6350 = vsub.f32 1.0, %v6318
      %v6351 = vsub.f32 1.0, %v6319
      %v6352 = vsub.f32 1.0, %v6320
      %v6353 = vsub.f32 1.0, %v6321
      %v6354 = vsub.f32 1.0, %v6322
      %v6355 = vsub.f32 1.0, %v6323
      %v6356 = vsub.f32 1.0, %v6324
      %v6357 = vsub.f32 1.0, %v6325
      %v6358 = vsub.f32 1.0, %v6326
      %v6359 = vsub.f32 1.0, %v6327
      %v6360 = vsub.f32 1.0, %v6328
      %v6361 = vsub.f32 1.0, %v6329
      %v6362 = vsub.f32 1.0, %v6330
      %v6363 = vsub.f32 1.0, %v6331
      %v6364 = vsub.f32 1.0, %v6332
      %v6365 = vsub.f32 1.0, %v6333
      %v6366 = vsub.f32 1.0, %v6334
      %v6367 = vsub.f32 1.0, %v6335
      %v6368 = vsub.f32 1.0, %v6336
      %v6369 = vsub.f32 1.0, %v6337
      %v6370 = vsub.f32 1.0, %v6338
      %v6371 = vsub.f32 1.0, %v6339
      %v6372 = vsub.f32 1.0, %v6340
      %v6373 = vsub.f32 1.0, %v6341
      %v6374 = vsub.f32 1.0, %v6342
      %v6375 = vsub.f32 1.0, %v6343
      %v6376 = vsub.f32 1.0, %v6344
      %v6377 = vsub.f32 1.0, %v6345
      %v6378 = vsub.f32 1.0, %v6346
      %v6379 = vsub.f32 1.0, %v6347
      %v6380 = vmul.f32 %v5740, %v6348
      %v6381 = vmul.f32 %v5741, %v6349
      %v6382 = vmul.f32 %v5742, %v6350
      %v6383 = vmul.f32 %v5743, %v6351
      %v6384 = vmul.f32 %v5744, %v6352
      %v6385 = vmul.f32 %v5745, %v6353
      %v6386 = vmul.f32 %v5746, %v6354
      %v6387 = vmul.f32 %v5747, %v6355
      %v6388 = vmul.f32 %v5748, %v6356
      %v6389 = vmul.f32 %v5749, %v6357
      %v6390 = vmul.f32 %v5750, %v6358
      %v6391 = vmul.f32 %v5751, %v6359
      %v6392 = vmul.f32 %v5752, %v6360
      %v6393 = vmul.f32 %v5753, %v6361
      %v6394 = vmul.f32 %v5754, %v6362
      %v6395 = vmul.f32 %v5755, %v6363
      %v6396 = vmul.f32 %v5756, %v6364
      %v6397 = vmul.f32 %v5757, %v6365
      %v6398 = vmul.f32 %v5758, %v6366
      %v6399 = vmul.f32 %v5759, %v6367
      %v6400 = vmul.f32 %v5760, %v6368
      %v6401 = vmul.f32 %v5761, %v6369
      %v6402 = vmul.f32 %v5762, %v6370
      %v6403 = vmul.f32 %v5763, %v6371
      %v6404 = vmul.f32 %v5764, %v6372
      %v6405 = vmul.f32 %v5765, %v6373
      %v6406 = vmul.f32 %v5766, %v6374
      %v6407 = vmul.f32 %v5767, %v6375
      %v6408 = vmul.f32 %v5768, %v6376
      %v6409 = vmul.f32 %v5769, %v6377
      %v6410 = vmul.f32 %v5770, %v6378
      %v6411 = vmul.f32 %v5771, %v6379
      %v6412 = vadd.f32 %v6380, 1.0
      %v6413 = vadd.f32 %v6381, 1.0
      %v6414 = vadd.f32 %v6382, 1.0
      %v6415 = vadd.f32 %v6383, 1.0
      %v6416 = vadd.f32 %v6384, 1.0
      %v6417 = vadd.f32 %v6385, 1.0
      %v6418 = vadd.f32 %v6386, 1.0
      %v6419 = vadd.f32 %v6387, 1.0
      %v6420 = vadd.f32 %v6388, 1.0
      %v6421 = vadd.f32 %v6389, 1.0
      %v6422 = vadd.f32 %v6390, 1.0
      %v6423 = vadd.f32 %v6391, 1.0
      %v6424 = vadd.f32 %v6392, 1.0
      %v6425 = vadd.f32 %v6393, 1.0
      %v6426 = vadd.f32 %v6394, 1.0
      %v6427 = vadd.f32 %v6395, 1.0
      %v6428 = vadd.f32 %v6396, 1.0
      %v6429 = vadd.f32 %v6397, 1.0
      %v6430 = vadd.f32 %v6398, 1.0
      %v6431 = vadd.f32 %v6399, 1.0
      %v6432 = vadd.f32 %v6400, 1.0
      %v6433 = vadd.f32 %v6401, 1.0
      %v6434 = vadd.f32 %v6402, 1.0
      %v6435 = vadd.f32 %v6403, 1.0
      %v6436 = vadd.f32 %v6404, 1.0
      %v6437 = vadd.f32 %v6405, 1.0
      %v6438 = vadd.f32 %v6406, 1.0
      %v6439 = vadd.f32 %v6407, 1.0
      %v6440 = vadd.f32 %v6408, 1.0
      %v6441 = vadd.f32 %v6409, 1.0
      %v6442 = vadd.f32 %v6410, 1.0
      %v6443 = vadd.f32 %v6411, 1.0
      %v6444 = vmul.f32 %v6412, 0.5
      %v6445 = vmul.f32 %v6413, 0.5
      %v6446 = vmul.f32 %v6414, 0.5
      %v6447 = vmul.f32 %v6415, 0.5
      %v6448 = vmul.f32 %v6416, 0.5
      %v6449 = vmul.f32 %v6417, 0.5
      %v6450 = vmul.f32 %v6418, 0.5
      %v6451 = vmul.f32 %v6419, 0.5
      %v6452 = vmul.f32 %v6420, 0.5
      %v6453 = vmul.f32 %v6421, 0.5
      %v6454 = vmul.f32 %v6422, 0.5
      %v6455 = vmul.f32 %v6423, 0.5
      %v6456 = vmul.f32 %v6424, 0.5
      %v6457 = vmul.f32 %v6425, 0.5
      %v6458 = vmul.f32 %v6426, 0.5
      %v6459 = vmul.f32 %v6427, 0.5
      %v6460 = vmul.f32 %v6428, 0.5
      %v6461 = vmul.f32 %v6429, 0.5
      %v6462 = vmul.f32 %v6430, 0.5
      %v6463 = vmul.f32 %v6431, 0.5
      %v6464 = vmul.f32 %v6432, 0.5
      %v6465 = vmul.f32 %v6433, 0.5
      %v6466 = vmul.f32 %v6434, 0.5
      %v6467 = vmul.f32 %v6435, 0.5
      %v6468 = vmul.f32 %v6436, 0.5
      %v6469 = vmul.f32 %v6437, 0.5
      %v6470 = vmul.f32 %v6438, 0.5
      %v6471 = vmul.f32 %v6439, 0.5
      %v6472 = vmul.f32 %v6440, 0.5
      %v6473 = vmul.f32 %v6441, 0.5
      %v6474 = vmul.f32 %v6442, 0.5
      %v6475 = vmul.f32 %v6443, 0.5
      %v6476 = vmul.f32 %v5378, %v6444
      %v6477 = vmul.f32 %v5381, %v6445
      %v6478 = vmul.f32 %v5386, %v6446
      %v6479 = vmul.f32 %v5389, %v6447
      %v6480 = vmul.f32 %v5394, %v6448
      %v6481 = vmul.f32 %v5397, %v6449
      %v6482 = vmul.f32 %v5402, %v6450
      %v6483 = vmul.f32 %v5405, %v6451
      %v6484 = vmul.f32 %v5410, %v6452
      %v6485 = vmul.f32 %v5413, %v6453
      %v6486 = vmul.f32 %v5418, %v6454
      %v6487 = vmul.f32 %v5421, %v6455
      %v6488 = vmul.f32 %v5426, %v6456
      %v6489 = vmul.f32 %v5429, %v6457
      %v6490 = vmul.f32 %v5434, %v6458
      %v6491 = vmul.f32 %v5437, %v6459
      %v6492 = vmul.f32 %v5442, %v6460
      %v6493 = vmul.f32 %v5445, %v6461
      %v6494 = vmul.f32 %v5450, %v6462
      %v6495 = vmul.f32 %v5453, %v6463
      %v6496 = vmul.f32 %v5458, %v6464
      %v6497 = vmul.f32 %v5461, %v6465
      %v6498 = vmul.f32 %v5466, %v6466
      %v6499 = vmul.f32 %v5469, %v6467
      %v6500 = vmul.f32 %v5474, %v6468
      %v6501 = vmul.f32 %v5477, %v6469
      %v6502 = vmul.f32 %v5482, %v6470
      %v6503 = vmul.f32 %v5485, %v6471
      %v6504 = vmul.f32 %v5490, %v6472
      %v6505 = vmul.f32 %v5493, %v6473
      %v6506 = vmul.f32 %v5498, %v6474
      %v6507 = vmul.f32 %v5501, %v6475
      %v6508 = vpack.c.bf16 %v6477, %v6476
      %v6509 = vpack.c.bf16 %v6479, %v6478
      %v6510 = vpack.c.bf16 %v6481, %v6480
      %v6511 = vpack.c.bf16 %v6483, %v6482
      %v6512 = vpack.c.bf16 %v6485, %v6484
      %v6513 = vpack.c.bf16 %v6487, %v6486
      %v6514 = vpack.c.bf16 %v6489, %v6488
      %v6515 = vpack.c.bf16 %v6491, %v6490
      %v6516 = vpack.c.bf16 %v6493, %v6492
      %v6517 = vpack.c.bf16 %v6495, %v6494
      %v6518 = vpack.c.bf16 %v6497, %v6496
      %v6519 = vpack.c.bf16 %v6499, %v6498
      %v6520 = vpack.c.bf16 %v6501, %v6500
      %v6521 = vpack.c.bf16 %v6503, %v6502
      %v6522 = vpack.c.bf16 %v6505, %v6504
      %v6523 = vpack.c.bf16 %v6507, %v6506
      %v6524 = vld [vmem:[%s22] sm:$0x3]
      %v6525 = vld [vmem:[%s23] sm:$0x1]
      %v6527 = vlaneseq
      %v6528 = vshrl.u32 %v6527, 7
      %v6529 = vsub.s32 0, %v6528
      %v6530 = vrot.slane %v6525, %v6529
      %v6533 = vsel %vm827, %v6508, 0
      %v6536 = vsel %vm827, %v6509, 0
      %v6539 = vsel %vm827, %v6510, 0
      %v6542 = vsel %vm827, %v6511, 0
      %v6545 = vsel %vm827, %v6512, 0
      %v6548 = vsel %vm827, %v6513, 0
      %v6551 = vsel %vm827, %v6514, 0
      %v6554 = vsel %vm827, %v6515, 0
      %v6557 = vsel %vm827, %v6516, 0
      %v6560 = vsel %vm827, %v6517, 0
      %v6563 = vsel %vm827, %v6518, 0
      %v6566 = vsel %vm827, %v6519, 0
      %v6569 = vsel %vm827, %v6520, 0
      %v6572 = vsel %vm827, %v6521, 0
      %v6575 = vsel %vm827, %v6522, 0
      %v6578 = vsel %vm827, %v6523, 0
      %v6581 = vsel %vm1393, %v6524, 0
      %6583 = vmatprep.subr.bf16.mxu0 0
      %6584 = vmatpush1.bf16.msra.mxu0 %v6581
      %6585 = vmatprep.subr.bf16.mxu0 0
      %6586 = vmatpush1.bf16.msra.mxu0 0
      %6587 = vmatprep.subr.bf16.mxu0 0
      %6588 = vmatpush1.bf16.msra.mxu0 0
      %6589 = vmatprep.subr.bf16.mxu0 0
      %6590 = vmatpush1.bf16.msra.mxu0 0
      %6591 = vmatprep.subr.bf16.mxu0 0
      %6592 = vmatpush1.bf16.msra.mxu0 0
      %6593 = vmatprep.subr.bf16.mxu0 0
      %6594 = vmatpush1.bf16.msra.mxu0 0
      %6595 = vmatprep.subr.bf16.mxu0 0
      %6596 = vmatpush1.bf16.msra.mxu0 0
      %6597 = vmatprep.subr.bf16.mxu0 0
      %6598 = vmatpush1.bf16.msra.mxu0 0
      %6599 = vmatprep.subr.bf16.mxu0 0
      %6600 = vmatpush1.bf16.msra.mxu0 0
      %6601 = vmatprep.subr.bf16.mxu0 0
      %6602 = vmatpush1.bf16.msra.mxu0 0
      %6603 = vmatprep.subr.bf16.mxu0 0
      %6604 = vmatpush1.bf16.msra.mxu0 0
      %6605 = vmatprep.subr.bf16.mxu0 0
      %6606 = vmatpush1.bf16.msra.mxu0 0
      %6607 = vmatprep.subr.bf16.mxu0 0
      %6608 = vmatpush1.bf16.msra.mxu0 0
      %6609 = vmatprep.subr.bf16.mxu0 0
      %6610 = vmatpush1.bf16.msra.mxu0 0
      %6611 = vmatprep.subr.bf16.mxu0 0
      %6612 = vmatpush1.bf16.msra.mxu0 0
      %6613 = vmatprep.subr.bf16.mxu0 0
      %6614 = vmatpush1.bf16.msra.mxu0 0
      %6615 = vmatprep.mubr.bf16.mxu0 0
      %6616 = vmatmul.mubr.bf16.gmra.mrb[0].mxu0 %v6533
      %v6617 = vpop.f32.mrb[0].mxu0
      %v6618 = vadd.f32 %v6530, %v6617
      %v6619 = vpop.f32.mrb[0].mxu0
      %v6620 = vpop.f32.mrb[0].mxu0
      %v6621 = vadd.f32 %v6530, %v6620
      %v6622 = vpop.f32.mrb[0].mxu0
      %6623 = vmatprep.mubr.bf16.mxu0 0
      %6624 = vmatmul.mubr.bf16.gmra.mrb[0].mxu0 %v6536
      %v6625 = vpop.f32.mrb[0].mxu0
      %v6626 = vadd.f32 %v6530, %v6625
      %v6627 = vpop.f32.mrb[0].mxu0
      %v6628 = vpop.f32.mrb[0].mxu0
      %v6629 = vadd.f32 %v6530, %v6628
      %v6630 = vpop.f32.mrb[0].mxu0
      %6631 = vmatprep.mubr.bf16.mxu0 0
      %6632 = vmatmul.mubr.bf16.gmra.mrb[0].mxu0 %v6539
      %v6633 = vpop.f32.mrb[0].mxu0
      %v6634 = vadd.f32 %v6530, %v6633
      %v6635 = vpop.f32.mrb[0].mxu0
      %v6636 = vpop.f32.mrb[0].mxu0
      %v6637 = vadd.f32 %v6530, %v6636
      %v6638 = vpop.f32.mrb[0].mxu0
      %6639 = vmatprep.mubr.bf16.mxu0 0
      %6640 = vmatmul.mubr.bf16.gmra.mrb[0].mxu0 %v6542
      %v6641 = vpop.f32.mrb[0].mxu0
      %v6642 = vadd.f32 %v6530, %v6641
      %v6643 = vpop.f32.mrb[0].mxu0
      %v6644 = vpop.f32.mrb[0].mxu0
      %v6645 = vadd.f32 %v6530, %v6644
      %v6646 = vpop.f32.mrb[0].mxu0
      %6647 = vmatprep.mubr.bf16.mxu0 0
      %6648 = vmatmul.mubr.bf16.gmra.mrb[0].mxu0 %v6545
      %v6649 = vpop.f32.mrb[0].mxu0
      %v6650 = vadd.f32 %v6530, %v6649
      %v6651 = vpop.f32.mrb[0].mxu0
      %v6652 = vpop.f32.mrb[0].mxu0
      %v6653 = vadd.f32 %v6530, %v6652
      %v6654 = vpop.f32.mrb[0].mxu0
      %6655 = vmatprep.mubr.bf16.mxu0 0
      %6656 = vmatmul.mubr.bf16.gmra.mrb[0].mxu0 %v6548
      %v6657 = vpop.f32.mrb[0].mxu0
      %v6658 = vadd.f32 %v6530, %v6657
      %v6659 = vpop.f32.mrb[0].mxu0
      %v6660 = vpop.f32.mrb[0].mxu0
      %v6661 = vadd.f32 %v6530, %v6660
      %v6662 = vpop.f32.mrb[0].mxu0
      %6663 = vmatprep.mubr.bf16.mxu0 0
      %6664 = vmatmul.mubr.bf16.gmra.mrb[0].mxu0 %v6551
      %v6665 = vpop.f32.mrb[0].mxu0
      %v6666 = vadd.f32 %v6530, %v6665
      %v6667 = vpop.f32.mrb[0].mxu0
      %v6668 = vpop.f32.mrb[0].mxu0
      %v6669 = vadd.f32 %v6530, %v6668
      %v6670 = vpop.f32.mrb[0].mxu0
      %6671 = vmatprep.mubr.bf16.mxu0 0
      %6672 = vmatmul.mubr.bf16.gmra.mrb[0].mxu0 %v6554
      %v6673 = vpop.f32.mrb[0].mxu0
      %v6674 = vadd.f32 %v6530, %v6673
      %v6675 = vpop.f32.mrb[0].mxu0
      %v6676 = vpop.f32.mrb[0].mxu0
      %v6677 = vadd.f32 %v6530, %v6676
      %v6678 = vpop.f32.mrb[0].mxu0
      %6679 = vmatprep.mubr.bf16.mxu0 0
      %6680 = vmatmul.mubr.bf16.gmra.mrb[0].mxu0 %v6557
      %v6681 = vpop.f32.mrb[0].mxu0
      %v6682 = vadd.f32 %v6530, %v6681
      %v6683 = vpop.f32.mrb[0].mxu0
      %v6684 = vpop.f32.mrb[0].mxu0
      %v6685 = vadd.f32 %v6530, %v6684
      %v6686 = vpop.f32.mrb[0].mxu0
      %6687 = vmatprep.mubr.bf16.mxu0 0
      %6688 = vmatmul.mubr.bf16.gmra.mrb[0].mxu0 %v6560
      %v6689 = vpop.f32.mrb[0].mxu0
      %v6690 = vadd.f32 %v6530, %v6689
      %v6691 = vpop.f32.mrb[0].mxu0
      %v6692 = vpop.f32.mrb[0].mxu0
      %v6693 = vadd.f32 %v6530, %v6692
      %v6694 = vpop.f32.mrb[0].mxu0
      %6695 = vmatprep.mubr.bf16.mxu0 0
      %6696 = vmatmul.mubr.bf16.gmra.mrb[0].mxu0 %v6563
      %v6697 = vpop.f32.mrb[0].mxu0
      %v6698 = vadd.f32 %v6530, %v6697
      %v6699 = vpop.f32.mrb[0].mxu0
      %v6700 = vpop.f32.mrb[0].mxu0
      %v6701 = vadd.f32 %v6530, %v6700
      %v6702 = vpop.f32.mrb[0].mxu0
      %6703 = vmatprep.mubr.bf16.mxu0 0
      %6704 = vmatmul.mubr.bf16.gmra.mrb[0].mxu0 %v6566
      %v6705 = vpop.f32.mrb[0].mxu0
      %v6706 = vadd.f32 %v6530, %v6705
      %v6707 = vpop.f32.mrb[0].mxu0
      %v6708 = vpop.f32.mrb[0].mxu0
      %v6709 = vadd.f32 %v6530, %v6708
      %v6710 = vpop.f32.mrb[0].mxu0
      %6711 = vmatprep.mubr.bf16.mxu0 0
      %6712 = vmatmul.mubr.bf16.gmra.mrb[0].mxu0 %v6569
      %v6713 = vpop.f32.mrb[0].mxu0
      %v6714 = vadd.f32 %v6530, %v6713
      %v6715 = vpop.f32.mrb[0].mxu0
      %v6716 = vpop.f32.mrb[0].mxu0
      %v6717 = vadd.f32 %v6530, %v6716
      %v6718 = vpop.f32.mrb[0].mxu0
      %6719 = vmatprep.mubr.bf16.mxu0 0
      %6720 = vmatmul.mubr.bf16.gmra.mrb[0].mxu0 %v6572
      %v6721 = vpop.f32.mrb[0].mxu0
      %v6722 = vadd.f32 %v6530, %v6721
      %v6723 = vpop.f32.mrb[0].mxu0
      %v6724 = vpop.f32.mrb[0].mxu0
      %v6725 = vadd.f32 %v6530, %v6724
      %v6726 = vpop.f32.mrb[0].mxu0
      %6727 = vmatprep.mubr.bf16.mxu0 0
      %6728 = vmatmul.mubr.bf16.gmra.mrb[0].mxu0 %v6575
      %v6729 = vpop.f32.mrb[0].mxu0
      %v6730 = vadd.f32 %v6530, %v6729
      %v6731 = vpop.f32.mrb[0].mxu0
      %v6732 = vpop.f32.mrb[0].mxu0
      %v6733 = vadd.f32 %v6530, %v6732
      %v6734 = vpop.f32.mrb[0].mxu0
      %6735 = vmatprep.mubr.bf16.mxu0 0
      %6736 = vmatmul.mubr.bf16.gmra.mrb[0].mxu0 %v6578
      %v6737 = vpop.f32.mrb[0].mxu0
      %v6738 = vadd.f32 %v6530, %v6737
      %v6739 = vpop.f32.mrb[0].mxu0
      %v6740 = vpop.f32.mrb[0].mxu0
      %v6741 = vadd.f32 %v6530, %v6740
      %v6742 = vpop.f32.mrb[0].mxu0
      %6743 = vdwg.mxu0
      %v6744 = vld [vmem:[%s25] sm:$0x1]
      %v6746 = vlaneseq
      %v6747 = vshrl.u32 %v6746, 7
      %v6748 = vsub.s32 0, %v6747
      %v6749 = vrot.slane %v6744, %v6748
      %v6751 = vmul.f32 %v6618, %v6749
      %v6752 = vmul.f32 %v6621, %v6749
      %v6753 = vmul.f32 %v6626, %v6749
      %v6754 = vmul.f32 %v6629, %v6749
      %v6755 = vmul.f32 %v6634, %v6749
      %v6756 = vmul.f32 %v6637, %v6749
      %v6757 = vmul.f32 %v6642, %v6749
      %v6758 = vmul.f32 %v6645, %v6749
      %v6759 = vmul.f32 %v6650, %v6749
      %v6760 = vmul.f32 %v6653, %v6749
      %v6761 = vmul.f32 %v6658, %v6749
      %v6762 = vmul.f32 %v6661, %v6749
      %v6763 = vmul.f32 %v6666, %v6749
      %v6764 = vmul.f32 %v6669, %v6749
      %v6765 = vmul.f32 %v6674, %v6749
      %v6766 = vmul.f32 %v6677, %v6749
      %v6767 = vmul.f32 %v6682, %v6749
      %v6768 = vmul.f32 %v6685, %v6749
      %v6769 = vmul.f32 %v6690, %v6749
      %v6770 = vmul.f32 %v6693, %v6749
      %v6771 = vmul.f32 %v6698, %v6749
      %v6772 = vmul.f32 %v6701, %v6749
      %v6773 = vmul.f32 %v6706, %v6749
      %v6774 = vmul.f32 %v6709, %v6749
      %v6775 = vmul.f32 %v6714, %v6749
      %v6776 = vmul.f32 %v6717, %v6749
      %v6777 = vmul.f32 %v6722, %v6749
      %v6778 = vmul.f32 %v6725, %v6749
      %v6779 = vmul.f32 %v6730, %v6749
      %v6780 = vmul.f32 %v6733, %v6749
      %v6781 = vmul.f32 %v6738, %v6749
      %v6782 = vmul.f32 %v6741, %v6749
      %v6783 = vadd.f32 %v4742, %v6751
      %v6784 = vadd.f32 %v4743, %v6752
      %v6785 = vadd.f32 %v4744, %v6753
      %v6786 = vadd.f32 %v4745, %v6754
      %v6787 = vadd.f32 %v4746, %v6755
      %v6788 = vadd.f32 %v4747, %v6756
      %v6789 = vadd.f32 %v4748, %v6757
      %v6790 = vadd.f32 %v4749, %v6758
      %v6791 = vadd.f32 %v4750, %v6759
      %v6792 = vadd.f32 %v4751, %v6760
      %v6793 = vadd.f32 %v4752, %v6761
      %v6794 = vadd.f32 %v4753, %v6762
      %v6795 = vadd.f32 %v4754, %v6763
      %v6796 = vadd.f32 %v4755, %v6764
      %v6797 = vadd.f32 %v4756, %v6765
      %v6798 = vadd.f32 %v4757, %v6766
      %v6799 = vadd.f32 %v4758, %v6767
      %v6800 = vadd.f32 %v4759, %v6768
      %v6801 = vadd.f32 %v4760, %v6769
      %v6802 = vadd.f32 %v4761, %v6770
      %v6803 = vadd.f32 %v4762, %v6771
      %v6804 = vadd.f32 %v4763, %v6772
      %v6805 = vadd.f32 %v4764, %v6773
      %v6806 = vadd.f32 %v4765, %v6774
      %v6807 = vadd.f32 %v4766, %v6775
      %v6808 = vadd.f32 %v4767, %v6776
      %v6809 = vadd.f32 %v4768, %v6777
      %v6810 = vadd.f32 %v4769, %v6778
      %v6811 = vadd.f32 %v4770, %v6779
      %v6812 = vadd.f32 %v4771, %v6780
      %v6813 = vadd.f32 %v4772, %v6781
      %v6814 = vadd.f32 %v4773, %v6782
      %6815 = vst.msk [vmem:[%s791] sm:$0xff] %vm827, %v6783
      %6816 = vst.msk [vmem:[%s791 + $0x8] sm:$0xff] %vm827, %v6784
      %6817 = vst.msk [vmem:[%s791 + $0x10] sm:$0xff] %vm827, %v6785
      %6818 = vst.msk [vmem:[%s791 + $0x18] sm:$0xff] %vm827, %v6786
      %6819 = vst.msk [vmem:[%s791 + $0x20] sm:$0xff] %vm827, %v6787
      %6820 = vst.msk [vmem:[%s791 + $0x28] sm:$0xff] %vm827, %v6788
      %6821 = vst.msk [vmem:[%s791 + $0x30] sm:$0xff] %vm827, %v6789
      %6822 = vst.msk [vmem:[%s791 + $0x38] sm:$0xff] %vm827, %v6790
      %6823 = vst.msk [vmem:[%s791 + $0x40] sm:$0xff] %vm827, %v6791
      %6824 = vst.msk [vmem:[%s791 + $0x48] sm:$0xff] %vm827, %v6792
      %6825 = vst.msk [vmem:[%s791 + $0x50] sm:$0xff] %vm827, %v6793
      %6826 = vst.msk [vmem:[%s791 + $0x58] sm:$0xff] %vm827, %v6794
      %6827 = vst.msk [vmem:[%s791 + $0x60] sm:$0xff] %vm827, %v6795
      %6828 = vst.msk [vmem:[%s791 + $0x68] sm:$0xff] %vm827, %v6796
      %6829 = vst.msk [vmem:[%s791 + $0x70] sm:$0xff] %vm827, %v6797
      %6830 = vst.msk [vmem:[%s791 + $0x78] sm:$0xff] %vm827, %v6798
      %6831 = vst.msk [vmem:[%s791 + $0x80] sm:$0xff] %vm827, %v6799
      %6832 = vst.msk [vmem:[%s791 + $0x88] sm:$0xff] %vm827, %v6800
      %6833 = vst.msk [vmem:[%s791 + $0x90] sm:$0xff] %vm827, %v6801
      %6834 = vst.msk [vmem:[%s791 + $0x98] sm:$0xff] %vm827, %v6802
      %6835 = vst.msk [vmem:[%s791 + $0xa0] sm:$0xff] %vm827, %v6803
      %6836 = vst.msk [vmem:[%s791 + $0xa8] sm:$0xff] %vm827, %v6804
      %6837 = vst.msk [vmem:[%s791 + $0xb0] sm:$0xff] %vm827, %v6805
      %6838 = vst.msk [vmem:[%s791 + $0xb8] sm:$0xff] %vm827, %v6806
      %6839 = vst.msk [vmem:[%s791 + $0xc0] sm:$0xff] %vm827, %v6807
      %6840 = vst.msk [vmem:[%s791 + $0xc8] sm:$0xff] %vm827, %v6808
      %6841 = vst.msk [vmem:[%s791 + $0xd0] sm:$0xff] %vm827, %v6809
      %6842 = vst.msk [vmem:[%s791 + $0xd8] sm:$0xff] %vm827, %v6810
      %6843 = vst.msk [vmem:[%s791 + $0xe0] sm:$0xff] %vm827, %v6811
      %6844 = vst.msk [vmem:[%s791 + $0xe8] sm:$0xff] %vm827, %v6812
      %6845 = vst.msk [vmem:[%s791 + $0xf0] sm:$0xff] %vm827, %v6813
      %6846 = vst.msk [vmem:[%s791 + $0xf8] sm:$0xff] %vm827, %v6814
      %p6847 = scmp.lt.s32.totalorder %s37, 1
      %s6848 = scalar_select %p6847, %s37, 1
      %s6849 = smul.addr %s6848, 32
      %s6850 = smul.addr %s6849, 8
      %s6851 = scalar_lea.vmem %s26, %s6850
      // Predicated region
      $region125: #{tpu_custom_call.1} parent=123 // pred_check
        %p6852 = pneg %p606
      $region126: #{tpu_custom_call.1} parent=123 // pred_check_branch
        %6854 = sbr.rel (%p6852) target = $region128
      $region127: #{tpu_custom_call.1} parent=123 // pred_region
        _
      $region128: #{tpu_custom_call.1} parent=123 // pred_fallthru
        _
    $region124: #{tpu_custom_call.1} parent=5 // pred_fallthru
      _
    %p6855 = scmp.le.s32.totalorder 2, %s32
    // Predicated region
    $region129: #{tpu_custom_call.1} parent=5 // pred_check
      %p6856 = pneg %p6855
    $region130: #{tpu_custom_call.1} parent=5 // pred_check_branch
      %6858 = sbr.rel (%p6856) target = $region132
    $region131: #{tpu_custom_call.1} parent=5 // pred_region
      %s6859 = ssub.s32 %s32, 2
      // Predicated region
      $region133: #{tpu_custom_call.1} parent=131 // pred_check
        %p6860 = pneg %p612
      $region134: #{tpu_custom_call.1} parent=131 // pred_check_branch
        %6862 = sbr.rel (%p6860) target = $region136
      $region135: #{tpu_custom_call.1} parent=131 // pred_region
        %p6863 = scmp.lt.s32.totalorder %s38, 1
        %s6864 = scalar_select %p6863, %s38, 1
        %s6865 = smul.addr %s6864, 32
        %s6866 = smul.addr %s6865, 8
        %s6867 = scalar_lea.vmem %s26, %s6866
      $region136: #{tpu_custom_call.1} parent=131 // pred_fallthru
        _
    $region132: #{tpu_custom_call.1} parent=5 // pred_fallthru
      _
  $region6: #{tpu_custom_call.1} parent=0 // loop_footer
    %s36 = sadd.s32 1, %s32
  $region7: #{tpu_custom_call.1} parent=0 // loop_footer_branch
    %31 = sbr.rel target = $region3
  $region8: #{tpu_custom_call.1} parent=0 // loop_exit
    _

</llo_original>
